<compile_context>
chip_gen: v7x
topology: tpu7x:2x2x1
jax: 0.10.0
libtpu: 0.0.40
codegen_flags: <defaults>
</compile_context>

<pallas_src>
import jax
import jax.numpy as jnp
import numpy as np
from jax.experimental import pallas as pl
from jax.experimental.pallas import tpu as pltpu


_COUT_PAD = 128  # lane-dense width of the final HBM store


def _round_up(x, m):
    return (x + m - 1) // m * m


def _fold_bn(w_oihw, conv_b, gamma, beta, mean, var, eps):
    """Fold inference-mode BatchNorm into the conv weights / bias (f32)."""
    inv = (gamma / jnp.sqrt(var + eps)).astype(jnp.float32)           # (Cout,)
    w_f = w_oihw.astype(jnp.float32) * inv[:, None, None, None]       # scale -> W
    bias = ((conv_b - mean) * inv + beta).astype(jnp.float32)         # shift -> b
    return w_f, bias


def _make_fused_kernel(H, W, base, c1, c2):
    """Fused 3-layer kernel; one whole image per grid step."""
    Wp = W + 2
    M = H * Wp                     # rows computed per layer (padded-width frame)
    store_off = base + Wp + 1      # sublane-tile aligned by construction of `base`

    def kernel(patches_ref, w1_ref, w2_ref, w3_ref, b_ref, mask_ref,
               o_ref, s1_ref, s2_ref):
        # Halo + guard rows of the padded-frame scratches must be zero (the
        # interior is fully overwritten below).  Scratch persists across grid
        # steps, so re-zero per image; this is a few KiB of VMEM stores.
        s1_ref[...] = jnp.zeros_like(s1_ref)
        s2_ref[...] = jnp.zeros_like(s2_ref)

        # 1.0 on real output columns (xw < W), 0.0 on the 2 wrapped columns per
        # spatial row; those wrapped positions are exactly the next layer's
        # halo columns, so masking doubles as halo zeroing.
        mask = mask_ref[...]                                       # (M, 1) f32

        # ---- layer 1: single K=9*Cin matmul over glue-built im2col patches --
        z1 = jnp.dot(patches_ref[...], w1_ref[...],
                     preferred_element_type=jnp.float32)           # (M, c1) f32
        y1 = jnp.maximum(z1 + b_ref[0:1, 0:c1], 0.0) * mask
        s1_ref[pl.ds(store_off, M), :] = y1.astype(s1_ref.dtype)   # aligned store

        # ---- layer 2: 9 contiguous flat-offset taps, tight dot-accumulate ---
        acc2 = jnp.zeros((M, c2), jnp.float32)
        for t in range(9):
            ky, kx = divmod(t, 3)
            tap = s1_ref[pl.ds(base + ky * Wp + kx, M), :]         # (M, c1) bf16
            acc2 = acc2 + jnp.dot(tap, w2_ref[t],
                                  preferred_element_type=jnp.float32)
        y2 = jnp.maximum(acc2 + b_ref[1:2, 0:c2], 0.0) * mask
        s2_ref[pl.ds(store_off, M), :] = y2.astype(s2_ref.dtype)

        # ---- layer 3: same taps, straight to the lane-dense HBM output ------
        acc3 = jnp.zeros((M, _COUT_PAD), jnp.float32)
        for t in range(9):
            ky, kx = divmod(t, 3)
            tap = s2_ref[pl.ds(base + ky * Wp + kx, M), :]         # (M, c2) bf16
            acc3 = acc3 + jnp.dot(tap, w3_ref[t],
                                  preferred_element_type=jnp.float32)
        # Wrapped columns / padded output lanes are stripped by the caller.
        o_ref[...] = jnp.maximum(acc3 + b_ref[2:3, :], 0.0).astype(o_ref.dtype)

    return kernel


def model_viz_forward(x_nchw, params, eps=1e-5):
    """modelViz forward (inference-mode BN).  x: (N, 3, H, W) -> (N, 10, H, W)."""
    assert len(params) == 3
    N, cin, H, W = x_nchw.shape
    Wp = W + 2
    M = H * Wp

    (w1f, b1), (w2f, b2), (w3f, b3) = (
        _fold_bn(p["w"], p["b"], p["gamma"], p["beta"], p["mean"], p["var"], eps)
        for p in params)
    c1, c2, c3 = w1f.shape[0], w2f.shape[0], w3f.shape[0]
    assert w1f.shape[1] == cin and w2f.shape[1] == c1 and w3f.shape[1] == c2
    assert c3 <= _COUT_PAD

    # ---- layer-1 weights: tap-major (9*Cin, c1) matrix, K padded 27 -> 32 ---
    k1 = 9 * cin
    k1p = _round_up(k1, 8)
    w1_mat = jnp.transpose(w1f, (2, 3, 1, 0)).reshape(k1, c1)
    w1_mat = jnp.pad(w1_mat, ((0, k1p - k1), (0, 0))).astype(jnp.bfloat16)

    # ---- layers 2/3: tap-major weights at TRUE input channel widths; only
    #      the final layer pads Cout to 128 so the HBM store is lane-dense.
    w2_taps = jnp.transpose(w2f, (2, 3, 1, 0)).reshape(9, c1, c2).astype(jnp.bfloat16)
    w3_taps = jnp.transpose(w3f, (2, 3, 1, 0)).reshape(9, c2, c3)
    w3_taps = jnp.pad(w3_taps,
                      ((0, 0), (0, 0), (0, _COUT_PAD - c3))).astype(jnp.bfloat16)

    # ---- folded biases packed in a single (3, 128) f32 operand --------------
    b_pack = jnp.zeros((3, _COUT_PAD), jnp.float32)
    b_pack = b_pack.at[0, :c1].set(b1).at[1, :c2].set(b2).at[2, :c3].set(b3)

    # ---- glue im2col for layer 1 ONLY (tiny: N*M*32 bf16), built in the same
    #      padded-width frame the in-kernel layers use.
    x_nhwc = jnp.transpose(x_nchw, (0, 2, 3, 1)).astype(jnp.bfloat16)
    xp = jnp.pad(x_nhwc, ((0, 0), (1, 1), (1, 3), (0, 0)))
    taps = [xp[:, ky:ky + H, kx:kx + Wp, :] for ky in range(3) for kx in range(3)]
    patches = jnp.stack(taps, axis=3).reshape(N, M, k1)
    patches = jnp.pad(patches, ((0, 0), (0, 0), (0, k1p - k1)))

    # ---- column-validity mask for the padded-width frame (host constant) ----
    colmask = jnp.asarray(
        (np.arange(M) % Wp < W).astype(np.float32).reshape(M, 1))

    # ---- scratch geometry: `base` makes the per-layer scratch store land on a
    #      full bf16 sublane tile; tap reads absorb the unavoidable +-1 column
    #      offsets.  Guard rows keep the largest tap read in bounds.
    base = (-(Wp + 1)) % 16
    ms = _round_up(base + 2 * Wp + 2 + M, 8)

    kernel = _make_fused_kernel(H, W, base, c1, c2)
    vmem_const = lambda: pl.BlockSpec(memory_space=pltpu.MemorySpace.VMEM)

    out = pl.pallas_call(
        kernel,
        out_shape=jax.ShapeDtypeStruct((N, M, _COUT_PAD), jnp.float32),
        grid_spec=pltpu.PrefetchScalarGridSpec(
            num_scalar_prefetch=0,
            grid=(N,),                                   # one image per grid step
            in_specs=[
                pl.BlockSpec((None, M, k1p), lambda n: (n, 0, 0)),   # patches
                vmem_const(),                                        # w1 (32, c1)
                vmem_const(),                                        # w2 (9, c1, c2)
                vmem_const(),                                        # w3 (9, c2, 128)
                vmem_const(),                                        # biases (3, 128)
                vmem_const(),                                        # column mask
            ],
            out_specs=pl.BlockSpec((None, M, _COUT_PAD), lambda n: (n, 0, 0)),
            scratch_shapes=[
                pltpu.VMEM((ms, c1), jnp.bfloat16),   # layer-1 act, padded frame
                pltpu.VMEM((ms, c2), jnp.bfloat16),   # layer-2 act, padded frame
            ],
        ),
        compiler_params=pltpu.CompilerParams(
            dimension_semantics=("parallel",)),
    )(patches, w1_mat, w2_taps, w3_taps, b_pack, colmask)

    # Strip the 2 wrapped columns per row + padded output lanes, back to NCHW.
    out = out.reshape(N, H, Wp, _COUT_PAD)[:, :, :W, :c3]
    return jnp.transpose(out, (0, 3, 1, 2))


def model_viz_reference(x_nchw, params, eps=1e-5):
    """Pure-JAX (XLA) f32 reference for correctness checking."""
    x = jnp.transpose(x_nchw, (0, 2, 3, 1)).astype(jnp.float32)
    for p in params:
        z = jax.lax.conv_general_dilated(
            x, p["w"].astype(jnp.float32), window_strides=(1, 1), padding="SAME",
            dimension_numbers=("NHWC", "OIHW", "NHWC"))
        z = z + p["b"][None, None, None, :]
        inv = p["gamma"] / jnp.sqrt(p["var"] + eps)
        z = (z - p["mean"]) * inv + p["beta"]
        x = jnp.maximum(z, 0.0)
    return jnp.transpose(x, (0, 3, 1, 2))


def init_params(key):
    """Deterministic synthetic parameters matching modelViz.__init__ shapes."""
    layer_dims = [(3, 16), (16, 64), (64, 10)]
    params = []
    for li, (cin, cout) in enumerate(layer_dims):
        ks = jax.random.split(jax.random.fold_in(key, li), 6)
        params.append(dict(
            w=0.1 * jax.random.normal(ks[0], (cout, cin, 3, 3), jnp.float32),
            b=0.05 * jax.random.normal(ks[1], (cout,), jnp.float32),
            gamma=1.0 + 0.1 * jax.random.normal(ks[2], (cout,), jnp.float32),
            beta=0.05 * jax.random.normal(ks[3], (cout,), jnp.float32),
            mean=0.05 * jax.random.normal(ks[4], (cout,), jnp.float32),
            var=1.0 + 0.1 * jnp.abs(jax.random.normal(ks[5], (cout,), jnp.float32)),
        ))
    return params


if __name__ == "__main__":
    key = jax.random.PRNGKey(0)
    k_x, k_p = jax.random.split(key)

    # Small example consistent with the module: batch=2, 3 input channels, 16x16.
    x = jax.random.normal(k_x, (2, 3, 16, 16), jnp.float32)
    params = init_params(k_p)

    y = jax.jit(model_viz_forward)(x, params)
    jax.block_until_ready(y)

    assert y.shape == (2, 10, 16, 16), y.shape
    assert bool(jnp.all(y >= 0.0))                 # ReLU output

    # Numerical check vs an XLA f32 reference (relaxed tolerance: bf16
    # activations / weights, f32 accumulation).
    y_ref = model_viz_reference(x, params)
    assert bool(jnp.allclose(y, y_ref, rtol=1e-1, atol=5e-2)), \
        float(jnp.max(jnp.abs(y - y_ref)))

    print("KERNEL_OK")
</pallas_src>

<mosaic_0001>
module attributes {stable_mosaic.version = 11 : i64} {
  func.func @kernel(%arg0: i32, %arg1: memref<1x288x32xbf16, #tpu.memory_space<vmem>>, %arg2: memref<32x16xbf16, #tpu.memory_space<vmem>>, %arg3: memref<9x16x64xbf16, #tpu.memory_space<vmem>>, %arg4: memref<9x64x128xbf16, #tpu.memory_space<vmem>>, %arg5: memref<3x128xf32, #tpu.memory_space<vmem>>, %arg6: memref<288x1xf32, #tpu.memory_space<vmem>>, %arg7: memref<1x288x128xf32, #tpu.memory_space<vmem>>, %arg8: memref<344x16xbf16, #tpu.memory_space<vmem>>, %arg9: memref<344x64xbf16, #tpu.memory_space<vmem>>) attributes {dimension_semantics = [#tpu.dimension_semantics<parallel>], iteration_bounds = array<i64: 2>, scalar_prefetch = 0 : i64, scratch_operands = 2 : i64, tpu.core_type = #tpu.core_type<tc>, window_params = [{transform_indices = @transform_0, window_bounds = array<i64: 1, 288, 32>}, {pipeline_mode = #tpu.pipeline_mode<synchronous>, transform_indices = @transform_1, window_bounds = array<i64: 32, 16>}, {pipeline_mode = #tpu.pipeline_mode<synchronous>, transform_indices = @transform_2, window_bounds = array<i64: 9, 16, 64>}, {pipeline_mode = #tpu.pipeline_mode<synchronous>, transform_indices = @transform_3, window_bounds = array<i64: 9, 64, 128>}, {pipeline_mode = #tpu.pipeline_mode<synchronous>, transform_indices = @transform_4, window_bounds = array<i64: 3, 128>}, {pipeline_mode = #tpu.pipeline_mode<synchronous>, transform_indices = @transform_5, window_bounds = array<i64: 288, 1>}, {transform_indices = @transform_6, window_bounds = array<i64: 1, 288, 128>}]} {
    %cst = arith.constant 0.000000e+00 : bf16
    %0 = vector.broadcast %cst : bf16 to vector<344x16xbf16>
    %c0 = arith.constant 0 : index
    %c0_0 = arith.constant 0 : index
    %1 = vector.load %arg8[%c0, %c0_0] : memref<344x16xbf16, #tpu.memory_space<vmem>>, vector<344x16xbf16>
    tpu.vector_store %arg8[%c0, %c0_0], %0 {strides = array<i32>} : memref<344x16xbf16, #tpu.memory_space<vmem>>, vector<344x16xbf16>,
    %cst_1 = arith.constant 0.000000e+00 : bf16
    %2 = vector.broadcast %cst_1 : bf16 to vector<344x64xbf16>
    %c0_2 = arith.constant 0 : index
    %c0_3 = arith.constant 0 : index
    %3 = vector.load %arg9[%c0_2, %c0_3] : memref<344x64xbf16, #tpu.memory_space<vmem>>, vector<344x64xbf16>
    tpu.vector_store %arg9[%c0_2, %c0_3], %2 {strides = array<i32>} : memref<344x64xbf16, #tpu.memory_space<vmem>>, vector<344x64xbf16>,
    %c0_4 = arith.constant 0 : index
    %c0_5 = arith.constant 0 : index
    %4 = vector.load %arg6[%c0_4, %c0_5] : memref<288x1xf32, #tpu.memory_space<vmem>>, vector<288x1xf32>
    %c0_6 = arith.constant 0 : index
    %c0_7 = arith.constant 0 : index
    %c0_8 = arith.constant 0 : index
    %5 = vector.load %arg1[%c0_6, %c0_7, %c0_8] : memref<1x288x32xbf16, #tpu.memory_space<vmem>>, vector<1x288x32xbf16>
    %6 = vector.shape_cast %5 : vector<1x288x32xbf16> to vector<288x32xbf16>
    %c0_9 = arith.constant 0 : index
    %c0_10 = arith.constant 0 : index
    %7 = vector.load %arg2[%c0_9, %c0_10] : memref<32x16xbf16, #tpu.memory_space<vmem>>, vector<32x16xbf16>
    %cst_11 = arith.constant dense<0.000000e+00> : vector<288x16xf32>
    %8 = tpu.matmul %6, %7, %cst_11 {dimension_numbers = #tpu.dot_dimension_numbers<[1], [0], [0], [1], [0, 0, 1, 1], [], []>} : vector<288x32xbf16>, vector<32x16xbf16>, vector<288x16xf32> -> vector<288x16xf32>
    %c0_12 = arith.constant 0 : index
    %c0_13 = arith.constant 0 : index
    %9 = vector.load %arg5[%c0_12, %c0_13] : memref<3x128xf32, #tpu.memory_space<vmem>>, vector<1x16xf32>
    %10 = vector.broadcast %9 : vector<1x16xf32> to vector<288x16xf32>
    %11 = arith.addf %8, %10 : vector<288x16xf32>
    %cst_14 = arith.constant 0.000000e+00 : f32
    %12 = vector.broadcast %cst_14 : f32 to vector<288x16xf32>
    %13 = arith.maximumf %11, %12 : vector<288x16xf32>
    %14 = vector.broadcast %4 : vector<288x1xf32> to vector<288x16xf32>
    %15 = arith.mulf %13, %14 : vector<288x16xf32>
    %16 = arith.truncf %15 : vector<288x16xf32> to vector<288x16xbf16>
    %c32 = arith.constant 32 : index
    %c0_15 = arith.constant 0 : index
    %17 = vector.load %arg8[%c32, %c0_15] : memref<344x16xbf16, #tpu.memory_space<vmem>>, vector<288x16xbf16>
    tpu.vector_store %arg8[%c32, %c0_15], %16 {strides = array<i32>} : memref<344x16xbf16, #tpu.memory_space<vmem>>, vector<288x16xbf16>,
    %cst_16 = arith.constant 0.000000e+00 : f32
    %18 = vector.broadcast %cst_16 : f32 to vector<288x64xf32>
    %c13 = arith.constant 13 : index
    %c0_17 = arith.constant 0 : index
    %19 = vector.load %arg8[%c13, %c0_17] : memref<344x16xbf16, #tpu.memory_space<vmem>>, vector<288x16xbf16>
    %c0_18 = arith.constant 0 : index
    %c0_19 = arith.constant 0 : index
    %c0_20 = arith.constant 0 : index
    %20 = vector.load %arg3[%c0_18, %c0_19, %c0_20] : memref<9x16x64xbf16, #tpu.memory_space<vmem>>, vector<1x16x64xbf16>
    %21 = vector.shape_cast %20 : vector<1x16x64xbf16> to vector<16x64xbf16>
    %cst_21 = arith.constant dense<0.000000e+00> : vector<288x64xf32>
    %22 = tpu.matmul %19, %21, %cst_21 {dimension_numbers = #tpu.dot_dimension_numbers<[1], [0], [0], [1], [0, 0, 1, 1], [], []>} : vector<288x16xbf16>, vector<16x64xbf16>, vector<288x64xf32> -> vector<288x64xf32>
    %23 = arith.addf %18, %22 : vector<288x64xf32>
    %c14 = arith.constant 14 : index
    %c0_22 = arith.constant 0 : index
    %24 = vector.load %arg8[%c14, %c0_22] : memref<344x16xbf16, #tpu.memory_space<vmem>>, vector<288x16xbf16>
    %c1 = arith.constant 1 : index
    %c0_23 = arith.constant 0 : index
    %c0_24 = arith.constant 0 : index
    %25 = vector.load %arg3[%c1, %c0_23, %c0_24] : memref<9x16x64xbf16, #tpu.memory_space<vmem>>, vector<1x16x64xbf16>
    %26 = vector.shape_cast %25 : vector<1x16x64xbf16> to vector<16x64xbf16>
    %cst_25 = arith.constant dense<0.000000e+00> : vector<288x64xf32>
    %27 = tpu.matmul %24, %26, %cst_25 {dimension_numbers = #tpu.dot_dimension_numbers<[1], [0], [0], [1], [0, 0, 1, 1], [], []>} : vector<288x16xbf16>, vector<16x64xbf16>, vector<288x64xf32> -> vector<288x64xf32>
    %28 = arith.addf %23, %27 : vector<288x64xf32>
    %c15 = arith.constant 15 : index
    %c0_26 = arith.constant 0 : index
    %29 = vector.load %arg8[%c15, %c0_26] : memref<344x16xbf16, #tpu.memory_space<vmem>>, vector<288x16xbf16>
    %c2 = arith.constant 2 : index
    %c0_27 = arith.constant 0 : index
    %c0_28 = arith.constant 0 : index
    %30 = vector.load %arg3[%c2, %c0_27, %c0_28] : memref<9x16x64xbf16, #tpu.memory_space<vmem>>, vector<1x16x64xbf16>
    %31 = vector.shape_cast %30 : vector<1x16x64xbf16> to vector<16x64xbf16>
    %cst_29 = arith.constant dense<0.000000e+00> : vector<288x64xf32>
    %32 = tpu.matmul %29, %31, %cst_29 {dimension_numbers = #tpu.dot_dimension_numbers<[1], [0], [0], [1], [0, 0, 1, 1], [], []>} : vector<288x16xbf16>, vector<16x64xbf16>, vector<288x64xf32> -> vector<288x64xf32>
    %33 = arith.addf %28, %32 : vector<288x64xf32>
    %c31 = arith.constant 31 : index
    %c0_30 = arith.constant 0 : index
    %34 = vector.load %arg8[%c31, %c0_30] : memref<344x16xbf16, #tpu.memory_space<vmem>>, vector<288x16xbf16>
    %c3 = arith.constant 3 : index
    %c0_31 = arith.constant 0 : index
    %c0_32 = arith.constant 0 : index
    %35 = vector.load %arg3[%c3, %c0_31, %c0_32] : memref<9x16x64xbf16, #tpu.memory_space<vmem>>, vector<1x16x64xbf16>
    %36 = vector.shape_cast %35 : vector<1x16x64xbf16> to vector<16x64xbf16>
    %cst_33 = arith.constant dense<0.000000e+00> : vector<288x64xf32>
    %37 = tpu.matmul %34, %36, %cst_33 {dimension_numbers = #tpu.dot_dimension_numbers<[1], [0], [0], [1], [0, 0, 1, 1], [], []>} : vector<288x16xbf16>, vector<16x64xbf16>, vector<288x64xf32> -> vector<288x64xf32>
    %38 = arith.addf %33, %37 : vector<288x64xf32>
    %c32_34 = arith.constant 32 : index
    %c0_35 = arith.constant 0 : index
    %39 = vector.load %arg8[%c32_34, %c0_35] : memref<344x16xbf16, #tpu.memory_space<vmem>>, vector<288x16xbf16>
    %c4 = arith.constant 4 : index
    %c0_36 = arith.constant 0 : index
    %c0_37 = arith.constant 0 : index
    %40 = vector.load %arg3[%c4, %c0_36, %c0_37] : memref<9x16x64xbf16, #tpu.memory_space<vmem>>, vector<1x16x64xbf16>
    %41 = vector.shape_cast %40 : vector<1x16x64xbf16> to vector<16x64xbf16>
    %cst_38 = arith.constant dense<0.000000e+00> : vector<288x64xf32>
    %42 = tpu.matmul %39, %41, %cst_38 {dimension_numbers = #tpu.dot_dimension_numbers<[1], [0], [0], [1], [0, 0, 1, 1], [], []>} : vector<288x16xbf16>, vector<16x64xbf16>, vector<288x64xf32> -> vector<288x64xf32>
    %43 = arith.addf %38, %42 : vector<288x64xf32>
    %c33 = arith.constant 33 : index
    %c0_39 = arith.constant 0 : index
    %44 = vector.load %arg8[%c33, %c0_39] : memref<344x16xbf16, #tpu.memory_space<vmem>>, vector<288x16xbf16>
    %c5 = arith.constant 5 : index
    %c0_40 = arith.constant 0 : index
    %c0_41 = arith.constant 0 : index
    %45 = vector.load %arg3[%c5, %c0_40, %c0_41] : memref<9x16x64xbf16, #tpu.memory_space<vmem>>, vector<1x16x64xbf16>
    %46 = vector.shape_cast %45 : vector<1x16x64xbf16> to vector<16x64xbf16>
    %cst_42 = arith.constant dense<0.000000e+00> : vector<288x64xf32>
    %47 = tpu.matmul %44, %46, %cst_42 {dimension_numbers = #tpu.dot_dimension_numbers<[1], [0], [0], [1], [0, 0, 1, 1], [], []>} : vector<288x16xbf16>, vector<16x64xbf16>, vector<288x64xf32> -> vector<288x64xf32>
    %48 = arith.addf %43, %47 : vector<288x64xf32>
    %c49 = arith.constant 49 : index
    %c0_43 = arith.constant 0 : index
    %49 = vector.load %arg8[%c49, %c0_43] : memref<344x16xbf16, #tpu.memory_space<vmem>>, vector<288x16xbf16>
    %c6 = arith.constant 6 : index
    %c0_44 = arith.constant 0 : index
    %c0_45 = arith.constant 0 : index
    %50 = vector.load %arg3[%c6, %c0_44, %c0_45] : memref<9x16x64xbf16, #tpu.memory_space<vmem>>, vector<1x16x64xbf16>
    %51 = vector.shape_cast %50 : vector<1x16x64xbf16> to vector<16x64xbf16>
    %cst_46 = arith.constant dense<0.000000e+00> : vector<288x64xf32>
    %52 = tpu.matmul %49, %51, %cst_46 {dimension_numbers = #tpu.dot_dimension_numbers<[1], [0], [0], [1], [0, 0, 1, 1], [], []>} : vector<288x16xbf16>, vector<16x64xbf16>, vector<288x64xf32> -> vector<288x64xf32>
    %53 = arith.addf %48, %52 : vector<288x64xf32>
    %c50 = arith.constant 50 : index
    %c0_47 = arith.constant 0 : index
    %54 = vector.load %arg8[%c50, %c0_47] : memref<344x16xbf16, #tpu.memory_space<vmem>>, vector<288x16xbf16>
    %c7 = arith.constant 7 : index
    %c0_48 = arith.constant 0 : index
    %c0_49 = arith.constant 0 : index
    %55 = vector.load %arg3[%c7, %c0_48, %c0_49] : memref<9x16x64xbf16, #tpu.memory_space<vmem>>, vector<1x16x64xbf16>
    %56 = vector.shape_cast %55 : vector<1x16x64xbf16> to vector<16x64xbf16>
    %cst_50 = arith.constant dense<0.000000e+00> : vector<288x64xf32>
    %57 = tpu.matmul %54, %56, %cst_50 {dimension_numbers = #tpu.dot_dimension_numbers<[1], [0], [0], [1], [0, 0, 1, 1], [], []>} : vector<288x16xbf16>, vector<16x64xbf16>, vector<288x64xf32> -> vector<288x64xf32>
    %58 = arith.addf %53, %57 : vector<288x64xf32>
    %c51 = arith.constant 51 : index
    %c0_51 = arith.constant 0 : index
    %59 = vector.load %arg8[%c51, %c0_51] : memref<344x16xbf16, #tpu.memory_space<vmem>>, vector<288x16xbf16>
    %c8 = arith.constant 8 : index
    %c0_52 = arith.constant 0 : index
    %c0_53 = arith.constant 0 : index
    %60 = vector.load %arg3[%c8, %c0_52, %c0_53] : memref<9x16x64xbf16, #tpu.memory_space<vmem>>, vector<1x16x64xbf16>
    %61 = vector.shape_cast %60 : vector<1x16x64xbf16> to vector<16x64xbf16>
    %cst_54 = arith.constant dense<0.000000e+00> : vector<288x64xf32>
    %62 = tpu.matmul %59, %61, %cst_54 {dimension_numbers = #tpu.dot_dimension_numbers<[1], [0], [0], [1], [0, 0, 1, 1], [], []>} : vector<288x16xbf16>, vector<16x64xbf16>, vector<288x64xf32> -> vector<288x64xf32>
    %63 = arith.addf %58, %62 : vector<288x64xf32>
    %c1_55 = arith.constant 1 : index
    %c0_56 = arith.constant 0 : index
    %64 = vector.load %arg5[%c1_55, %c0_56] : memref<3x128xf32, #tpu.memory_space<vmem>>, vector<1x64xf32>
    %65 = vector.broadcast %64 : vector<1x64xf32> to vector<288x64xf32>
    %66 = arith.addf %63, %65 : vector<288x64xf32>
    %cst_57 = arith.constant 0.000000e+00 : f32
    %67 = vector.broadcast %cst_57 : f32 to vector<288x64xf32>
    %68 = arith.maximumf %66, %67 : vector<288x64xf32>
    %69 = vector.broadcast %4 : vector<288x1xf32> to vector<288x64xf32>
    %70 = arith.mulf %68, %69 : vector<288x64xf32>
    %71 = arith.truncf %70 : vector<288x64xf32> to vector<288x64xbf16>
    %c32_58 = arith.constant 32 : index
    %c0_59 = arith.constant 0 : index
    %72 = vector.load %arg9[%c32_58, %c0_59] : memref<344x64xbf16, #tpu.memory_space<vmem>>, vector<288x64xbf16>
    tpu.vector_store %arg9[%c32_58, %c0_59], %71 {strides = array<i32>} : memref<344x64xbf16, #tpu.memory_space<vmem>>, vector<288x64xbf16>,
    %cst_60 = arith.constant 0.000000e+00 : f32
    %73 = vector.broadcast %cst_60 : f32 to vector<288x128xf32>
    %c13_61 = arith.constant 13 : index
    %c0_62 = arith.constant 0 : index
    %74 = vector.load %arg9[%c13_61, %c0_62] : memref<344x64xbf16, #tpu.memory_space<vmem>>, vector<288x64xbf16>
    %c0_63 = arith.constant 0 : index
    %c0_64 = arith.constant 0 : index
    %c0_65 = arith.constant 0 : index
    %75 = vector.load %arg4[%c0_63, %c0_64, %c0_65] : memref<9x64x128xbf16, #tpu.memory_space<vmem>>, vector<1x64x128xbf16>
    %76 = vector.shape_cast %75 : vector<1x64x128xbf16> to vector<64x128xbf16>
    %cst_66 = arith.constant dense<0.000000e+00> : vector<288x128xf32>
    %77 = tpu.matmul %74, %76, %cst_66 {dimension_numbers = #tpu.dot_dimension_numbers<[1], [0], [0], [1], [0, 0, 1, 1], [], []>} : vector<288x64xbf16>, vector<64x128xbf16>, vector<288x128xf32> -> vector<288x128xf32>
    %78 = arith.addf %73, %77 : vector<288x128xf32>
    %c14_67 = arith.constant 14 : index
    %c0_68 = arith.constant 0 : index
    %79 = vector.load %arg9[%c14_67, %c0_68] : memref<344x64xbf16, #tpu.memory_space<vmem>>, vector<288x64xbf16>
    %c1_69 = arith.constant 1 : index
    %c0_70 = arith.constant 0 : index
    %c0_71 = arith.constant 0 : index
    %80 = vector.load %arg4[%c1_69, %c0_70, %c0_71] : memref<9x64x128xbf16, #tpu.memory_space<vmem>>, vector<1x64x128xbf16>
    %81 = vector.shape_cast %80 : vector<1x64x128xbf16> to vector<64x128xbf16>
    %cst_72 = arith.constant dense<0.000000e+00> : vector<288x128xf32>
    %82 = tpu.matmul %79, %81, %cst_72 {dimension_numbers = #tpu.dot_dimension_numbers<[1], [0], [0], [1], [0, 0, 1, 1], [], []>} : vector<288x64xbf16>, vector<64x128xbf16>, vector<288x128xf32> -> vector<288x128xf32>
    %83 = arith.addf %78, %82 : vector<288x128xf32>
    %c15_73 = arith.constant 15 : index
    %c0_74 = arith.constant 0 : index
    %84 = vector.load %arg9[%c15_73, %c0_74] : memref<344x64xbf16, #tpu.memory_space<vmem>>, vector<288x64xbf16>
    %c2_75 = arith.constant 2 : index
    %c0_76 = arith.constant 0 : index
    %c0_77 = arith.constant 0 : index
    %85 = vector.load %arg4[%c2_75, %c0_76, %c0_77] : memref<9x64x128xbf16, #tpu.memory_space<vmem>>, vector<1x64x128xbf16>
    %86 = vector.shape_cast %85 : vector<1x64x128xbf16> to vector<64x128xbf16>
    %cst_78 = arith.constant dense<0.000000e+00> : vector<288x128xf32>
    %87 = tpu.matmul %84, %86, %cst_78 {dimension_numbers = #tpu.dot_dimension_numbers<[1], [0], [0], [1], [0, 0, 1, 1], [], []>} : vector<288x64xbf16>, vector<64x128xbf16>, vector<288x128xf32> -> vector<288x128xf32>
    %88 = arith.addf %83, %87 : vector<288x128xf32>
    %c31_79 = arith.constant 31 : index
    %c0_80 = arith.constant 0 : index
    %89 = vector.load %arg9[%c31_79, %c0_80] : memref<344x64xbf16, #tpu.memory_space<vmem>>, vector<288x64xbf16>
    %c3_81 = arith.constant 3 : index
    %c0_82 = arith.constant 0 : index
    %c0_83 = arith.constant 0 : index
    %90 = vector.load %arg4[%c3_81, %c0_82, %c0_83] : memref<9x64x128xbf16, #tpu.memory_space<vmem>>, vector<1x64x128xbf16>
    %91 = vector.shape_cast %90 : vector<1x64x128xbf16> to vector<64x128xbf16>
    %cst_84 = arith.constant dense<0.000000e+00> : vector<288x128xf32>
    %92 = tpu.matmul %89, %91, %cst_84 {dimension_numbers = #tpu.dot_dimension_numbers<[1], [0], [0], [1], [0, 0, 1, 1], [], []>} : vector<288x64xbf16>, vector<64x128xbf16>, vector<288x128xf32> -> vector<288x128xf32>
    %93 = arith.addf %88, %92 : vector<288x128xf32>
    %c32_85 = arith.constant 32 : index
    %c0_86 = arith.constant 0 : index
    %94 = vector.load %arg9[%c32_85, %c0_86] : memref<344x64xbf16, #tpu.memory_space<vmem>>, vector<288x64xbf16>
    %c4_87 = arith.constant 4 : index
    %c0_88 = arith.constant 0 : index
    %c0_89 = arith.constant 0 : index
    %95 = vector.load %arg4[%c4_87, %c0_88, %c0_89] : memref<9x64x128xbf16, #tpu.memory_space<vmem>>, vector<1x64x128xbf16>
    %96 = vector.shape_cast %95 : vector<1x64x128xbf16> to vector<64x128xbf16>
    %cst_90 = arith.constant dense<0.000000e+00> : vector<288x128xf32>
    %97 = tpu.matmul %94, %96, %cst_90 {dimension_numbers = #tpu.dot_dimension_numbers<[1], [0], [0], [1], [0, 0, 1, 1], [], []>} : vector<288x64xbf16>, vector<64x128xbf16>, vector<288x128xf32> -> vector<288x128xf32>
    %98 = arith.addf %93, %97 : vector<288x128xf32>
    %c33_91 = arith.constant 33 : index
    %c0_92 = arith.constant 0 : index
    %99 = vector.load %arg9[%c33_91, %c0_92] : memref<344x64xbf16, #tpu.memory_space<vmem>>, vector<288x64xbf16>
    %c5_93 = arith.constant 5 : index
    %c0_94 = arith.constant 0 : index
    %c0_95 = arith.constant 0 : index
    %100 = vector.load %arg4[%c5_93, %c0_94, %c0_95] : memref<9x64x128xbf16, #tpu.memory_space<vmem>>, vector<1x64x128xbf16>
    %101 = vector.shape_cast %100 : vector<1x64x128xbf16> to vector<64x128xbf16>
    %cst_96 = arith.constant dense<0.000000e+00> : vector<288x128xf32>
    %102 = tpu.matmul %99, %101, %cst_96 {dimension_numbers = #tpu.dot_dimension_numbers<[1], [0], [0], [1], [0, 0, 1, 1], [], []>} : vector<288x64xbf16>, vector<64x128xbf16>, vector<288x128xf32> -> vector<288x128xf32>
    %103 = arith.addf %98, %102 : vector<288x128xf32>
    %c49_97 = arith.constant 49 : index
    %c0_98 = arith.constant 0 : index
    %104 = vector.load %arg9[%c49_97, %c0_98] : memref<344x64xbf16, #tpu.memory_space<vmem>>, vector<288x64xbf16>
    %c6_99 = arith.constant 6 : index
    %c0_100 = arith.constant 0 : index
    %c0_101 = arith.constant 0 : index
    %105 = vector.load %arg4[%c6_99, %c0_100, %c0_101] : memref<9x64x128xbf16, #tpu.memory_space<vmem>>, vector<1x64x128xbf16>
    %106 = vector.shape_cast %105 : vector<1x64x128xbf16> to vector<64x128xbf16>
    %cst_102 = arith.constant dense<0.000000e+00> : vector<288x128xf32>
    %107 = tpu.matmul %104, %106, %cst_102 {dimension_numbers = #tpu.dot_dimension_numbers<[1], [0], [0], [1], [0, 0, 1, 1], [], []>} : vector<288x64xbf16>, vector<64x128xbf16>, vector<288x128xf32> -> vector<288x128xf32>
    %108 = arith.addf %103, %107 : vector<288x128xf32>
    %c50_103 = arith.constant 50 : index
    %c0_104 = arith.constant 0 : index
    %109 = vector.load %arg9[%c50_103, %c0_104] : memref<344x64xbf16, #tpu.memory_space<vmem>>, vector<288x64xbf16>
    %c7_105 = arith.constant 7 : index
    %c0_106 = arith.constant 0 : index
    %c0_107 = arith.constant 0 : index
    %110 = vector.load %arg4[%c7_105, %c0_106, %c0_107] : memref<9x64x128xbf16, #tpu.memory_space<vmem>>, vector<1x64x128xbf16>
    %111 = vector.shape_cast %110 : vector<1x64x128xbf16> to vector<64x128xbf16>
    %cst_108 = arith.constant dense<0.000000e+00> : vector<288x128xf32>
    %112 = tpu.matmul %109, %111, %cst_108 {dimension_numbers = #tpu.dot_dimension_numbers<[1], [0], [0], [1], [0, 0, 1, 1], [], []>} : vector<288x64xbf16>, vector<64x128xbf16>, vector<288x128xf32> -> vector<288x128xf32>
    %113 = arith.addf %108, %112 : vector<288x128xf32>
    %c51_109 = arith.constant 51 : index
    %c0_110 = arith.constant 0 : index
    %114 = vector.load %arg9[%c51_109, %c0_110] : memref<344x64xbf16, #tpu.memory_space<vmem>>, vector<288x64xbf16>
    %c8_111 = arith.constant 8 : index
    %c0_112 = arith.constant 0 : index
    %c0_113 = arith.constant 0 : index
    %115 = vector.load %arg4[%c8_111, %c0_112, %c0_113] : memref<9x64x128xbf16, #tpu.memory_space<vmem>>, vector<1x64x128xbf16>
    %116 = vector.shape_cast %115 : vector<1x64x128xbf16> to vector<64x128xbf16>
    %cst_114 = arith.constant dense<0.000000e+00> : vector<288x128xf32>
    %117 = tpu.matmul %114, %116, %cst_114 {dimension_numbers = #tpu.dot_dimension_numbers<[1], [0], [0], [1], [0, 0, 1, 1], [], []>} : vector<288x64xbf16>, vector<64x128xbf16>, vector<288x128xf32> -> vector<288x128xf32>
    %118 = arith.addf %113, %117 : vector<288x128xf32>
    %c2_115 = arith.constant 2 : index
    %c0_116 = arith.constant 0 : index
    %119 = vector.load %arg5[%c2_115, %c0_116] : memref<3x128xf32, #tpu.memory_space<vmem>>, vector<1x128xf32>
    %120 = vector.broadcast %119 : vector<1x128xf32> to vector<288x128xf32>
    %121 = arith.addf %118, %120 : vector<288x128xf32>
    %cst_117 = arith.constant 0.000000e+00 : f32
    %122 = vector.broadcast %cst_117 : f32 to vector<288x128xf32>
    %123 = arith.maximumf %121, %122 : vector<288x128xf32>
    %c0_118 = arith.constant 0 : index
    %c0_119 = arith.constant 0 : index
    %c0_120 = arith.constant 0 : index
    %124 = vector.load %arg7[%c0_118, %c0_119, %c0_120] : memref<1x288x128xf32, #tpu.memory_space<vmem>>, vector<1x288x128xf32>
    %125 = vector.shape_cast %124 : vector<1x288x128xf32> to vector<288x128xf32>
    %126 = vector.shape_cast %123 : vector<288x128xf32> to vector<1x288x128xf32>
    tpu.vector_store %arg7[%c0_118, %c0_119, %c0_120], %126 {strides = array<i32>} : memref<1x288x128xf32, #tpu.memory_space<vmem>>, vector<1x288x128xf32>,
    return
  }
  func.func @transform_0(%arg0: i32) -> (i32, i32, i32) {
    %c0_i32 = arith.constant 0 : i32
    %c0_i32_0 = arith.constant 0 : i32
    %c0_i32_1 = arith.constant 0 : i32
    return %arg0, %c0_i32, %c0_i32_0 : i32, i32, i32
  }
  func.func @transform_1(%arg0: i32) -> (i32, i32) {
    %c0_i32 = arith.constant 0 : i32
    %c0_i32_0 = arith.constant 0 : i32
    %c0_i32_1 = arith.constant 0 : i32
    return %c0_i32, %c0_i32_0 : i32, i32
  }
  func.func @transform_2(%arg0: i32) -> (i32, i32, i32) {
    %c0_i32 = arith.constant 0 : i32
    %c0_i32_0 = arith.constant 0 : i32
    %c0_i32_1 = arith.constant 0 : i32
    %c0_i32_2 = arith.constant 0 : i32
    return %c0_i32, %c0_i32_0, %c0_i32_1 : i32, i32, i32
  }
  func.func @transform_3(%arg0: i32) -> (i32, i32, i32) {
    %c0_i32 = arith.constant 0 : i32
    %c0_i32_0 = arith.constant 0 : i32
    %c0_i32_1 = arith.constant 0 : i32
    %c0_i32_2 = arith.constant 0 : i32
    return %c0_i32, %c0_i32_0, %c0_i32_1 : i32, i32, i32
  }
  func.func @transform_4(%arg0: i32) -> (i32, i32) {
    %c0_i32 = arith.constant 0 : i32
    %c0_i32_0 = arith.constant 0 : i32
    %c0_i32_1 = arith.constant 0 : i32
    return %c0_i32, %c0_i32_0 : i32, i32
  }
  func.func @transform_5(%arg0: i32) -> (i32, i32) {
    %c0_i32 = arith.constant 0 : i32
    %c0_i32_0 = arith.constant 0 : i32
    %c0_i32_1 = arith.constant 0 : i32
    return %c0_i32, %c0_i32_0 : i32, i32
  }
  func.func @transform_6(%arg0: i32) -> (i32, i32, i32) {
    %c0_i32 = arith.constant 0 : i32
    %c0_i32_0 = arith.constant 0 : i32
    %c0_i32_1 = arith.constant 0 : i32
    return %arg0, %c0_i32, %c0_i32_0 : i32, i32, i32
  }
}

</mosaic_0001>

<llo_original>
// kernel: model_viz_forward.1
$region0: #{model_viz_forward.1}
  #allocation0 [shape = 'u32[]', space=smem, size = 0x4, offset = 0x4, fixed_abs, tag = 'smem constant byte address 0x4 - core index']
  #allocation1 [shape = 'u32[144,128]{1,0:T(1,128)}', space=vmem, size = 0x12000, scoped, tag = 'internal scratch']
  #allocation2 [shape = 'bf16[344,16]{1,0:T(8,128)(2,1)}', space=vmem, size = 0x15800, scoped, tag = 'scratch operand']
  #allocation3 [shape = 'bf16[344,64]{1,0:T(8,128)(2,1)}', space=vmem, size = 0x15800, scoped, tag = 'scratch operand']
  %s0 = inlined_call_operand.vmem [shape: bf16[2,288,32], index: 0, kind: input, shape index: {}]
  %s1 = inlined_call_operand.vmem [shape: bf16[32,16], index: 1, kind: input, shape index: {}]
  %s2 = inlined_call_operand.vmem [shape: bf16[9,16,64], index: 2, kind: input, shape index: {}]
  %s3 = inlined_call_operand.vmem [shape: bf16[9,64,128], index: 3, kind: input, shape index: {}]
  %s4 = inlined_call_operand.vmem [shape: f32[3,128], index: 4, kind: input, shape index: {}]
  %s5 = inlined_call_operand.vmem [shape: f32[288,1], index: 5, kind: input, shape index: {}]
  %s6 = inlined_call_operand.vmem [shape: f32[2,288,128], index: 6, kind: output, shape index: {}]
  %s7 = sld [smem:[#allocation0]]
  $region57: #{model_viz_forward.1} parent=0
    _
  %s9 = ssub.s32 1, %s7
  %s10 = scalar_select 0, %s9, %s7
  loop: start=0, step=1, limit=4
  $region2: #{model_viz_forward.1} parent=0 // loop_pre_header
    _
  $region3: #{model_viz_forward.1} parent=0 // loop_header
    %s12 = sphi 0, %s16
    %p13 = scmp.ge.s32.totalorder %s12, 4
    %s22 = sphi 0, %s24
    %s25 = sphi 0, %s22
    %s26 = sphi 0, %s25
    %s42 = sphi 0, %s26
    %s46 = sphi 0, %s46
    %s48 = sphi 0, %s46
    %s49 = sphi 0, %s48
    %s63 = sphi 0, %s49
    %s67 = sphi 0, %s67
    %s69 = sphi 0, %s67
    %s70 = sphi 0, %s69
    %s84 = sphi 0, %s70
    %s88 = sphi 0, %s88
    %s90 = sphi 0, %s88
    %s91 = sphi 0, %s90
    %s105 = sphi 0, %s91
    %s109 = sphi 0, %s109
    %s111 = sphi 0, %s109
    %s112 = sphi 0, %s111
    %s126 = sphi 0, %s112
    %s130 = sphi 0, %s130
    %s132 = sphi 0, %s130
    %s133 = sphi 0, %s132
    %s147 = sphi 0, %s133
    %s153 = sphi 0, %s155
    %s156 = sphi 0, %s153
    %s157 = sphi 0, %s156
    %s173 = sphi 0, %s157
  $region4: #{model_viz_forward.1} parent=0 // loop_header_branch
    %15 = sbr.rel (%p13) target = $region8
  $region5: #{model_viz_forward.1} parent=0 // loop_body
    %s17 = ssub.s32 %s12, 1
    %s18 = ssub.s32 %s12, 2
    %s19 = sadd.s32 %s12, 1
    %s20 = ssub.s32 %s12, %s19
    %p21 = scmp.eq.s32.totalorder %s20, 0
    %s23 = sadd.s32 %s22, 1
    %s24 = scalar_select %p21, %s22, %s23
    %p27 = pneg %p21
    %p28 = scmp.eq.s32.totalorder %s12, 1
    %p29 = por %p27, %p28
    %p30 = scmp.ne.s32.totalorder %s22, %s25
    %p31 = scmp.eq.s32.totalorder %s12, 0
    %p32 = por %p30, %p31
    %p33 = scmp.ne.s32.totalorder %s22, %s25
    %p34 = scmp.eq.s32.totalorder %s17, 1
    %p35 = por %p33, %p34
    %p36 = scmp.ne.s32.totalorder %s25, %s26
    %p37 = scmp.eq.s32.totalorder %s17, 0
    %p38 = por %p36, %p37
    %p39 = scmp.ne.s32.totalorder %s25, %s26
    %p40 = scmp.eq.s32.totalorder %s18, 1
    %p41 = por %p39, %p40
    %p43 = scmp.ne.s32.totalorder %s26, %s42
    %p44 = scmp.eq.s32.totalorder %s18, 0
    %p45 = por %p43, %p44
    %s47 = sadd.s32 %s46, 1
    %p50 = scmp.eq.s32.totalorder %s12, 1
    %p51 = scmp.ne.s32.totalorder %s46, %s48
    %p52 = scmp.eq.s32.totalorder %s12, 0
    %p53 = por %p51, %p52
    %p54 = scmp.ne.s32.totalorder %s46, %s48
    %p55 = scmp.eq.s32.totalorder %s17, 1
    %p56 = por %p54, %p55
    %p57 = scmp.ne.s32.totalorder %s48, %s49
    %p58 = scmp.eq.s32.totalorder %s17, 0
    %p59 = por %p57, %p58
    %p60 = scmp.ne.s32.totalorder %s48, %s49
    %p61 = scmp.eq.s32.totalorder %s18, 1
    %p62 = por %p60, %p61
    %p64 = scmp.ne.s32.totalorder %s49, %s63
    %p65 = scmp.eq.s32.totalorder %s18, 0
    %p66 = por %p64, %p65
    %s68 = sadd.s32 %s67, 1
    %p71 = scmp.eq.s32.totalorder %s12, 1
    %p72 = scmp.ne.s32.totalorder %s67, %s69
    %p73 = scmp.eq.s32.totalorder %s12, 0
    %p74 = por %p72, %p73
    %p75 = scmp.ne.s32.totalorder %s67, %s69
    %p76 = scmp.eq.s32.totalorder %s17, 1
    %p77 = por %p75, %p76
    %p78 = scmp.ne.s32.totalorder %s69, %s70
    %p79 = scmp.eq.s32.totalorder %s17, 0
    %p80 = por %p78, %p79
    %p81 = scmp.ne.s32.totalorder %s69, %s70
    %p82 = scmp.eq.s32.totalorder %s18, 1
    %p83 = por %p81, %p82
    %p85 = scmp.ne.s32.totalorder %s70, %s84
    %p86 = scmp.eq.s32.totalorder %s18, 0
    %p87 = por %p85, %p86
    %s89 = sadd.s32 %s88, 1
    %p92 = scmp.eq.s32.totalorder %s12, 1
    %p93 = scmp.ne.s32.totalorder %s88, %s90
    %p94 = scmp.eq.s32.totalorder %s12, 0
    %p95 = por %p93, %p94
    %p96 = scmp.ne.s32.totalorder %s88, %s90
    %p97 = scmp.eq.s32.totalorder %s17, 1
    %p98 = por %p96, %p97
    %p99 = scmp.ne.s32.totalorder %s90, %s91
    %p100 = scmp.eq.s32.totalorder %s17, 0
    %p101 = por %p99, %p100
    %p102 = scmp.ne.s32.totalorder %s90, %s91
    %p103 = scmp.eq.s32.totalorder %s18, 1
    %p104 = por %p102, %p103
    %p106 = scmp.ne.s32.totalorder %s91, %s105
    %p107 = scmp.eq.s32.totalorder %s18, 0
    %p108 = por %p106, %p107
    %s110 = sadd.s32 %s109, 1
    %p113 = scmp.eq.s32.totalorder %s12, 1
    %p114 = scmp.ne.s32.totalorder %s109, %s111
    %p115 = scmp.eq.s32.totalorder %s12, 0
    %p116 = por %p114, %p115
    %p117 = scmp.ne.s32.totalorder %s109, %s111
    %p118 = scmp.eq.s32.totalorder %s17, 1
    %p119 = por %p117, %p118
    %p120 = scmp.ne.s32.totalorder %s111, %s112
    %p121 = scmp.eq.s32.totalorder %s17, 0
    %p122 = por %p120, %p121
    %p123 = scmp.ne.s32.totalorder %s111, %s112
    %p124 = scmp.eq.s32.totalorder %s18, 1
    %p125 = por %p123, %p124
    %p127 = scmp.ne.s32.totalorder %s112, %s126
    %p128 = scmp.eq.s32.totalorder %s18, 0
    %p129 = por %p127, %p128
    %s131 = sadd.s32 %s130, 1
    %p134 = scmp.eq.s32.totalorder %s12, 1
    %p135 = scmp.ne.s32.totalorder %s130, %s132
    %p136 = scmp.eq.s32.totalorder %s12, 0
    %p137 = por %p135, %p136
    %p138 = scmp.ne.s32.totalorder %s130, %s132
    %p139 = scmp.eq.s32.totalorder %s17, 1
    %p140 = por %p138, %p139
    %p141 = scmp.ne.s32.totalorder %s132, %s133
    %p142 = scmp.eq.s32.totalorder %s17, 0
    %p143 = por %p141, %p142
    %p144 = scmp.ne.s32.totalorder %s132, %s133
    %p145 = scmp.eq.s32.totalorder %s18, 1
    %p146 = por %p144, %p145
    %p148 = scmp.ne.s32.totalorder %s133, %s147
    %p149 = scmp.eq.s32.totalorder %s18, 0
    %p150 = por %p148, %p149
    %s151 = ssub.s32 %s12, %s19
    %p152 = scmp.eq.s32.totalorder %s151, 0
    %s154 = sadd.s32 %s153, 1
    %s155 = scalar_select %p152, %s153, %s154
    %p158 = pneg %p152
    %p159 = scmp.eq.s32.totalorder %s12, 1
    %p160 = por %p158, %p159
    %p161 = scmp.ne.s32.totalorder %s153, %s156
    %p162 = scmp.eq.s32.totalorder %s12, 0
    %p163 = por %p161, %p162
    %p164 = scmp.ne.s32.totalorder %s153, %s156
    %p165 = scmp.eq.s32.totalorder %s17, 1
    %p166 = por %p164, %p165
    %p167 = scmp.ne.s32.totalorder %s156, %s157
    %p168 = scmp.eq.s32.totalorder %s17, 0
    %p169 = por %p167, %p168
    %p170 = scmp.ne.s32.totalorder %s156, %s157
    %p171 = scmp.eq.s32.totalorder %s18, 1
    %p172 = por %p170, %p171
    %p174 = scmp.ne.s32.totalorder %s157, %s173
    %p175 = scmp.eq.s32.totalorder %s18, 0
    %p176 = por %p174, %p175
    %p177 = scmp.le.s32.totalorder 1, %s12
    %p178 = scmp.lt.s32.totalorder %s12, 3
    %p179 = pnand %p177, %p178
    %p180 = pneg %p179
    // Predicated region
    $region9: #{model_viz_forward.1} parent=5 // pred_check
      _
    $region10: #{model_viz_forward.1} parent=5 // pred_check_branch
      %182 = sbr.rel (%p179) target = $region12
    $region11: #{model_viz_forward.1} parent=5 // pred_region
      %s183 = ssub.s32 %s12, 1
      // Predicated region
      $region13: #{model_viz_forward.1} parent=11 // pred_check
        %p184 = pneg %p59
      $region14: #{model_viz_forward.1} parent=11 // pred_check_branch
        %186 = sbr.rel (%p184) target = $region16
      $region15: #{model_viz_forward.1} parent=11 // pred_region
        _
      $region16: #{model_viz_forward.1} parent=11 // pred_fallthru
        _
      // Predicated region
      $region17: #{model_viz_forward.1} parent=11 // pred_check
        %p187 = pneg %p80
      $region18: #{model_viz_forward.1} parent=11 // pred_check_branch
        %189 = sbr.rel (%p187) target = $region20
      $region19: #{model_viz_forward.1} parent=11 // pred_region
        _
      $region20: #{model_viz_forward.1} parent=11 // pred_fallthru
        _
      // Predicated region
      $region21: #{model_viz_forward.1} parent=11 // pred_check
        %p190 = pneg %p101
      $region22: #{model_viz_forward.1} parent=11 // pred_check_branch
        %192 = sbr.rel (%p190) target = $region24
      $region23: #{model_viz_forward.1} parent=11 // pred_region
        _
      $region24: #{model_viz_forward.1} parent=11 // pred_fallthru
        _
      // Predicated region
      $region25: #{model_viz_forward.1} parent=11 // pred_check
        %p193 = pneg %p122
      $region26: #{model_viz_forward.1} parent=11 // pred_check_branch
        %195 = sbr.rel (%p193) target = $region28
      $region27: #{model_viz_forward.1} parent=11 // pred_region
        _
      $region28: #{model_viz_forward.1} parent=11 // pred_fallthru
        _
      // Predicated region
      $region29: #{model_viz_forward.1} parent=11 // pred_check
        %p196 = pneg %p143
      $region30: #{model_viz_forward.1} parent=11 // pred_check_branch
        %198 = sbr.rel (%p196) target = $region32
      $region31: #{model_viz_forward.1} parent=11 // pred_region
        _
      $region32: #{model_viz_forward.1} parent=11 // pred_fallthru
        _
    $region12: #{model_viz_forward.1} parent=5 // pred_fallthru
      _
    %p199 = scmp.lt.s32.totalorder %s12, 2
    // Predicated region
    $region33: #{model_viz_forward.1} parent=5 // pred_check
      %p200 = pneg %p199
    $region34: #{model_viz_forward.1} parent=5 // pred_check_branch
      %202 = sbr.rel (%p200) target = $region36
    $region35: #{model_viz_forward.1} parent=5 // pred_region
      // Predicated region
      $region37: #{model_viz_forward.1} parent=35 // pred_check
        %p203 = pneg %p32
      $region38: #{model_viz_forward.1} parent=35 // pred_check_branch
        %205 = sbr.rel (%p203) target = $region40
      $region39: #{model_viz_forward.1} parent=35 // pred_region
        %p206 = scmp.lt.s32.totalorder %s12, 1
        %s207 = scalar_select %p206, %s12, 1
        %s208 = smul.addr %s207, 36
        %s209 = smul.addr %s208, 4
        %s210 = scalar_lea.vmem %s0, %s209
      $region40: #{model_viz_forward.1} parent=35 // pred_fallthru
        _
    $region36: #{model_viz_forward.1} parent=5 // pred_fallthru
      _
    %p211 = scmp.le.s32.totalorder 1, %s12
    %p212 = scmp.lt.s32.totalorder %s12, 3
    %p213 = pnand %p211, %p212
    %p214 = pneg %p213
    // Predicated region
    $region41: #{model_viz_forward.1} parent=5 // pred_check
      _
    $region42: #{model_viz_forward.1} parent=5 // pred_check_branch
      %216 = sbr.rel (%p213) target = $region44
    $region43: #{model_viz_forward.1} parent=5 // pred_region
      %s217 = ssub.s32 %s12, 1
      %p218 = scmp.lt.s32.totalorder %s17, 1
      %s219 = scalar_select %p218, %s17, 1
      %s220 = smul.addr %s219, 36
      %s221 = smul.addr %s220, 4
      %s222 = scalar_lea.vmem %s0, %s221
      %p223 = pneg %p38
      %p224 = pneg %p35
      %p225 = pneg %p59
      %p226 = pneg %p56
      %p227 = pneg %p80
      %p228 = pneg %p77
      %p229 = pneg %p101
      %p230 = pneg %p98
      %p231 = pneg %p122
      %p232 = pneg %p119
      %p233 = pneg %p143
      %p234 = pneg %p140
      %p235 = pneg %p169
      %p236 = pneg %p166
      %p237 = scmp.lt.s32.totalorder %s17, 1
      %s238 = scalar_select %p237, %s17, 1
      %s239 = smul.addr %s238, 36
      %s240 = smul.addr %s239, 8
      %s241 = scalar_lea.vmem %s6, %s240
      %p242 = scmp.lt.s32.totalorder %s17, 1
      %s243 = scalar_select %p242, %s17, 1
      %s244 = smul.addr %s243, 36
      %s245 = smul.addr %s244, 4
      %s246 = scalar_lea.vmem %s0, %s245
      %p247 = scmp.lt.s32.totalorder %s17, 1
      %s248 = scalar_select %p247, %s17, 1
      %s249 = smul.addr %s248, 36
      %s250 = smul.addr %s249, 8
      %s251 = scalar_lea.vmem %s6, %s250
      %vm253 = vcmask 125952
      %254 = vst.msk [vmem:[#allocation2] sm:$0xf] %vm253, 0
      %255 = vst.msk [vmem:[#allocation2 + $0x4] sm:$0xf] %vm253, 0
      %256 = vst.msk [vmem:[#allocation2 + $0x8] sm:$0xf] %vm253, 0
      %257 = vst.msk [vmem:[#allocation2 + $0xc] sm:$0xf] %vm253, 0
      %258 = vst.msk [vmem:[#allocation2 + $0x10] sm:$0xf] %vm253, 0
      %259 = vst.msk [vmem:[#allocation2 + $0x14] sm:$0xf] %vm253, 0
      %260 = vst.msk [vmem:[#allocation2 + $0x18] sm:$0xf] %vm253, 0
      %261 = vst.msk [vmem:[#allocation2 + $0x1c] sm:$0xf] %vm253, 0
      %262 = vst.msk [vmem:[#allocation2 + $0x20] sm:$0xf] %vm253, 0
      %263 = vst.msk [vmem:[#allocation2 + $0x24] sm:$0xf] %vm253, 0
      %264 = vst.msk [vmem:[#allocation2 + $0x28] sm:$0xf] %vm253, 0
      %265 = vst.msk [vmem:[#allocation2 + $0x2c] sm:$0xf] %vm253, 0
      %266 = vst.msk [vmem:[#allocation2 + $0x30] sm:$0xf] %vm253, 0
      %267 = vst.msk [vmem:[#allocation2 + $0x34] sm:$0xf] %vm253, 0
      %268 = vst.msk [vmem:[#allocation2 + $0x38] sm:$0xf] %vm253, 0
      %269 = vst.msk [vmem:[#allocation2 + $0x3c] sm:$0xf] %vm253, 0
      %270 = vst.msk [vmem:[#allocation2 + $0x40] sm:$0xf] %vm253, 0
      %271 = vst.msk [vmem:[#allocation2 + $0x44] sm:$0xf] %vm253, 0
      %272 = vst.msk [vmem:[#allocation2 + $0x48] sm:$0xf] %vm253, 0
      %273 = vst.msk [vmem:[#allocation2 + $0x4c] sm:$0xf] %vm253, 0
      %274 = vst.msk [vmem:[#allocation2 + $0x50] sm:$0xf] %vm253, 0
      %275 = vst.msk [vmem:[#allocation2 + $0x54] sm:$0xf] %vm253, 0
      %276 = vst.msk [vmem:[#allocation2 + $0x58] sm:$0xf] %vm253, 0
      %277 = vst.msk [vmem:[#allocation2 + $0x5c] sm:$0xf] %vm253, 0
      %278 = vst.msk [vmem:[#allocation2 + $0x60] sm:$0xf] %vm253, 0
      %279 = vst.msk [vmem:[#allocation2 + $0x64] sm:$0xf] %vm253, 0
      %280 = vst.msk [vmem:[#allocation2 + $0x68] sm:$0xf] %vm253, 0
      %281 = vst.msk [vmem:[#allocation2 + $0x6c] sm:$0xf] %vm253, 0
      %282 = vst.msk [vmem:[#allocation2 + $0x70] sm:$0xf] %vm253, 0
      %283 = vst.msk [vmem:[#allocation2 + $0x74] sm:$0xf] %vm253, 0
      %284 = vst.msk [vmem:[#allocation2 + $0x78] sm:$0xf] %vm253, 0
      %285 = vst.msk [vmem:[#allocation2 + $0x7c] sm:$0xf] %vm253, 0
      %286 = vst.msk [vmem:[#allocation2 + $0x80] sm:$0xf] %vm253, 0
      %287 = vst.msk [vmem:[#allocation2 + $0x84] sm:$0xf] %vm253, 0
      %288 = vst.msk [vmem:[#allocation2 + $0x88] sm:$0xf] %vm253, 0
      %289 = vst.msk [vmem:[#allocation2 + $0x8c] sm:$0xf] %vm253, 0
      %290 = vst.msk [vmem:[#allocation2 + $0x90] sm:$0xf] %vm253, 0
      %291 = vst.msk [vmem:[#allocation2 + $0x94] sm:$0xf] %vm253, 0
      %292 = vst.msk [vmem:[#allocation2 + $0x98] sm:$0xf] %vm253, 0
      %293 = vst.msk [vmem:[#allocation2 + $0x9c] sm:$0xf] %vm253, 0
      %294 = vst.msk [vmem:[#allocation2 + $0xa0] sm:$0xf] %vm253, 0
      %295 = vst.msk [vmem:[#allocation2 + $0xa4] sm:$0xf] %vm253, 0
      %296 = vst.msk [vmem:[#allocation2 + $0xa8] sm:$0xf] %vm253, 0
      %vm297 = vcmask 519168
      %298 = vst.msk [vmem:[#allocation3] sm:$0xf] %vm297, 0
      %299 = vst.msk [vmem:[#allocation3 + $0x4] sm:$0xf] %vm297, 0
      %300 = vst.msk [vmem:[#allocation3 + $0x8] sm:$0xf] %vm297, 0
      %301 = vst.msk [vmem:[#allocation3 + $0xc] sm:$0xf] %vm297, 0
      %302 = vst.msk [vmem:[#allocation3 + $0x10] sm:$0xf] %vm297, 0
      %303 = vst.msk [vmem:[#allocation3 + $0x14] sm:$0xf] %vm297, 0
      %304 = vst.msk [vmem:[#allocation3 + $0x18] sm:$0xf] %vm297, 0
      %305 = vst.msk [vmem:[#allocation3 + $0x1c] sm:$0xf] %vm297, 0
      %306 = vst.msk [vmem:[#allocation3 + $0x20] sm:$0xf] %vm297, 0
      %307 = vst.msk [vmem:[#allocation3 + $0x24] sm:$0xf] %vm297, 0
      %308 = vst.msk [vmem:[#allocation3 + $0x28] sm:$0xf] %vm297, 0
      %309 = vst.msk [vmem:[#allocation3 + $0x2c] sm:$0xf] %vm297, 0
      %310 = vst.msk [vmem:[#allocation3 + $0x30] sm:$0xf] %vm297, 0
      %311 = vst.msk [vmem:[#allocation3 + $0x34] sm:$0xf] %vm297, 0
      %312 = vst.msk [vmem:[#allocation3 + $0x38] sm:$0xf] %vm297, 0
      %313 = vst.msk [vmem:[#allocation3 + $0x3c] sm:$0xf] %vm297, 0
      %314 = vst.msk [vmem:[#allocation3 + $0x40] sm:$0xf] %vm297, 0
      %315 = vst.msk [vmem:[#allocation3 + $0x44] sm:$0xf] %vm297, 0
      %316 = vst.msk [vmem:[#allocation3 + $0x48] sm:$0xf] %vm297, 0
      %317 = vst.msk [vmem:[#allocation3 + $0x4c] sm:$0xf] %vm297, 0
      %318 = vst.msk [vmem:[#allocation3 + $0x50] sm:$0xf] %vm297, 0
      %319 = vst.msk [vmem:[#allocation3 + $0x54] sm:$0xf] %vm297, 0
      %320 = vst.msk [vmem:[#allocation3 + $0x58] sm:$0xf] %vm297, 0
      %321 = vst.msk [vmem:[#allocation3 + $0x5c] sm:$0xf] %vm297, 0
      %322 = vst.msk [vmem:[#allocation3 + $0x60] sm:$0xf] %vm297, 0
      %323 = vst.msk [vmem:[#allocation3 + $0x64] sm:$0xf] %vm297, 0
      %324 = vst.msk [vmem:[#allocation3 + $0x68] sm:$0xf] %vm297, 0
      %325 = vst.msk [vmem:[#allocation3 + $0x6c] sm:$0xf] %vm297, 0
      %326 = vst.msk [vmem:[#allocation3 + $0x70] sm:$0xf] %vm297, 0
      %327 = vst.msk [vmem:[#allocation3 + $0x74] sm:$0xf] %vm297, 0
      %328 = vst.msk [vmem:[#allocation3 + $0x78] sm:$0xf] %vm297, 0
      %329 = vst.msk [vmem:[#allocation3 + $0x7c] sm:$0xf] %vm297, 0
      %330 = vst.msk [vmem:[#allocation3 + $0x80] sm:$0xf] %vm297, 0
      %331 = vst.msk [vmem:[#allocation3 + $0x84] sm:$0xf] %vm297, 0
      %332 = vst.msk [vmem:[#allocation3 + $0x88] sm:$0xf] %vm297, 0
      %333 = vst.msk [vmem:[#allocation3 + $0x8c] sm:$0xf] %vm297, 0
      %334 = vst.msk [vmem:[#allocation3 + $0x90] sm:$0xf] %vm297, 0
      %335 = vst.msk [vmem:[#allocation3 + $0x94] sm:$0xf] %vm297, 0
      %336 = vst.msk [vmem:[#allocation3 + $0x98] sm:$0xf] %vm297, 0
      %337 = vst.msk [vmem:[#allocation3 + $0x9c] sm:$0xf] %vm297, 0
      %338 = vst.msk [vmem:[#allocation3 + $0xa0] sm:$0xf] %vm297, 0
      %339 = vst.msk [vmem:[#allocation3 + $0xa4] sm:$0xf] %vm297, 0
      %340 = vst.msk [vmem:[#allocation3 + $0xa8] sm:$0xf] %vm297, 0
      %v341 = vld [vmem:[%s5] sm:$0xff]
      %v342 = vld [vmem:[%s5 + $0x8] sm:$0xff]
      %v343 = vld [vmem:[%s5 + $0x10] sm:$0xff]
      %v344 = vld [vmem:[%s5 + $0x18] sm:$0xff]
      %v345 = vld [vmem:[%s5 + $0x20] sm:$0xff]
      %v346 = vld [vmem:[%s5 + $0x28] sm:$0xff]
      %v347 = vld [vmem:[%s5 + $0x30] sm:$0xff]
      %v348 = vld [vmem:[%s5 + $0x38] sm:$0xff]
      %v349 = vld [vmem:[%s5 + $0x40] sm:$0xff]
      %v350 = vld [vmem:[%s5 + $0x48] sm:$0xff]
      %v351 = vld [vmem:[%s5 + $0x50] sm:$0xff]
      %v352 = vld [vmem:[%s5 + $0x58] sm:$0xff]
      %v353 = vld [vmem:[%s5 + $0x60] sm:$0xff]
      %v354 = vld [vmem:[%s5 + $0x68] sm:$0xff]
      %v355 = vld [vmem:[%s5 + $0x70] sm:$0xff]
      %v356 = vld [vmem:[%s5 + $0x78] sm:$0xff]
      %v357 = vld [vmem:[%s5 + $0x80] sm:$0xff]
      %v358 = vld [vmem:[%s5 + $0x88] sm:$0xff]
      %v359 = vld [vmem:[%s5 + $0x90] sm:$0xff]
      %v360 = vld [vmem:[%s5 + $0x98] sm:$0xff]
      %v361 = vld [vmem:[%s5 + $0xa0] sm:$0xff]
      %v362 = vld [vmem:[%s5 + $0xa8] sm:$0xff]
      %v363 = vld [vmem:[%s5 + $0xb0] sm:$0xff]
      %v364 = vld [vmem:[%s5 + $0xb8] sm:$0xff]
      %v365 = vld [vmem:[%s5 + $0xc0] sm:$0xff]
      %v366 = vld [vmem:[%s5 + $0xc8] sm:$0xff]
      %v367 = vld [vmem:[%s5 + $0xd0] sm:$0xff]
      %v368 = vld [vmem:[%s5 + $0xd8] sm:$0xff]
      %v369 = vld [vmem:[%s5 + $0xe0] sm:$0xff]
      %v370 = vld [vmem:[%s5 + $0xe8] sm:$0xff]
      %v371 = vld [vmem:[%s5 + $0xf0] sm:$0xff]
      %v372 = vld [vmem:[%s5 + $0xf8] sm:$0xff]
      %v373 = vld [vmem:[%s5 + $0x100] sm:$0xff]
      %v374 = vld [vmem:[%s5 + $0x108] sm:$0xff]
      %v375 = vld [vmem:[%s5 + $0x110] sm:$0xff]
      %v376 = vld [vmem:[%s5 + $0x118] sm:$0xff]
      %v377 = vld [vmem:[%s246] sm:$0xf]
      %v378 = vld [vmem:[%s246 + $0x4] sm:$0xf]
      %v379 = vld [vmem:[%s246 + $0x8] sm:$0xf]
      %v380 = vld [vmem:[%s246 + $0xc] sm:$0xf]
      %v381 = vld [vmem:[%s246 + $0x10] sm:$0xf]
      %v382 = vld [vmem:[%s246 + $0x14] sm:$0xf]
      %v383 = vld [vmem:[%s246 + $0x18] sm:$0xf]
      %v384 = vld [vmem:[%s246 + $0x1c] sm:$0xf]
      %v385 = vld [vmem:[%s246 + $0x20] sm:$0xf]
      %v386 = vld [vmem:[%s246 + $0x24] sm:$0xf]
      %v387 = vld [vmem:[%s246 + $0x28] sm:$0xf]
      %v388 = vld [vmem:[%s246 + $0x2c] sm:$0xf]
      %v389 = vld [vmem:[%s246 + $0x30] sm:$0xf]
      %v390 = vld [vmem:[%s246 + $0x34] sm:$0xf]
      %v391 = vld [vmem:[%s246 + $0x38] sm:$0xf]
      %v392 = vld [vmem:[%s246 + $0x3c] sm:$0xf]
      %v393 = vld [vmem:[%s246 + $0x40] sm:$0xf]
      %v394 = vld [vmem:[%s246 + $0x44] sm:$0xf]
      %v395 = vld [vmem:[%s246 + $0x48] sm:$0xf]
      %v396 = vld [vmem:[%s246 + $0x4c] sm:$0xf]
      %v397 = vld [vmem:[%s246 + $0x50] sm:$0xf]
      %v398 = vld [vmem:[%s246 + $0x54] sm:$0xf]
      %v399 = vld [vmem:[%s246 + $0x58] sm:$0xf]
      %v400 = vld [vmem:[%s246 + $0x5c] sm:$0xf]
      %v401 = vld [vmem:[%s246 + $0x60] sm:$0xf]
      %v402 = vld [vmem:[%s246 + $0x64] sm:$0xf]
      %v403 = vld [vmem:[%s246 + $0x68] sm:$0xf]
      %v404 = vld [vmem:[%s246 + $0x6c] sm:$0xf]
      %v405 = vld [vmem:[%s246 + $0x70] sm:$0xf]
      %v406 = vld [vmem:[%s246 + $0x74] sm:$0xf]
      %v407 = vld [vmem:[%s246 + $0x78] sm:$0xf]
      %v408 = vld [vmem:[%s246 + $0x7c] sm:$0xf]
      %v409 = vld [vmem:[%s246 + $0x80] sm:$0xf]
      %v410 = vld [vmem:[%s246 + $0x84] sm:$0xf]
      %v411 = vld [vmem:[%s246 + $0x88] sm:$0xf]
      %v412 = vld [vmem:[%s246 + $0x8c] sm:$0xf]
      %v413 = vld [vmem:[%s1] sm:$0xf]
      %v414 = vld [vmem:[%s1 + $0x4] sm:$0xf]
      %v415 = vld [vmem:[%s1 + $0x8] sm:$0xf]
      %v416 = vld [vmem:[%s1 + $0xc] sm:$0xf]
      %v417 = vld [vmem:[%s4] sm:$0x1]
      %v418 = vlaneseq
      %v419 = vshrl.u32 %v418, 7
      %v420 = vsub.s32 0, %v419
      %v421 = vrot.slane %v417, %v420
      %v458 = vunpack.c.l.b16 %v377
      %v459 = vunpack.c.l.b16 %v378
      %v460 = vunpack.c.l.b16 %v379
      %v461 = vunpack.c.l.b16 %v380
      %v462 = vunpack.c.l.b16 %v381
      %v463 = vunpack.c.l.b16 %v382
      %v464 = vunpack.c.l.b16 %v383
      %v465 = vunpack.c.l.b16 %v384
      %v466 = vunpack.c.l.b16 %v385
      %v467 = vunpack.c.l.b16 %v386
      %v468 = vunpack.c.l.b16 %v387
      %v469 = vunpack.c.l.b16 %v388
      %v470 = vunpack.c.l.b16 %v389
      %v471 = vunpack.c.l.b16 %v390
      %v472 = vunpack.c.l.b16 %v391
      %v473 = vunpack.c.l.b16 %v392
      %v474 = vunpack.c.l.b16 %v393
      %v475 = vunpack.c.l.b16 %v394
      %v476 = vunpack.c.l.b16 %v395
      %v477 = vunpack.c.l.b16 %v396
      %v478 = vunpack.c.l.b16 %v397
      %v479 = vunpack.c.l.b16 %v398
      %v480 = vunpack.c.l.b16 %v399
      %v481 = vunpack.c.l.b16 %v400
      %v482 = vunpack.c.l.b16 %v401
      %v483 = vunpack.c.l.b16 %v402
      %v484 = vunpack.c.l.b16 %v403
      %v485 = vunpack.c.l.b16 %v404
      %v486 = vunpack.c.l.b16 %v405
      %v487 = vunpack.c.l.b16 %v406
      %v488 = vunpack.c.l.b16 %v407
      %v489 = vunpack.c.l.b16 %v408
      %v490 = vunpack.c.l.b16 %v409
      %v491 = vunpack.c.l.b16 %v410
      %v492 = vunpack.c.l.b16 %v411
      %v493 = vunpack.c.l.b16 %v412
      %v494 = vpack.c.b16 %v459, %v458
      %v495 = vpack.c.b16 %v461, %v460
      %v496 = vpack.c.b16 %v463, %v462
      %v497 = vpack.c.b16 %v465, %v464
      %v498 = vpack.c.b16 %v467, %v466
      %v499 = vpack.c.b16 %v469, %v468
      %v500 = vpack.c.b16 %v471, %v470
      %v501 = vpack.c.b16 %v473, %v472
      %v502 = vpack.c.b16 %v475, %v474
      %v503 = vpack.c.b16 %v477, %v476
      %v504 = vpack.c.b16 %v479, %v478
      %v505 = vpack.c.b16 %v481, %v480
      %v506 = vpack.c.b16 %v483, %v482
      %v507 = vpack.c.b16 %v485, %v484
      %v508 = vpack.c.b16 %v487, %v486
      %v509 = vpack.c.b16 %v489, %v488
      %v510 = vpack.c.b16 %v491, %v490
      %v511 = vpack.c.b16 %v493, %v492
      %v516 = vunpack.c.l.b16 %v413
      %v517 = vunpack.c.l.b16 %v414
      %v518 = vunpack.c.l.b16 %v415
      %v519 = vunpack.c.l.b16 %v416
      %v520 = vpack.c.b16 %v517, %v516
      %v521 = vpack.c.b16 %v519, %v518
      %vm524 = vcmask 261120
      %v526 = vsel %vm524, %v494, 0
      %v529 = vsel %vm524, %v495, 0
      %v532 = vsel %vm524, %v496, 0
      %v535 = vsel %vm524, %v497, 0
      %v538 = vsel %vm524, %v498, 0
      %v541 = vsel %vm524, %v499, 0
      %v544 = vsel %vm524, %v500, 0
      %v547 = vsel %vm524, %v501, 0
      %v550 = vsel %vm524, %v502, 0
      %v553 = vsel %vm524, %v503, 0
      %v556 = vsel %vm524, %v504, 0
      %v559 = vsel %vm524, %v505, 0
      %v562 = vsel %vm524, %v506, 0
      %v565 = vsel %vm524, %v507, 0
      %v568 = vsel %vm524, %v508, 0
      %v571 = vsel %vm524, %v509, 0
      %v574 = vsel %vm524, %v510, 0
      %v577 = vsel %vm524, %v511, 0
      %579 = vmatprep.subr.bf16.mxu0 0
      %580 = vmatpush1.bf16.msra.mxu0 %v520
      %581 = vmatprep.subr.bf16.mxu0 0
      %582 = vmatpush1.bf16.msra.mxu0 %v521
      %583 = vmatprep.subr.bf16.mxu0 0
      %584 = vmatpush1.bf16.msra.mxu0 0
      %585 = vmatprep.subr.bf16.mxu0 0
      %586 = vmatpush1.bf16.msra.mxu0 0
      %587 = vmatprep.subr.bf16.mxu0 0
      %588 = vmatpush1.bf16.msra.mxu0 0
      %589 = vmatprep.subr.bf16.mxu0 0
      %590 = vmatpush1.bf16.msra.mxu0 0
      %591 = vmatprep.subr.bf16.mxu0 0
      %592 = vmatpush1.bf16.msra.mxu0 0
      %593 = vmatprep.subr.bf16.mxu0 0
      %594 = vmatpush1.bf16.msra.mxu0 0
      %595 = vmatprep.subr.bf16.mxu0 0
      %596 = vmatpush1.bf16.msra.mxu0 0
      %597 = vmatprep.subr.bf16.mxu0 0
      %598 = vmatpush1.bf16.msra.mxu0 0
      %599 = vmatprep.subr.bf16.mxu0 0
      %600 = vmatpush1.bf16.msra.mxu0 0
      %601 = vmatprep.subr.bf16.mxu0 0
      %602 = vmatpush1.bf16.msra.mxu0 0
      %603 = vmatprep.subr.bf16.mxu0 0
      %604 = vmatpush1.bf16.msra.mxu0 0
      %605 = vmatprep.subr.bf16.mxu0 0
      %606 = vmatpush1.bf16.msra.mxu0 0
      %607 = vmatprep.subr.bf16.mxu0 0
      %608 = vmatpush1.bf16.msra.mxu0 0
      %609 = vmatprep.subr.bf16.mxu0 0
      %610 = vmatpush1.bf16.msra.mxu0 0
      %611 = vmatprep.mubr.bf16.mxu0 0
      %612 = vmatmul.mubr.bf16.gmra.mrb[0].mxu0 %v526
      %v613 = vpop.f32.mrb[0].mxu0
      %v614 = vadd.f32 %v421, %v613
      %v615 = vpop.f32.mrb[0].mxu0
      %v616 = vpop.f32.mrb[0].mxu0
      %v617 = vadd.f32 %v421, %v616
      %v618 = vpop.f32.mrb[0].mxu0
      %619 = vmatprep.mubr.bf16.mxu0 0
      %620 = vmatmul.mubr.bf16.gmra.mrb[0].mxu0 %v529
      %v621 = vpop.f32.mrb[0].mxu0
      %v622 = vadd.f32 %v421, %v621
      %v623 = vpop.f32.mrb[0].mxu0
      %v624 = vpop.f32.mrb[0].mxu0
      %v625 = vadd.f32 %v421, %v624
      %v626 = vpop.f32.mrb[0].mxu0
      %627 = vmatprep.mubr.bf16.mxu0 0
      %628 = vmatmul.mubr.bf16.gmra.mrb[0].mxu0 %v532
      %v629 = vpop.f32.mrb[0].mxu0
      %v630 = vadd.f32 %v421, %v629
      %v631 = vpop.f32.mrb[0].mxu0
      %v632 = vpop.f32.mrb[0].mxu0
      %v633 = vadd.f32 %v421, %v632
      %v634 = vpop.f32.mrb[0].mxu0
      %635 = vmatprep.mubr.bf16.mxu0 0
      %636 = vmatmul.mubr.bf16.gmra.mrb[0].mxu0 %v535
      %v637 = vpop.f32.mrb[0].mxu0
      %v638 = vadd.f32 %v421, %v637
      %v639 = vpop.f32.mrb[0].mxu0
      %v640 = vpop.f32.mrb[0].mxu0
      %v641 = vadd.f32 %v421, %v640
      %v642 = vpop.f32.mrb[0].mxu0
      %643 = vmatprep.mubr.bf16.mxu0 0
      %644 = vmatmul.mubr.bf16.gmra.mrb[0].mxu0 %v538
      %v645 = vpop.f32.mrb[0].mxu0
      %v646 = vadd.f32 %v421, %v645
      %v647 = vpop.f32.mrb[0].mxu0
      %v648 = vpop.f32.mrb[0].mxu0
      %v649 = vadd.f32 %v421, %v648
      %v650 = vpop.f32.mrb[0].mxu0
      %651 = vmatprep.mubr.bf16.mxu0 0
      %652 = vmatmul.mubr.bf16.gmra.mrb[0].mxu0 %v541
      %v653 = vpop.f32.mrb[0].mxu0
      %v654 = vadd.f32 %v421, %v653
      %v655 = vpop.f32.mrb[0].mxu0
      %v656 = vpop.f32.mrb[0].mxu0
      %v657 = vadd.f32 %v421, %v656
      %v658 = vpop.f32.mrb[0].mxu0
      %659 = vmatprep.mubr.bf16.mxu0 0
      %660 = vmatmul.mubr.bf16.gmra.mrb[0].mxu0 %v544
      %v661 = vpop.f32.mrb[0].mxu0
      %v662 = vadd.f32 %v421, %v661
      %v663 = vpop.f32.mrb[0].mxu0
      %v664 = vpop.f32.mrb[0].mxu0
      %v665 = vadd.f32 %v421, %v664
      %v666 = vpop.f32.mrb[0].mxu0
      %667 = vmatprep.mubr.bf16.mxu0 0
      %668 = vmatmul.mubr.bf16.gmra.mrb[0].mxu0 %v547
      %v669 = vpop.f32.mrb[0].mxu0
      %v670 = vadd.f32 %v421, %v669
      %v671 = vpop.f32.mrb[0].mxu0
      %v672 = vpop.f32.mrb[0].mxu0
      %v673 = vadd.f32 %v421, %v672
      %v674 = vpop.f32.mrb[0].mxu0
      %675 = vmatprep.mubr.bf16.mxu0 0
      %676 = vmatmul.mubr.bf16.gmra.mrb[0].mxu0 %v550
      %v677 = vpop.f32.mrb[0].mxu0
      %v678 = vadd.f32 %v421, %v677
      %v679 = vpop.f32.mrb[0].mxu0
      %v680 = vpop.f32.mrb[0].mxu0
      %v681 = vadd.f32 %v421, %v680
      %v682 = vpop.f32.mrb[0].mxu0
      %683 = vmatprep.mubr.bf16.mxu0 0
      %684 = vmatmul.mubr.bf16.gmra.mrb[0].mxu0 %v553
      %v685 = vpop.f32.mrb[0].mxu0
      %v686 = vadd.f32 %v421, %v685
      %v687 = vpop.f32.mrb[0].mxu0
      %v688 = vpop.f32.mrb[0].mxu0
      %v689 = vadd.f32 %v421, %v688
      %v690 = vpop.f32.mrb[0].mxu0
      %691 = vmatprep.mubr.bf16.mxu0 0
      %692 = vmatmul.mubr.bf16.gmra.mrb[0].mxu0 %v556
      %v693 = vpop.f32.mrb[0].mxu0
      %v694 = vadd.f32 %v421, %v693
      %v695 = vpop.f32.mrb[0].mxu0
      %v696 = vpop.f32.mrb[0].mxu0
      %v697 = vadd.f32 %v421, %v696
      %v698 = vpop.f32.mrb[0].mxu0
      %699 = vmatprep.mubr.bf16.mxu0 0
      %700 = vmatmul.mubr.bf16.gmra.mrb[0].mxu0 %v559
      %v701 = vpop.f32.mrb[0].mxu0
      %v702 = vadd.f32 %v421, %v701
      %v703 = vpop.f32.mrb[0].mxu0
      %v704 = vpop.f32.mrb[0].mxu0
      %v705 = vadd.f32 %v421, %v704
      %v706 = vpop.f32.mrb[0].mxu0
      %707 = vmatprep.mubr.bf16.mxu0 0
      %708 = vmatmul.mubr.bf16.gmra.mrb[0].mxu0 %v562
      %v709 = vpop.f32.mrb[0].mxu0
      %v710 = vadd.f32 %v421, %v709
      %v711 = vpop.f32.mrb[0].mxu0
      %v712 = vpop.f32.mrb[0].mxu0
      %v713 = vadd.f32 %v421, %v712
      %v714 = vpop.f32.mrb[0].mxu0
      %715 = vmatprep.mubr.bf16.mxu0 0
      %716 = vmatmul.mubr.bf16.gmra.mrb[0].mxu0 %v565
      %v717 = vpop.f32.mrb[0].mxu0
      %v718 = vadd.f32 %v421, %v717
      %v719 = vpop.f32.mrb[0].mxu0
      %v720 = vpop.f32.mrb[0].mxu0
      %v721 = vadd.f32 %v421, %v720
      %v722 = vpop.f32.mrb[0].mxu0
      %723 = vmatprep.mubr.bf16.mxu0 0
      %724 = vmatmul.mubr.bf16.gmra.mrb[0].mxu0 %v568
      %v725 = vpop.f32.mrb[0].mxu0
      %v726 = vadd.f32 %v421, %v725
      %v727 = vpop.f32.mrb[0].mxu0
      %v728 = vpop.f32.mrb[0].mxu0
      %v729 = vadd.f32 %v421, %v728
      %v730 = vpop.f32.mrb[0].mxu0
      %731 = vmatprep.mubr.bf16.mxu0 0
      %732 = vmatmul.mubr.bf16.gmra.mrb[0].mxu0 %v571
      %v733 = vpop.f32.mrb[0].mxu0
      %v734 = vadd.f32 %v421, %v733
      %v735 = vpop.f32.mrb[0].mxu0
      %v736 = vpop.f32.mrb[0].mxu0
      %v737 = vadd.f32 %v421, %v736
      %v738 = vpop.f32.mrb[0].mxu0
      %739 = vmatprep.mubr.bf16.mxu0 0
      %740 = vmatmul.mubr.bf16.gmra.mrb[0].mxu0 %v574
      %v741 = vpop.f32.mrb[0].mxu0
      %v742 = vadd.f32 %v421, %v741
      %v743 = vpop.f32.mrb[0].mxu0
      %v744 = vpop.f32.mrb[0].mxu0
      %v745 = vadd.f32 %v421, %v744
      %v746 = vpop.f32.mrb[0].mxu0
      %747 = vmatprep.mubr.bf16.mxu0 0
      %748 = vmatmul.mubr.bf16.gmra.mrb[0].mxu0 %v577
      %v749 = vpop.f32.mrb[0].mxu0
      %v750 = vadd.f32 %v421, %v749
      %v751 = vpop.f32.mrb[0].mxu0
      %v752 = vpop.f32.mrb[0].mxu0
      %v753 = vadd.f32 %v421, %v752
      %v754 = vpop.f32.mrb[0].mxu0
      %755 = vdwg.mxu0
      %v756 = vmax.f32 %v614, 0.0
      %v757 = vmax.f32 %v617, 0.0
      %v758 = vmax.f32 %v622, 0.0
      %v759 = vmax.f32 %v625, 0.0
      %v760 = vmax.f32 %v630, 0.0
      %v761 = vmax.f32 %v633, 0.0
      %v762 = vmax.f32 %v638, 0.0
      %v763 = vmax.f32 %v641, 0.0
      %v764 = vmax.f32 %v646, 0.0
      %v765 = vmax.f32 %v649, 0.0
      %v766 = vmax.f32 %v654, 0.0
      %v767 = vmax.f32 %v657, 0.0
      %v768 = vmax.f32 %v662, 0.0
      %v769 = vmax.f32 %v665, 0.0
      %v770 = vmax.f32 %v670, 0.0
      %v771 = vmax.f32 %v673, 0.0
      %v772 = vmax.f32 %v678, 0.0
      %v773 = vmax.f32 %v681, 0.0
      %v774 = vmax.f32 %v686, 0.0
      %v775 = vmax.f32 %v689, 0.0
      %v776 = vmax.f32 %v694, 0.0
      %v777 = vmax.f32 %v697, 0.0
      %v778 = vmax.f32 %v702, 0.0
      %v779 = vmax.f32 %v705, 0.0
      %v780 = vmax.f32 %v710, 0.0
      %v781 = vmax.f32 %v713, 0.0
      %v782 = vmax.f32 %v718, 0.0
      %v783 = vmax.f32 %v721, 0.0
      %v784 = vmax.f32 %v726, 0.0
      %v785 = vmax.f32 %v729, 0.0
      %v786 = vmax.f32 %v734, 0.0
      %v787 = vmax.f32 %v737, 0.0
      %v788 = vmax.f32 %v742, 0.0
      %v789 = vmax.f32 %v745, 0.0
      %v790 = vmax.f32 %v750, 0.0
      %v791 = vmax.f32 %v753, 0.0
      %793 = vset.pattern.permute.xlu0 0
      %794 = vperm.xlu0 %793, %v341
      %v795 = vpop.permute.xlu0 %794
      %798 = vset.pattern.permute.xlu0 0
      %799 = vperm.xlu0 %798, %v342
      %v800 = vpop.permute.xlu0 %799
      %803 = vset.pattern.permute.xlu0 0
      %804 = vperm.xlu0 %803, %v343
      %v805 = vpop.permute.xlu0 %804
      %808 = vset.pattern.permute.xlu0 0
      %809 = vperm.xlu0 %808, %v344
      %v810 = vpop.permute.xlu0 %809
      %813 = vset.pattern.permute.xlu0 0
      %814 = vperm.xlu0 %813, %v345
      %v815 = vpop.permute.xlu0 %814
      %818 = vset.pattern.permute.xlu0 0
      %819 = vperm.xlu0 %818, %v346
      %v820 = vpop.permute.xlu0 %819
      %823 = vset.pattern.permute.xlu0 0
      %824 = vperm.xlu0 %823, %v347
      %v825 = vpop.permute.xlu0 %824
      %828 = vset.pattern.permute.xlu0 0
      %829 = vperm.xlu0 %828, %v348
      %v830 = vpop.permute.xlu0 %829
      %833 = vset.pattern.permute.xlu0 0
      %834 = vperm.xlu0 %833, %v349
      %v835 = vpop.permute.xlu0 %834
      %838 = vset.pattern.permute.xlu0 0
      %839 = vperm.xlu0 %838, %v350
      %v840 = vpop.permute.xlu0 %839
      %843 = vset.pattern.permute.xlu0 0
      %844 = vperm.xlu0 %843, %v351
      %v845 = vpop.permute.xlu0 %844
      %848 = vset.pattern.permute.xlu0 0
      %849 = vperm.xlu0 %848, %v352
      %v850 = vpop.permute.xlu0 %849
      %853 = vset.pattern.permute.xlu0 0
      %854 = vperm.xlu0 %853, %v353
      %v855 = vpop.permute.xlu0 %854
      %858 = vset.pattern.permute.xlu0 0
      %859 = vperm.xlu0 %858, %v354
      %v860 = vpop.permute.xlu0 %859
      %863 = vset.pattern.permute.xlu0 0
      %864 = vperm.xlu0 %863, %v355
      %v865 = vpop.permute.xlu0 %864
      %868 = vset.pattern.permute.xlu0 0
      %869 = vperm.xlu0 %868, %v356
      %v870 = vpop.permute.xlu0 %869
      %873 = vset.pattern.permute.xlu0 0
      %874 = vperm.xlu0 %873, %v357
      %v875 = vpop.permute.xlu0 %874
      %878 = vset.pattern.permute.xlu0 0
      %879 = vperm.xlu0 %878, %v358
      %v880 = vpop.permute.xlu0 %879
      %883 = vset.pattern.permute.xlu0 0
      %884 = vperm.xlu0 %883, %v359
      %v885 = vpop.permute.xlu0 %884
      %888 = vset.pattern.permute.xlu0 0
      %889 = vperm.xlu0 %888, %v360
      %v890 = vpop.permute.xlu0 %889
      %893 = vset.pattern.permute.xlu0 0
      %894 = vperm.xlu0 %893, %v361
      %v895 = vpop.permute.xlu0 %894
      %898 = vset.pattern.permute.xlu0 0
      %899 = vperm.xlu0 %898, %v362
      %v900 = vpop.permute.xlu0 %899
      %903 = vset.pattern.permute.xlu0 0
      %904 = vperm.xlu0 %903, %v363
      %v905 = vpop.permute.xlu0 %904
      %908 = vset.pattern.permute.xlu0 0
      %909 = vperm.xlu0 %908, %v364
      %v910 = vpop.permute.xlu0 %909
      %913 = vset.pattern.permute.xlu0 0
      %914 = vperm.xlu0 %913, %v365
      %v915 = vpop.permute.xlu0 %914
      %918 = vset.pattern.permute.xlu0 0
      %919 = vperm.xlu0 %918, %v366
      %v920 = vpop.permute.xlu0 %919
      %923 = vset.pattern.permute.xlu0 0
      %924 = vperm.xlu0 %923, %v367
      %v925 = vpop.permute.xlu0 %924
      %928 = vset.pattern.permute.xlu0 0
      %929 = vperm.xlu0 %928, %v368
      %v930 = vpop.permute.xlu0 %929
      %933 = vset.pattern.permute.xlu0 0
      %934 = vperm.xlu0 %933, %v369
      %v935 = vpop.permute.xlu0 %934
      %938 = vset.pattern.permute.xlu0 0
      %939 = vperm.xlu0 %938, %v370
      %v940 = vpop.permute.xlu0 %939
      %943 = vset.pattern.permute.xlu0 0
      %944 = vperm.xlu0 %943, %v371
      %v945 = vpop.permute.xlu0 %944
      %948 = vset.pattern.permute.xlu0 0
      %949 = vperm.xlu0 %948, %v372
      %v950 = vpop.permute.xlu0 %949
      %953 = vset.pattern.permute.xlu0 0
      %954 = vperm.xlu0 %953, %v373
      %v955 = vpop.permute.xlu0 %954
      %958 = vset.pattern.permute.xlu0 0
      %959 = vperm.xlu0 %958, %v374
      %v960 = vpop.permute.xlu0 %959
      %963 = vset.pattern.permute.xlu0 0
      %964 = vperm.xlu0 %963, %v375
      %v965 = vpop.permute.xlu0 %964
      %968 = vset.pattern.permute.xlu0 0
      %969 = vperm.xlu0 %968, %v376
      %v970 = vpop.permute.xlu0 %969
      %v972 = vmul.f32 %v756, %v795
      %v973 = vmul.f32 %v757, %v800
      %v974 = vmul.f32 %v758, %v805
      %v975 = vmul.f32 %v759, %v810
      %v976 = vmul.f32 %v760, %v815
      %v977 = vmul.f32 %v761, %v820
      %v978 = vmul.f32 %v762, %v825
      %v979 = vmul.f32 %v763, %v830
      %v980 = vmul.f32 %v764, %v835
      %v981 = vmul.f32 %v765, %v840
      %v982 = vmul.f32 %v766, %v845
      %v983 = vmul.f32 %v767, %v850
      %v984 = vmul.f32 %v768, %v855
      %v985 = vmul.f32 %v769, %v860
      %v986 = vmul.f32 %v770, %v865
      %v987 = vmul.f32 %v771, %v870
      %v988 = vmul.f32 %v772, %v875
      %v989 = vmul.f32 %v773, %v880
      %v990 = vmul.f32 %v774, %v885
      %v991 = vmul.f32 %v775, %v890
      %v992 = vmul.f32 %v776, %v895
      %v993 = vmul.f32 %v777, %v900
      %v994 = vmul.f32 %v778, %v905
      %v995 = vmul.f32 %v779, %v910
      %v996 = vmul.f32 %v780, %v915
      %v997 = vmul.f32 %v781, %v920
      %v998 = vmul.f32 %v782, %v925
      %v999 = vmul.f32 %v783, %v930
      %v1000 = vmul.f32 %v784, %v935
      %v1001 = vmul.f32 %v785, %v940
      %v1002 = vmul.f32 %v786, %v945
      %v1003 = vmul.f32 %v787, %v950
      %v1004 = vmul.f32 %v788, %v955
      %v1005 = vmul.f32 %v789, %v960
      %v1006 = vmul.f32 %v790, %v965
      %v1007 = vmul.f32 %v791, %v970
      %v1008 = vpack.c.bf16 %v973, %v972
      %v1009 = vpack.c.bf16 %v975, %v974
      %v1010 = vpack.c.bf16 %v977, %v976
      %v1011 = vpack.c.bf16 %v979, %v978
      %v1012 = vpack.c.bf16 %v981, %v980
      %v1013 = vpack.c.bf16 %v983, %v982
      %v1014 = vpack.c.bf16 %v985, %v984
      %v1015 = vpack.c.bf16 %v987, %v986
      %v1016 = vpack.c.bf16 %v989, %v988
      %v1017 = vpack.c.bf16 %v991, %v990
      %v1018 = vpack.c.bf16 %v993, %v992
      %v1019 = vpack.c.bf16 %v995, %v994
      %v1020 = vpack.c.bf16 %v997, %v996
      %v1021 = vpack.c.bf16 %v999, %v998
      %v1022 = vpack.c.bf16 %v1001, %v1000
      %v1023 = vpack.c.bf16 %v1003, %v1002
      %v1024 = vpack.c.bf16 %v1005, %v1004
      %v1025 = vpack.c.bf16 %v1007, %v1006
      %v1044 = vunpack.c.l.b16 %v1008
      %v1045 = vunpack.c.h.b16 %v1008
      %v1046 = vunpack.c.l.b16 %v1009
      %v1047 = vunpack.c.h.b16 %v1009
      %v1048 = vunpack.c.l.b16 %v1010
      %v1049 = vunpack.c.h.b16 %v1010
      %v1050 = vunpack.c.l.b16 %v1011
      %v1051 = vunpack.c.h.b16 %v1011
      %v1052 = vunpack.c.l.b16 %v1012
      %v1053 = vunpack.c.h.b16 %v1012
      %v1054 = vunpack.c.l.b16 %v1013
      %v1055 = vunpack.c.h.b16 %v1013
      %v1056 = vunpack.c.l.b16 %v1014
      %v1057 = vunpack.c.h.b16 %v1014
      %v1058 = vunpack.c.l.b16 %v1015
      %v1059 = vunpack.c.h.b16 %v1015
      %v1060 = vunpack.c.l.b16 %v1016
      %v1061 = vunpack.c.h.b16 %v1016
      %v1062 = vunpack.c.l.b16 %v1017
      %v1063 = vunpack.c.h.b16 %v1017
      %v1064 = vunpack.c.l.b16 %v1018
      %v1065 = vunpack.c.h.b16 %v1018
      %v1066 = vunpack.c.l.b16 %v1019
      %v1067 = vunpack.c.h.b16 %v1019
      %v1068 = vunpack.c.l.b16 %v1020
      %v1069 = vunpack.c.h.b16 %v1020
      %v1070 = vunpack.c.l.b16 %v1021
      %v1071 = vunpack.c.h.b16 %v1021
      %v1072 = vunpack.c.l.b16 %v1022
      %v1073 = vunpack.c.h.b16 %v1022
      %v1074 = vunpack.c.l.b16 %v1023
      %v1075 = vunpack.c.h.b16 %v1023
      %v1076 = vunpack.c.l.b16 %v1024
      %v1077 = vunpack.c.h.b16 %v1024
      %v1078 = vunpack.c.l.b16 %v1025
      %v1079 = vunpack.c.h.b16 %v1025
      %v1080 = vpack.c.b16 %v1044, %v1044
      %v1081 = vpack.c.b16 %v1045, %v1045
      %v1082 = vpack.c.b16 %v1046, %v1046
      %v1083 = vpack.c.b16 %v1047, %v1047
      %v1084 = vpack.c.b16 %v1048, %v1048
      %v1085 = vpack.c.b16 %v1049, %v1049
      %v1086 = vpack.c.b16 %v1050, %v1050
      %v1087 = vpack.c.b16 %v1051, %v1051
      %v1088 = vpack.c.b16 %v1052, %v1052
      %v1089 = vpack.c.b16 %v1053, %v1053
      %v1090 = vpack.c.b16 %v1054, %v1054
      %v1091 = vpack.c.b16 %v1055, %v1055
      %v1092 = vpack.c.b16 %v1056, %v1056
      %v1093 = vpack.c.b16 %v1057, %v1057
      %v1094 = vpack.c.b16 %v1058, %v1058
      %v1095 = vpack.c.b16 %v1059, %v1059
      %v1096 = vpack.c.b16 %v1060, %v1060
      %v1097 = vpack.c.b16 %v1061, %v1061
      %v1098 = vpack.c.b16 %v1062, %v1062
      %v1099 = vpack.c.b16 %v1063, %v1063
      %v1100 = vpack.c.b16 %v1064, %v1064
      %v1101 = vpack.c.b16 %v1065, %v1065
      %v1102 = vpack.c.b16 %v1066, %v1066
      %v1103 = vpack.c.b16 %v1067, %v1067
      %v1104 = vpack.c.b16 %v1068, %v1068
      %v1105 = vpack.c.b16 %v1069, %v1069
      %v1106 = vpack.c.b16 %v1070, %v1070
      %v1107 = vpack.c.b16 %v1071, %v1071
      %v1108 = vpack.c.b16 %v1072, %v1072
      %v1109 = vpack.c.b16 %v1073, %v1073
      %v1110 = vpack.c.b16 %v1074, %v1074
      %v1111 = vpack.c.b16 %v1075, %v1075
      %v1112 = vpack.c.b16 %v1076, %v1076
      %v1113 = vpack.c.b16 %v1077, %v1077
      %v1114 = vpack.c.b16 %v1078, %v1078
      %v1115 = vpack.c.b16 %v1079, %v1079
      %1152 = vst.msk [vmem:[#allocation2 + $0x10] sm:$0xf] %vm253, %v1080
      %1153 = vst.msk [vmem:[#allocation2 + $0x14] sm:$0xf] %vm253, %v1081
      %1154 = vst.msk [vmem:[#allocation2 + $0x18] sm:$0xf] %vm253, %v1082
      %1155 = vst.msk [vmem:[#allocation2 + $0x1c] sm:$0xf] %vm253, %v1083
      %1156 = vst.msk [vmem:[#allocation2 + $0x20] sm:$0xf] %vm253, %v1084
      %1157 = vst.msk [vmem:[#allocation2 + $0x24] sm:$0xf] %vm253, %v1085
      %1158 = vst.msk [vmem:[#allocation2 + $0x28] sm:$0xf] %vm253, %v1086
      %1159 = vst.msk [vmem:[#allocation2 + $0x2c] sm:$0xf] %vm253, %v1087
      %1160 = vst.msk [vmem:[#allocation2 + $0x30] sm:$0xf] %vm253, %v1088
      %1161 = vst.msk [vmem:[#allocation2 + $0x34] sm:$0xf] %vm253, %v1089
      %1162 = vst.msk [vmem:[#allocation2 + $0x38] sm:$0xf] %vm253, %v1090
      %1163 = vst.msk [vmem:[#allocation2 + $0x3c] sm:$0xf] %vm253, %v1091
      %1164 = vst.msk [vmem:[#allocation2 + $0x40] sm:$0xf] %vm253, %v1092
      %1165 = vst.msk [vmem:[#allocation2 + $0x44] sm:$0xf] %vm253, %v1093
      %1166 = vst.msk [vmem:[#allocation2 + $0x48] sm:$0xf] %vm253, %v1094
      %1167 = vst.msk [vmem:[#allocation2 + $0x4c] sm:$0xf] %vm253, %v1095
      %1168 = vst.msk [vmem:[#allocation2 + $0x50] sm:$0xf] %vm253, %v1096
      %1169 = vst.msk [vmem:[#allocation2 + $0x54] sm:$0xf] %vm253, %v1097
      %1170 = vst.msk [vmem:[#allocation2 + $0x58] sm:$0xf] %vm253, %v1098
      %1171 = vst.msk [vmem:[#allocation2 + $0x5c] sm:$0xf] %vm253, %v1099
      %1172 = vst.msk [vmem:[#allocation2 + $0x60] sm:$0xf] %vm253, %v1100
      %1173 = vst.msk [vmem:[#allocation2 + $0x64] sm:$0xf] %vm253, %v1101
      %1174 = vst.msk [vmem:[#allocation2 + $0x68] sm:$0xf] %vm253, %v1102
      %1175 = vst.msk [vmem:[#allocation2 + $0x6c] sm:$0xf] %vm253, %v1103
      %1176 = vst.msk [vmem:[#allocation2 + $0x70] sm:$0xf] %vm253, %v1104
      %1177 = vst.msk [vmem:[#allocation2 + $0x74] sm:$0xf] %vm253, %v1105
      %1178 = vst.msk [vmem:[#allocation2 + $0x78] sm:$0xf] %vm253, %v1106
      %1179 = vst.msk [vmem:[#allocation2 + $0x7c] sm:$0xf] %vm253, %v1107
      %1180 = vst.msk [vmem:[#allocation2 + $0x80] sm:$0xf] %vm253, %v1108
      %1181 = vst.msk [vmem:[#allocation2 + $0x84] sm:$0xf] %vm253, %v1109
      %1182 = vst.msk [vmem:[#allocation2 + $0x88] sm:$0xf] %vm253, %v1110
      %1183 = vst.msk [vmem:[#allocation2 + $0x8c] sm:$0xf] %vm253, %v1111
      %1184 = vst.msk [vmem:[#allocation2 + $0x90] sm:$0xf] %vm253, %v1112
      %1185 = vst.msk [vmem:[#allocation2 + $0x94] sm:$0xf] %vm253, %v1113
      %1186 = vst.msk [vmem:[#allocation2 + $0x98] sm:$0xf] %vm253, %v1114
      %1187 = vst.msk [vmem:[#allocation2 + $0x9c] sm:$0xf] %vm253, %v1115
      %v1188 = vld [vmem:[#allocation2 + $0x4] sm:$0xc]
      %v1189 = vld [vmem:[#allocation2 + $0x8] sm:$0xf]
      %v1190 = vld [vmem:[#allocation2 + $0xc] sm:$0xf]
      %v1191 = vld [vmem:[#allocation2 + $0x10] sm:$0xf]
      %v1192 = vld [vmem:[#allocation2 + $0x14] sm:$0xf]
      %v1193 = vld [vmem:[#allocation2 + $0x18] sm:$0xf]
      %v1194 = vld [vmem:[#allocation2 + $0x1c] sm:$0xf]
      %v1195 = vld [vmem:[#allocation2 + $0x20] sm:$0xf]
      %v1196 = vld [vmem:[#allocation2 + $0x24] sm:$0xf]
      %v1197 = vld [vmem:[#allocation2 + $0x28] sm:$0xf]
      %v1198 = vld [vmem:[#allocation2 + $0x2c] sm:$0xf]
      %v1199 = vld [vmem:[#allocation2 + $0x30] sm:$0xf]
      %v1200 = vld [vmem:[#allocation2 + $0x34] sm:$0xf]
      %v1201 = vld [vmem:[#allocation2 + $0x38] sm:$0xf]
      %v1202 = vld [vmem:[#allocation2 + $0x3c] sm:$0xf]
      %v1203 = vld [vmem:[#allocation2 + $0x40] sm:$0xf]
      %v1204 = vld [vmem:[#allocation2 + $0x44] sm:$0xf]
      %v1205 = vld [vmem:[#allocation2 + $0x48] sm:$0xf]
      %v1206 = vld [vmem:[#allocation2 + $0x4c] sm:$0xf]
      %v1207 = vld [vmem:[#allocation2 + $0x50] sm:$0xf]
      %v1208 = vld [vmem:[#allocation2 + $0x54] sm:$0xf]
      %v1209 = vld [vmem:[#allocation2 + $0x58] sm:$0xf]
      %v1210 = vld [vmem:[#allocation2 + $0x5c] sm:$0xf]
      %v1211 = vld [vmem:[#allocation2 + $0x60] sm:$0xf]
      %v1212 = vld [vmem:[#allocation2 + $0x64] sm:$0xf]
      %v1213 = vld [vmem:[#allocation2 + $0x68] sm:$0xf]
      %v1214 = vld [vmem:[#allocation2 + $0x6c] sm:$0xf]
      %v1215 = vld [vmem:[#allocation2 + $0x70] sm:$0xf]
      %v1216 = vld [vmem:[#allocation2 + $0x74] sm:$0xf]
      %v1217 = vld [vmem:[#allocation2 + $0x78] sm:$0xf]
      %v1218 = vld [vmem:[#allocation2 + $0x7c] sm:$0xf]
      %v1219 = vld [vmem:[#allocation2 + $0x80] sm:$0xf]
      %v1220 = vld [vmem:[#allocation2 + $0x84] sm:$0xf]
      %v1221 = vld [vmem:[#allocation2 + $0x88] sm:$0xf]
      %v1222 = vld [vmem:[#allocation2 + $0x8c] sm:$0xf]
      %v1223 = vld [vmem:[#allocation2 + $0x90] sm:$0xf]
      %v1224 = vld [vmem:[#allocation2 + $0x94] sm:$0x7]
      %v1225 = vld [vmem:[%s2] sm:$0xf]
      %v1226 = vld [vmem:[%s2 + $0x4] sm:$0xf]
      %v1227 = vld [vmem:[#allocation2 + $0x4] sm:$0x8]
      %s1228 = scalar_lea.vmem %s2, 8
      %v1229 = vld [vmem:[%s1228] sm:$0xf]
      %v1230 = vld [vmem:[%s1228 + $0x4] sm:$0xf]
      %v1268 = vunpack.c.l.b16 %v1227
      %v1269 = vunpack.c.l.b16 %v1189
      %v1270 = vunpack.c.l.b16 %v1190
      %v1271 = vunpack.c.l.b16 %v1191
      %v1272 = vunpack.c.l.b16 %v1192
      %v1273 = vunpack.c.l.b16 %v1193
      %v1274 = vunpack.c.l.b16 %v1194
      %v1275 = vunpack.c.l.b16 %v1195
      %v1276 = vunpack.c.l.b16 %v1196
      %v1277 = vunpack.c.l.b16 %v1197
      %v1278 = vunpack.c.l.b16 %v1198
      %v1279 = vunpack.c.l.b16 %v1199
      %v1280 = vunpack.c.l.b16 %v1200
      %v1281 = vunpack.c.l.b16 %v1201
      %v1282 = vunpack.c.l.b16 %v1202
      %v1283 = vunpack.c.l.b16 %v1203
      %v1284 = vunpack.c.l.b16 %v1204
      %v1285 = vunpack.c.l.b16 %v1205
      %v1286 = vunpack.c.l.b16 %v1206
      %v1287 = vunpack.c.l.b16 %v1207
      %v1288 = vunpack.c.l.b16 %v1208
      %v1289 = vunpack.c.l.b16 %v1209
      %v1290 = vunpack.c.l.b16 %v1210
      %v1291 = vunpack.c.l.b16 %v1211
      %v1292 = vunpack.c.l.b16 %v1212
      %v1293 = vunpack.c.l.b16 %v1213
      %v1294 = vunpack.c.l.b16 %v1214
      %v1295 = vunpack.c.l.b16 %v1215
      %v1296 = vunpack.c.l.b16 %v1216
      %v1297 = vunpack.c.l.b16 %v1217
      %v1298 = vunpack.c.l.b16 %v1218
      %v1299 = vunpack.c.l.b16 %v1219
      %v1300 = vunpack.c.l.b16 %v1220
      %v1301 = vunpack.c.l.b16 %v1221
      %v1302 = vunpack.c.l.b16 %v1222
      %v1303 = vunpack.c.l.b16 %v1223
      %v1304 = vunpack.c.l.b16 %v1224
      %v1305 = vpack.c.b16 %v1269, %v1268
      %v1306 = vpack.c.b16 %v1271, %v1270
      %v1307 = vpack.c.b16 %v1273, %v1272
      %v1308 = vpack.c.b16 %v1275, %v1274
      %v1309 = vpack.c.b16 %v1277, %v1276
      %v1310 = vpack.c.b16 %v1279, %v1278
      %v1311 = vpack.c.b16 %v1281, %v1280
      %v1312 = vpack.c.b16 %v1283, %v1282
      %v1313 = vpack.c.b16 %v1285, %v1284
      %v1314 = vpack.c.b16 %v1287, %v1286
      %v1315 = vpack.c.b16 %v1289, %v1288
      %v1316 = vpack.c.b16 %v1291, %v1290
      %v1317 = vpack.c.b16 %v1293, %v1292
      %v1318 = vpack.c.b16 %v1295, %v1294
      %v1319 = vpack.c.b16 %v1297, %v1296
      %v1320 = vpack.c.b16 %v1299, %v1298
      %v1321 = vpack.c.b16 %v1301, %v1300
      %v1322 = vpack.c.b16 %v1303, %v1302
      %v1323 = vpack.c.b16 %v1304, %v1304
      %vm1324 = vcmask 1044480
      %v1325 = vrot.slane %v1305, 3
      %v1326 = vrot.slane %v1306, 3
      %v1327 = vsel %vm1324, %v1325, %v1326
      %v1328 = vrot.slane %v1307, 3
      %v1329 = vsel %vm1324, %v1326, %v1328
      %v1330 = vrot.slane %v1308, 3
      %v1331 = vsel %vm1324, %v1328, %v1330
      %v1332 = vrot.slane %v1309, 3
      %v1333 = vsel %vm1324, %v1330, %v1332
      %v1334 = vrot.slane %v1310, 3
      %v1335 = vsel %vm1324, %v1332, %v1334
      %v1336 = vrot.slane %v1311, 3
      %v1337 = vsel %vm1324, %v1334, %v1336
      %v1338 = vrot.slane %v1312, 3
      %v1339 = vsel %vm1324, %v1336, %v1338
      %v1340 = vrot.slane %v1313, 3
      %v1341 = vsel %vm1324, %v1338, %v1340
      %v1342 = vrot.slane %v1314, 3
      %v1343 = vsel %vm1324, %v1340, %v1342
      %v1344 = vrot.slane %v1315, 3
      %v1345 = vsel %vm1324, %v1342, %v1344
      %v1346 = vrot.slane %v1316, 3
      %v1347 = vsel %vm1324, %v1344, %v1346
      %v1348 = vrot.slane %v1317, 3
      %v1349 = vsel %vm1324, %v1346, %v1348
      %v1350 = vrot.slane %v1318, 3
      %v1351 = vsel %vm1324, %v1348, %v1350
      %v1352 = vrot.slane %v1319, 3
      %v1353 = vsel %vm1324, %v1350, %v1352
      %v1354 = vrot.slane %v1320, 3
      %v1355 = vsel %vm1324, %v1352, %v1354
      %v1356 = vrot.slane %v1321, 3
      %v1357 = vsel %vm1324, %v1354, %v1356
      %v1358 = vrot.slane %v1322, 3
      %v1359 = vsel %vm1324, %v1356, %v1358
      %v1360 = vrot.slane %v1323, 3
      %v1361 = vsel %vm1324, %v1358, %v1360
      %v1364 = vunpack.c.l.b16 %v1229
      %v1365 = vunpack.c.l.b16 %v1230
      %v1366 = vpack.c.b16 %v1365, %v1364
      %vm1368 = vcmask 130048
      %v1370 = vsel %vm1368, %v1327, 0
      %v1373 = vsel %vm1368, %v1329, 0
      %v1376 = vsel %vm1368, %v1331, 0
      %v1379 = vsel %vm1368, %v1333, 0
      %v1382 = vsel %vm1368, %v1335, 0
      %v1385 = vsel %vm1368, %v1337, 0
      %v1388 = vsel %vm1368, %v1339, 0
      %v1391 = vsel %vm1368, %v1341, 0
      %v1394 = vsel %vm1368, %v1343, 0
      %v1397 = vsel %vm1368, %v1345, 0
      %v1400 = vsel %vm1368, %v1347, 0
      %v1403 = vsel %vm1368, %v1349, 0
      %v1406 = vsel %vm1368, %v1351, 0
      %v1409 = vsel %vm1368, %v1353, 0
      %v1412 = vsel %vm1368, %v1355, 0
      %v1415 = vsel %vm1368, %v1357, 0
      %v1418 = vsel %vm1368, %v1359, 0
      %v1421 = vsel %vm1368, %v1361, 0
      %1423 = vmatprep.subr.bf16.mxu0 0
      %1424 = vmatpush1.bf16.msra.mxu0 %v1366
      %1425 = vmatprep.subr.bf16.mxu0 0
      %1426 = vmatpush1.bf16.msra.mxu0 0
      %1427 = vmatprep.subr.bf16.mxu0 0
      %1428 = vmatpush1.bf16.msra.mxu0 0
      %1429 = vmatprep.subr.bf16.mxu0 0
      %1430 = vmatpush1.bf16.msra.mxu0 0
      %1431 = vmatprep.subr.bf16.mxu0 0
      %1432 = vmatpush1.bf16.msra.mxu0 0
      %1433 = vmatprep.subr.bf16.mxu0 0
      %1434 = vmatpush1.bf16.msra.mxu0 0
      %1435 = vmatprep.subr.bf16.mxu0 0
      %1436 = vmatpush1.bf16.msra.mxu0 0
      %1437 = vmatprep.subr.bf16.mxu0 0
      %1438 = vmatpush1.bf16.msra.mxu0 0
      %1439 = vmatprep.subr.bf16.mxu0 0
      %1440 = vmatpush1.bf16.msra.mxu0 0
      %1441 = vmatprep.subr.bf16.mxu0 0
      %1442 = vmatpush1.bf16.msra.mxu0 0
      %1443 = vmatprep.subr.bf16.mxu0 0
      %1444 = vmatpush1.bf16.msra.mxu0 0
      %1445 = vmatprep.subr.bf16.mxu0 0
      %1446 = vmatpush1.bf16.msra.mxu0 0
      %1447 = vmatprep.subr.bf16.mxu0 0
      %1448 = vmatpush1.bf16.msra.mxu0 0
      %1449 = vmatprep.subr.bf16.mxu0 0
      %1450 = vmatpush1.bf16.msra.mxu0 0
      %1451 = vmatprep.subr.bf16.mxu0 0
      %1452 = vmatpush1.bf16.msra.mxu0 0
      %1453 = vmatprep.subr.bf16.mxu0 0
      %1454 = vmatpush1.bf16.msra.mxu0 0
      %1455 = vmatprep.mubr.bf16.mxu0 0
      %1456 = vmatmul.mubr.bf16.gmra.mrb[0].mxu0 %v1370
      %v1457 = vpop.f32.mrb[0].mxu0
      %v1458 = vadd.f32 0.0, %v1457
      %v1459 = vpop.f32.mrb[0].mxu0
      %v1460 = vpop.f32.mrb[0].mxu0
      %v1461 = vadd.f32 0.0, %v1460
      %v1462 = vpop.f32.mrb[0].mxu0
      %1463 = vmatprep.mubr.bf16.mxu0 0
      %1464 = vmatmul.mubr.bf16.gmra.mrb[0].mxu0 %v1373
      %v1465 = vpop.f32.mrb[0].mxu0
      %v1466 = vadd.f32 0.0, %v1465
      %v1467 = vpop.f32.mrb[0].mxu0
      %v1468 = vpop.f32.mrb[0].mxu0
      %v1469 = vadd.f32 0.0, %v1468
      %v1470 = vpop.f32.mrb[0].mxu0
      %1471 = vmatprep.mubr.bf16.mxu0 0
      %1472 = vmatmul.mubr.bf16.gmra.mrb[0].mxu0 %v1376
      %v1473 = vpop.f32.mrb[0].mxu0
      %v1474 = vadd.f32 0.0, %v1473
      %v1475 = vpop.f32.mrb[0].mxu0
      %v1476 = vpop.f32.mrb[0].mxu0
      %v1477 = vadd.f32 0.0, %v1476
      %v1478 = vpop.f32.mrb[0].mxu0
      %1479 = vmatprep.mubr.bf16.mxu0 0
      %1480 = vmatmul.mubr.bf16.gmra.mrb[0].mxu0 %v1379
      %v1481 = vpop.f32.mrb[0].mxu0
      %v1482 = vadd.f32 0.0, %v1481
      %v1483 = vpop.f32.mrb[0].mxu0
      %v1484 = vpop.f32.mrb[0].mxu0
      %v1485 = vadd.f32 0.0, %v1484
      %v1486 = vpop.f32.mrb[0].mxu0
      %1487 = vmatprep.mubr.bf16.mxu0 0
      %1488 = vmatmul.mubr.bf16.gmra.mrb[0].mxu0 %v1382
      %v1489 = vpop.f32.mrb[0].mxu0
      %v1490 = vadd.f32 0.0, %v1489
      %v1491 = vpop.f32.mrb[0].mxu0
      %v1492 = vpop.f32.mrb[0].mxu0
      %v1493 = vadd.f32 0.0, %v1492
      %v1494 = vpop.f32.mrb[0].mxu0
      %1495 = vmatprep.mubr.bf16.mxu0 0
      %1496 = vmatmul.mubr.bf16.gmra.mrb[0].mxu0 %v1385
      %v1497 = vpop.f32.mrb[0].mxu0
      %v1498 = vadd.f32 0.0, %v1497
      %v1499 = vpop.f32.mrb[0].mxu0
      %v1500 = vpop.f32.mrb[0].mxu0
      %v1501 = vadd.f32 0.0, %v1500
      %v1502 = vpop.f32.mrb[0].mxu0
      %1503 = vmatprep.mubr.bf16.mxu0 0
      %1504 = vmatmul.mubr.bf16.gmra.mrb[0].mxu0 %v1388
      %v1505 = vpop.f32.mrb[0].mxu0
      %v1506 = vadd.f32 0.0, %v1505
      %v1507 = vpop.f32.mrb[0].mxu0
      %v1508 = vpop.f32.mrb[0].mxu0
      %v1509 = vadd.f32 0.0, %v1508
      %v1510 = vpop.f32.mrb[0].mxu0
      %1511 = vmatprep.mubr.bf16.mxu0 0
      %1512 = vmatmul.mubr.bf16.gmra.mrb[0].mxu0 %v1391
      %v1513 = vpop.f32.mrb[0].mxu0
      %v1514 = vadd.f32 0.0, %v1513
      %v1515 = vpop.f32.mrb[0].mxu0
      %v1516 = vpop.f32.mrb[0].mxu0
      %v1517 = vadd.f32 0.0, %v1516
      %v1518 = vpop.f32.mrb[0].mxu0
      %1519 = vmatprep.mubr.bf16.mxu0 0
      %1520 = vmatmul.mubr.bf16.gmra.mrb[0].mxu0 %v1394
      %v1521 = vpop.f32.mrb[0].mxu0
      %v1522 = vadd.f32 0.0, %v1521
      %v1523 = vpop.f32.mrb[0].mxu0
      %v1524 = vpop.f32.mrb[0].mxu0
      %v1525 = vadd.f32 0.0, %v1524
      %v1526 = vpop.f32.mrb[0].mxu0
      %1527 = vmatprep.mubr.bf16.mxu0 0
      %1528 = vmatmul.mubr.bf16.gmra.mrb[0].mxu0 %v1397
      %v1529 = vpop.f32.mrb[0].mxu0
      %v1530 = vadd.f32 0.0, %v1529
      %v1531 = vpop.f32.mrb[0].mxu0
      %v1532 = vpop.f32.mrb[0].mxu0
      %v1533 = vadd.f32 0.0, %v1532
      %v1534 = vpop.f32.mrb[0].mxu0
      %1535 = vmatprep.mubr.bf16.mxu0 0
      %1536 = vmatmul.mubr.bf16.gmra.mrb[0].mxu0 %v1400
      %v1537 = vpop.f32.mrb[0].mxu0
      %v1538 = vadd.f32 0.0, %v1537
      %v1539 = vpop.f32.mrb[0].mxu0
      %v1540 = vpop.f32.mrb[0].mxu0
      %v1541 = vadd.f32 0.0, %v1540
      %v1542 = vpop.f32.mrb[0].mxu0
      %1543 = vmatprep.mubr.bf16.mxu0 0
      %1544 = vmatmul.mubr.bf16.gmra.mrb[0].mxu0 %v1403
      %v1545 = vpop.f32.mrb[0].mxu0
      %v1546 = vadd.f32 0.0, %v1545
      %v1547 = vpop.f32.mrb[0].mxu0
      %v1548 = vpop.f32.mrb[0].mxu0
      %v1549 = vadd.f32 0.0, %v1548
      %v1550 = vpop.f32.mrb[0].mxu0
      %1551 = vmatprep.mubr.bf16.mxu0 0
      %1552 = vmatmul.mubr.bf16.gmra.mrb[0].mxu0 %v1406
      %v1553 = vpop.f32.mrb[0].mxu0
      %v1554 = vadd.f32 0.0, %v1553
      %v1555 = vpop.f32.mrb[0].mxu0
      %v1556 = vpop.f32.mrb[0].mxu0
      %v1557 = vadd.f32 0.0, %v1556
      %v1558 = vpop.f32.mrb[0].mxu0
      %1559 = vmatprep.mubr.bf16.mxu0 0
      %1560 = vmatmul.mubr.bf16.gmra.mrb[0].mxu0 %v1409
      %v1561 = vpop.f32.mrb[0].mxu0
      %v1562 = vadd.f32 0.0, %v1561
      %v1563 = vpop.f32.mrb[0].mxu0
      %v1564 = vpop.f32.mrb[0].mxu0
      %v1565 = vadd.f32 0.0, %v1564
      %v1566 = vpop.f32.mrb[0].mxu0
      %1567 = vmatprep.mubr.bf16.mxu0 0
      %1568 = vmatmul.mubr.bf16.gmra.mrb[0].mxu0 %v1412
      %v1569 = vpop.f32.mrb[0].mxu0
      %v1570 = vadd.f32 0.0, %v1569
      %v1571 = vpop.f32.mrb[0].mxu0
      %v1572 = vpop.f32.mrb[0].mxu0
      %v1573 = vadd.f32 0.0, %v1572
      %v1574 = vpop.f32.mrb[0].mxu0
      %1575 = vmatprep.mubr.bf16.mxu0 0
      %1576 = vmatmul.mubr.bf16.gmra.mrb[0].mxu0 %v1415
      %v1577 = vpop.f32.mrb[0].mxu0
      %v1578 = vadd.f32 0.0, %v1577
      %v1579 = vpop.f32.mrb[0].mxu0
      %v1580 = vpop.f32.mrb[0].mxu0
      %v1581 = vadd.f32 0.0, %v1580
      %v1582 = vpop.f32.mrb[0].mxu0
      %1583 = vmatprep.mubr.bf16.mxu0 0
      %1584 = vmatmul.mubr.bf16.gmra.mrb[0].mxu0 %v1418
      %v1585 = vpop.f32.mrb[0].mxu0
      %v1586 = vadd.f32 0.0, %v1585
      %v1587 = vpop.f32.mrb[0].mxu0
      %v1588 = vpop.f32.mrb[0].mxu0
      %v1589 = vadd.f32 0.0, %v1588
      %v1590 = vpop.f32.mrb[0].mxu0
      %1591 = vmatprep.mubr.bf16.mxu0 0
      %1592 = vmatmul.mubr.bf16.gmra.mrb[0].mxu0 %v1421
      %v1593 = vpop.f32.mrb[0].mxu0
      %v1594 = vadd.f32 0.0, %v1593
      %v1595 = vpop.f32.mrb[0].mxu0
      %v1596 = vpop.f32.mrb[0].mxu0
      %v1597 = vadd.f32 0.0, %v1596
      %v1598 = vpop.f32.mrb[0].mxu0
      %1599 = vdwg.mxu0
      %v1601 = vunpack.c.l.b16 %v1188
      %v1602 = vpack.c.b16 %v1269, %v1601
      %vm1603 = vsmask.f32 5376
      %v1605 = vshrl.u32 %v1602, 16
      %v1607 = vrot.slane %v1605, 2
      %v1608 = vshll.u32 %v1602, 16
      %v1610 = vrot.slane %v1608, 3
      %v1611 = vor.u32 %v1607, %v1610
      %v1613 = vshrl.u32 %v1306, 16
      %v1615 = vrot.slane %v1613, 2
      %v1616 = vshll.u32 %v1306, 16
      %v1618 = vrot.slane %v1616, 3
      %v1619 = vor.u32 %v1615, %v1618
      %v1620 = vsel %vm1603, %v1611, %v1619
      %v1622 = vshrl.u32 %v1307, 16
      %v1624 = vrot.slane %v1622, 2
      %v1625 = vshll.u32 %v1307, 16
      %v1627 = vrot.slane %v1625, 3
      %v1628 = vor.u32 %v1624, %v1627
      %v1629 = vsel %vm1603, %v1619, %v1628
      %v1631 = vshrl.u32 %v1308, 16
      %v1633 = vrot.slane %v1631, 2
      %v1634 = vshll.u32 %v1308, 16
      %v1636 = vrot.slane %v1634, 3
      %v1637 = vor.u32 %v1633, %v1636
      %v1638 = vsel %vm1603, %v1628, %v1637
      %v1640 = vshrl.u32 %v1309, 16
      %v1642 = vrot.slane %v1640, 2
      %v1643 = vshll.u32 %v1309, 16
      %v1645 = vrot.slane %v1643, 3
      %v1646 = vor.u32 %v1642, %v1645
      %v1647 = vsel %vm1603, %v1637, %v1646
      %v1649 = vshrl.u32 %v1310, 16
      %v1651 = vrot.slane %v1649, 2
      %v1652 = vshll.u32 %v1310, 16
      %v1654 = vrot.slane %v1652, 3
      %v1655 = vor.u32 %v1651, %v1654
      %v1656 = vsel %vm1603, %v1646, %v1655
      %v1658 = vshrl.u32 %v1311, 16
      %v1660 = vrot.slane %v1658, 2
      %v1661 = vshll.u32 %v1311, 16
      %v1663 = vrot.slane %v1661, 3
      %v1664 = vor.u32 %v1660, %v1663
      %v1665 = vsel %vm1603, %v1655, %v1664
      %v1667 = vshrl.u32 %v1312, 16
      %v1669 = vrot.slane %v1667, 2
      %v1670 = vshll.u32 %v1312, 16
      %v1672 = vrot.slane %v1670, 3
      %v1673 = vor.u32 %v1669, %v1672
      %v1674 = vsel %vm1603, %v1664, %v1673
      %v1676 = vshrl.u32 %v1313, 16
      %v1678 = vrot.slane %v1676, 2
      %v1679 = vshll.u32 %v1313, 16
      %v1681 = vrot.slane %v1679, 3
      %v1682 = vor.u32 %v1678, %v1681
      %v1683 = vsel %vm1603, %v1673, %v1682
      %v1685 = vshrl.u32 %v1314, 16
      %v1687 = vrot.slane %v1685, 2
      %v1688 = vshll.u32 %v1314, 16
      %v1690 = vrot.slane %v1688, 3
      %v1691 = vor.u32 %v1687, %v1690
      %v1692 = vsel %vm1603, %v1682, %v1691
      %v1694 = vshrl.u32 %v1315, 16
      %v1696 = vrot.slane %v1694, 2
      %v1697 = vshll.u32 %v1315, 16
      %v1699 = vrot.slane %v1697, 3
      %v1700 = vor.u32 %v1696, %v1699
      %v1701 = vsel %vm1603, %v1691, %v1700
      %v1703 = vshrl.u32 %v1316, 16
      %v1705 = vrot.slane %v1703, 2
      %v1706 = vshll.u32 %v1316, 16
      %v1708 = vrot.slane %v1706, 3
      %v1709 = vor.u32 %v1705, %v1708
      %v1710 = vsel %vm1603, %v1700, %v1709
      %v1712 = vshrl.u32 %v1317, 16
      %v1714 = vrot.slane %v1712, 2
      %v1715 = vshll.u32 %v1317, 16
      %v1717 = vrot.slane %v1715, 3
      %v1718 = vor.u32 %v1714, %v1717
      %v1719 = vsel %vm1603, %v1709, %v1718
      %v1721 = vshrl.u32 %v1318, 16
      %v1723 = vrot.slane %v1721, 2
      %v1724 = vshll.u32 %v1318, 16
      %v1726 = vrot.slane %v1724, 3
      %v1727 = vor.u32 %v1723, %v1726
      %v1728 = vsel %vm1603, %v1718, %v1727
      %v1730 = vshrl.u32 %v1319, 16
      %v1732 = vrot.slane %v1730, 2
      %v1733 = vshll.u32 %v1319, 16
      %v1735 = vrot.slane %v1733, 3
      %v1736 = vor.u32 %v1732, %v1735
      %v1737 = vsel %vm1603, %v1727, %v1736
      %v1739 = vshrl.u32 %v1320, 16
      %v1741 = vrot.slane %v1739, 2
      %v1742 = vshll.u32 %v1320, 16
      %v1744 = vrot.slane %v1742, 3
      %v1745 = vor.u32 %v1741, %v1744
      %v1746 = vsel %vm1603, %v1736, %v1745
      %v1748 = vshrl.u32 %v1321, 16
      %v1750 = vrot.slane %v1748, 2
      %v1751 = vshll.u32 %v1321, 16
      %v1753 = vrot.slane %v1751, 3
      %v1754 = vor.u32 %v1750, %v1753
      %v1755 = vsel %vm1603, %v1745, %v1754
      %v1757 = vshrl.u32 %v1322, 16
      %v1759 = vrot.slane %v1757, 2
      %v1760 = vshll.u32 %v1322, 16
      %v1762 = vrot.slane %v1760, 3
      %v1763 = vor.u32 %v1759, %v1762
      %v1764 = vsel %vm1603, %v1754, %v1763
      %v1766 = vshrl.u32 %v1323, 16
      %v1768 = vrot.slane %v1766, 2
      %v1769 = vshll.u32 %v1323, 16
      %v1771 = vrot.slane %v1769, 3
      %v1772 = vor.u32 %v1768, %v1771
      %v1773 = vsel %vm1603, %v1763, %v1772
      %v1776 = vunpack.c.l.b16 %v1225
      %v1777 = vunpack.c.l.b16 %v1226
      %v1778 = vpack.c.b16 %v1777, %v1776
      %v1781 = vsel %vm1368, %v1620, 0
      %v1784 = vsel %vm1368, %v1629, 0
      %v1787 = vsel %vm1368, %v1638, 0
      %v1790 = vsel %vm1368, %v1647, 0
      %v1793 = vsel %vm1368, %v1656, 0
      %v1796 = vsel %vm1368, %v1665, 0
      %v1799 = vsel %vm1368, %v1674, 0
      %v1802 = vsel %vm1368, %v1683, 0
      %v1805 = vsel %vm1368, %v1692, 0
      %v1808 = vsel %vm1368, %v1701, 0
      %v1811 = vsel %vm1368, %v1710, 0
      %v1814 = vsel %vm1368, %v1719, 0
      %v1817 = vsel %vm1368, %v1728, 0
      %v1820 = vsel %vm1368, %v1737, 0
      %v1823 = vsel %vm1368, %v1746, 0
      %v1826 = vsel %vm1368, %v1755, 0
      %v1829 = vsel %vm1368, %v1764, 0
      %v1832 = vsel %vm1368, %v1773, 0
      %1834 = vmatprep.subr.bf16.mxu0 0
      %1835 = vmatpush1.bf16.msra.mxu0 %v1778
      %1836 = vmatprep.subr.bf16.mxu0 0
      %1837 = vmatpush1.bf16.msra.mxu0 0
      %1838 = vmatprep.subr.bf16.mxu0 0
      %1839 = vmatpush1.bf16.msra.mxu0 0
      %1840 = vmatprep.subr.bf16.mxu0 0
      %1841 = vmatpush1.bf16.msra.mxu0 0
      %1842 = vmatprep.subr.bf16.mxu0 0
      %1843 = vmatpush1.bf16.msra.mxu0 0
      %1844 = vmatprep.subr.bf16.mxu0 0
      %1845 = vmatpush1.bf16.msra.mxu0 0
      %1846 = vmatprep.subr.bf16.mxu0 0
      %1847 = vmatpush1.bf16.msra.mxu0 0
      %1848 = vmatprep.subr.bf16.mxu0 0
      %1849 = vmatpush1.bf16.msra.mxu0 0
      %1850 = vmatprep.subr.bf16.mxu0 0
      %1851 = vmatpush1.bf16.msra.mxu0 0
      %1852 = vmatprep.subr.bf16.mxu0 0
      %1853 = vmatpush1.bf16.msra.mxu0 0
      %1854 = vmatprep.subr.bf16.mxu0 0
      %1855 = vmatpush1.bf16.msra.mxu0 0
      %1856 = vmatprep.subr.bf16.mxu0 0
      %1857 = vmatpush1.bf16.msra.mxu0 0
      %1858 = vmatprep.subr.bf16.mxu0 0
      %1859 = vmatpush1.bf16.msra.mxu0 0
      %1860 = vmatprep.subr.bf16.mxu0 0
      %1861 = vmatpush1.bf16.msra.mxu0 0
      %1862 = vmatprep.subr.bf16.mxu0 0
      %1863 = vmatpush1.bf16.msra.mxu0 0
      %1864 = vmatprep.subr.bf16.mxu0 0
      %1865 = vmatpush1.bf16.msra.mxu0 0
      %1866 = vmatprep.mubr.bf16.mxu0 0
      %1867 = vmatmul.mubr.bf16.gmra.mrb[0].mxu0 %v1781
      %v1868 = vpop.f32.mrb[0].mxu0
      %v1869 = vadd.f32 %v1458, %v1868
      %v1870 = vpop.f32.mrb[0].mxu0
      %v1871 = vpop.f32.mrb[0].mxu0
      %v1872 = vadd.f32 %v1461, %v1871
      %v1873 = vpop.f32.mrb[0].mxu0
      %1874 = vmatprep.mubr.bf16.mxu0 0
      %1875 = vmatmul.mubr.bf16.gmra.mrb[0].mxu0 %v1784
      %v1876 = vpop.f32.mrb[0].mxu0
      %v1877 = vadd.f32 %v1466, %v1876
      %v1878 = vpop.f32.mrb[0].mxu0
      %v1879 = vpop.f32.mrb[0].mxu0
      %v1880 = vadd.f32 %v1469, %v1879
      %v1881 = vpop.f32.mrb[0].mxu0
      %1882 = vmatprep.mubr.bf16.mxu0 0
      %1883 = vmatmul.mubr.bf16.gmra.mrb[0].mxu0 %v1787
      %v1884 = vpop.f32.mrb[0].mxu0
      %v1885 = vadd.f32 %v1474, %v1884
      %v1886 = vpop.f32.mrb[0].mxu0
      %v1887 = vpop.f32.mrb[0].mxu0
      %v1888 = vadd.f32 %v1477, %v1887
      %v1889 = vpop.f32.mrb[0].mxu0
      %1890 = vmatprep.mubr.bf16.mxu0 0
      %1891 = vmatmul.mubr.bf16.gmra.mrb[0].mxu0 %v1790
      %v1892 = vpop.f32.mrb[0].mxu0
      %v1893 = vadd.f32 %v1482, %v1892
      %v1894 = vpop.f32.mrb[0].mxu0
      %v1895 = vpop.f32.mrb[0].mxu0
      %v1896 = vadd.f32 %v1485, %v1895
      %v1897 = vpop.f32.mrb[0].mxu0
      %1898 = vmatprep.mubr.bf16.mxu0 0
      %1899 = vmatmul.mubr.bf16.gmra.mrb[0].mxu0 %v1793
      %v1900 = vpop.f32.mrb[0].mxu0
      %v1901 = vadd.f32 %v1490, %v1900
      %v1902 = vpop.f32.mrb[0].mxu0
      %v1903 = vpop.f32.mrb[0].mxu0
      %v1904 = vadd.f32 %v1493, %v1903
      %v1905 = vpop.f32.mrb[0].mxu0
      %1906 = vmatprep.mubr.bf16.mxu0 0
      %1907 = vmatmul.mubr.bf16.gmra.mrb[0].mxu0 %v1796
      %v1908 = vpop.f32.mrb[0].mxu0
      %v1909 = vadd.f32 %v1498, %v1908
      %v1910 = vpop.f32.mrb[0].mxu0
      %v1911 = vpop.f32.mrb[0].mxu0
      %v1912 = vadd.f32 %v1501, %v1911
      %v1913 = vpop.f32.mrb[0].mxu0
      %1914 = vmatprep.mubr.bf16.mxu0 0
      %1915 = vmatmul.mubr.bf16.gmra.mrb[0].mxu0 %v1799
      %v1916 = vpop.f32.mrb[0].mxu0
      %v1917 = vadd.f32 %v1506, %v1916
      %v1918 = vpop.f32.mrb[0].mxu0
      %v1919 = vpop.f32.mrb[0].mxu0
      %v1920 = vadd.f32 %v1509, %v1919
      %v1921 = vpop.f32.mrb[0].mxu0
      %1922 = vmatprep.mubr.bf16.mxu0 0
      %1923 = vmatmul.mubr.bf16.gmra.mrb[0].mxu0 %v1802
      %v1924 = vpop.f32.mrb[0].mxu0
      %v1925 = vadd.f32 %v1514, %v1924
      %v1926 = vpop.f32.mrb[0].mxu0
      %v1927 = vpop.f32.mrb[0].mxu0
      %v1928 = vadd.f32 %v1517, %v1927
      %v1929 = vpop.f32.mrb[0].mxu0
      %1930 = vmatprep.mubr.bf16.mxu0 0
      %1931 = vmatmul.mubr.bf16.gmra.mrb[0].mxu0 %v1805
      %v1932 = vpop.f32.mrb[0].mxu0
      %v1933 = vadd.f32 %v1522, %v1932
      %v1934 = vpop.f32.mrb[0].mxu0
      %v1935 = vpop.f32.mrb[0].mxu0
      %v1936 = vadd.f32 %v1525, %v1935
      %v1937 = vpop.f32.mrb[0].mxu0
      %1938 = vmatprep.mubr.bf16.mxu0 0
      %1939 = vmatmul.mubr.bf16.gmra.mrb[0].mxu0 %v1808
      %v1940 = vpop.f32.mrb[0].mxu0
      %v1941 = vadd.f32 %v1530, %v1940
      %v1942 = vpop.f32.mrb[0].mxu0
      %v1943 = vpop.f32.mrb[0].mxu0
      %v1944 = vadd.f32 %v1533, %v1943
      %v1945 = vpop.f32.mrb[0].mxu0
      %1946 = vmatprep.mubr.bf16.mxu0 0
      %1947 = vmatmul.mubr.bf16.gmra.mrb[0].mxu0 %v1811
      %v1948 = vpop.f32.mrb[0].mxu0
      %v1949 = vadd.f32 %v1538, %v1948
      %v1950 = vpop.f32.mrb[0].mxu0
      %v1951 = vpop.f32.mrb[0].mxu0
      %v1952 = vadd.f32 %v1541, %v1951
      %v1953 = vpop.f32.mrb[0].mxu0
      %1954 = vmatprep.mubr.bf16.mxu0 0
      %1955 = vmatmul.mubr.bf16.gmra.mrb[0].mxu0 %v1814
      %v1956 = vpop.f32.mrb[0].mxu0
      %v1957 = vadd.f32 %v1546, %v1956
      %v1958 = vpop.f32.mrb[0].mxu0
      %v1959 = vpop.f32.mrb[0].mxu0
      %v1960 = vadd.f32 %v1549, %v1959
      %v1961 = vpop.f32.mrb[0].mxu0
      %1962 = vmatprep.mubr.bf16.mxu0 0
      %1963 = vmatmul.mubr.bf16.gmra.mrb[0].mxu0 %v1817
      %v1964 = vpop.f32.mrb[0].mxu0
      %v1965 = vadd.f32 %v1554, %v1964
      %v1966 = vpop.f32.mrb[0].mxu0
      %v1967 = vpop.f32.mrb[0].mxu0
      %v1968 = vadd.f32 %v1557, %v1967
      %v1969 = vpop.f32.mrb[0].mxu0
      %1970 = vmatprep.mubr.bf16.mxu0 0
      %1971 = vmatmul.mubr.bf16.gmra.mrb[0].mxu0 %v1820
      %v1972 = vpop.f32.mrb[0].mxu0
      %v1973 = vadd.f32 %v1562, %v1972
      %v1974 = vpop.f32.mrb[0].mxu0
      %v1975 = vpop.f32.mrb[0].mxu0
      %v1976 = vadd.f32 %v1565, %v1975
      %v1977 = vpop.f32.mrb[0].mxu0
      %1978 = vmatprep.mubr.bf16.mxu0 0
      %1979 = vmatmul.mubr.bf16.gmra.mrb[0].mxu0 %v1823
      %v1980 = vpop.f32.mrb[0].mxu0
      %v1981 = vadd.f32 %v1570, %v1980
      %v1982 = vpop.f32.mrb[0].mxu0
      %v1983 = vpop.f32.mrb[0].mxu0
      %v1984 = vadd.f32 %v1573, %v1983
      %v1985 = vpop.f32.mrb[0].mxu0
      %1986 = vmatprep.mubr.bf16.mxu0 0
      %1987 = vmatmul.mubr.bf16.gmra.mrb[0].mxu0 %v1826
      %v1988 = vpop.f32.mrb[0].mxu0
      %v1989 = vadd.f32 %v1578, %v1988
      %v1990 = vpop.f32.mrb[0].mxu0
      %v1991 = vpop.f32.mrb[0].mxu0
      %v1992 = vadd.f32 %v1581, %v1991
      %v1993 = vpop.f32.mrb[0].mxu0
      %1994 = vmatprep.mubr.bf16.mxu0 0
      %1995 = vmatmul.mubr.bf16.gmra.mrb[0].mxu0 %v1829
      %v1996 = vpop.f32.mrb[0].mxu0
      %v1997 = vadd.f32 %v1586, %v1996
      %v1998 = vpop.f32.mrb[0].mxu0
      %v1999 = vpop.f32.mrb[0].mxu0
      %v2000 = vadd.f32 %v1589, %v1999
      %v2001 = vpop.f32.mrb[0].mxu0
      %2002 = vmatprep.mubr.bf16.mxu0 0
      %2003 = vmatmul.mubr.bf16.gmra.mrb[0].mxu0 %v1832
      %v2004 = vpop.f32.mrb[0].mxu0
      %v2005 = vadd.f32 %v1594, %v2004
      %v2006 = vpop.f32.mrb[0].mxu0
      %v2007 = vpop.f32.mrb[0].mxu0
      %v2008 = vadd.f32 %v1597, %v2007
      %v2009 = vpop.f32.mrb[0].mxu0
      %2010 = vdwg.mxu0
      %v2011 = vld [vmem:[#allocation2 + $0x94] sm:$0xf]
      %s2012 = scalar_lea.vmem %s2, 16
      %v2013 = vld [vmem:[%s2012] sm:$0xf]
      %v2014 = vld [vmem:[%s2012 + $0x4] sm:$0xf]
      %v2016 = vunpack.c.l.b16 %v2011
      %v2017 = vpack.c.b16 %v2016, %v2016
      %vm2018 = vsmask.f32 4352
      %v2020 = vshrl.u32 %v1305, 16
      %v2022 = vrot.slane %v2020, 3
      %v2023 = vshll.u32 %v1305, 16
      %v2025 = vrot.slane %v2023, 4
      %v2026 = vor.u32 %v2022, %v2025
      %v2027 = vrot.slane %v1613, 3
      %v2028 = vrot.slane %v1616, 4
      %v2029 = vor.u32 %v2027, %v2028
      %v2030 = vsel %vm2018, %v2026, %v2029
      %v2031 = vrot.slane %v1622, 3
      %v2032 = vrot.slane %v1625, 4
      %v2033 = vor.u32 %v2031, %v2032
      %v2034 = vsel %vm2018, %v2029, %v2033
      %v2035 = vrot.slane %v1631, 3
      %v2036 = vrot.slane %v1634, 4
      %v2037 = vor.u32 %v2035, %v2036
      %v2038 = vsel %vm2018, %v2033, %v2037
      %v2039 = vrot.slane %v1640, 3
      %v2040 = vrot.slane %v1643, 4
      %v2041 = vor.u32 %v2039, %v2040
      %v2042 = vsel %vm2018, %v2037, %v2041
      %v2043 = vrot.slane %v1649, 3
      %v2044 = vrot.slane %v1652, 4
      %v2045 = vor.u32 %v2043, %v2044
      %v2046 = vsel %vm2018, %v2041, %v2045
      %v2047 = vrot.slane %v1658, 3
      %v2048 = vrot.slane %v1661, 4
      %v2049 = vor.u32 %v2047, %v2048
      %v2050 = vsel %vm2018, %v2045, %v2049
      %v2051 = vrot.slane %v1667, 3
      %v2052 = vrot.slane %v1670, 4
      %v2053 = vor.u32 %v2051, %v2052
      %v2054 = vsel %vm2018, %v2049, %v2053
      %v2055 = vrot.slane %v1676, 3
      %v2056 = vrot.slane %v1679, 4
      %v2057 = vor.u32 %v2055, %v2056
      %v2058 = vsel %vm2018, %v2053, %v2057
      %v2059 = vrot.slane %v1685, 3
      %v2060 = vrot.slane %v1688, 4
      %v2061 = vor.u32 %v2059, %v2060
      %v2062 = vsel %vm2018, %v2057, %v2061
      %v2063 = vrot.slane %v1694, 3
      %v2064 = vrot.slane %v1697, 4
      %v2065 = vor.u32 %v2063, %v2064
      %v2066 = vsel %vm2018, %v2061, %v2065
      %v2067 = vrot.slane %v1703, 3
      %v2068 = vrot.slane %v1706, 4
      %v2069 = vor.u32 %v2067, %v2068
      %v2070 = vsel %vm2018, %v2065, %v2069
      %v2071 = vrot.slane %v1712, 3
      %v2072 = vrot.slane %v1715, 4
      %v2073 = vor.u32 %v2071, %v2072
      %v2074 = vsel %vm2018, %v2069, %v2073
      %v2075 = vrot.slane %v1721, 3
      %v2076 = vrot.slane %v1724, 4
      %v2077 = vor.u32 %v2075, %v2076
      %v2078 = vsel %vm2018, %v2073, %v2077
      %v2079 = vrot.slane %v1730, 3
      %v2080 = vrot.slane %v1733, 4
      %v2081 = vor.u32 %v2079, %v2080
      %v2082 = vsel %vm2018, %v2077, %v2081
      %v2083 = vrot.slane %v1739, 3
      %v2084 = vrot.slane %v1742, 4
      %v2085 = vor.u32 %v2083, %v2084
      %v2086 = vsel %vm2018, %v2081, %v2085
      %v2087 = vrot.slane %v1748, 3
      %v2088 = vrot.slane %v1751, 4
      %v2089 = vor.u32 %v2087, %v2088
      %v2090 = vsel %vm2018, %v2085, %v2089
      %v2091 = vrot.slane %v1757, 3
      %v2092 = vrot.slane %v1760, 4
      %v2093 = vor.u32 %v2091, %v2092
      %v2094 = vsel %vm2018, %v2089, %v2093
      %v2096 = vshrl.u32 %v2017, 16
      %v2098 = vrot.slane %v2096, 3
      %v2099 = vshll.u32 %v2017, 16
      %v2101 = vrot.slane %v2099, 4
      %v2102 = vor.u32 %v2098, %v2101
      %v2103 = vsel %vm2018, %v2093, %v2102
      %v2106 = vunpack.c.l.b16 %v2013
      %v2107 = vunpack.c.l.b16 %v2014
      %v2108 = vpack.c.b16 %v2107, %v2106
      %v2111 = vsel %vm1368, %v2030, 0
      %v2114 = vsel %vm1368, %v2034, 0
      %v2117 = vsel %vm1368, %v2038, 0
      %v2120 = vsel %vm1368, %v2042, 0
      %v2123 = vsel %vm1368, %v2046, 0
      %v2126 = vsel %vm1368, %v2050, 0
      %v2129 = vsel %vm1368, %v2054, 0
      %v2132 = vsel %vm1368, %v2058, 0
      %v2135 = vsel %vm1368, %v2062, 0
      %v2138 = vsel %vm1368, %v2066, 0
      %v2141 = vsel %vm1368, %v2070, 0
      %v2144 = vsel %vm1368, %v2074, 0
      %v2147 = vsel %vm1368, %v2078, 0
      %v2150 = vsel %vm1368, %v2082, 0
      %v2153 = vsel %vm1368, %v2086, 0
      %v2156 = vsel %vm1368, %v2090, 0
      %v2159 = vsel %vm1368, %v2094, 0
      %v2162 = vsel %vm1368, %v2103, 0
      %2164 = vmatprep.subr.bf16.mxu0 0
      %2165 = vmatpush1.bf16.msra.mxu0 %v2108
      %2166 = vmatprep.subr.bf16.mxu0 0
      %2167 = vmatpush1.bf16.msra.mxu0 0
      %2168 = vmatprep.subr.bf16.mxu0 0
      %2169 = vmatpush1.bf16.msra.mxu0 0
      %2170 = vmatprep.subr.bf16.mxu0 0
      %2171 = vmatpush1.bf16.msra.mxu0 0
      %2172 = vmatprep.subr.bf16.mxu0 0
      %2173 = vmatpush1.bf16.msra.mxu0 0
      %2174 = vmatprep.subr.bf16.mxu0 0
      %2175 = vmatpush1.bf16.msra.mxu0 0
      %2176 = vmatprep.subr.bf16.mxu0 0
      %2177 = vmatpush1.bf16.msra.mxu0 0
      %2178 = vmatprep.subr.bf16.mxu0 0
      %2179 = vmatpush1.bf16.msra.mxu0 0
      %2180 = vmatprep.subr.bf16.mxu0 0
      %2181 = vmatpush1.bf16.msra.mxu0 0
      %2182 = vmatprep.subr.bf16.mxu0 0
      %2183 = vmatpush1.bf16.msra.mxu0 0
      %2184 = vmatprep.subr.bf16.mxu0 0
      %2185 = vmatpush1.bf16.msra.mxu0 0
      %2186 = vmatprep.subr.bf16.mxu0 0
      %2187 = vmatpush1.bf16.msra.mxu0 0
      %2188 = vmatprep.subr.bf16.mxu0 0
      %2189 = vmatpush1.bf16.msra.mxu0 0
      %2190 = vmatprep.subr.bf16.mxu0 0
      %2191 = vmatpush1.bf16.msra.mxu0 0
      %2192 = vmatprep.subr.bf16.mxu0 0
      %2193 = vmatpush1.bf16.msra.mxu0 0
      %2194 = vmatprep.subr.bf16.mxu0 0
      %2195 = vmatpush1.bf16.msra.mxu0 0
      %2196 = vmatprep.mubr.bf16.mxu0 0
      %2197 = vmatmul.mubr.bf16.gmra.mrb[0].mxu0 %v2111
      %v2198 = vpop.f32.mrb[0].mxu0
      %v2199 = vadd.f32 0.0, %v2198
      %v2200 = vpop.f32.mrb[0].mxu0
      %v2201 = vpop.f32.mrb[0].mxu0
      %v2202 = vadd.f32 0.0, %v2201
      %v2203 = vpop.f32.mrb[0].mxu0
      %2204 = vmatprep.mubr.bf16.mxu0 0
      %2205 = vmatmul.mubr.bf16.gmra.mrb[0].mxu0 %v2114
      %v2206 = vpop.f32.mrb[0].mxu0
      %v2207 = vadd.f32 0.0, %v2206
      %v2208 = vpop.f32.mrb[0].mxu0
      %v2209 = vpop.f32.mrb[0].mxu0
      %v2210 = vadd.f32 0.0, %v2209
      %v2211 = vpop.f32.mrb[0].mxu0
      %2212 = vmatprep.mubr.bf16.mxu0 0
      %2213 = vmatmul.mubr.bf16.gmra.mrb[0].mxu0 %v2117
      %v2214 = vpop.f32.mrb[0].mxu0
      %v2215 = vadd.f32 0.0, %v2214
      %v2216 = vpop.f32.mrb[0].mxu0
      %v2217 = vpop.f32.mrb[0].mxu0
      %v2218 = vadd.f32 0.0, %v2217
      %v2219 = vpop.f32.mrb[0].mxu0
      %2220 = vmatprep.mubr.bf16.mxu0 0
      %2221 = vmatmul.mubr.bf16.gmra.mrb[0].mxu0 %v2120
      %v2222 = vpop.f32.mrb[0].mxu0
      %v2223 = vadd.f32 0.0, %v2222
      %v2224 = vpop.f32.mrb[0].mxu0
      %v2225 = vpop.f32.mrb[0].mxu0
      %v2226 = vadd.f32 0.0, %v2225
      %v2227 = vpop.f32.mrb[0].mxu0
      %2228 = vmatprep.mubr.bf16.mxu0 0
      %2229 = vmatmul.mubr.bf16.gmra.mrb[0].mxu0 %v2123
      %v2230 = vpop.f32.mrb[0].mxu0
      %v2231 = vadd.f32 0.0, %v2230
      %v2232 = vpop.f32.mrb[0].mxu0
      %v2233 = vpop.f32.mrb[0].mxu0
      %v2234 = vadd.f32 0.0, %v2233
      %v2235 = vpop.f32.mrb[0].mxu0
      %2236 = vmatprep.mubr.bf16.mxu0 0
      %2237 = vmatmul.mubr.bf16.gmra.mrb[0].mxu0 %v2126
      %v2238 = vpop.f32.mrb[0].mxu0
      %v2239 = vadd.f32 0.0, %v2238
      %v2240 = vpop.f32.mrb[0].mxu0
      %v2241 = vpop.f32.mrb[0].mxu0
      %v2242 = vadd.f32 0.0, %v2241
      %v2243 = vpop.f32.mrb[0].mxu0
      %2244 = vmatprep.mubr.bf16.mxu0 0
      %2245 = vmatmul.mubr.bf16.gmra.mrb[0].mxu0 %v2129
      %v2246 = vpop.f32.mrb[0].mxu0
      %v2247 = vadd.f32 0.0, %v2246
      %v2248 = vpop.f32.mrb[0].mxu0
      %v2249 = vpop.f32.mrb[0].mxu0
      %v2250 = vadd.f32 0.0, %v2249
      %v2251 = vpop.f32.mrb[0].mxu0
      %2252 = vmatprep.mubr.bf16.mxu0 0
      %2253 = vmatmul.mubr.bf16.gmra.mrb[0].mxu0 %v2132
      %v2254 = vpop.f32.mrb[0].mxu0
      %v2255 = vadd.f32 0.0, %v2254
      %v2256 = vpop.f32.mrb[0].mxu0
      %v2257 = vpop.f32.mrb[0].mxu0
      %v2258 = vadd.f32 0.0, %v2257
      %v2259 = vpop.f32.mrb[0].mxu0
      %2260 = vmatprep.mubr.bf16.mxu0 0
      %2261 = vmatmul.mubr.bf16.gmra.mrb[0].mxu0 %v2135
      %v2262 = vpop.f32.mrb[0].mxu0
      %v2263 = vadd.f32 0.0, %v2262
      %v2264 = vpop.f32.mrb[0].mxu0
      %v2265 = vpop.f32.mrb[0].mxu0
      %v2266 = vadd.f32 0.0, %v2265
      %v2267 = vpop.f32.mrb[0].mxu0
      %2268 = vmatprep.mubr.bf16.mxu0 0
      %2269 = vmatmul.mubr.bf16.gmra.mrb[0].mxu0 %v2138
      %v2270 = vpop.f32.mrb[0].mxu0
      %v2271 = vadd.f32 0.0, %v2270
      %v2272 = vpop.f32.mrb[0].mxu0
      %v2273 = vpop.f32.mrb[0].mxu0
      %v2274 = vadd.f32 0.0, %v2273
      %v2275 = vpop.f32.mrb[0].mxu0
      %2276 = vmatprep.mubr.bf16.mxu0 0
      %2277 = vmatmul.mubr.bf16.gmra.mrb[0].mxu0 %v2141
      %v2278 = vpop.f32.mrb[0].mxu0
      %v2279 = vadd.f32 0.0, %v2278
      %v2280 = vpop.f32.mrb[0].mxu0
      %v2281 = vpop.f32.mrb[0].mxu0
      %v2282 = vadd.f32 0.0, %v2281
      %v2283 = vpop.f32.mrb[0].mxu0
      %2284 = vmatprep.mubr.bf16.mxu0 0
      %2285 = vmatmul.mubr.bf16.gmra.mrb[0].mxu0 %v2144
      %v2286 = vpop.f32.mrb[0].mxu0
      %v2287 = vadd.f32 0.0, %v2286
      %v2288 = vpop.f32.mrb[0].mxu0
      %v2289 = vpop.f32.mrb[0].mxu0
      %v2290 = vadd.f32 0.0, %v2289
      %v2291 = vpop.f32.mrb[0].mxu0
      %2292 = vmatprep.mubr.bf16.mxu0 0
      %2293 = vmatmul.mubr.bf16.gmra.mrb[0].mxu0 %v2147
      %v2294 = vpop.f32.mrb[0].mxu0
      %v2295 = vadd.f32 0.0, %v2294
      %v2296 = vpop.f32.mrb[0].mxu0
      %v2297 = vpop.f32.mrb[0].mxu0
      %v2298 = vadd.f32 0.0, %v2297
      %v2299 = vpop.f32.mrb[0].mxu0
      %2300 = vmatprep.mubr.bf16.mxu0 0
      %2301 = vmatmul.mubr.bf16.gmra.mrb[0].mxu0 %v2150
      %v2302 = vpop.f32.mrb[0].mxu0
      %v2303 = vadd.f32 0.0, %v2302
      %v2304 = vpop.f32.mrb[0].mxu0
      %v2305 = vpop.f32.mrb[0].mxu0
      %v2306 = vadd.f32 0.0, %v2305
      %v2307 = vpop.f32.mrb[0].mxu0
      %2308 = vmatprep.mubr.bf16.mxu0 0
      %2309 = vmatmul.mubr.bf16.gmra.mrb[0].mxu0 %v2153
      %v2310 = vpop.f32.mrb[0].mxu0
      %v2311 = vadd.f32 0.0, %v2310
      %v2312 = vpop.f32.mrb[0].mxu0
      %v2313 = vpop.f32.mrb[0].mxu0
      %v2314 = vadd.f32 0.0, %v2313
      %v2315 = vpop.f32.mrb[0].mxu0
      %2316 = vmatprep.mubr.bf16.mxu0 0
      %2317 = vmatmul.mubr.bf16.gmra.mrb[0].mxu0 %v2156
      %v2318 = vpop.f32.mrb[0].mxu0
      %v2319 = vadd.f32 0.0, %v2318
      %v2320 = vpop.f32.mrb[0].mxu0
      %v2321 = vpop.f32.mrb[0].mxu0
      %v2322 = vadd.f32 0.0, %v2321
      %v2323 = vpop.f32.mrb[0].mxu0
      %2324 = vmatprep.mubr.bf16.mxu0 0
      %2325 = vmatmul.mubr.bf16.gmra.mrb[0].mxu0 %v2159
      %v2326 = vpop.f32.mrb[0].mxu0
      %v2327 = vadd.f32 0.0, %v2326
      %v2328 = vpop.f32.mrb[0].mxu0
      %v2329 = vpop.f32.mrb[0].mxu0
      %v2330 = vadd.f32 0.0, %v2329
      %v2331 = vpop.f32.mrb[0].mxu0
      %2332 = vmatprep.mubr.bf16.mxu0 0
      %2333 = vmatmul.mubr.bf16.gmra.mrb[0].mxu0 %v2162
      %v2334 = vpop.f32.mrb[0].mxu0
      %v2335 = vadd.f32 0.0, %v2334
      %v2336 = vpop.f32.mrb[0].mxu0
      %v2337 = vpop.f32.mrb[0].mxu0
      %v2338 = vadd.f32 0.0, %v2337
      %v2339 = vpop.f32.mrb[0].mxu0
      %2340 = vdwg.mxu0
      %v2341 = vadd.f32 %v1869, %v2199
      %v2342 = vadd.f32 %v1872, %v2202
      %v2343 = vadd.f32 %v1877, %v2207
      %v2344 = vadd.f32 %v1880, %v2210
      %v2345 = vadd.f32 %v1885, %v2215
      %v2346 = vadd.f32 %v1888, %v2218
      %v2347 = vadd.f32 %v1893, %v2223
      %v2348 = vadd.f32 %v1896, %v2226
      %v2349 = vadd.f32 %v1901, %v2231
      %v2350 = vadd.f32 %v1904, %v2234
      %v2351 = vadd.f32 %v1909, %v2239
      %v2352 = vadd.f32 %v1912, %v2242
      %v2353 = vadd.f32 %v1917, %v2247
      %v2354 = vadd.f32 %v1920, %v2250
      %v2355 = vadd.f32 %v1925, %v2255
      %v2356 = vadd.f32 %v1928, %v2258
      %v2357 = vadd.f32 %v1933, %v2263
      %v2358 = vadd.f32 %v1936, %v2266
      %v2359 = vadd.f32 %v1941, %v2271
      %v2360 = vadd.f32 %v1944, %v2274
      %v2361 = vadd.f32 %v1949, %v2279
      %v2362 = vadd.f32 %v1952, %v2282
      %v2363 = vadd.f32 %v1957, %v2287
      %v2364 = vadd.f32 %v1960, %v2290
      %v2365 = vadd.f32 %v1965, %v2295
      %v2366 = vadd.f32 %v1968, %v2298
      %v2367 = vadd.f32 %v1973, %v2303
      %v2368 = vadd.f32 %v1976, %v2306
      %v2369 = vadd.f32 %v1981, %v2311
      %v2370 = vadd.f32 %v1984, %v2314
      %v2371 = vadd.f32 %v1989, %v2319
      %v2372 = vadd.f32 %v1992, %v2322
      %v2373 = vadd.f32 %v1997, %v2327
      %v2374 = vadd.f32 %v2000, %v2330
      %v2375 = vadd.f32 %v2005, %v2335
      %v2376 = vadd.f32 %v2008, %v2338
      %v2377 = vld [vmem:[#allocation2 + $0xc] sm:$0x8]
      %v2378 = vld [vmem:[#allocation2 + $0x10] sm:$0xf]
      %v2379 = vld [vmem:[#allocation2 + $0x14] sm:$0xf]
      %v2380 = vld [vmem:[#allocation2 + $0x18] sm:$0xf]
      %v2381 = vld [vmem:[#allocation2 + $0x1c] sm:$0xf]
      %v2382 = vld [vmem:[#allocation2 + $0x20] sm:$0xf]
      %v2383 = vld [vmem:[#allocation2 + $0x24] sm:$0xf]
      %v2384 = vld [vmem:[#allocation2 + $0x28] sm:$0xf]
      %v2385 = vld [vmem:[#allocation2 + $0x2c] sm:$0xf]
      %v2386 = vld [vmem:[#allocation2 + $0x30] sm:$0xf]
      %v2387 = vld [vmem:[#allocation2 + $0x34] sm:$0xf]
      %v2388 = vld [vmem:[#allocation2 + $0x38] sm:$0xf]
      %v2389 = vld [vmem:[#allocation2 + $0x3c] sm:$0xf]
      %v2390 = vld [vmem:[#allocation2 + $0x40] sm:$0xf]
      %v2391 = vld [vmem:[#allocation2 + $0x44] sm:$0xf]
      %v2392 = vld [vmem:[#allocation2 + $0x48] sm:$0xf]
      %v2393 = vld [vmem:[#allocation2 + $0x4c] sm:$0xf]
      %v2394 = vld [vmem:[#allocation2 + $0x50] sm:$0xf]
      %v2395 = vld [vmem:[#allocation2 + $0x54] sm:$0xf]
      %v2396 = vld [vmem:[#allocation2 + $0x58] sm:$0xf]
      %v2397 = vld [vmem:[#allocation2 + $0x5c] sm:$0xf]
      %v2398 = vld [vmem:[#allocation2 + $0x60] sm:$0xf]
      %v2399 = vld [vmem:[#allocation2 + $0x64] sm:$0xf]
      %v2400 = vld [vmem:[#allocation2 + $0x68] sm:$0xf]
      %v2401 = vld [vmem:[#allocation2 + $0x6c] sm:$0xf]
      %v2402 = vld [vmem:[#allocation2 + $0x70] sm:$0xf]
      %v2403 = vld [vmem:[#allocation2 + $0x74] sm:$0xf]
      %v2404 = vld [vmem:[#allocation2 + $0x78] sm:$0xf]
      %v2405 = vld [vmem:[#allocation2 + $0x7c] sm:$0xf]
      %v2406 = vld [vmem:[#allocation2 + $0x80] sm:$0xf]
      %v2407 = vld [vmem:[#allocation2 + $0x84] sm:$0xf]
      %v2408 = vld [vmem:[#allocation2 + $0x88] sm:$0xf]
      %v2409 = vld [vmem:[#allocation2 + $0x8c] sm:$0xf]
      %v2410 = vld [vmem:[#allocation2 + $0x90] sm:$0xf]
      %v2411 = vld [vmem:[#allocation2 + $0x94] sm:$0xf]
      %v2412 = vld [vmem:[#allocation2 + $0x98] sm:$0xf]
      %v2413 = vld [vmem:[#allocation2 + $0x9c] sm:$0xf]
      %s2414 = scalar_lea.vmem %s2, 24
      %v2415 = vld [vmem:[%s2414] sm:$0xf]
      %v2416 = vld [vmem:[%s2414 + $0x4] sm:$0xf]
      %v2454 = vunpack.c.l.b16 %v2377
      %v2455 = vunpack.c.l.b16 %v2378
      %v2456 = vunpack.c.l.b16 %v2379
      %v2457 = vunpack.c.l.b16 %v2380
      %v2458 = vunpack.c.l.b16 %v2381
      %v2459 = vunpack.c.l.b16 %v2382
      %v2460 = vunpack.c.l.b16 %v2383
      %v2461 = vunpack.c.l.b16 %v2384
      %v2462 = vunpack.c.l.b16 %v2385
      %v2463 = vunpack.c.l.b16 %v2386
      %v2464 = vunpack.c.l.b16 %v2387
      %v2465 = vunpack.c.l.b16 %v2388
      %v2466 = vunpack.c.l.b16 %v2389
      %v2467 = vunpack.c.l.b16 %v2390
      %v2468 = vunpack.c.l.b16 %v2391
      %v2469 = vunpack.c.l.b16 %v2392
      %v2470 = vunpack.c.l.b16 %v2393
      %v2471 = vunpack.c.l.b16 %v2394
      %v2472 = vunpack.c.l.b16 %v2395
      %v2473 = vunpack.c.l.b16 %v2396
      %v2474 = vunpack.c.l.b16 %v2397
      %v2475 = vunpack.c.l.b16 %v2398
      %v2476 = vunpack.c.l.b16 %v2399
      %v2477 = vunpack.c.l.b16 %v2400
      %v2478 = vunpack.c.l.b16 %v2401
      %v2479 = vunpack.c.l.b16 %v2402
      %v2480 = vunpack.c.l.b16 %v2403
      %v2481 = vunpack.c.l.b16 %v2404
      %v2482 = vunpack.c.l.b16 %v2405
      %v2483 = vunpack.c.l.b16 %v2406
      %v2484 = vunpack.c.l.b16 %v2407
      %v2485 = vunpack.c.l.b16 %v2408
      %v2486 = vunpack.c.l.b16 %v2409
      %v2487 = vunpack.c.l.b16 %v2410
      %v2488 = vunpack.c.l.b16 %v2411
      %v2489 = vunpack.c.l.b16 %v2412
      %v2490 = vunpack.c.l.b16 %v2413
      %v2491 = vpack.c.b16 %v2455, %v2454
      %v2492 = vpack.c.b16 %v2457, %v2456
      %v2493 = vpack.c.b16 %v2459, %v2458
      %v2494 = vpack.c.b16 %v2461, %v2460
      %v2495 = vpack.c.b16 %v2463, %v2462
      %v2496 = vpack.c.b16 %v2465, %v2464
      %v2497 = vpack.c.b16 %v2467, %v2466
      %v2498 = vpack.c.b16 %v2469, %v2468
      %v2499 = vpack.c.b16 %v2471, %v2470
      %v2500 = vpack.c.b16 %v2473, %v2472
      %v2501 = vpack.c.b16 %v2475, %v2474
      %v2502 = vpack.c.b16 %v2477, %v2476
      %v2503 = vpack.c.b16 %v2479, %v2478
      %v2504 = vpack.c.b16 %v2481, %v2480
      %v2505 = vpack.c.b16 %v2483, %v2482
      %v2506 = vpack.c.b16 %v2485, %v2484
      %v2507 = vpack.c.b16 %v2487, %v2486
      %v2508 = vpack.c.b16 %v2489, %v2488
      %v2509 = vpack.c.b16 %v2490, %v2490
      %v2511 = vshrl.u32 %v2491, 16
      %v2513 = vrot.slane %v2511, 3
      %v2514 = vshll.u32 %v2491, 16
      %v2516 = vrot.slane %v2514, 4
      %v2517 = vor.u32 %v2513, %v2516
      %v2519 = vshrl.u32 %v2492, 16
      %v2521 = vrot.slane %v2519, 3
      %v2522 = vshll.u32 %v2492, 16
      %v2524 = vrot.slane %v2522, 4
      %v2525 = vor.u32 %v2521, %v2524
      %v2526 = vsel %vm2018, %v2517, %v2525
      %v2528 = vshrl.u32 %v2493, 16
      %v2530 = vrot.slane %v2528, 3
      %v2531 = vshll.u32 %v2493, 16
      %v2533 = vrot.slane %v2531, 4
      %v2534 = vor.u32 %v2530, %v2533
      %v2535 = vsel %vm2018, %v2525, %v2534
      %v2537 = vshrl.u32 %v2494, 16
      %v2539 = vrot.slane %v2537, 3
      %v2540 = vshll.u32 %v2494, 16
      %v2542 = vrot.slane %v2540, 4
      %v2543 = vor.u32 %v2539, %v2542
      %v2544 = vsel %vm2018, %v2534, %v2543
      %v2546 = vshrl.u32 %v2495, 16
      %v2548 = vrot.slane %v2546, 3
      %v2549 = vshll.u32 %v2495, 16
      %v2551 = vrot.slane %v2549, 4
      %v2552 = vor.u32 %v2548, %v2551
      %v2553 = vsel %vm2018, %v2543, %v2552
      %v2555 = vshrl.u32 %v2496, 16
      %v2557 = vrot.slane %v2555, 3
      %v2558 = vshll.u32 %v2496, 16
      %v2560 = vrot.slane %v2558, 4
      %v2561 = vor.u32 %v2557, %v2560
      %v2562 = vsel %vm2018, %v2552, %v2561
      %v2564 = vshrl.u32 %v2497, 16
      %v2566 = vrot.slane %v2564, 3
      %v2567 = vshll.u32 %v2497, 16
      %v2569 = vrot.slane %v2567, 4
      %v2570 = vor.u32 %v2566, %v2569
      %v2571 = vsel %vm2018, %v2561, %v2570
      %v2573 = vshrl.u32 %v2498, 16
      %v2575 = vrot.slane %v2573, 3
      %v2576 = vshll.u32 %v2498, 16
      %v2578 = vrot.slane %v2576, 4
      %v2579 = vor.u32 %v2575, %v2578
      %v2580 = vsel %vm2018, %v2570, %v2579
      %v2582 = vshrl.u32 %v2499, 16
      %v2584 = vrot.slane %v2582, 3
      %v2585 = vshll.u32 %v2499, 16
      %v2587 = vrot.slane %v2585, 4
      %v2588 = vor.u32 %v2584, %v2587
      %v2589 = vsel %vm2018, %v2579, %v2588
      %v2591 = vshrl.u32 %v2500, 16
      %v2593 = vrot.slane %v2591, 3
      %v2594 = vshll.u32 %v2500, 16
      %v2596 = vrot.slane %v2594, 4
      %v2597 = vor.u32 %v2593, %v2596
      %v2598 = vsel %vm2018, %v2588, %v2597
      %v2600 = vshrl.u32 %v2501, 16
      %v2602 = vrot.slane %v2600, 3
      %v2603 = vshll.u32 %v2501, 16
      %v2605 = vrot.slane %v2603, 4
      %v2606 = vor.u32 %v2602, %v2605
      %v2607 = vsel %vm2018, %v2597, %v2606
      %v2609 = vshrl.u32 %v2502, 16
      %v2611 = vrot.slane %v2609, 3
      %v2612 = vshll.u32 %v2502, 16
      %v2614 = vrot.slane %v2612, 4
      %v2615 = vor.u32 %v2611, %v2614
      %v2616 = vsel %vm2018, %v2606, %v2615
      %v2618 = vshrl.u32 %v2503, 16
      %v2620 = vrot.slane %v2618, 3
      %v2621 = vshll.u32 %v2503, 16
      %v2623 = vrot.slane %v2621, 4
      %v2624 = vor.u32 %v2620, %v2623
      %v2625 = vsel %vm2018, %v2615, %v2624
      %v2627 = vshrl.u32 %v2504, 16
      %v2629 = vrot.slane %v2627, 3
      %v2630 = vshll.u32 %v2504, 16
      %v2632 = vrot.slane %v2630, 4
      %v2633 = vor.u32 %v2629, %v2632
      %v2634 = vsel %vm2018, %v2624, %v2633
      %v2636 = vshrl.u32 %v2505, 16
      %v2638 = vrot.slane %v2636, 3
      %v2639 = vshll.u32 %v2505, 16
      %v2641 = vrot.slane %v2639, 4
      %v2642 = vor.u32 %v2638, %v2641
      %v2643 = vsel %vm2018, %v2633, %v2642
      %v2645 = vshrl.u32 %v2506, 16
      %v2647 = vrot.slane %v2645, 3
      %v2648 = vshll.u32 %v2506, 16
      %v2650 = vrot.slane %v2648, 4
      %v2651 = vor.u32 %v2647, %v2650
      %v2652 = vsel %vm2018, %v2642, %v2651
      %v2654 = vshrl.u32 %v2507, 16
      %v2656 = vrot.slane %v2654, 3
      %v2657 = vshll.u32 %v2507, 16
      %v2659 = vrot.slane %v2657, 4
      %v2660 = vor.u32 %v2656, %v2659
      %v2661 = vsel %vm2018, %v2651, %v2660
      %v2663 = vshrl.u32 %v2508, 16
      %v2665 = vrot.slane %v2663, 3
      %v2666 = vshll.u32 %v2508, 16
      %v2668 = vrot.slane %v2666, 4
      %v2669 = vor.u32 %v2665, %v2668
      %v2670 = vsel %vm2018, %v2660, %v2669
      %v2672 = vshrl.u32 %v2509, 16
      %v2674 = vrot.slane %v2672, 3
      %v2675 = vshll.u32 %v2509, 16
      %v2677 = vrot.slane %v2675, 4
      %v2678 = vor.u32 %v2674, %v2677
      %v2679 = vsel %vm2018, %v2669, %v2678
      %v2682 = vunpack.c.l.b16 %v2415
      %v2683 = vunpack.c.l.b16 %v2416
      %v2684 = vpack.c.b16 %v2683, %v2682
      %v2687 = vsel %vm1368, %v2526, 0
      %v2690 = vsel %vm1368, %v2535, 0
      %v2693 = vsel %vm1368, %v2544, 0
      %v2696 = vsel %vm1368, %v2553, 0
      %v2699 = vsel %vm1368, %v2562, 0
      %v2702 = vsel %vm1368, %v2571, 0
      %v2705 = vsel %vm1368, %v2580, 0
      %v2708 = vsel %vm1368, %v2589, 0
      %v2711 = vsel %vm1368, %v2598, 0
      %v2714 = vsel %vm1368, %v2607, 0
      %v2717 = vsel %vm1368, %v2616, 0
      %v2720 = vsel %vm1368, %v2625, 0
      %v2723 = vsel %vm1368, %v2634, 0
      %v2726 = vsel %vm1368, %v2643, 0
      %v2729 = vsel %vm1368, %v2652, 0
      %v2732 = vsel %vm1368, %v2661, 0
      %v2735 = vsel %vm1368, %v2670, 0
      %v2738 = vsel %vm1368, %v2679, 0
      %2740 = vmatprep.subr.bf16.mxu0 0
      %2741 = vmatpush1.bf16.msra.mxu0 %v2684
      %2742 = vmatprep.subr.bf16.mxu0 0
      %2743 = vmatpush1.bf16.msra.mxu0 0
      %2744 = vmatprep.subr.bf16.mxu0 0
      %2745 = vmatpush1.bf16.msra.mxu0 0
      %2746 = vmatprep.subr.bf16.mxu0 0
      %2747 = vmatpush1.bf16.msra.mxu0 0
      %2748 = vmatprep.subr.bf16.mxu0 0
      %2749 = vmatpush1.bf16.msra.mxu0 0
      %2750 = vmatprep.subr.bf16.mxu0 0
      %2751 = vmatpush1.bf16.msra.mxu0 0
      %2752 = vmatprep.subr.bf16.mxu0 0
      %2753 = vmatpush1.bf16.msra.mxu0 0
      %2754 = vmatprep.subr.bf16.mxu0 0
      %2755 = vmatpush1.bf16.msra.mxu0 0
      %2756 = vmatprep.subr.bf16.mxu0 0
      %2757 = vmatpush1.bf16.msra.mxu0 0
      %2758 = vmatprep.subr.bf16.mxu0 0
      %2759 = vmatpush1.bf16.msra.mxu0 0
      %2760 = vmatprep.subr.bf16.mxu0 0
      %2761 = vmatpush1.bf16.msra.mxu0 0
      %2762 = vmatprep.subr.bf16.mxu0 0
      %2763 = vmatpush1.bf16.msra.mxu0 0
      %2764 = vmatprep.subr.bf16.mxu0 0
      %2765 = vmatpush1.bf16.msra.mxu0 0
      %2766 = vmatprep.subr.bf16.mxu0 0
      %2767 = vmatpush1.bf16.msra.mxu0 0
      %2768 = vmatprep.subr.bf16.mxu0 0
      %2769 = vmatpush1.bf16.msra.mxu0 0
      %2770 = vmatprep.subr.bf16.mxu0 0
      %2771 = vmatpush1.bf16.msra.mxu0 0
      %2772 = vmatprep.mubr.bf16.mxu0 0
      %2773 = vmatmul.mubr.bf16.gmra.mrb[0].mxu0 %v2687
      %v2774 = vpop.f32.mrb[0].mxu0
      %v2775 = vadd.f32 0.0, %v2774
      %v2776 = vpop.f32.mrb[0].mxu0
      %v2777 = vpop.f32.mrb[0].mxu0
      %v2778 = vadd.f32 0.0, %v2777
      %v2779 = vpop.f32.mrb[0].mxu0
      %2780 = vmatprep.mubr.bf16.mxu0 0
      %2781 = vmatmul.mubr.bf16.gmra.mrb[0].mxu0 %v2690
      %v2782 = vpop.f32.mrb[0].mxu0
      %v2783 = vadd.f32 0.0, %v2782
      %v2784 = vpop.f32.mrb[0].mxu0
      %v2785 = vpop.f32.mrb[0].mxu0
      %v2786 = vadd.f32 0.0, %v2785
      %v2787 = vpop.f32.mrb[0].mxu0
      %2788 = vmatprep.mubr.bf16.mxu0 0
      %2789 = vmatmul.mubr.bf16.gmra.mrb[0].mxu0 %v2693
      %v2790 = vpop.f32.mrb[0].mxu0
      %v2791 = vadd.f32 0.0, %v2790
      %v2792 = vpop.f32.mrb[0].mxu0
      %v2793 = vpop.f32.mrb[0].mxu0
      %v2794 = vadd.f32 0.0, %v2793
      %v2795 = vpop.f32.mrb[0].mxu0
      %2796 = vmatprep.mubr.bf16.mxu0 0
      %2797 = vmatmul.mubr.bf16.gmra.mrb[0].mxu0 %v2696
      %v2798 = vpop.f32.mrb[0].mxu0
      %v2799 = vadd.f32 0.0, %v2798
      %v2800 = vpop.f32.mrb[0].mxu0
      %v2801 = vpop.f32.mrb[0].mxu0
      %v2802 = vadd.f32 0.0, %v2801
      %v2803 = vpop.f32.mrb[0].mxu0
      %2804 = vmatprep.mubr.bf16.mxu0 0
      %2805 = vmatmul.mubr.bf16.gmra.mrb[0].mxu0 %v2699
      %v2806 = vpop.f32.mrb[0].mxu0
      %v2807 = vadd.f32 0.0, %v2806
      %v2808 = vpop.f32.mrb[0].mxu0
      %v2809 = vpop.f32.mrb[0].mxu0
      %v2810 = vadd.f32 0.0, %v2809
      %v2811 = vpop.f32.mrb[0].mxu0
      %2812 = vmatprep.mubr.bf16.mxu0 0
      %2813 = vmatmul.mubr.bf16.gmra.mrb[0].mxu0 %v2702
      %v2814 = vpop.f32.mrb[0].mxu0
      %v2815 = vadd.f32 0.0, %v2814
      %v2816 = vpop.f32.mrb[0].mxu0
      %v2817 = vpop.f32.mrb[0].mxu0
      %v2818 = vadd.f32 0.0, %v2817
      %v2819 = vpop.f32.mrb[0].mxu0
      %2820 = vmatprep.mubr.bf16.mxu0 0
      %2821 = vmatmul.mubr.bf16.gmra.mrb[0].mxu0 %v2705
      %v2822 = vpop.f32.mrb[0].mxu0
      %v2823 = vadd.f32 0.0, %v2822
      %v2824 = vpop.f32.mrb[0].mxu0
      %v2825 = vpop.f32.mrb[0].mxu0
      %v2826 = vadd.f32 0.0, %v2825
      %v2827 = vpop.f32.mrb[0].mxu0
      %2828 = vmatprep.mubr.bf16.mxu0 0
      %2829 = vmatmul.mubr.bf16.gmra.mrb[0].mxu0 %v2708
      %v2830 = vpop.f32.mrb[0].mxu0
      %v2831 = vadd.f32 0.0, %v2830
      %v2832 = vpop.f32.mrb[0].mxu0
      %v2833 = vpop.f32.mrb[0].mxu0
      %v2834 = vadd.f32 0.0, %v2833
      %v2835 = vpop.f32.mrb[0].mxu0
      %2836 = vmatprep.mubr.bf16.mxu0 0
      %2837 = vmatmul.mubr.bf16.gmra.mrb[0].mxu0 %v2711
      %v2838 = vpop.f32.mrb[0].mxu0
      %v2839 = vadd.f32 0.0, %v2838
      %v2840 = vpop.f32.mrb[0].mxu0
      %v2841 = vpop.f32.mrb[0].mxu0
      %v2842 = vadd.f32 0.0, %v2841
      %v2843 = vpop.f32.mrb[0].mxu0
      %2844 = vmatprep.mubr.bf16.mxu0 0
      %2845 = vmatmul.mubr.bf16.gmra.mrb[0].mxu0 %v2714
      %v2846 = vpop.f32.mrb[0].mxu0
      %v2847 = vadd.f32 0.0, %v2846
      %v2848 = vpop.f32.mrb[0].mxu0
      %v2849 = vpop.f32.mrb[0].mxu0
      %v2850 = vadd.f32 0.0, %v2849
      %v2851 = vpop.f32.mrb[0].mxu0
      %2852 = vmatprep.mubr.bf16.mxu0 0
      %2853 = vmatmul.mubr.bf16.gmra.mrb[0].mxu0 %v2717
      %v2854 = vpop.f32.mrb[0].mxu0
      %v2855 = vadd.f32 0.0, %v2854
      %v2856 = vpop.f32.mrb[0].mxu0
      %v2857 = vpop.f32.mrb[0].mxu0
      %v2858 = vadd.f32 0.0, %v2857
      %v2859 = vpop.f32.mrb[0].mxu0
      %2860 = vmatprep.mubr.bf16.mxu0 0
      %2861 = vmatmul.mubr.bf16.gmra.mrb[0].mxu0 %v2720
      %v2862 = vpop.f32.mrb[0].mxu0
      %v2863 = vadd.f32 0.0, %v2862
      %v2864 = vpop.f32.mrb[0].mxu0
      %v2865 = vpop.f32.mrb[0].mxu0
      %v2866 = vadd.f32 0.0, %v2865
      %v2867 = vpop.f32.mrb[0].mxu0
      %2868 = vmatprep.mubr.bf16.mxu0 0
      %2869 = vmatmul.mubr.bf16.gmra.mrb[0].mxu0 %v2723
      %v2870 = vpop.f32.mrb[0].mxu0
      %v2871 = vadd.f32 0.0, %v2870
      %v2872 = vpop.f32.mrb[0].mxu0
      %v2873 = vpop.f32.mrb[0].mxu0
      %v2874 = vadd.f32 0.0, %v2873
      %v2875 = vpop.f32.mrb[0].mxu0
      %2876 = vmatprep.mubr.bf16.mxu0 0
      %2877 = vmatmul.mubr.bf16.gmra.mrb[0].mxu0 %v2726
      %v2878 = vpop.f32.mrb[0].mxu0
      %v2879 = vadd.f32 0.0, %v2878
      %v2880 = vpop.f32.mrb[0].mxu0
      %v2881 = vpop.f32.mrb[0].mxu0
      %v2882 = vadd.f32 0.0, %v2881
      %v2883 = vpop.f32.mrb[0].mxu0
      %2884 = vmatprep.mubr.bf16.mxu0 0
      %2885 = vmatmul.mubr.bf16.gmra.mrb[0].mxu0 %v2729
      %v2886 = vpop.f32.mrb[0].mxu0
      %v2887 = vadd.f32 0.0, %v2886
      %v2888 = vpop.f32.mrb[0].mxu0
      %v2889 = vpop.f32.mrb[0].mxu0
      %v2890 = vadd.f32 0.0, %v2889
      %v2891 = vpop.f32.mrb[0].mxu0
      %2892 = vmatprep.mubr.bf16.mxu0 0
      %2893 = vmatmul.mubr.bf16.gmra.mrb[0].mxu0 %v2732
      %v2894 = vpop.f32.mrb[0].mxu0
      %v2895 = vadd.f32 0.0, %v2894
      %v2896 = vpop.f32.mrb[0].mxu0
      %v2897 = vpop.f32.mrb[0].mxu0
      %v2898 = vadd.f32 0.0, %v2897
      %v2899 = vpop.f32.mrb[0].mxu0
      %2900 = vmatprep.mubr.bf16.mxu0 0
      %2901 = vmatmul.mubr.bf16.gmra.mrb[0].mxu0 %v2735
      %v2902 = vpop.f32.mrb[0].mxu0
      %v2903 = vadd.f32 0.0, %v2902
      %v2904 = vpop.f32.mrb[0].mxu0
      %v2905 = vpop.f32.mrb[0].mxu0
      %v2906 = vadd.f32 0.0, %v2905
      %v2907 = vpop.f32.mrb[0].mxu0
      %2908 = vmatprep.mubr.bf16.mxu0 0
      %2909 = vmatmul.mubr.bf16.gmra.mrb[0].mxu0 %v2738
      %v2910 = vpop.f32.mrb[0].mxu0
      %v2911 = vadd.f32 0.0, %v2910
      %v2912 = vpop.f32.mrb[0].mxu0
      %v2913 = vpop.f32.mrb[0].mxu0
      %v2914 = vadd.f32 0.0, %v2913
      %v2915 = vpop.f32.mrb[0].mxu0
      %2916 = vdwg.mxu0
      %v2917 = vadd.f32 %v2341, %v2775
      %v2918 = vadd.f32 %v2342, %v2778
      %v2919 = vadd.f32 %v2343, %v2783
      %v2920 = vadd.f32 %v2344, %v2786
      %v2921 = vadd.f32 %v2345, %v2791
      %v2922 = vadd.f32 %v2346, %v2794
      %v2923 = vadd.f32 %v2347, %v2799
      %v2924 = vadd.f32 %v2348, %v2802
      %v2925 = vadd.f32 %v2349, %v2807
      %v2926 = vadd.f32 %v2350, %v2810
      %v2927 = vadd.f32 %v2351, %v2815
      %v2928 = vadd.f32 %v2352, %v2818
      %v2929 = vadd.f32 %v2353, %v2823
      %v2930 = vadd.f32 %v2354, %v2826
      %v2931 = vadd.f32 %v2355, %v2831
      %v2932 = vadd.f32 %v2356, %v2834
      %v2933 = vadd.f32 %v2357, %v2839
      %v2934 = vadd.f32 %v2358, %v2842
      %v2935 = vadd.f32 %v2359, %v2847
      %v2936 = vadd.f32 %v2360, %v2850
      %v2937 = vadd.f32 %v2361, %v2855
      %v2938 = vadd.f32 %v2362, %v2858
      %v2939 = vadd.f32 %v2363, %v2863
      %v2940 = vadd.f32 %v2364, %v2866
      %v2941 = vadd.f32 %v2365, %v2871
      %v2942 = vadd.f32 %v2366, %v2874
      %v2943 = vadd.f32 %v2367, %v2879
      %v2944 = vadd.f32 %v2368, %v2882
      %v2945 = vadd.f32 %v2369, %v2887
      %v2946 = vadd.f32 %v2370, %v2890
      %v2947 = vadd.f32 %v2371, %v2895
      %v2948 = vadd.f32 %v2372, %v2898
      %v2949 = vadd.f32 %v2373, %v2903
      %v2950 = vadd.f32 %v2374, %v2906
      %v2951 = vadd.f32 %v2375, %v2911
      %v2952 = vadd.f32 %v2376, %v2914
      %s2953 = scalar_lea.vmem %s2, 32
      %v2954 = vld [vmem:[%s2953] sm:$0xf]
      %v2955 = vld [vmem:[%s2953 + $0x4] sm:$0xf]
      %v2956 = vpack.c.b16 %v2456, %v2455
      %v2957 = vpack.c.b16 %v2458, %v2457
      %v2958 = vpack.c.b16 %v2460, %v2459
      %v2959 = vpack.c.b16 %v2462, %v2461
      %v2960 = vpack.c.b16 %v2464, %v2463
      %v2961 = vpack.c.b16 %v2466, %v2465
      %v2962 = vpack.c.b16 %v2468, %v2467
      %v2963 = vpack.c.b16 %v2470, %v2469
      %v2964 = vpack.c.b16 %v2472, %v2471
      %v2965 = vpack.c.b16 %v2474, %v2473
      %v2966 = vpack.c.b16 %v2476, %v2475
      %v2967 = vpack.c.b16 %v2478, %v2477
      %v2968 = vpack.c.b16 %v2480, %v2479
      %v2969 = vpack.c.b16 %v2482, %v2481
      %v2970 = vpack.c.b16 %v2484, %v2483
      %v2971 = vpack.c.b16 %v2486, %v2485
      %v2972 = vpack.c.b16 %v2488, %v2487
      %v2973 = vpack.c.b16 %v2490, %v2489
      %v2976 = vunpack.c.l.b16 %v2954
      %v2977 = vunpack.c.l.b16 %v2955
      %v2978 = vpack.c.b16 %v2977, %v2976
      %v2981 = vsel %vm1368, %v2956, 0
      %v2984 = vsel %vm1368, %v2957, 0
      %v2987 = vsel %vm1368, %v2958, 0
      %v2990 = vsel %vm1368, %v2959, 0
      %v2993 = vsel %vm1368, %v2960, 0
      %v2996 = vsel %vm1368, %v2961, 0
      %v2999 = vsel %vm1368, %v2962, 0
      %v3002 = vsel %vm1368, %v2963, 0
      %v3005 = vsel %vm1368, %v2964, 0
      %v3008 = vsel %vm1368, %v2965, 0
      %v3011 = vsel %vm1368, %v2966, 0
      %v3014 = vsel %vm1368, %v2967, 0
      %v3017 = vsel %vm1368, %v2968, 0
      %v3020 = vsel %vm1368, %v2969, 0
      %v3023 = vsel %vm1368, %v2970, 0
      %v3026 = vsel %vm1368, %v2971, 0
      %v3029 = vsel %vm1368, %v2972, 0
      %v3032 = vsel %vm1368, %v2973, 0
      %3034 = vmatprep.subr.bf16.mxu0 0
      %3035 = vmatpush1.bf16.msra.mxu0 %v2978
      %3036 = vmatprep.subr.bf16.mxu0 0
      %3037 = vmatpush1.bf16.msra.mxu0 0
      %3038 = vmatprep.subr.bf16.mxu0 0
      %3039 = vmatpush1.bf16.msra.mxu0 0
      %3040 = vmatprep.subr.bf16.mxu0 0
      %3041 = vmatpush1.bf16.msra.mxu0 0
      %3042 = vmatprep.subr.bf16.mxu0 0
      %3043 = vmatpush1.bf16.msra.mxu0 0
      %3044 = vmatprep.subr.bf16.mxu0 0
      %3045 = vmatpush1.bf16.msra.mxu0 0
      %3046 = vmatprep.subr.bf16.mxu0 0
      %3047 = vmatpush1.bf16.msra.mxu0 0
      %3048 = vmatprep.subr.bf16.mxu0 0
      %3049 = vmatpush1.bf16.msra.mxu0 0
      %3050 = vmatprep.subr.bf16.mxu0 0
      %3051 = vmatpush1.bf16.msra.mxu0 0
      %3052 = vmatprep.subr.bf16.mxu0 0
      %3053 = vmatpush1.bf16.msra.mxu0 0
      %3054 = vmatprep.subr.bf16.mxu0 0
      %3055 = vmatpush1.bf16.msra.mxu0 0
      %3056 = vmatprep.subr.bf16.mxu0 0
      %3057 = vmatpush1.bf16.msra.mxu0 0
      %3058 = vmatprep.subr.bf16.mxu0 0
      %3059 = vmatpush1.bf16.msra.mxu0 0
      %3060 = vmatprep.subr.bf16.mxu0 0
      %3061 = vmatpush1.bf16.msra.mxu0 0
      %3062 = vmatprep.subr.bf16.mxu0 0
      %3063 = vmatpush1.bf16.msra.mxu0 0
      %3064 = vmatprep.subr.bf16.mxu0 0
      %3065 = vmatpush1.bf16.msra.mxu0 0
      %3066 = vmatprep.mubr.bf16.mxu0 0
      %3067 = vmatmul.mubr.bf16.gmra.mrb[0].mxu0 %v2981
      %v3068 = vpop.f32.mrb[0].mxu0
      %v3069 = vadd.f32 0.0, %v3068
      %v3070 = vpop.f32.mrb[0].mxu0
      %v3071 = vpop.f32.mrb[0].mxu0
      %v3072 = vadd.f32 0.0, %v3071
      %v3073 = vpop.f32.mrb[0].mxu0
      %3074 = vmatprep.mubr.bf16.mxu0 0
      %3075 = vmatmul.mubr.bf16.gmra.mrb[0].mxu0 %v2984
      %v3076 = vpop.f32.mrb[0].mxu0
      %v3077 = vadd.f32 0.0, %v3076
      %v3078 = vpop.f32.mrb[0].mxu0
      %v3079 = vpop.f32.mrb[0].mxu0
      %v3080 = vadd.f32 0.0, %v3079
      %v3081 = vpop.f32.mrb[0].mxu0
      %3082 = vmatprep.mubr.bf16.mxu0 0
      %3083 = vmatmul.mubr.bf16.gmra.mrb[0].mxu0 %v2987
      %v3084 = vpop.f32.mrb[0].mxu0
      %v3085 = vadd.f32 0.0, %v3084
      %v3086 = vpop.f32.mrb[0].mxu0
      %v3087 = vpop.f32.mrb[0].mxu0
      %v3088 = vadd.f32 0.0, %v3087
      %v3089 = vpop.f32.mrb[0].mxu0
      %3090 = vmatprep.mubr.bf16.mxu0 0
      %3091 = vmatmul.mubr.bf16.gmra.mrb[0].mxu0 %v2990
      %v3092 = vpop.f32.mrb[0].mxu0
      %v3093 = vadd.f32 0.0, %v3092
      %v3094 = vpop.f32.mrb[0].mxu0
      %v3095 = vpop.f32.mrb[0].mxu0
      %v3096 = vadd.f32 0.0, %v3095
      %v3097 = vpop.f32.mrb[0].mxu0
      %3098 = vmatprep.mubr.bf16.mxu0 0
      %3099 = vmatmul.mubr.bf16.gmra.mrb[0].mxu0 %v2993
      %v3100 = vpop.f32.mrb[0].mxu0
      %v3101 = vadd.f32 0.0, %v3100
      %v3102 = vpop.f32.mrb[0].mxu0
      %v3103 = vpop.f32.mrb[0].mxu0
      %v3104 = vadd.f32 0.0, %v3103
      %v3105 = vpop.f32.mrb[0].mxu0
      %3106 = vmatprep.mubr.bf16.mxu0 0
      %3107 = vmatmul.mubr.bf16.gmra.mrb[0].mxu0 %v2996
      %v3108 = vpop.f32.mrb[0].mxu0
      %v3109 = vadd.f32 0.0, %v3108
      %v3110 = vpop.f32.mrb[0].mxu0
      %v3111 = vpop.f32.mrb[0].mxu0
      %v3112 = vadd.f32 0.0, %v3111
      %v3113 = vpop.f32.mrb[0].mxu0
      %3114 = vmatprep.mubr.bf16.mxu0 0
      %3115 = vmatmul.mubr.bf16.gmra.mrb[0].mxu0 %v2999
      %v3116 = vpop.f32.mrb[0].mxu0
      %v3117 = vadd.f32 0.0, %v3116
      %v3118 = vpop.f32.mrb[0].mxu0
      %v3119 = vpop.f32.mrb[0].mxu0
      %v3120 = vadd.f32 0.0, %v3119
      %v3121 = vpop.f32.mrb[0].mxu0
      %3122 = vmatprep.mubr.bf16.mxu0 0
      %3123 = vmatmul.mubr.bf16.gmra.mrb[0].mxu0 %v3002
      %v3124 = vpop.f32.mrb[0].mxu0
      %v3125 = vadd.f32 0.0, %v3124
      %v3126 = vpop.f32.mrb[0].mxu0
      %v3127 = vpop.f32.mrb[0].mxu0
      %v3128 = vadd.f32 0.0, %v3127
      %v3129 = vpop.f32.mrb[0].mxu0
      %3130 = vmatprep.mubr.bf16.mxu0 0
      %3131 = vmatmul.mubr.bf16.gmra.mrb[0].mxu0 %v3005
      %v3132 = vpop.f32.mrb[0].mxu0
      %v3133 = vadd.f32 0.0, %v3132
      %v3134 = vpop.f32.mrb[0].mxu0
      %v3135 = vpop.f32.mrb[0].mxu0
      %v3136 = vadd.f32 0.0, %v3135
      %v3137 = vpop.f32.mrb[0].mxu0
      %3138 = vmatprep.mubr.bf16.mxu0 0
      %3139 = vmatmul.mubr.bf16.gmra.mrb[0].mxu0 %v3008
      %v3140 = vpop.f32.mrb[0].mxu0
      %v3141 = vadd.f32 0.0, %v3140
      %v3142 = vpop.f32.mrb[0].mxu0
      %v3143 = vpop.f32.mrb[0].mxu0
      %v3144 = vadd.f32 0.0, %v3143
      %v3145 = vpop.f32.mrb[0].mxu0
      %3146 = vmatprep.mubr.bf16.mxu0 0
      %3147 = vmatmul.mubr.bf16.gmra.mrb[0].mxu0 %v3011
      %v3148 = vpop.f32.mrb[0].mxu0
      %v3149 = vadd.f32 0.0, %v3148
      %v3150 = vpop.f32.mrb[0].mxu0
      %v3151 = vpop.f32.mrb[0].mxu0
      %v3152 = vadd.f32 0.0, %v3151
      %v3153 = vpop.f32.mrb[0].mxu0
      %3154 = vmatprep.mubr.bf16.mxu0 0
      %3155 = vmatmul.mubr.bf16.gmra.mrb[0].mxu0 %v3014
      %v3156 = vpop.f32.mrb[0].mxu0
      %v3157 = vadd.f32 0.0, %v3156
      %v3158 = vpop.f32.mrb[0].mxu0
      %v3159 = vpop.f32.mrb[0].mxu0
      %v3160 = vadd.f32 0.0, %v3159
      %v3161 = vpop.f32.mrb[0].mxu0
      %3162 = vmatprep.mubr.bf16.mxu0 0
      %3163 = vmatmul.mubr.bf16.gmra.mrb[0].mxu0 %v3017
      %v3164 = vpop.f32.mrb[0].mxu0
      %v3165 = vadd.f32 0.0, %v3164
      %v3166 = vpop.f32.mrb[0].mxu0
      %v3167 = vpop.f32.mrb[0].mxu0
      %v3168 = vadd.f32 0.0, %v3167
      %v3169 = vpop.f32.mrb[0].mxu0
      %3170 = vmatprep.mubr.bf16.mxu0 0
      %3171 = vmatmul.mubr.bf16.gmra.mrb[0].mxu0 %v3020
      %v3172 = vpop.f32.mrb[0].mxu0
      %v3173 = vadd.f32 0.0, %v3172
      %v3174 = vpop.f32.mrb[0].mxu0
      %v3175 = vpop.f32.mrb[0].mxu0
      %v3176 = vadd.f32 0.0, %v3175
      %v3177 = vpop.f32.mrb[0].mxu0
      %3178 = vmatprep.mubr.bf16.mxu0 0
      %3179 = vmatmul.mubr.bf16.gmra.mrb[0].mxu0 %v3023
      %v3180 = vpop.f32.mrb[0].mxu0
      %v3181 = vadd.f32 0.0, %v3180
      %v3182 = vpop.f32.mrb[0].mxu0
      %v3183 = vpop.f32.mrb[0].mxu0
      %v3184 = vadd.f32 0.0, %v3183
      %v3185 = vpop.f32.mrb[0].mxu0
      %3186 = vmatprep.mubr.bf16.mxu0 0
      %3187 = vmatmul.mubr.bf16.gmra.mrb[0].mxu0 %v3026
      %v3188 = vpop.f32.mrb[0].mxu0
      %v3189 = vadd.f32 0.0, %v3188
      %v3190 = vpop.f32.mrb[0].mxu0
      %v3191 = vpop.f32.mrb[0].mxu0
      %v3192 = vadd.f32 0.0, %v3191
      %v3193 = vpop.f32.mrb[0].mxu0
      %3194 = vmatprep.mubr.bf16.mxu0 0
      %3195 = vmatmul.mubr.bf16.gmra.mrb[0].mxu0 %v3029
      %v3196 = vpop.f32.mrb[0].mxu0
      %v3197 = vadd.f32 0.0, %v3196
      %v3198 = vpop.f32.mrb[0].mxu0
      %v3199 = vpop.f32.mrb[0].mxu0
      %v3200 = vadd.f32 0.0, %v3199
      %v3201 = vpop.f32.mrb[0].mxu0
      %3202 = vmatprep.mubr.bf16.mxu0 0
      %3203 = vmatmul.mubr.bf16.gmra.mrb[0].mxu0 %v3032
      %v3204 = vpop.f32.mrb[0].mxu0
      %v3205 = vadd.f32 0.0, %v3204
      %v3206 = vpop.f32.mrb[0].mxu0
      %v3207 = vpop.f32.mrb[0].mxu0
      %v3208 = vadd.f32 0.0, %v3207
      %v3209 = vpop.f32.mrb[0].mxu0
      %3210 = vdwg.mxu0
      %v3211 = vadd.f32 %v2917, %v3069
      %v3212 = vadd.f32 %v2918, %v3072
      %v3213 = vadd.f32 %v2919, %v3077
      %v3214 = vadd.f32 %v2920, %v3080
      %v3215 = vadd.f32 %v2921, %v3085
      %v3216 = vadd.f32 %v2922, %v3088
      %v3217 = vadd.f32 %v2923, %v3093
      %v3218 = vadd.f32 %v2924, %v3096
      %v3219 = vadd.f32 %v2925, %v3101
      %v3220 = vadd.f32 %v2926, %v3104
      %v3221 = vadd.f32 %v2927, %v3109
      %v3222 = vadd.f32 %v2928, %v3112
      %v3223 = vadd.f32 %v2929, %v3117
      %v3224 = vadd.f32 %v2930, %v3120
      %v3225 = vadd.f32 %v2931, %v3125
      %v3226 = vadd.f32 %v2932, %v3128
      %v3227 = vadd.f32 %v2933, %v3133
      %v3228 = vadd.f32 %v2934, %v3136
      %v3229 = vadd.f32 %v2935, %v3141
      %v3230 = vadd.f32 %v2936, %v3144
      %v3231 = vadd.f32 %v2937, %v3149
      %v3232 = vadd.f32 %v2938, %v3152
      %v3233 = vadd.f32 %v2939, %v3157
      %v3234 = vadd.f32 %v2940, %v3160
      %v3235 = vadd.f32 %v2941, %v3165
      %v3236 = vadd.f32 %v2942, %v3168
      %v3237 = vadd.f32 %v2943, %v3173
      %v3238 = vadd.f32 %v2944, %v3176
      %v3239 = vadd.f32 %v2945, %v3181
      %v3240 = vadd.f32 %v2946, %v3184
      %v3241 = vadd.f32 %v2947, %v3189
      %v3242 = vadd.f32 %v2948, %v3192
      %v3243 = vadd.f32 %v2949, %v3197
      %v3244 = vadd.f32 %v2950, %v3200
      %v3245 = vadd.f32 %v2951, %v3205
      %v3246 = vadd.f32 %v2952, %v3208
      %v3247 = vld [vmem:[#allocation2 + $0x10] sm:$0xf]
      %v3248 = vld [vmem:[#allocation2 + $0x14] sm:$0xf]
      %v3249 = vld [vmem:[#allocation2 + $0x18] sm:$0xf]
      %v3250 = vld [vmem:[#allocation2 + $0x1c] sm:$0xf]
      %v3251 = vld [vmem:[#allocation2 + $0x20] sm:$0xf]
      %v3252 = vld [vmem:[#allocation2 + $0x24] sm:$0xf]
      %v3253 = vld [vmem:[#allocation2 + $0x28] sm:$0xf]
      %v3254 = vld [vmem:[#allocation2 + $0x2c] sm:$0xf]
      %v3255 = vld [vmem:[#allocation2 + $0x30] sm:$0xf]
      %v3256 = vld [vmem:[#allocation2 + $0x34] sm:$0xf]
      %v3257 = vld [vmem:[#allocation2 + $0x38] sm:$0xf]
      %v3258 = vld [vmem:[#allocation2 + $0x3c] sm:$0xf]
      %v3259 = vld [vmem:[#allocation2 + $0x40] sm:$0xf]
      %v3260 = vld [vmem:[#allocation2 + $0x44] sm:$0xf]
      %v3261 = vld [vmem:[#allocation2 + $0x48] sm:$0xf]
      %v3262 = vld [vmem:[#allocation2 + $0x4c] sm:$0xf]
      %v3263 = vld [vmem:[#allocation2 + $0x50] sm:$0xf]
      %v3264 = vld [vmem:[#allocation2 + $0x54] sm:$0xf]
      %v3265 = vld [vmem:[#allocation2 + $0x58] sm:$0xf]
      %v3266 = vld [vmem:[#allocation2 + $0x5c] sm:$0xf]
      %v3267 = vld [vmem:[#allocation2 + $0x60] sm:$0xf]
      %v3268 = vld [vmem:[#allocation2 + $0x64] sm:$0xf]
      %v3269 = vld [vmem:[#allocation2 + $0x68] sm:$0xf]
      %v3270 = vld [vmem:[#allocation2 + $0x6c] sm:$0xf]
      %v3271 = vld [vmem:[#allocation2 + $0x70] sm:$0xf]
      %v3272 = vld [vmem:[#allocation2 + $0x74] sm:$0xf]
      %v3273 = vld [vmem:[#allocation2 + $0x78] sm:$0xf]
      %v3274 = vld [vmem:[#allocation2 + $0x7c] sm:$0xf]
      %v3275 = vld [vmem:[#allocation2 + $0x80] sm:$0xf]
      %v3276 = vld [vmem:[#allocation2 + $0x84] sm:$0xf]
      %v3277 = vld [vmem:[#allocation2 + $0x88] sm:$0xf]
      %v3278 = vld [vmem:[#allocation2 + $0x8c] sm:$0xf]
      %v3279 = vld [vmem:[#allocation2 + $0x90] sm:$0xf]
      %v3280 = vld [vmem:[#allocation2 + $0x94] sm:$0xf]
      %v3281 = vld [vmem:[#allocation2 + $0x98] sm:$0xf]
      %v3282 = vld [vmem:[#allocation2 + $0x9c] sm:$0xf]
      %v3283 = vld [vmem:[#allocation2 + $0xa0] sm:$0x1]
      %s3284 = scalar_lea.vmem %s2, 40
      %v3285 = vld [vmem:[%s3284] sm:$0xf]
      %v3286 = vld [vmem:[%s3284 + $0x4] sm:$0xf]
      %v3324 = vunpack.c.l.b16 %v3247
      %v3325 = vunpack.c.l.b16 %v3248
      %v3326 = vunpack.c.l.b16 %v3249
      %v3327 = vunpack.c.l.b16 %v3250
      %v3328 = vunpack.c.l.b16 %v3251
      %v3329 = vunpack.c.l.b16 %v3252
      %v3330 = vunpack.c.l.b16 %v3253
      %v3331 = vunpack.c.l.b16 %v3254
      %v3332 = vunpack.c.l.b16 %v3255
      %v3333 = vunpack.c.l.b16 %v3256
      %v3334 = vunpack.c.l.b16 %v3257
      %v3335 = vunpack.c.l.b16 %v3258
      %v3336 = vunpack.c.l.b16 %v3259
      %v3337 = vunpack.c.l.b16 %v3260
      %v3338 = vunpack.c.l.b16 %v3261
      %v3339 = vunpack.c.l.b16 %v3262
      %v3340 = vunpack.c.l.b16 %v3263
      %v3341 = vunpack.c.l.b16 %v3264
      %v3342 = vunpack.c.l.b16 %v3265
      %v3343 = vunpack.c.l.b16 %v3266
      %v3344 = vunpack.c.l.b16 %v3267
      %v3345 = vunpack.c.l.b16 %v3268
      %v3346 = vunpack.c.l.b16 %v3269
      %v3347 = vunpack.c.l.b16 %v3270
      %v3348 = vunpack.c.l.b16 %v3271
      %v3349 = vunpack.c.l.b16 %v3272
      %v3350 = vunpack.c.l.b16 %v3273
      %v3351 = vunpack.c.l.b16 %v3274
      %v3352 = vunpack.c.l.b16 %v3275
      %v3353 = vunpack.c.l.b16 %v3276
      %v3354 = vunpack.c.l.b16 %v3277
      %v3355 = vunpack.c.l.b16 %v3278
      %v3356 = vunpack.c.l.b16 %v3279
      %v3357 = vunpack.c.l.b16 %v3280
      %v3358 = vunpack.c.l.b16 %v3281
      %v3359 = vunpack.c.l.b16 %v3282
      %v3360 = vunpack.c.l.b16 %v3283
      %v3361 = vpack.c.b16 %v3325, %v3324
      %v3362 = vpack.c.b16 %v3327, %v3326
      %v3363 = vpack.c.b16 %v3329, %v3328
      %v3364 = vpack.c.b16 %v3331, %v3330
      %v3365 = vpack.c.b16 %v3333, %v3332
      %v3366 = vpack.c.b16 %v3335, %v3334
      %v3367 = vpack.c.b16 %v3337, %v3336
      %v3368 = vpack.c.b16 %v3339, %v3338
      %v3369 = vpack.c.b16 %v3341, %v3340
      %v3370 = vpack.c.b16 %v3343, %v3342
      %v3371 = vpack.c.b16 %v3345, %v3344
      %v3372 = vpack.c.b16 %v3347, %v3346
      %v3373 = vpack.c.b16 %v3349, %v3348
      %v3374 = vpack.c.b16 %v3351, %v3350
      %v3375 = vpack.c.b16 %v3353, %v3352
      %v3376 = vpack.c.b16 %v3355, %v3354
      %v3377 = vpack.c.b16 %v3357, %v3356
      %v3378 = vpack.c.b16 %v3359, %v3358
      %v3379 = vpack.c.b16 %v3360, %v3360
      %vm3380 = vsmask.f32 7424
      %v3382 = vshrl.u32 %v3361, 16
      %v3384 = vshll.u32 %v3361, 16
      %v3386 = vrot.slane %v3384, 1
      %v3387 = vor.u32 %v3382, %v3386
      %v3389 = vshll.u32 %v3362, 16
      %v3391 = vrot.slane %v3389, 1
      %v3392 = vsel %vm3380, %v3387, %v3391
      %v3393 = vshrl.u32 %v3362, 16
      %v3395 = vor.u32 %v3393, %v3391
      %v3397 = vshll.u32 %v3363, 16
      %v3399 = vrot.slane %v3397, 1
      %v3400 = vsel %vm3380, %v3395, %v3399
      %v3401 = vshrl.u32 %v3363, 16
      %v3403 = vor.u32 %v3401, %v3399
      %v3405 = vshll.u32 %v3364, 16
      %v3407 = vrot.slane %v3405, 1
      %v3408 = vsel %vm3380, %v3403, %v3407
      %v3409 = vshrl.u32 %v3364, 16
      %v3411 = vor.u32 %v3409, %v3407
      %v3413 = vshll.u32 %v3365, 16
      %v3415 = vrot.slane %v3413, 1
      %v3416 = vsel %vm3380, %v3411, %v3415
      %v3417 = vshrl.u32 %v3365, 16
      %v3419 = vor.u32 %v3417, %v3415
      %v3421 = vshll.u32 %v3366, 16
      %v3423 = vrot.slane %v3421, 1
      %v3424 = vsel %vm3380, %v3419, %v3423
      %v3425 = vshrl.u32 %v3366, 16
      %v3427 = vor.u32 %v3425, %v3423
      %v3429 = vshll.u32 %v3367, 16
      %v3431 = vrot.slane %v3429, 1
      %v3432 = vsel %vm3380, %v3427, %v3431
      %v3433 = vshrl.u32 %v3367, 16
      %v3435 = vor.u32 %v3433, %v3431
      %v3437 = vshll.u32 %v3368, 16
      %v3439 = vrot.slane %v3437, 1
      %v3440 = vsel %vm3380, %v3435, %v3439
      %v3441 = vshrl.u32 %v3368, 16
      %v3443 = vor.u32 %v3441, %v3439
      %v3445 = vshll.u32 %v3369, 16
      %v3447 = vrot.slane %v3445, 1
      %v3448 = vsel %vm3380, %v3443, %v3447
      %v3449 = vshrl.u32 %v3369, 16
      %v3451 = vor.u32 %v3449, %v3447
      %v3453 = vshll.u32 %v3370, 16
      %v3455 = vrot.slane %v3453, 1
      %v3456 = vsel %vm3380, %v3451, %v3455
      %v3457 = vshrl.u32 %v3370, 16
      %v3459 = vor.u32 %v3457, %v3455
      %v3461 = vshll.u32 %v3371, 16
      %v3463 = vrot.slane %v3461, 1
      %v3464 = vsel %vm3380, %v3459, %v3463
      %v3465 = vshrl.u32 %v3371, 16
      %v3467 = vor.u32 %v3465, %v3463
      %v3469 = vshll.u32 %v3372, 16
      %v3471 = vrot.slane %v3469, 1
      %v3472 = vsel %vm3380, %v3467, %v3471
      %v3473 = vshrl.u32 %v3372, 16
      %v3475 = vor.u32 %v3473, %v3471
      %v3477 = vshll.u32 %v3373, 16
      %v3479 = vrot.slane %v3477, 1
      %v3480 = vsel %vm3380, %v3475, %v3479
      %v3481 = vshrl.u32 %v3373, 16
      %v3483 = vor.u32 %v3481, %v3479
      %v3485 = vshll.u32 %v3374, 16
      %v3487 = vrot.slane %v3485, 1
      %v3488 = vsel %vm3380, %v3483, %v3487
      %v3489 = vshrl.u32 %v3374, 16
      %v3491 = vor.u32 %v3489, %v3487
      %v3493 = vshll.u32 %v3375, 16
      %v3495 = vrot.slane %v3493, 1
      %v3496 = vsel %vm3380, %v3491, %v3495
      %v3497 = vshrl.u32 %v3375, 16
      %v3499 = vor.u32 %v3497, %v3495
      %v3501 = vshll.u32 %v3376, 16
      %v3503 = vrot.slane %v3501, 1
      %v3504 = vsel %vm3380, %v3499, %v3503
      %v3505 = vshrl.u32 %v3376, 16
      %v3507 = vor.u32 %v3505, %v3503
      %v3509 = vshll.u32 %v3377, 16
      %v3511 = vrot.slane %v3509, 1
      %v3512 = vsel %vm3380, %v3507, %v3511
      %v3513 = vshrl.u32 %v3377, 16
      %v3515 = vor.u32 %v3513, %v3511
      %v3517 = vshll.u32 %v3378, 16
      %v3519 = vrot.slane %v3517, 1
      %v3520 = vsel %vm3380, %v3515, %v3519
      %v3521 = vshrl.u32 %v3378, 16
      %v3523 = vor.u32 %v3521, %v3519
      %v3525 = vshll.u32 %v3379, 16
      %v3527 = vrot.slane %v3525, 1
      %v3528 = vsel %vm3380, %v3523, %v3527
      %v3531 = vunpack.c.l.b16 %v3285
      %v3532 = vunpack.c.l.b16 %v3286
      %v3533 = vpack.c.b16 %v3532, %v3531
      %v3536 = vsel %vm1368, %v3392, 0
      %v3539 = vsel %vm1368, %v3400, 0
      %v3542 = vsel %vm1368, %v3408, 0
      %v3545 = vsel %vm1368, %v3416, 0
      %v3548 = vsel %vm1368, %v3424, 0
      %v3551 = vsel %vm1368, %v3432, 0
      %v3554 = vsel %vm1368, %v3440, 0
      %v3557 = vsel %vm1368, %v3448, 0
      %v3560 = vsel %vm1368, %v3456, 0
      %v3563 = vsel %vm1368, %v3464, 0
      %v3566 = vsel %vm1368, %v3472, 0
      %v3569 = vsel %vm1368, %v3480, 0
      %v3572 = vsel %vm1368, %v3488, 0
      %v3575 = vsel %vm1368, %v3496, 0
      %v3578 = vsel %vm1368, %v3504, 0
      %v3581 = vsel %vm1368, %v3512, 0
      %v3584 = vsel %vm1368, %v3520, 0
      %v3587 = vsel %vm1368, %v3528, 0
      %3589 = vmatprep.subr.bf16.mxu0 0
      %3590 = vmatpush1.bf16.msra.mxu0 %v3533
      %3591 = vmatprep.subr.bf16.mxu0 0
      %3592 = vmatpush1.bf16.msra.mxu0 0
      %3593 = vmatprep.subr.bf16.mxu0 0
      %3594 = vmatpush1.bf16.msra.mxu0 0
      %3595 = vmatprep.subr.bf16.mxu0 0
      %3596 = vmatpush1.bf16.msra.mxu0 0
      %3597 = vmatprep.subr.bf16.mxu0 0
      %3598 = vmatpush1.bf16.msra.mxu0 0
      %3599 = vmatprep.subr.bf16.mxu0 0
      %3600 = vmatpush1.bf16.msra.mxu0 0
      %3601 = vmatprep.subr.bf16.mxu0 0
      %3602 = vmatpush1.bf16.msra.mxu0 0
      %3603 = vmatprep.subr.bf16.mxu0 0
      %3604 = vmatpush1.bf16.msra.mxu0 0
      %3605 = vmatprep.subr.bf16.mxu0 0
      %3606 = vmatpush1.bf16.msra.mxu0 0
      %3607 = vmatprep.subr.bf16.mxu0 0
      %3608 = vmatpush1.bf16.msra.mxu0 0
      %3609 = vmatprep.subr.bf16.mxu0 0
      %3610 = vmatpush1.bf16.msra.mxu0 0
      %3611 = vmatprep.subr.bf16.mxu0 0
      %3612 = vmatpush1.bf16.msra.mxu0 0
      %3613 = vmatprep.subr.bf16.mxu0 0
      %3614 = vmatpush1.bf16.msra.mxu0 0
      %3615 = vmatprep.subr.bf16.mxu0 0
      %3616 = vmatpush1.bf16.msra.mxu0 0
      %3617 = vmatprep.subr.bf16.mxu0 0
      %3618 = vmatpush1.bf16.msra.mxu0 0
      %3619 = vmatprep.subr.bf16.mxu0 0
      %3620 = vmatpush1.bf16.msra.mxu0 0
      %3621 = vmatprep.mubr.bf16.mxu0 0
      %3622 = vmatmul.mubr.bf16.gmra.mrb[0].mxu0 %v3536
      %v3623 = vpop.f32.mrb[0].mxu0
      %v3624 = vadd.f32 0.0, %v3623
      %v3625 = vpop.f32.mrb[0].mxu0
      %v3626 = vpop.f32.mrb[0].mxu0
      %v3627 = vadd.f32 0.0, %v3626
      %v3628 = vpop.f32.mrb[0].mxu0
      %3629 = vmatprep.mubr.bf16.mxu0 0
      %3630 = vmatmul.mubr.bf16.gmra.mrb[0].mxu0 %v3539
      %v3631 = vpop.f32.mrb[0].mxu0
      %v3632 = vadd.f32 0.0, %v3631
      %v3633 = vpop.f32.mrb[0].mxu0
      %v3634 = vpop.f32.mrb[0].mxu0
      %v3635 = vadd.f32 0.0, %v3634
      %v3636 = vpop.f32.mrb[0].mxu0
      %3637 = vmatprep.mubr.bf16.mxu0 0
      %3638 = vmatmul.mubr.bf16.gmra.mrb[0].mxu0 %v3542
      %v3639 = vpop.f32.mrb[0].mxu0
      %v3640 = vadd.f32 0.0, %v3639
      %v3641 = vpop.f32.mrb[0].mxu0
      %v3642 = vpop.f32.mrb[0].mxu0
      %v3643 = vadd.f32 0.0, %v3642
      %v3644 = vpop.f32.mrb[0].mxu0
      %3645 = vmatprep.mubr.bf16.mxu0 0
      %3646 = vmatmul.mubr.bf16.gmra.mrb[0].mxu0 %v3545
      %v3647 = vpop.f32.mrb[0].mxu0
      %v3648 = vadd.f32 0.0, %v3647
      %v3649 = vpop.f32.mrb[0].mxu0
      %v3650 = vpop.f32.mrb[0].mxu0
      %v3651 = vadd.f32 0.0, %v3650
      %v3652 = vpop.f32.mrb[0].mxu0
      %3653 = vmatprep.mubr.bf16.mxu0 0
      %3654 = vmatmul.mubr.bf16.gmra.mrb[0].mxu0 %v3548
      %v3655 = vpop.f32.mrb[0].mxu0
      %v3656 = vadd.f32 0.0, %v3655
      %v3657 = vpop.f32.mrb[0].mxu0
      %v3658 = vpop.f32.mrb[0].mxu0
      %v3659 = vadd.f32 0.0, %v3658
      %v3660 = vpop.f32.mrb[0].mxu0
      %3661 = vmatprep.mubr.bf16.mxu0 0
      %3662 = vmatmul.mubr.bf16.gmra.mrb[0].mxu0 %v3551
      %v3663 = vpop.f32.mrb[0].mxu0
      %v3664 = vadd.f32 0.0, %v3663
      %v3665 = vpop.f32.mrb[0].mxu0
      %v3666 = vpop.f32.mrb[0].mxu0
      %v3667 = vadd.f32 0.0, %v3666
      %v3668 = vpop.f32.mrb[0].mxu0
      %3669 = vmatprep.mubr.bf16.mxu0 0
      %3670 = vmatmul.mubr.bf16.gmra.mrb[0].mxu0 %v3554
      %v3671 = vpop.f32.mrb[0].mxu0
      %v3672 = vadd.f32 0.0, %v3671
      %v3673 = vpop.f32.mrb[0].mxu0
      %v3674 = vpop.f32.mrb[0].mxu0
      %v3675 = vadd.f32 0.0, %v3674
      %v3676 = vpop.f32.mrb[0].mxu0
      %3677 = vmatprep.mubr.bf16.mxu0 0
      %3678 = vmatmul.mubr.bf16.gmra.mrb[0].mxu0 %v3557
      %v3679 = vpop.f32.mrb[0].mxu0
      %v3680 = vadd.f32 0.0, %v3679
      %v3681 = vpop.f32.mrb[0].mxu0
      %v3682 = vpop.f32.mrb[0].mxu0
      %v3683 = vadd.f32 0.0, %v3682
      %v3684 = vpop.f32.mrb[0].mxu0
      %3685 = vmatprep.mubr.bf16.mxu0 0
      %3686 = vmatmul.mubr.bf16.gmra.mrb[0].mxu0 %v3560
      %v3687 = vpop.f32.mrb[0].mxu0
      %v3688 = vadd.f32 0.0, %v3687
      %v3689 = vpop.f32.mrb[0].mxu0
      %v3690 = vpop.f32.mrb[0].mxu0
      %v3691 = vadd.f32 0.0, %v3690
      %v3692 = vpop.f32.mrb[0].mxu0
      %3693 = vmatprep.mubr.bf16.mxu0 0
      %3694 = vmatmul.mubr.bf16.gmra.mrb[0].mxu0 %v3563
      %v3695 = vpop.f32.mrb[0].mxu0
      %v3696 = vadd.f32 0.0, %v3695
      %v3697 = vpop.f32.mrb[0].mxu0
      %v3698 = vpop.f32.mrb[0].mxu0
      %v3699 = vadd.f32 0.0, %v3698
      %v3700 = vpop.f32.mrb[0].mxu0
      %3701 = vmatprep.mubr.bf16.mxu0 0
      %3702 = vmatmul.mubr.bf16.gmra.mrb[0].mxu0 %v3566
      %v3703 = vpop.f32.mrb[0].mxu0
      %v3704 = vadd.f32 0.0, %v3703
      %v3705 = vpop.f32.mrb[0].mxu0
      %v3706 = vpop.f32.mrb[0].mxu0
      %v3707 = vadd.f32 0.0, %v3706
      %v3708 = vpop.f32.mrb[0].mxu0
      %3709 = vmatprep.mubr.bf16.mxu0 0
      %3710 = vmatmul.mubr.bf16.gmra.mrb[0].mxu0 %v3569
      %v3711 = vpop.f32.mrb[0].mxu0
      %v3712 = vadd.f32 0.0, %v3711
      %v3713 = vpop.f32.mrb[0].mxu0
      %v3714 = vpop.f32.mrb[0].mxu0
      %v3715 = vadd.f32 0.0, %v3714
      %v3716 = vpop.f32.mrb[0].mxu0
      %3717 = vmatprep.mubr.bf16.mxu0 0
      %3718 = vmatmul.mubr.bf16.gmra.mrb[0].mxu0 %v3572
      %v3719 = vpop.f32.mrb[0].mxu0
      %v3720 = vadd.f32 0.0, %v3719
      %v3721 = vpop.f32.mrb[0].mxu0
      %v3722 = vpop.f32.mrb[0].mxu0
      %v3723 = vadd.f32 0.0, %v3722
      %v3724 = vpop.f32.mrb[0].mxu0
      %3725 = vmatprep.mubr.bf16.mxu0 0
      %3726 = vmatmul.mubr.bf16.gmra.mrb[0].mxu0 %v3575
      %v3727 = vpop.f32.mrb[0].mxu0
      %v3728 = vadd.f32 0.0, %v3727
      %v3729 = vpop.f32.mrb[0].mxu0
      %v3730 = vpop.f32.mrb[0].mxu0
      %v3731 = vadd.f32 0.0, %v3730
      %v3732 = vpop.f32.mrb[0].mxu0
      %3733 = vmatprep.mubr.bf16.mxu0 0
      %3734 = vmatmul.mubr.bf16.gmra.mrb[0].mxu0 %v3578
      %v3735 = vpop.f32.mrb[0].mxu0
      %v3736 = vadd.f32 0.0, %v3735
      %v3737 = vpop.f32.mrb[0].mxu0
      %v3738 = vpop.f32.mrb[0].mxu0
      %v3739 = vadd.f32 0.0, %v3738
      %v3740 = vpop.f32.mrb[0].mxu0
      %3741 = vmatprep.mubr.bf16.mxu0 0
      %3742 = vmatmul.mubr.bf16.gmra.mrb[0].mxu0 %v3581
      %v3743 = vpop.f32.mrb[0].mxu0
      %v3744 = vadd.f32 0.0, %v3743
      %v3745 = vpop.f32.mrb[0].mxu0
      %v3746 = vpop.f32.mrb[0].mxu0
      %v3747 = vadd.f32 0.0, %v3746
      %v3748 = vpop.f32.mrb[0].mxu0
      %3749 = vmatprep.mubr.bf16.mxu0 0
      %3750 = vmatmul.mubr.bf16.gmra.mrb[0].mxu0 %v3584
      %v3751 = vpop.f32.mrb[0].mxu0
      %v3752 = vadd.f32 0.0, %v3751
      %v3753 = vpop.f32.mrb[0].mxu0
      %v3754 = vpop.f32.mrb[0].mxu0
      %v3755 = vadd.f32 0.0, %v3754
      %v3756 = vpop.f32.mrb[0].mxu0
      %3757 = vmatprep.mubr.bf16.mxu0 0
      %3758 = vmatmul.mubr.bf16.gmra.mrb[0].mxu0 %v3587
      %v3759 = vpop.f32.mrb[0].mxu0
      %v3760 = vadd.f32 0.0, %v3759
      %v3761 = vpop.f32.mrb[0].mxu0
      %v3762 = vpop.f32.mrb[0].mxu0
      %v3763 = vadd.f32 0.0, %v3762
      %v3764 = vpop.f32.mrb[0].mxu0
      %3765 = vdwg.mxu0
      %v3766 = vadd.f32 %v3211, %v3624
      %v3767 = vadd.f32 %v3212, %v3627
      %v3768 = vadd.f32 %v3213, %v3632
      %v3769 = vadd.f32 %v3214, %v3635
      %v3770 = vadd.f32 %v3215, %v3640
      %v3771 = vadd.f32 %v3216, %v3643
      %v3772 = vadd.f32 %v3217, %v3648
      %v3773 = vadd.f32 %v3218, %v3651
      %v3774 = vadd.f32 %v3219, %v3656
      %v3775 = vadd.f32 %v3220, %v3659
      %v3776 = vadd.f32 %v3221, %v3664
      %v3777 = vadd.f32 %v3222, %v3667
      %v3778 = vadd.f32 %v3223, %v3672
      %v3779 = vadd.f32 %v3224, %v3675
      %v3780 = vadd.f32 %v3225, %v3680
      %v3781 = vadd.f32 %v3226, %v3683
      %v3782 = vadd.f32 %v3227, %v3688
      %v3783 = vadd.f32 %v3228, %v3691
      %v3784 = vadd.f32 %v3229, %v3696
      %v3785 = vadd.f32 %v3230, %v3699
      %v3786 = vadd.f32 %v3231, %v3704
      %v3787 = vadd.f32 %v3232, %v3707
      %v3788 = vadd.f32 %v3233, %v3712
      %v3789 = vadd.f32 %v3234, %v3715
      %v3790 = vadd.f32 %v3235, %v3720
      %v3791 = vadd.f32 %v3236, %v3723
      %v3792 = vadd.f32 %v3237, %v3728
      %v3793 = vadd.f32 %v3238, %v3731
      %v3794 = vadd.f32 %v3239, %v3736
      %v3795 = vadd.f32 %v3240, %v3739
      %v3796 = vadd.f32 %v3241, %v3744
      %v3797 = vadd.f32 %v3242, %v3747
      %v3798 = vadd.f32 %v3243, %v3752
      %v3799 = vadd.f32 %v3244, %v3755
      %v3800 = vadd.f32 %v3245, %v3760
      %v3801 = vadd.f32 %v3246, %v3763
      %v3802 = vld [vmem:[#allocation2 + $0x18] sm:$0xf]
      %v3803 = vld [vmem:[#allocation2 + $0x1c] sm:$0xf]
      %v3804 = vld [vmem:[#allocation2 + $0x20] sm:$0xf]
      %v3805 = vld [vmem:[#allocation2 + $0x24] sm:$0xf]
      %v3806 = vld [vmem:[#allocation2 + $0x28] sm:$0xf]
      %v3807 = vld [vmem:[#allocation2 + $0x2c] sm:$0xf]
      %v3808 = vld [vmem:[#allocation2 + $0x30] sm:$0xf]
      %v3809 = vld [vmem:[#allocation2 + $0x34] sm:$0xf]
      %v3810 = vld [vmem:[#allocation2 + $0x38] sm:$0xf]
      %v3811 = vld [vmem:[#allocation2 + $0x3c] sm:$0xf]
      %v3812 = vld [vmem:[#allocation2 + $0x40] sm:$0xf]
      %v3813 = vld [vmem:[#allocation2 + $0x44] sm:$0xf]
      %v3814 = vld [vmem:[#allocation2 + $0x48] sm:$0xf]
      %v3815 = vld [vmem:[#allocation2 + $0x4c] sm:$0xf]
      %v3816 = vld [vmem:[#allocation2 + $0x50] sm:$0xf]
      %v3817 = vld [vmem:[#allocation2 + $0x54] sm:$0xf]
      %v3818 = vld [vmem:[#allocation2 + $0x58] sm:$0xf]
      %v3819 = vld [vmem:[#allocation2 + $0x5c] sm:$0xf]
      %v3820 = vld [vmem:[#allocation2 + $0x60] sm:$0xf]
      %v3821 = vld [vmem:[#allocation2 + $0x64] sm:$0xf]
      %v3822 = vld [vmem:[#allocation2 + $0x68] sm:$0xf]
      %v3823 = vld [vmem:[#allocation2 + $0x6c] sm:$0xf]
      %v3824 = vld [vmem:[#allocation2 + $0x70] sm:$0xf]
      %v3825 = vld [vmem:[#allocation2 + $0x74] sm:$0xf]
      %v3826 = vld [vmem:[#allocation2 + $0x78] sm:$0xf]
      %v3827 = vld [vmem:[#allocation2 + $0x7c] sm:$0xf]
      %v3828 = vld [vmem:[#allocation2 + $0x80] sm:$0xf]
      %v3829 = vld [vmem:[#allocation2 + $0x84] sm:$0xf]
      %v3830 = vld [vmem:[#allocation2 + $0x88] sm:$0xf]
      %v3831 = vld [vmem:[#allocation2 + $0x8c] sm:$0xf]
      %v3832 = vld [vmem:[#allocation2 + $0x90] sm:$0xf]
      %v3833 = vld [vmem:[#allocation2 + $0x94] sm:$0xf]
      %v3834 = vld [vmem:[#allocation2 + $0x98] sm:$0xf]
      %v3835 = vld [vmem:[#allocation2 + $0x9c] sm:$0xf]
      %v3836 = vld [vmem:[#allocation2 + $0xa0] sm:$0xf]
      %v3837 = vld [vmem:[#allocation2 + $0xa4] sm:$0xf]
      %v3838 = vld [vmem:[#allocation2 + $0xa8] sm:$0x1]
      %s3839 = scalar_lea.vmem %s2, 48
      %v3840 = vld [vmem:[%s3839] sm:$0xf]
      %v3841 = vld [vmem:[%s3839 + $0x4] sm:$0xf]
      %v3879 = vunpack.c.l.b16 %v3802
      %v3880 = vunpack.c.l.b16 %v3803
      %v3881 = vunpack.c.l.b16 %v3804
      %v3882 = vunpack.c.l.b16 %v3805
      %v3883 = vunpack.c.l.b16 %v3806
      %v3884 = vunpack.c.l.b16 %v3807
      %v3885 = vunpack.c.l.b16 %v3808
      %v3886 = vunpack.c.l.b16 %v3809
      %v3887 = vunpack.c.l.b16 %v3810
      %v3888 = vunpack.c.l.b16 %v3811
      %v3889 = vunpack.c.l.b16 %v3812
      %v3890 = vunpack.c.l.b16 %v3813
      %v3891 = vunpack.c.l.b16 %v3814
      %v3892 = vunpack.c.l.b16 %v3815
      %v3893 = vunpack.c.l.b16 %v3816
      %v3894 = vunpack.c.l.b16 %v3817
      %v3895 = vunpack.c.l.b16 %v3818
      %v3896 = vunpack.c.l.b16 %v3819
      %v3897 = vunpack.c.l.b16 %v3820
      %v3898 = vunpack.c.l.b16 %v3821
      %v3899 = vunpack.c.l.b16 %v3822
      %v3900 = vunpack.c.l.b16 %v3823
      %v3901 = vunpack.c.l.b16 %v3824
      %v3902 = vunpack.c.l.b16 %v3825
      %v3903 = vunpack.c.l.b16 %v3826
      %v3904 = vunpack.c.l.b16 %v3827
      %v3905 = vunpack.c.l.b16 %v3828
      %v3906 = vunpack.c.l.b16 %v3829
      %v3907 = vunpack.c.l.b16 %v3830
      %v3908 = vunpack.c.l.b16 %v3831
      %v3909 = vunpack.c.l.b16 %v3832
      %v3910 = vunpack.c.l.b16 %v3833
      %v3911 = vunpack.c.l.b16 %v3834
      %v3912 = vunpack.c.l.b16 %v3835
      %v3913 = vunpack.c.l.b16 %v3836
      %v3914 = vunpack.c.l.b16 %v3837
      %v3915 = vunpack.c.l.b16 %v3838
      %v3916 = vpack.c.b16 %v3880, %v3879
      %v3917 = vpack.c.b16 %v3882, %v3881
      %v3918 = vpack.c.b16 %v3884, %v3883
      %v3919 = vpack.c.b16 %v3886, %v3885
      %v3920 = vpack.c.b16 %v3888, %v3887
      %v3921 = vpack.c.b16 %v3890, %v3889
      %v3922 = vpack.c.b16 %v3892, %v3891
      %v3923 = vpack.c.b16 %v3894, %v3893
      %v3924 = vpack.c.b16 %v3896, %v3895
      %v3925 = vpack.c.b16 %v3898, %v3897
      %v3926 = vpack.c.b16 %v3900, %v3899
      %v3927 = vpack.c.b16 %v3902, %v3901
      %v3928 = vpack.c.b16 %v3904, %v3903
      %v3929 = vpack.c.b16 %v3906, %v3905
      %v3930 = vpack.c.b16 %v3908, %v3907
      %v3931 = vpack.c.b16 %v3910, %v3909
      %v3932 = vpack.c.b16 %v3912, %v3911
      %v3933 = vpack.c.b16 %v3914, %v3913
      %v3934 = vpack.c.b16 %v3915, %v3915
      %v3936 = vshrl.u32 %v3916, 16
      %v3938 = vshll.u32 %v3916, 16
      %v3940 = vrot.slane %v3938, 1
      %v3941 = vor.u32 %v3936, %v3940
      %v3943 = vshll.u32 %v3917, 16
      %v3945 = vrot.slane %v3943, 1
      %v3946 = vsel %vm3380, %v3941, %v3945
      %v3947 = vshrl.u32 %v3917, 16
      %v3949 = vor.u32 %v3947, %v3945
      %v3951 = vshll.u32 %v3918, 16
      %v3953 = vrot.slane %v3951, 1
      %v3954 = vsel %vm3380, %v3949, %v3953
      %v3955 = vshrl.u32 %v3918, 16
      %v3957 = vor.u32 %v3955, %v3953
      %v3959 = vshll.u32 %v3919, 16
      %v3961 = vrot.slane %v3959, 1
      %v3962 = vsel %vm3380, %v3957, %v3961
      %v3963 = vshrl.u32 %v3919, 16
      %v3965 = vor.u32 %v3963, %v3961
      %v3967 = vshll.u32 %v3920, 16
      %v3969 = vrot.slane %v3967, 1
      %v3970 = vsel %vm3380, %v3965, %v3969
      %v3971 = vshrl.u32 %v3920, 16
      %v3973 = vor.u32 %v3971, %v3969
      %v3975 = vshll.u32 %v3921, 16
      %v3977 = vrot.slane %v3975, 1
      %v3978 = vsel %vm3380, %v3973, %v3977
      %v3979 = vshrl.u32 %v3921, 16
      %v3981 = vor.u32 %v3979, %v3977
      %v3983 = vshll.u32 %v3922, 16
      %v3985 = vrot.slane %v3983, 1
      %v3986 = vsel %vm3380, %v3981, %v3985
      %v3987 = vshrl.u32 %v3922, 16
      %v3989 = vor.u32 %v3987, %v3985
      %v3991 = vshll.u32 %v3923, 16
      %v3993 = vrot.slane %v3991, 1
      %v3994 = vsel %vm3380, %v3989, %v3993
      %v3995 = vshrl.u32 %v3923, 16
      %v3997 = vor.u32 %v3995, %v3993
      %v3999 = vshll.u32 %v3924, 16
      %v4001 = vrot.slane %v3999, 1
      %v4002 = vsel %vm3380, %v3997, %v4001
      %v4003 = vshrl.u32 %v3924, 16
      %v4005 = vor.u32 %v4003, %v4001
      %v4007 = vshll.u32 %v3925, 16
      %v4009 = vrot.slane %v4007, 1
      %v4010 = vsel %vm3380, %v4005, %v4009
      %v4011 = vshrl.u32 %v3925, 16
      %v4013 = vor.u32 %v4011, %v4009
      %v4015 = vshll.u32 %v3926, 16
      %v4017 = vrot.slane %v4015, 1
      %v4018 = vsel %vm3380, %v4013, %v4017
      %v4019 = vshrl.u32 %v3926, 16
      %v4021 = vor.u32 %v4019, %v4017
      %v4023 = vshll.u32 %v3927, 16
      %v4025 = vrot.slane %v4023, 1
      %v4026 = vsel %vm3380, %v4021, %v4025
      %v4027 = vshrl.u32 %v3927, 16
      %v4029 = vor.u32 %v4027, %v4025
      %v4031 = vshll.u32 %v3928, 16
      %v4033 = vrot.slane %v4031, 1
      %v4034 = vsel %vm3380, %v4029, %v4033
      %v4035 = vshrl.u32 %v3928, 16
      %v4037 = vor.u32 %v4035, %v4033
      %v4039 = vshll.u32 %v3929, 16
      %v4041 = vrot.slane %v4039, 1
      %v4042 = vsel %vm3380, %v4037, %v4041
      %v4043 = vshrl.u32 %v3929, 16
      %v4045 = vor.u32 %v4043, %v4041
      %v4047 = vshll.u32 %v3930, 16
      %v4049 = vrot.slane %v4047, 1
      %v4050 = vsel %vm3380, %v4045, %v4049
      %v4051 = vshrl.u32 %v3930, 16
      %v4053 = vor.u32 %v4051, %v4049
      %v4055 = vshll.u32 %v3931, 16
      %v4057 = vrot.slane %v4055, 1
      %v4058 = vsel %vm3380, %v4053, %v4057
      %v4059 = vshrl.u32 %v3931, 16
      %v4061 = vor.u32 %v4059, %v4057
      %v4063 = vshll.u32 %v3932, 16
      %v4065 = vrot.slane %v4063, 1
      %v4066 = vsel %vm3380, %v4061, %v4065
      %v4067 = vshrl.u32 %v3932, 16
      %v4069 = vor.u32 %v4067, %v4065
      %v4071 = vshll.u32 %v3933, 16
      %v4073 = vrot.slane %v4071, 1
      %v4074 = vsel %vm3380, %v4069, %v4073
      %v4075 = vshrl.u32 %v3933, 16
      %v4077 = vor.u32 %v4075, %v4073
      %v4079 = vshll.u32 %v3934, 16
      %v4081 = vrot.slane %v4079, 1
      %v4082 = vsel %vm3380, %v4077, %v4081
      %v4085 = vunpack.c.l.b16 %v3840
      %v4086 = vunpack.c.l.b16 %v3841
      %v4087 = vpack.c.b16 %v4086, %v4085
      %v4090 = vsel %vm1368, %v3946, 0
      %v4093 = vsel %vm1368, %v3954, 0
      %v4096 = vsel %vm1368, %v3962, 0
      %v4099 = vsel %vm1368, %v3970, 0
      %v4102 = vsel %vm1368, %v3978, 0
      %v4105 = vsel %vm1368, %v3986, 0
      %v4108 = vsel %vm1368, %v3994, 0
      %v4111 = vsel %vm1368, %v4002, 0
      %v4114 = vsel %vm1368, %v4010, 0
      %v4117 = vsel %vm1368, %v4018, 0
      %v4120 = vsel %vm1368, %v4026, 0
      %v4123 = vsel %vm1368, %v4034, 0
      %v4126 = vsel %vm1368, %v4042, 0
      %v4129 = vsel %vm1368, %v4050, 0
      %v4132 = vsel %vm1368, %v4058, 0
      %v4135 = vsel %vm1368, %v4066, 0
      %v4138 = vsel %vm1368, %v4074, 0
      %v4141 = vsel %vm1368, %v4082, 0
      %4143 = vmatprep.subr.bf16.mxu0 0
      %4144 = vmatpush1.bf16.msra.mxu0 %v4087
      %4145 = vmatprep.subr.bf16.mxu0 0
      %4146 = vmatpush1.bf16.msra.mxu0 0
      %4147 = vmatprep.subr.bf16.mxu0 0
      %4148 = vmatpush1.bf16.msra.mxu0 0
      %4149 = vmatprep.subr.bf16.mxu0 0
      %4150 = vmatpush1.bf16.msra.mxu0 0
      %4151 = vmatprep.subr.bf16.mxu0 0
      %4152 = vmatpush1.bf16.msra.mxu0 0
      %4153 = vmatprep.subr.bf16.mxu0 0
      %4154 = vmatpush1.bf16.msra.mxu0 0
      %4155 = vmatprep.subr.bf16.mxu0 0
      %4156 = vmatpush1.bf16.msra.mxu0 0
      %4157 = vmatprep.subr.bf16.mxu0 0
      %4158 = vmatpush1.bf16.msra.mxu0 0
      %4159 = vmatprep.subr.bf16.mxu0 0
      %4160 = vmatpush1.bf16.msra.mxu0 0
      %4161 = vmatprep.subr.bf16.mxu0 0
      %4162 = vmatpush1.bf16.msra.mxu0 0
      %4163 = vmatprep.subr.bf16.mxu0 0
      %4164 = vmatpush1.bf16.msra.mxu0 0
      %4165 = vmatprep.subr.bf16.mxu0 0
      %4166 = vmatpush1.bf16.msra.mxu0 0
      %4167 = vmatprep.subr.bf16.mxu0 0
      %4168 = vmatpush1.bf16.msra.mxu0 0
      %4169 = vmatprep.subr.bf16.mxu0 0
      %4170 = vmatpush1.bf16.msra.mxu0 0
      %4171 = vmatprep.subr.bf16.mxu0 0
      %4172 = vmatpush1.bf16.msra.mxu0 0
      %4173 = vmatprep.subr.bf16.mxu0 0
      %4174 = vmatpush1.bf16.msra.mxu0 0
      %4175 = vmatprep.mubr.bf16.mxu0 0
      %4176 = vmatmul.mubr.bf16.gmra.mrb[0].mxu0 %v4090
      %v4177 = vpop.f32.mrb[0].mxu0
      %v4178 = vadd.f32 0.0, %v4177
      %v4179 = vpop.f32.mrb[0].mxu0
      %v4180 = vpop.f32.mrb[0].mxu0
      %v4181 = vadd.f32 0.0, %v4180
      %v4182 = vpop.f32.mrb[0].mxu0
      %4183 = vmatprep.mubr.bf16.mxu0 0
      %4184 = vmatmul.mubr.bf16.gmra.mrb[0].mxu0 %v4093
      %v4185 = vpop.f32.mrb[0].mxu0
      %v4186 = vadd.f32 0.0, %v4185
      %v4187 = vpop.f32.mrb[0].mxu0
      %v4188 = vpop.f32.mrb[0].mxu0
      %v4189 = vadd.f32 0.0, %v4188
      %v4190 = vpop.f32.mrb[0].mxu0
      %4191 = vmatprep.mubr.bf16.mxu0 0
      %4192 = vmatmul.mubr.bf16.gmra.mrb[0].mxu0 %v4096
      %v4193 = vpop.f32.mrb[0].mxu0
      %v4194 = vadd.f32 0.0, %v4193
      %v4195 = vpop.f32.mrb[0].mxu0
      %v4196 = vpop.f32.mrb[0].mxu0
      %v4197 = vadd.f32 0.0, %v4196
      %v4198 = vpop.f32.mrb[0].mxu0
      %4199 = vmatprep.mubr.bf16.mxu0 0
      %4200 = vmatmul.mubr.bf16.gmra.mrb[0].mxu0 %v4099
      %v4201 = vpop.f32.mrb[0].mxu0
      %v4202 = vadd.f32 0.0, %v4201
      %v4203 = vpop.f32.mrb[0].mxu0
      %v4204 = vpop.f32.mrb[0].mxu0
      %v4205 = vadd.f32 0.0, %v4204
      %v4206 = vpop.f32.mrb[0].mxu0
      %4207 = vmatprep.mubr.bf16.mxu0 0
      %4208 = vmatmul.mubr.bf16.gmra.mrb[0].mxu0 %v4102
      %v4209 = vpop.f32.mrb[0].mxu0
      %v4210 = vadd.f32 0.0, %v4209
      %v4211 = vpop.f32.mrb[0].mxu0
      %v4212 = vpop.f32.mrb[0].mxu0
      %v4213 = vadd.f32 0.0, %v4212
      %v4214 = vpop.f32.mrb[0].mxu0
      %4215 = vmatprep.mubr.bf16.mxu0 0
      %4216 = vmatmul.mubr.bf16.gmra.mrb[0].mxu0 %v4105
      %v4217 = vpop.f32.mrb[0].mxu0
      %v4218 = vadd.f32 0.0, %v4217
      %v4219 = vpop.f32.mrb[0].mxu0
      %v4220 = vpop.f32.mrb[0].mxu0
      %v4221 = vadd.f32 0.0, %v4220
      %v4222 = vpop.f32.mrb[0].mxu0
      %4223 = vmatprep.mubr.bf16.mxu0 0
      %4224 = vmatmul.mubr.bf16.gmra.mrb[0].mxu0 %v4108
      %v4225 = vpop.f32.mrb[0].mxu0
      %v4226 = vadd.f32 0.0, %v4225
      %v4227 = vpop.f32.mrb[0].mxu0
      %v4228 = vpop.f32.mrb[0].mxu0
      %v4229 = vadd.f32 0.0, %v4228
      %v4230 = vpop.f32.mrb[0].mxu0
      %4231 = vmatprep.mubr.bf16.mxu0 0
      %4232 = vmatmul.mubr.bf16.gmra.mrb[0].mxu0 %v4111
      %v4233 = vpop.f32.mrb[0].mxu0
      %v4234 = vadd.f32 0.0, %v4233
      %v4235 = vpop.f32.mrb[0].mxu0
      %v4236 = vpop.f32.mrb[0].mxu0
      %v4237 = vadd.f32 0.0, %v4236
      %v4238 = vpop.f32.mrb[0].mxu0
      %4239 = vmatprep.mubr.bf16.mxu0 0
      %4240 = vmatmul.mubr.bf16.gmra.mrb[0].mxu0 %v4114
      %v4241 = vpop.f32.mrb[0].mxu0
      %v4242 = vadd.f32 0.0, %v4241
      %v4243 = vpop.f32.mrb[0].mxu0
      %v4244 = vpop.f32.mrb[0].mxu0
      %v4245 = vadd.f32 0.0, %v4244
      %v4246 = vpop.f32.mrb[0].mxu0
      %4247 = vmatprep.mubr.bf16.mxu0 0
      %4248 = vmatmul.mubr.bf16.gmra.mrb[0].mxu0 %v4117
      %v4249 = vpop.f32.mrb[0].mxu0
      %v4250 = vadd.f32 0.0, %v4249
      %v4251 = vpop.f32.mrb[0].mxu0
      %v4252 = vpop.f32.mrb[0].mxu0
      %v4253 = vadd.f32 0.0, %v4252
      %v4254 = vpop.f32.mrb[0].mxu0
      %4255 = vmatprep.mubr.bf16.mxu0 0
      %4256 = vmatmul.mubr.bf16.gmra.mrb[0].mxu0 %v4120
      %v4257 = vpop.f32.mrb[0].mxu0
      %v4258 = vadd.f32 0.0, %v4257
      %v4259 = vpop.f32.mrb[0].mxu0
      %v4260 = vpop.f32.mrb[0].mxu0
      %v4261 = vadd.f32 0.0, %v4260
      %v4262 = vpop.f32.mrb[0].mxu0
      %4263 = vmatprep.mubr.bf16.mxu0 0
      %4264 = vmatmul.mubr.bf16.gmra.mrb[0].mxu0 %v4123
      %v4265 = vpop.f32.mrb[0].mxu0
      %v4266 = vadd.f32 0.0, %v4265
      %v4267 = vpop.f32.mrb[0].mxu0
      %v4268 = vpop.f32.mrb[0].mxu0
      %v4269 = vadd.f32 0.0, %v4268
      %v4270 = vpop.f32.mrb[0].mxu0
      %4271 = vmatprep.mubr.bf16.mxu0 0
      %4272 = vmatmul.mubr.bf16.gmra.mrb[0].mxu0 %v4126
      %v4273 = vpop.f32.mrb[0].mxu0
      %v4274 = vadd.f32 0.0, %v4273
      %v4275 = vpop.f32.mrb[0].mxu0
      %v4276 = vpop.f32.mrb[0].mxu0
      %v4277 = vadd.f32 0.0, %v4276
      %v4278 = vpop.f32.mrb[0].mxu0
      %4279 = vmatprep.mubr.bf16.mxu0 0
      %4280 = vmatmul.mubr.bf16.gmra.mrb[0].mxu0 %v4129
      %v4281 = vpop.f32.mrb[0].mxu0
      %v4282 = vadd.f32 0.0, %v4281
      %v4283 = vpop.f32.mrb[0].mxu0
      %v4284 = vpop.f32.mrb[0].mxu0
      %v4285 = vadd.f32 0.0, %v4284
      %v4286 = vpop.f32.mrb[0].mxu0
      %4287 = vmatprep.mubr.bf16.mxu0 0
      %4288 = vmatmul.mubr.bf16.gmra.mrb[0].mxu0 %v4132
      %v4289 = vpop.f32.mrb[0].mxu0
      %v4290 = vadd.f32 0.0, %v4289
      %v4291 = vpop.f32.mrb[0].mxu0
      %v4292 = vpop.f32.mrb[0].mxu0
      %v4293 = vadd.f32 0.0, %v4292
      %v4294 = vpop.f32.mrb[0].mxu0
      %4295 = vmatprep.mubr.bf16.mxu0 0
      %4296 = vmatmul.mubr.bf16.gmra.mrb[0].mxu0 %v4135
      %v4297 = vpop.f32.mrb[0].mxu0
      %v4298 = vadd.f32 0.0, %v4297
      %v4299 = vpop.f32.mrb[0].mxu0
      %v4300 = vpop.f32.mrb[0].mxu0
      %v4301 = vadd.f32 0.0, %v4300
      %v4302 = vpop.f32.mrb[0].mxu0
      %4303 = vmatprep.mubr.bf16.mxu0 0
      %4304 = vmatmul.mubr.bf16.gmra.mrb[0].mxu0 %v4138
      %v4305 = vpop.f32.mrb[0].mxu0
      %v4306 = vadd.f32 0.0, %v4305
      %v4307 = vpop.f32.mrb[0].mxu0
      %v4308 = vpop.f32.mrb[0].mxu0
      %v4309 = vadd.f32 0.0, %v4308
      %v4310 = vpop.f32.mrb[0].mxu0
      %4311 = vmatprep.mubr.bf16.mxu0 0
      %4312 = vmatmul.mubr.bf16.gmra.mrb[0].mxu0 %v4141
      %v4313 = vpop.f32.mrb[0].mxu0
      %v4314 = vadd.f32 0.0, %v4313
      %v4315 = vpop.f32.mrb[0].mxu0
      %v4316 = vpop.f32.mrb[0].mxu0
      %v4317 = vadd.f32 0.0, %v4316
      %v4318 = vpop.f32.mrb[0].mxu0
      %4319 = vdwg.mxu0
      %v4320 = vadd.f32 %v3766, %v4178
      %v4321 = vadd.f32 %v3767, %v4181
      %v4322 = vadd.f32 %v3768, %v4186
      %v4323 = vadd.f32 %v3769, %v4189
      %v4324 = vadd.f32 %v3770, %v4194
      %v4325 = vadd.f32 %v3771, %v4197
      %v4326 = vadd.f32 %v3772, %v4202
      %v4327 = vadd.f32 %v3773, %v4205
      %v4328 = vadd.f32 %v3774, %v4210
      %v4329 = vadd.f32 %v3775, %v4213
      %v4330 = vadd.f32 %v3776, %v4218
      %v4331 = vadd.f32 %v3777, %v4221
      %v4332 = vadd.f32 %v3778, %v4226
      %v4333 = vadd.f32 %v3779, %v4229
      %v4334 = vadd.f32 %v3780, %v4234
      %v4335 = vadd.f32 %v3781, %v4237
      %v4336 = vadd.f32 %v3782, %v4242
      %v4337 = vadd.f32 %v3783, %v4245
      %v4338 = vadd.f32 %v3784, %v4250
      %v4339 = vadd.f32 %v3785, %v4253
      %v4340 = vadd.f32 %v3786, %v4258
      %v4341 = vadd.f32 %v3787, %v4261
      %v4342 = vadd.f32 %v3788, %v4266
      %v4343 = vadd.f32 %v3789, %v4269
      %v4344 = vadd.f32 %v3790, %v4274
      %v4345 = vadd.f32 %v3791, %v4277
      %v4346 = vadd.f32 %v3792, %v4282
      %v4347 = vadd.f32 %v3793, %v4285
      %v4348 = vadd.f32 %v3794, %v4290
      %v4349 = vadd.f32 %v3795, %v4293
      %v4350 = vadd.f32 %v3796, %v4298
      %v4351 = vadd.f32 %v3797, %v4301
      %v4352 = vadd.f32 %v3798, %v4306
      %v4353 = vadd.f32 %v3799, %v4309
      %v4354 = vadd.f32 %v3800, %v4314
      %v4355 = vadd.f32 %v3801, %v4317
      %v4356 = vld [vmem:[#allocation2 + $0x18] sm:$0xe]
      %s4357 = scalar_lea.vmem %s2, 56
      %v4358 = vld [vmem:[%s4357] sm:$0xf]
      %v4359 = vld [vmem:[%s4357 + $0x4] sm:$0xf]
      %v4361 = vunpack.c.l.b16 %v4356
      %v4362 = vpack.c.b16 %v3880, %v4361
      %vm4363 = vcmask 1046528
      %v4364 = vrot.slane %v4362, 1
      %v4365 = vrot.slane %v3917, 1
      %v4366 = vsel %vm4363, %v4364, %v4365
      %v4367 = vrot.slane %v3918, 1
      %v4368 = vsel %vm4363, %v4365, %v4367
      %v4369 = vrot.slane %v3919, 1
      %v4370 = vsel %vm4363, %v4367, %v4369
      %v4371 = vrot.slane %v3920, 1
      %v4372 = vsel %vm4363, %v4369, %v4371
      %v4373 = vrot.slane %v3921, 1
      %v4374 = vsel %vm4363, %v4371, %v4373
      %v4375 = vrot.slane %v3922, 1
      %v4376 = vsel %vm4363, %v4373, %v4375
      %v4377 = vrot.slane %v3923, 1
      %v4378 = vsel %vm4363, %v4375, %v4377
      %v4379 = vrot.slane %v3924, 1
      %v4380 = vsel %vm4363, %v4377, %v4379
      %v4381 = vrot.slane %v3925, 1
      %v4382 = vsel %vm4363, %v4379, %v4381
      %v4383 = vrot.slane %v3926, 1
      %v4384 = vsel %vm4363, %v4381, %v4383
      %v4385 = vrot.slane %v3927, 1
      %v4386 = vsel %vm4363, %v4383, %v4385
      %v4387 = vrot.slane %v3928, 1
      %v4388 = vsel %vm4363, %v4385, %v4387
      %v4389 = vrot.slane %v3929, 1
      %v4390 = vsel %vm4363, %v4387, %v4389
      %v4391 = vrot.slane %v3930, 1
      %v4392 = vsel %vm4363, %v4389, %v4391
      %v4393 = vrot.slane %v3931, 1
      %v4394 = vsel %vm4363, %v4391, %v4393
      %v4395 = vrot.slane %v3932, 1
      %v4396 = vsel %vm4363, %v4393, %v4395
      %v4397 = vrot.slane %v3933, 1
      %v4398 = vsel %vm4363, %v4395, %v4397
      %v4399 = vrot.slane %v3934, 1
      %v4400 = vsel %vm4363, %v4397, %v4399
      %v4403 = vunpack.c.l.b16 %v4358
      %v4404 = vunpack.c.l.b16 %v4359
      %v4405 = vpack.c.b16 %v4404, %v4403
      %v4408 = vsel %vm1368, %v4366, 0
      %v4411 = vsel %vm1368, %v4368, 0
      %v4414 = vsel %vm1368, %v4370, 0
      %v4417 = vsel %vm1368, %v4372, 0
      %v4420 = vsel %vm1368, %v4374, 0
      %v4423 = vsel %vm1368, %v4376, 0
      %v4426 = vsel %vm1368, %v4378, 0
      %v4429 = vsel %vm1368, %v4380, 0
      %v4432 = vsel %vm1368, %v4382, 0
      %v4435 = vsel %vm1368, %v4384, 0
      %v4438 = vsel %vm1368, %v4386, 0
      %v4441 = vsel %vm1368, %v4388, 0
      %v4444 = vsel %vm1368, %v4390, 0
      %v4447 = vsel %vm1368, %v4392, 0
      %v4450 = vsel %vm1368, %v4394, 0
      %v4453 = vsel %vm1368, %v4396, 0
      %v4456 = vsel %vm1368, %v4398, 0
      %v4459 = vsel %vm1368, %v4400, 0
      %4461 = vmatprep.subr.bf16.mxu0 0
      %4462 = vmatpush1.bf16.msra.mxu0 %v4405
      %4463 = vmatprep.subr.bf16.mxu0 0
      %4464 = vmatpush1.bf16.msra.mxu0 0
      %4465 = vmatprep.subr.bf16.mxu0 0
      %4466 = vmatpush1.bf16.msra.mxu0 0
      %4467 = vmatprep.subr.bf16.mxu0 0
      %4468 = vmatpush1.bf16.msra.mxu0 0
      %4469 = vmatprep.subr.bf16.mxu0 0
      %4470 = vmatpush1.bf16.msra.mxu0 0
      %4471 = vmatprep.subr.bf16.mxu0 0
      %4472 = vmatpush1.bf16.msra.mxu0 0
      %4473 = vmatprep.subr.bf16.mxu0 0
      %4474 = vmatpush1.bf16.msra.mxu0 0
      %4475 = vmatprep.subr.bf16.mxu0 0
      %4476 = vmatpush1.bf16.msra.mxu0 0
      %4477 = vmatprep.subr.bf16.mxu0 0
      %4478 = vmatpush1.bf16.msra.mxu0 0
      %4479 = vmatprep.subr.bf16.mxu0 0
      %4480 = vmatpush1.bf16.msra.mxu0 0
      %4481 = vmatprep.subr.bf16.mxu0 0
      %4482 = vmatpush1.bf16.msra.mxu0 0
      %4483 = vmatprep.subr.bf16.mxu0 0
      %4484 = vmatpush1.bf16.msra.mxu0 0
      %4485 = vmatprep.subr.bf16.mxu0 0
      %4486 = vmatpush1.bf16.msra.mxu0 0
      %4487 = vmatprep.subr.bf16.mxu0 0
      %4488 = vmatpush1.bf16.msra.mxu0 0
      %4489 = vmatprep.subr.bf16.mxu0 0
      %4490 = vmatpush1.bf16.msra.mxu0 0
      %4491 = vmatprep.subr.bf16.mxu0 0
      %4492 = vmatpush1.bf16.msra.mxu0 0
      %4493 = vmatprep.mubr.bf16.mxu0 0
      %4494 = vmatmul.mubr.bf16.gmra.mrb[0].mxu0 %v4408
      %v4495 = vpop.f32.mrb[0].mxu0
      %v4496 = vadd.f32 0.0, %v4495
      %v4497 = vpop.f32.mrb[0].mxu0
      %v4498 = vpop.f32.mrb[0].mxu0
      %v4499 = vadd.f32 0.0, %v4498
      %v4500 = vpop.f32.mrb[0].mxu0
      %4501 = vmatprep.mubr.bf16.mxu0 0
      %4502 = vmatmul.mubr.bf16.gmra.mrb[0].mxu0 %v4411
      %v4503 = vpop.f32.mrb[0].mxu0
      %v4504 = vadd.f32 0.0, %v4503
      %v4505 = vpop.f32.mrb[0].mxu0
      %v4506 = vpop.f32.mrb[0].mxu0
      %v4507 = vadd.f32 0.0, %v4506
      %v4508 = vpop.f32.mrb[0].mxu0
      %4509 = vmatprep.mubr.bf16.mxu0 0
      %4510 = vmatmul.mubr.bf16.gmra.mrb[0].mxu0 %v4414
      %v4511 = vpop.f32.mrb[0].mxu0
      %v4512 = vadd.f32 0.0, %v4511
      %v4513 = vpop.f32.mrb[0].mxu0
      %v4514 = vpop.f32.mrb[0].mxu0
      %v4515 = vadd.f32 0.0, %v4514
      %v4516 = vpop.f32.mrb[0].mxu0
      %4517 = vmatprep.mubr.bf16.mxu0 0
      %4518 = vmatmul.mubr.bf16.gmra.mrb[0].mxu0 %v4417
      %v4519 = vpop.f32.mrb[0].mxu0
      %v4520 = vadd.f32 0.0, %v4519
      %v4521 = vpop.f32.mrb[0].mxu0
      %v4522 = vpop.f32.mrb[0].mxu0
      %v4523 = vadd.f32 0.0, %v4522
      %v4524 = vpop.f32.mrb[0].mxu0
      %4525 = vmatprep.mubr.bf16.mxu0 0
      %4526 = vmatmul.mubr.bf16.gmra.mrb[0].mxu0 %v4420
      %v4527 = vpop.f32.mrb[0].mxu0
      %v4528 = vadd.f32 0.0, %v4527
      %v4529 = vpop.f32.mrb[0].mxu0
      %v4530 = vpop.f32.mrb[0].mxu0
      %v4531 = vadd.f32 0.0, %v4530
      %v4532 = vpop.f32.mrb[0].mxu0
      %4533 = vmatprep.mubr.bf16.mxu0 0
      %4534 = vmatmul.mubr.bf16.gmra.mrb[0].mxu0 %v4423
      %v4535 = vpop.f32.mrb[0].mxu0
      %v4536 = vadd.f32 0.0, %v4535
      %v4537 = vpop.f32.mrb[0].mxu0
      %v4538 = vpop.f32.mrb[0].mxu0
      %v4539 = vadd.f32 0.0, %v4538
      %v4540 = vpop.f32.mrb[0].mxu0
      %4541 = vmatprep.mubr.bf16.mxu0 0
      %4542 = vmatmul.mubr.bf16.gmra.mrb[0].mxu0 %v4426
      %v4543 = vpop.f32.mrb[0].mxu0
      %v4544 = vadd.f32 0.0, %v4543
      %v4545 = vpop.f32.mrb[0].mxu0
      %v4546 = vpop.f32.mrb[0].mxu0
      %v4547 = vadd.f32 0.0, %v4546
      %v4548 = vpop.f32.mrb[0].mxu0
      %4549 = vmatprep.mubr.bf16.mxu0 0
      %4550 = vmatmul.mubr.bf16.gmra.mrb[0].mxu0 %v4429
      %v4551 = vpop.f32.mrb[0].mxu0
      %v4552 = vadd.f32 0.0, %v4551
      %v4553 = vpop.f32.mrb[0].mxu0
      %v4554 = vpop.f32.mrb[0].mxu0
      %v4555 = vadd.f32 0.0, %v4554
      %v4556 = vpop.f32.mrb[0].mxu0
      %4557 = vmatprep.mubr.bf16.mxu0 0
      %4558 = vmatmul.mubr.bf16.gmra.mrb[0].mxu0 %v4432
      %v4559 = vpop.f32.mrb[0].mxu0
      %v4560 = vadd.f32 0.0, %v4559
      %v4561 = vpop.f32.mrb[0].mxu0
      %v4562 = vpop.f32.mrb[0].mxu0
      %v4563 = vadd.f32 0.0, %v4562
      %v4564 = vpop.f32.mrb[0].mxu0
      %4565 = vmatprep.mubr.bf16.mxu0 0
      %4566 = vmatmul.mubr.bf16.gmra.mrb[0].mxu0 %v4435
      %v4567 = vpop.f32.mrb[0].mxu0
      %v4568 = vadd.f32 0.0, %v4567
      %v4569 = vpop.f32.mrb[0].mxu0
      %v4570 = vpop.f32.mrb[0].mxu0
      %v4571 = vadd.f32 0.0, %v4570
      %v4572 = vpop.f32.mrb[0].mxu0
      %4573 = vmatprep.mubr.bf16.mxu0 0
      %4574 = vmatmul.mubr.bf16.gmra.mrb[0].mxu0 %v4438
      %v4575 = vpop.f32.mrb[0].mxu0
      %v4576 = vadd.f32 0.0, %v4575
      %v4577 = vpop.f32.mrb[0].mxu0
      %v4578 = vpop.f32.mrb[0].mxu0
      %v4579 = vadd.f32 0.0, %v4578
      %v4580 = vpop.f32.mrb[0].mxu0
      %4581 = vmatprep.mubr.bf16.mxu0 0
      %4582 = vmatmul.mubr.bf16.gmra.mrb[0].mxu0 %v4441
      %v4583 = vpop.f32.mrb[0].mxu0
      %v4584 = vadd.f32 0.0, %v4583
      %v4585 = vpop.f32.mrb[0].mxu0
      %v4586 = vpop.f32.mrb[0].mxu0
      %v4587 = vadd.f32 0.0, %v4586
      %v4588 = vpop.f32.mrb[0].mxu0
      %4589 = vmatprep.mubr.bf16.mxu0 0
      %4590 = vmatmul.mubr.bf16.gmra.mrb[0].mxu0 %v4444
      %v4591 = vpop.f32.mrb[0].mxu0
      %v4592 = vadd.f32 0.0, %v4591
      %v4593 = vpop.f32.mrb[0].mxu0
      %v4594 = vpop.f32.mrb[0].mxu0
      %v4595 = vadd.f32 0.0, %v4594
      %v4596 = vpop.f32.mrb[0].mxu0
      %4597 = vmatprep.mubr.bf16.mxu0 0
      %4598 = vmatmul.mubr.bf16.gmra.mrb[0].mxu0 %v4447
      %v4599 = vpop.f32.mrb[0].mxu0
      %v4600 = vadd.f32 0.0, %v4599
      %v4601 = vpop.f32.mrb[0].mxu0
      %v4602 = vpop.f32.mrb[0].mxu0
      %v4603 = vadd.f32 0.0, %v4602
      %v4604 = vpop.f32.mrb[0].mxu0
      %4605 = vmatprep.mubr.bf16.mxu0 0
      %4606 = vmatmul.mubr.bf16.gmra.mrb[0].mxu0 %v4450
      %v4607 = vpop.f32.mrb[0].mxu0
      %v4608 = vadd.f32 0.0, %v4607
      %v4609 = vpop.f32.mrb[0].mxu0
      %v4610 = vpop.f32.mrb[0].mxu0
      %v4611 = vadd.f32 0.0, %v4610
      %v4612 = vpop.f32.mrb[0].mxu0
      %4613 = vmatprep.mubr.bf16.mxu0 0
      %4614 = vmatmul.mubr.bf16.gmra.mrb[0].mxu0 %v4453
      %v4615 = vpop.f32.mrb[0].mxu0
      %v4616 = vadd.f32 0.0, %v4615
      %v4617 = vpop.f32.mrb[0].mxu0
      %v4618 = vpop.f32.mrb[0].mxu0
      %v4619 = vadd.f32 0.0, %v4618
      %v4620 = vpop.f32.mrb[0].mxu0
      %4621 = vmatprep.mubr.bf16.mxu0 0
      %4622 = vmatmul.mubr.bf16.gmra.mrb[0].mxu0 %v4456
      %v4623 = vpop.f32.mrb[0].mxu0
      %v4624 = vadd.f32 0.0, %v4623
      %v4625 = vpop.f32.mrb[0].mxu0
      %v4626 = vpop.f32.mrb[0].mxu0
      %v4627 = vadd.f32 0.0, %v4626
      %v4628 = vpop.f32.mrb[0].mxu0
      %4629 = vmatprep.mubr.bf16.mxu0 0
      %4630 = vmatmul.mubr.bf16.gmra.mrb[0].mxu0 %v4459
      %v4631 = vpop.f32.mrb[0].mxu0
      %v4632 = vadd.f32 0.0, %v4631
      %v4633 = vpop.f32.mrb[0].mxu0
      %v4634 = vpop.f32.mrb[0].mxu0
      %v4635 = vadd.f32 0.0, %v4634
      %v4636 = vpop.f32.mrb[0].mxu0
      %4637 = vdwg.mxu0
      %v4638 = vadd.f32 %v4320, %v4496
      %v4639 = vadd.f32 %v4321, %v4499
      %v4640 = vadd.f32 %v4322, %v4504
      %v4641 = vadd.f32 %v4323, %v4507
      %v4642 = vadd.f32 %v4324, %v4512
      %v4643 = vadd.f32 %v4325, %v4515
      %v4644 = vadd.f32 %v4326, %v4520
      %v4645 = vadd.f32 %v4327, %v4523
      %v4646 = vadd.f32 %v4328, %v4528
      %v4647 = vadd.f32 %v4329, %v4531
      %v4648 = vadd.f32 %v4330, %v4536
      %v4649 = vadd.f32 %v4331, %v4539
      %v4650 = vadd.f32 %v4332, %v4544
      %v4651 = vadd.f32 %v4333, %v4547
      %v4652 = vadd.f32 %v4334, %v4552
      %v4653 = vadd.f32 %v4335, %v4555
      %v4654 = vadd.f32 %v4336, %v4560
      %v4655 = vadd.f32 %v4337, %v4563
      %v4656 = vadd.f32 %v4338, %v4568
      %v4657 = vadd.f32 %v4339, %v4571
      %v4658 = vadd.f32 %v4340, %v4576
      %v4659 = vadd.f32 %v4341, %v4579
      %v4660 = vadd.f32 %v4342, %v4584
      %v4661 = vadd.f32 %v4343, %v4587
      %v4662 = vadd.f32 %v4344, %v4592
      %v4663 = vadd.f32 %v4345, %v4595
      %v4664 = vadd.f32 %v4346, %v4600
      %v4665 = vadd.f32 %v4347, %v4603
      %v4666 = vadd.f32 %v4348, %v4608
      %v4667 = vadd.f32 %v4349, %v4611
      %v4668 = vadd.f32 %v4350, %v4616
      %v4669 = vadd.f32 %v4351, %v4619
      %v4670 = vadd.f32 %v4352, %v4624
      %v4671 = vadd.f32 %v4353, %v4627
      %v4672 = vadd.f32 %v4354, %v4632
      %v4673 = vadd.f32 %v4355, %v4635
      %v4674 = vld [vmem:[#allocation2 + $0xa8] sm:$0x3]
      %s4675 = scalar_lea.vmem %s2, 64
      %v4676 = vld [vmem:[%s4675] sm:$0xf]
      %v4677 = vld [vmem:[%s4675 + $0x4] sm:$0xf]
      %v4679 = vunpack.c.l.b16 %v4674
      %v4680 = vpack.c.b16 %v4679, %v4679
      %vm4681 = vsmask.f32 6400
      %v4683 = vshrl.u32 %v4362, 16
      %v4685 = vrot.slane %v4683, 1
      %v4686 = vshll.u32 %v4362, 16
      %v4688 = vrot.slane %v4686, 2
      %v4689 = vor.u32 %v4685, %v4688
      %v4690 = vrot.slane %v3947, 1
      %v4691 = vrot.slane %v3943, 2
      %v4692 = vor.u32 %v4690, %v4691
      %v4693 = vsel %vm4681, %v4689, %v4692
      %v4694 = vrot.slane %v3955, 1
      %v4695 = vrot.slane %v3951, 2
      %v4696 = vor.u32 %v4694, %v4695
      %v4697 = vsel %vm4681, %v4692, %v4696
      %v4698 = vrot.slane %v3963, 1
      %v4699 = vrot.slane %v3959, 2
      %v4700 = vor.u32 %v4698, %v4699
      %v4701 = vsel %vm4681, %v4696, %v4700
      %v4702 = vrot.slane %v3971, 1
      %v4703 = vrot.slane %v3967, 2
      %v4704 = vor.u32 %v4702, %v4703
      %v4705 = vsel %vm4681, %v4700, %v4704
      %v4706 = vrot.slane %v3979, 1
      %v4707 = vrot.slane %v3975, 2
      %v4708 = vor.u32 %v4706, %v4707
      %v4709 = vsel %vm4681, %v4704, %v4708
      %v4710 = vrot.slane %v3987, 1
      %v4711 = vrot.slane %v3983, 2
      %v4712 = vor.u32 %v4710, %v4711
      %v4713 = vsel %vm4681, %v4708, %v4712
      %v4714 = vrot.slane %v3995, 1
      %v4715 = vrot.slane %v3991, 2
      %v4716 = vor.u32 %v4714, %v4715
      %v4717 = vsel %vm4681, %v4712, %v4716
      %v4718 = vrot.slane %v4003, 1
      %v4719 = vrot.slane %v3999, 2
      %v4720 = vor.u32 %v4718, %v4719
      %v4721 = vsel %vm4681, %v4716, %v4720
      %v4722 = vrot.slane %v4011, 1
      %v4723 = vrot.slane %v4007, 2
      %v4724 = vor.u32 %v4722, %v4723
      %v4725 = vsel %vm4681, %v4720, %v4724
      %v4726 = vrot.slane %v4019, 1
      %v4727 = vrot.slane %v4015, 2
      %v4728 = vor.u32 %v4726, %v4727
      %v4729 = vsel %vm4681, %v4724, %v4728
      %v4730 = vrot.slane %v4027, 1
      %v4731 = vrot.slane %v4023, 2
      %v4732 = vor.u32 %v4730, %v4731
      %v4733 = vsel %vm4681, %v4728, %v4732
      %v4734 = vrot.slane %v4035, 1
      %v4735 = vrot.slane %v4031, 2
      %v4736 = vor.u32 %v4734, %v4735
      %v4737 = vsel %vm4681, %v4732, %v4736
      %v4738 = vrot.slane %v4043, 1
      %v4739 = vrot.slane %v4039, 2
      %v4740 = vor.u32 %v4738, %v4739
      %v4741 = vsel %vm4681, %v4736, %v4740
      %v4742 = vrot.slane %v4051, 1
      %v4743 = vrot.slane %v4047, 2
      %v4744 = vor.u32 %v4742, %v4743
      %v4745 = vsel %vm4681, %v4740, %v4744
      %v4746 = vrot.slane %v4059, 1
      %v4747 = vrot.slane %v4055, 2
      %v4748 = vor.u32 %v4746, %v4747
      %v4749 = vsel %vm4681, %v4744, %v4748
      %v4750 = vrot.slane %v4067, 1
      %v4751 = vrot.slane %v4063, 2
      %v4752 = vor.u32 %v4750, %v4751
      %v4753 = vsel %vm4681, %v4748, %v4752
      %v4754 = vrot.slane %v4075, 1
      %v4755 = vrot.slane %v4071, 2
      %v4756 = vor.u32 %v4754, %v4755
      %v4757 = vsel %vm4681, %v4752, %v4756
      %v4759 = vshrl.u32 %v4680, 16
      %v4761 = vrot.slane %v4759, 1
      %v4762 = vshll.u32 %v4680, 16
      %v4764 = vrot.slane %v4762, 2
      %v4765 = vor.u32 %v4761, %v4764
      %v4766 = vsel %vm4681, %v4756, %v4765
      %v4769 = vunpack.c.l.b16 %v4676
      %v4770 = vunpack.c.l.b16 %v4677
      %v4771 = vpack.c.b16 %v4770, %v4769
      %v4774 = vsel %vm1368, %v4693, 0
      %v4777 = vsel %vm1368, %v4697, 0
      %v4780 = vsel %vm1368, %v4701, 0
      %v4783 = vsel %vm1368, %v4705, 0
      %v4786 = vsel %vm1368, %v4709, 0
      %v4789 = vsel %vm1368, %v4713, 0
      %v4792 = vsel %vm1368, %v4717, 0
      %v4795 = vsel %vm1368, %v4721, 0
      %v4798 = vsel %vm1368, %v4725, 0
      %v4801 = vsel %vm1368, %v4729, 0
      %v4804 = vsel %vm1368, %v4733, 0
      %v4807 = vsel %vm1368, %v4737, 0
      %v4810 = vsel %vm1368, %v4741, 0
      %v4813 = vsel %vm1368, %v4745, 0
      %v4816 = vsel %vm1368, %v4749, 0
      %v4819 = vsel %vm1368, %v4753, 0
      %v4822 = vsel %vm1368, %v4757, 0
      %v4825 = vsel %vm1368, %v4766, 0
      %4827 = vmatprep.subr.bf16.mxu0 0
      %4828 = vmatpush1.bf16.msra.mxu0 %v4771
      %4829 = vmatprep.subr.bf16.mxu0 0
      %4830 = vmatpush1.bf16.msra.mxu0 0
      %4831 = vmatprep.subr.bf16.mxu0 0
      %4832 = vmatpush1.bf16.msra.mxu0 0
      %4833 = vmatprep.subr.bf16.mxu0 0
      %4834 = vmatpush1.bf16.msra.mxu0 0
      %4835 = vmatprep.subr.bf16.mxu0 0
      %4836 = vmatpush1.bf16.msra.mxu0 0
      %4837 = vmatprep.subr.bf16.mxu0 0
      %4838 = vmatpush1.bf16.msra.mxu0 0
      %4839 = vmatprep.subr.bf16.mxu0 0
      %4840 = vmatpush1.bf16.msra.mxu0 0
      %4841 = vmatprep.subr.bf16.mxu0 0
      %4842 = vmatpush1.bf16.msra.mxu0 0
      %4843 = vmatprep.subr.bf16.mxu0 0
      %4844 = vmatpush1.bf16.msra.mxu0 0
      %4845 = vmatprep.subr.bf16.mxu0 0
      %4846 = vmatpush1.bf16.msra.mxu0 0
      %4847 = vmatprep.subr.bf16.mxu0 0
      %4848 = vmatpush1.bf16.msra.mxu0 0
      %4849 = vmatprep.subr.bf16.mxu0 0
      %4850 = vmatpush1.bf16.msra.mxu0 0
      %4851 = vmatprep.subr.bf16.mxu0 0
      %4852 = vmatpush1.bf16.msra.mxu0 0
      %4853 = vmatprep.subr.bf16.mxu0 0
      %4854 = vmatpush1.bf16.msra.mxu0 0
      %4855 = vmatprep.subr.bf16.mxu0 0
      %4856 = vmatpush1.bf16.msra.mxu0 0
      %4857 = vmatprep.subr.bf16.mxu0 0
      %4858 = vmatpush1.bf16.msra.mxu0 0
      %4859 = vmatprep.mubr.bf16.mxu0 0
      %4860 = vmatmul.mubr.bf16.gmra.mrb[0].mxu0 %v4774
      %v4861 = vpop.f32.mrb[0].mxu0
      %v4862 = vadd.f32 0.0, %v4861
      %v4863 = vpop.f32.mrb[0].mxu0
      %v4864 = vpop.f32.mrb[0].mxu0
      %v4865 = vadd.f32 0.0, %v4864
      %v4866 = vpop.f32.mrb[0].mxu0
      %4867 = vmatprep.mubr.bf16.mxu0 0
      %4868 = vmatmul.mubr.bf16.gmra.mrb[0].mxu0 %v4777
      %v4869 = vpop.f32.mrb[0].mxu0
      %v4870 = vadd.f32 0.0, %v4869
      %v4871 = vpop.f32.mrb[0].mxu0
      %v4872 = vpop.f32.mrb[0].mxu0
      %v4873 = vadd.f32 0.0, %v4872
      %v4874 = vpop.f32.mrb[0].mxu0
      %4875 = vmatprep.mubr.bf16.mxu0 0
      %4876 = vmatmul.mubr.bf16.gmra.mrb[0].mxu0 %v4780
      %v4877 = vpop.f32.mrb[0].mxu0
      %v4878 = vadd.f32 0.0, %v4877
      %v4879 = vpop.f32.mrb[0].mxu0
      %v4880 = vpop.f32.mrb[0].mxu0
      %v4881 = vadd.f32 0.0, %v4880
      %v4882 = vpop.f32.mrb[0].mxu0
      %4883 = vmatprep.mubr.bf16.mxu0 0
      %4884 = vmatmul.mubr.bf16.gmra.mrb[0].mxu0 %v4783
      %v4885 = vpop.f32.mrb[0].mxu0
      %v4886 = vadd.f32 0.0, %v4885
      %v4887 = vpop.f32.mrb[0].mxu0
      %v4888 = vpop.f32.mrb[0].mxu0
      %v4889 = vadd.f32 0.0, %v4888
      %v4890 = vpop.f32.mrb[0].mxu0
      %4891 = vmatprep.mubr.bf16.mxu0 0
      %4892 = vmatmul.mubr.bf16.gmra.mrb[0].mxu0 %v4786
      %v4893 = vpop.f32.mrb[0].mxu0
      %v4894 = vadd.f32 0.0, %v4893
      %v4895 = vpop.f32.mrb[0].mxu0
      %v4896 = vpop.f32.mrb[0].mxu0
      %v4897 = vadd.f32 0.0, %v4896
      %v4898 = vpop.f32.mrb[0].mxu0
      %4899 = vmatprep.mubr.bf16.mxu0 0
      %4900 = vmatmul.mubr.bf16.gmra.mrb[0].mxu0 %v4789
      %v4901 = vpop.f32.mrb[0].mxu0
      %v4902 = vadd.f32 0.0, %v4901
      %v4903 = vpop.f32.mrb[0].mxu0
      %v4904 = vpop.f32.mrb[0].mxu0
      %v4905 = vadd.f32 0.0, %v4904
      %v4906 = vpop.f32.mrb[0].mxu0
      %4907 = vmatprep.mubr.bf16.mxu0 0
      %4908 = vmatmul.mubr.bf16.gmra.mrb[0].mxu0 %v4792
      %v4909 = vpop.f32.mrb[0].mxu0
      %v4910 = vadd.f32 0.0, %v4909
      %v4911 = vpop.f32.mrb[0].mxu0
      %v4912 = vpop.f32.mrb[0].mxu0
      %v4913 = vadd.f32 0.0, %v4912
      %v4914 = vpop.f32.mrb[0].mxu0
      %4915 = vmatprep.mubr.bf16.mxu0 0
      %4916 = vmatmul.mubr.bf16.gmra.mrb[0].mxu0 %v4795
      %v4917 = vpop.f32.mrb[0].mxu0
      %v4918 = vadd.f32 0.0, %v4917
      %v4919 = vpop.f32.mrb[0].mxu0
      %v4920 = vpop.f32.mrb[0].mxu0
      %v4921 = vadd.f32 0.0, %v4920
      %v4922 = vpop.f32.mrb[0].mxu0
      %4923 = vmatprep.mubr.bf16.mxu0 0
      %4924 = vmatmul.mubr.bf16.gmra.mrb[0].mxu0 %v4798
      %v4925 = vpop.f32.mrb[0].mxu0
      %v4926 = vadd.f32 0.0, %v4925
      %v4927 = vpop.f32.mrb[0].mxu0
      %v4928 = vpop.f32.mrb[0].mxu0
      %v4929 = vadd.f32 0.0, %v4928
      %v4930 = vpop.f32.mrb[0].mxu0
      %4931 = vmatprep.mubr.bf16.mxu0 0
      %4932 = vmatmul.mubr.bf16.gmra.mrb[0].mxu0 %v4801
      %v4933 = vpop.f32.mrb[0].mxu0
      %v4934 = vadd.f32 0.0, %v4933
      %v4935 = vpop.f32.mrb[0].mxu0
      %v4936 = vpop.f32.mrb[0].mxu0
      %v4937 = vadd.f32 0.0, %v4936
      %v4938 = vpop.f32.mrb[0].mxu0
      %4939 = vmatprep.mubr.bf16.mxu0 0
      %4940 = vmatmul.mubr.bf16.gmra.mrb[0].mxu0 %v4804
      %v4941 = vpop.f32.mrb[0].mxu0
      %v4942 = vadd.f32 0.0, %v4941
      %v4943 = vpop.f32.mrb[0].mxu0
      %v4944 = vpop.f32.mrb[0].mxu0
      %v4945 = vadd.f32 0.0, %v4944
      %v4946 = vpop.f32.mrb[0].mxu0
      %4947 = vmatprep.mubr.bf16.mxu0 0
      %4948 = vmatmul.mubr.bf16.gmra.mrb[0].mxu0 %v4807
      %v4949 = vpop.f32.mrb[0].mxu0
      %v4950 = vadd.f32 0.0, %v4949
      %v4951 = vpop.f32.mrb[0].mxu0
      %v4952 = vpop.f32.mrb[0].mxu0
      %v4953 = vadd.f32 0.0, %v4952
      %v4954 = vpop.f32.mrb[0].mxu0
      %4955 = vmatprep.mubr.bf16.mxu0 0
      %4956 = vmatmul.mubr.bf16.gmra.mrb[0].mxu0 %v4810
      %v4957 = vpop.f32.mrb[0].mxu0
      %v4958 = vadd.f32 0.0, %v4957
      %v4959 = vpop.f32.mrb[0].mxu0
      %v4960 = vpop.f32.mrb[0].mxu0
      %v4961 = vadd.f32 0.0, %v4960
      %v4962 = vpop.f32.mrb[0].mxu0
      %4963 = vmatprep.mubr.bf16.mxu0 0
      %4964 = vmatmul.mubr.bf16.gmra.mrb[0].mxu0 %v4813
      %v4965 = vpop.f32.mrb[0].mxu0
      %v4966 = vadd.f32 0.0, %v4965
      %v4967 = vpop.f32.mrb[0].mxu0
      %v4968 = vpop.f32.mrb[0].mxu0
      %v4969 = vadd.f32 0.0, %v4968
      %v4970 = vpop.f32.mrb[0].mxu0
      %4971 = vmatprep.mubr.bf16.mxu0 0
      %4972 = vmatmul.mubr.bf16.gmra.mrb[0].mxu0 %v4816
      %v4973 = vpop.f32.mrb[0].mxu0
      %v4974 = vadd.f32 0.0, %v4973
      %v4975 = vpop.f32.mrb[0].mxu0
      %v4976 = vpop.f32.mrb[0].mxu0
      %v4977 = vadd.f32 0.0, %v4976
      %v4978 = vpop.f32.mrb[0].mxu0
      %4979 = vmatprep.mubr.bf16.mxu0 0
      %4980 = vmatmul.mubr.bf16.gmra.mrb[0].mxu0 %v4819
      %v4981 = vpop.f32.mrb[0].mxu0
      %v4982 = vadd.f32 0.0, %v4981
      %v4983 = vpop.f32.mrb[0].mxu0
      %v4984 = vpop.f32.mrb[0].mxu0
      %v4985 = vadd.f32 0.0, %v4984
      %v4986 = vpop.f32.mrb[0].mxu0
      %4987 = vmatprep.mubr.bf16.mxu0 0
      %4988 = vmatmul.mubr.bf16.gmra.mrb[0].mxu0 %v4822
      %v4989 = vpop.f32.mrb[0].mxu0
      %v4990 = vadd.f32 0.0, %v4989
      %v4991 = vpop.f32.mrb[0].mxu0
      %v4992 = vpop.f32.mrb[0].mxu0
      %v4993 = vadd.f32 0.0, %v4992
      %v4994 = vpop.f32.mrb[0].mxu0
      %4995 = vmatprep.mubr.bf16.mxu0 0
      %4996 = vmatmul.mubr.bf16.gmra.mrb[0].mxu0 %v4825
      %v4997 = vpop.f32.mrb[0].mxu0
      %v4998 = vadd.f32 0.0, %v4997
      %v4999 = vpop.f32.mrb[0].mxu0
      %v5000 = vpop.f32.mrb[0].mxu0
      %v5001 = vadd.f32 0.0, %v5000
      %v5002 = vpop.f32.mrb[0].mxu0
      %5003 = vdwg.mxu0
      %v5004 = vadd.f32 %v4638, %v4862
      %v5005 = vadd.f32 %v4639, %v4865
      %v5006 = vadd.f32 %v4640, %v4870
      %v5007 = vadd.f32 %v4641, %v4873
      %v5008 = vadd.f32 %v4642, %v4878
      %v5009 = vadd.f32 %v4643, %v4881
      %v5010 = vadd.f32 %v4644, %v4886
      %v5011 = vadd.f32 %v4645, %v4889
      %v5012 = vadd.f32 %v4646, %v4894
      %v5013 = vadd.f32 %v4647, %v4897
      %v5014 = vadd.f32 %v4648, %v4902
      %v5015 = vadd.f32 %v4649, %v4905
      %v5016 = vadd.f32 %v4650, %v4910
      %v5017 = vadd.f32 %v4651, %v4913
      %v5018 = vadd.f32 %v4652, %v4918
      %v5019 = vadd.f32 %v4653, %v4921
      %v5020 = vadd.f32 %v4654, %v4926
      %v5021 = vadd.f32 %v4655, %v4929
      %v5022 = vadd.f32 %v4656, %v4934
      %v5023 = vadd.f32 %v4657, %v4937
      %v5024 = vadd.f32 %v4658, %v4942
      %v5025 = vadd.f32 %v4659, %v4945
      %v5026 = vadd.f32 %v4660, %v4950
      %v5027 = vadd.f32 %v4661, %v4953
      %v5028 = vadd.f32 %v4662, %v4958
      %v5029 = vadd.f32 %v4663, %v4961
      %v5030 = vadd.f32 %v4664, %v4966
      %v5031 = vadd.f32 %v4665, %v4969
      %v5032 = vadd.f32 %v4666, %v4974
      %v5033 = vadd.f32 %v4667, %v4977
      %v5034 = vadd.f32 %v4668, %v4982
      %v5035 = vadd.f32 %v4669, %v4985
      %v5036 = vadd.f32 %v4670, %v4990
      %v5037 = vadd.f32 %v4671, %v4993
      %v5038 = vadd.f32 %v4672, %v4998
      %v5039 = vadd.f32 %v4673, %v5001
      %v5040 = vld [vmem:[%s4 + $0x1] sm:$0x1]
      %v5041 = vlaneseq
      %v5042 = vshrl.u32 %v5041, 7
      %v5043 = vsub.s32 0, %v5042
      %v5044 = vrot.slane %v5040, %v5043
      %v5045 = vadd.f32 %v5004, %v5044
      %v5046 = vadd.f32 %v5005, %v5044
      %v5047 = vadd.f32 %v5006, %v5044
      %v5048 = vadd.f32 %v5007, %v5044
      %v5049 = vadd.f32 %v5008, %v5044
      %v5050 = vadd.f32 %v5009, %v5044
      %v5051 = vadd.f32 %v5010, %v5044
      %v5052 = vadd.f32 %v5011, %v5044
      %v5053 = vadd.f32 %v5012, %v5044
      %v5054 = vadd.f32 %v5013, %v5044
      %v5055 = vadd.f32 %v5014, %v5044
      %v5056 = vadd.f32 %v5015, %v5044
      %v5057 = vadd.f32 %v5016, %v5044
      %v5058 = vadd.f32 %v5017, %v5044
      %v5059 = vadd.f32 %v5018, %v5044
      %v5060 = vadd.f32 %v5019, %v5044
      %v5061 = vadd.f32 %v5020, %v5044
      %v5062 = vadd.f32 %v5021, %v5044
      %v5063 = vadd.f32 %v5022, %v5044
      %v5064 = vadd.f32 %v5023, %v5044
      %v5065 = vadd.f32 %v5024, %v5044
      %v5066 = vadd.f32 %v5025, %v5044
      %v5067 = vadd.f32 %v5026, %v5044
      %v5068 = vadd.f32 %v5027, %v5044
      %v5069 = vadd.f32 %v5028, %v5044
      %v5070 = vadd.f32 %v5029, %v5044
      %v5071 = vadd.f32 %v5030, %v5044
      %v5072 = vadd.f32 %v5031, %v5044
      %v5073 = vadd.f32 %v5032, %v5044
      %v5074 = vadd.f32 %v5033, %v5044
      %v5075 = vadd.f32 %v5034, %v5044
      %v5076 = vadd.f32 %v5035, %v5044
      %v5077 = vadd.f32 %v5036, %v5044
      %v5078 = vadd.f32 %v5037, %v5044
      %v5079 = vadd.f32 %v5038, %v5044
      %v5080 = vadd.f32 %v5039, %v5044
      %v5081 = vmax.f32 %v5045, 0.0
      %v5082 = vmax.f32 %v5046, 0.0
      %v5083 = vmax.f32 %v5047, 0.0
      %v5084 = vmax.f32 %v5048, 0.0
      %v5085 = vmax.f32 %v5049, 0.0
      %v5086 = vmax.f32 %v5050, 0.0
      %v5087 = vmax.f32 %v5051, 0.0
      %v5088 = vmax.f32 %v5052, 0.0
      %v5089 = vmax.f32 %v5053, 0.0
      %v5090 = vmax.f32 %v5054, 0.0
      %v5091 = vmax.f32 %v5055, 0.0
      %v5092 = vmax.f32 %v5056, 0.0
      %v5093 = vmax.f32 %v5057, 0.0
      %v5094 = vmax.f32 %v5058, 0.0
      %v5095 = vmax.f32 %v5059, 0.0
      %v5096 = vmax.f32 %v5060, 0.0
      %v5097 = vmax.f32 %v5061, 0.0
      %v5098 = vmax.f32 %v5062, 0.0
      %v5099 = vmax.f32 %v5063, 0.0
      %v5100 = vmax.f32 %v5064, 0.0
      %v5101 = vmax.f32 %v5065, 0.0
      %v5102 = vmax.f32 %v5066, 0.0
      %v5103 = vmax.f32 %v5067, 0.0
      %v5104 = vmax.f32 %v5068, 0.0
      %v5105 = vmax.f32 %v5069, 0.0
      %v5106 = vmax.f32 %v5070, 0.0
      %v5107 = vmax.f32 %v5071, 0.0
      %v5108 = vmax.f32 %v5072, 0.0
      %v5109 = vmax.f32 %v5073, 0.0
      %v5110 = vmax.f32 %v5074, 0.0
      %v5111 = vmax.f32 %v5075, 0.0
      %v5112 = vmax.f32 %v5076, 0.0
      %v5113 = vmax.f32 %v5077, 0.0
      %v5114 = vmax.f32 %v5078, 0.0
      %v5115 = vmax.f32 %v5079, 0.0
      %v5116 = vmax.f32 %v5080, 0.0
      %v5117 = vmul.f32 %v5081, %v795
      %v5118 = vmul.f32 %v5082, %v800
      %v5119 = vmul.f32 %v5083, %v805
      %v5120 = vmul.f32 %v5084, %v810
      %v5121 = vmul.f32 %v5085, %v815
      %v5122 = vmul.f32 %v5086, %v820
      %v5123 = vmul.f32 %v5087, %v825
      %v5124 = vmul.f32 %v5088, %v830
      %v5125 = vmul.f32 %v5089, %v835
      %v5126 = vmul.f32 %v5090, %v840
      %v5127 = vmul.f32 %v5091, %v845
      %v5128 = vmul.f32 %v5092, %v850
      %v5129 = vmul.f32 %v5093, %v855
      %v5130 = vmul.f32 %v5094, %v860
      %v5131 = vmul.f32 %v5095, %v865
      %v5132 = vmul.f32 %v5096, %v870
      %v5133 = vmul.f32 %v5097, %v875
      %v5134 = vmul.f32 %v5098, %v880
      %v5135 = vmul.f32 %v5099, %v885
      %v5136 = vmul.f32 %v5100, %v890
      %v5137 = vmul.f32 %v5101, %v895
      %v5138 = vmul.f32 %v5102, %v900
      %v5139 = vmul.f32 %v5103, %v905
      %v5140 = vmul.f32 %v5104, %v910
      %v5141 = vmul.f32 %v5105, %v915
      %v5142 = vmul.f32 %v5106, %v920
      %v5143 = vmul.f32 %v5107, %v925
      %v5144 = vmul.f32 %v5108, %v930
      %v5145 = vmul.f32 %v5109, %v935
      %v5146 = vmul.f32 %v5110, %v940
      %v5147 = vmul.f32 %v5111, %v945
      %v5148 = vmul.f32 %v5112, %v950
      %v5149 = vmul.f32 %v5113, %v955
      %v5150 = vmul.f32 %v5114, %v960
      %v5151 = vmul.f32 %v5115, %v965
      %v5152 = vmul.f32 %v5116, %v970
      %v5153 = vpack.c.bf16 %v5118, %v5117
      %v5154 = vpack.c.bf16 %v5120, %v5119
      %v5155 = vpack.c.bf16 %v5122, %v5121
      %v5156 = vpack.c.bf16 %v5124, %v5123
      %v5157 = vpack.c.bf16 %v5126, %v5125
      %v5158 = vpack.c.bf16 %v5128, %v5127
      %v5159 = vpack.c.bf16 %v5130, %v5129
      %v5160 = vpack.c.bf16 %v5132, %v5131
      %v5161 = vpack.c.bf16 %v5134, %v5133
      %v5162 = vpack.c.bf16 %v5136, %v5135
      %v5163 = vpack.c.bf16 %v5138, %v5137
      %v5164 = vpack.c.bf16 %v5140, %v5139
      %v5165 = vpack.c.bf16 %v5142, %v5141
      %v5166 = vpack.c.bf16 %v5144, %v5143
      %v5167 = vpack.c.bf16 %v5146, %v5145
      %v5168 = vpack.c.bf16 %v5148, %v5147
      %v5169 = vpack.c.bf16 %v5150, %v5149
      %v5170 = vpack.c.bf16 %v5152, %v5151
      %v5189 = vunpack.c.l.b16 %v5153
      %v5190 = vunpack.c.h.b16 %v5153
      %v5191 = vunpack.c.l.b16 %v5154
      %v5192 = vunpack.c.h.b16 %v5154
      %v5193 = vunpack.c.l.b16 %v5155
      %v5194 = vunpack.c.h.b16 %v5155
      %v5195 = vunpack.c.l.b16 %v5156
      %v5196 = vunpack.c.h.b16 %v5156
      %v5197 = vunpack.c.l.b16 %v5157
      %v5198 = vunpack.c.h.b16 %v5157
      %v5199 = vunpack.c.l.b16 %v5158
      %v5200 = vunpack.c.h.b16 %v5158
      %v5201 = vunpack.c.l.b16 %v5159
      %v5202 = vunpack.c.h.b16 %v5159
      %v5203 = vunpack.c.l.b16 %v5160
      %v5204 = vunpack.c.h.b16 %v5160
      %v5205 = vunpack.c.l.b16 %v5161
      %v5206 = vunpack.c.h.b16 %v5161
      %v5207 = vunpack.c.l.b16 %v5162
      %v5208 = vunpack.c.h.b16 %v5162
      %v5209 = vunpack.c.l.b16 %v5163
      %v5210 = vunpack.c.h.b16 %v5163
      %v5211 = vunpack.c.l.b16 %v5164
      %v5212 = vunpack.c.h.b16 %v5164
      %v5213 = vunpack.c.l.b16 %v5165
      %v5214 = vunpack.c.h.b16 %v5165
      %v5215 = vunpack.c.l.b16 %v5166
      %v5216 = vunpack.c.h.b16 %v5166
      %v5217 = vunpack.c.l.b16 %v5167
      %v5218 = vunpack.c.h.b16 %v5167
      %v5219 = vunpack.c.l.b16 %v5168
      %v5220 = vunpack.c.h.b16 %v5168
      %v5221 = vunpack.c.l.b16 %v5169
      %v5222 = vunpack.c.h.b16 %v5169
      %v5223 = vunpack.c.l.b16 %v5170
      %v5224 = vunpack.c.h.b16 %v5170
      %v5225 = vpack.c.b16 %v5189, %v5189
      %v5226 = vpack.c.b16 %v5190, %v5190
      %v5227 = vpack.c.b16 %v5191, %v5191
      %v5228 = vpack.c.b16 %v5192, %v5192
      %v5229 = vpack.c.b16 %v5193, %v5193
      %v5230 = vpack.c.b16 %v5194, %v5194
      %v5231 = vpack.c.b16 %v5195, %v5195
      %v5232 = vpack.c.b16 %v5196, %v5196
      %v5233 = vpack.c.b16 %v5197, %v5197
      %v5234 = vpack.c.b16 %v5198, %v5198
      %v5235 = vpack.c.b16 %v5199, %v5199
      %v5236 = vpack.c.b16 %v5200, %v5200
      %v5237 = vpack.c.b16 %v5201, %v5201
      %v5238 = vpack.c.b16 %v5202, %v5202
      %v5239 = vpack.c.b16 %v5203, %v5203
      %v5240 = vpack.c.b16 %v5204, %v5204
      %v5241 = vpack.c.b16 %v5205, %v5205
      %v5242 = vpack.c.b16 %v5206, %v5206
      %v5243 = vpack.c.b16 %v5207, %v5207
      %v5244 = vpack.c.b16 %v5208, %v5208
      %v5245 = vpack.c.b16 %v5209, %v5209
      %v5246 = vpack.c.b16 %v5210, %v5210
      %v5247 = vpack.c.b16 %v5211, %v5211
      %v5248 = vpack.c.b16 %v5212, %v5212
      %v5249 = vpack.c.b16 %v5213, %v5213
      %v5250 = vpack.c.b16 %v5214, %v5214
      %v5251 = vpack.c.b16 %v5215, %v5215
      %v5252 = vpack.c.b16 %v5216, %v5216
      %v5253 = vpack.c.b16 %v5217, %v5217
      %v5254 = vpack.c.b16 %v5218, %v5218
      %v5255 = vpack.c.b16 %v5219, %v5219
      %v5256 = vpack.c.b16 %v5220, %v5220
      %v5257 = vpack.c.b16 %v5221, %v5221
      %v5258 = vpack.c.b16 %v5222, %v5222
      %v5259 = vpack.c.b16 %v5223, %v5223
      %v5260 = vpack.c.b16 %v5224, %v5224
      %5297 = vst.msk [vmem:[#allocation3 + $0x10] sm:$0xf] %vm297, %v5225
      %5298 = vst.msk [vmem:[#allocation3 + $0x14] sm:$0xf] %vm297, %v5226
      %5299 = vst.msk [vmem:[#allocation3 + $0x18] sm:$0xf] %vm297, %v5227
      %5300 = vst.msk [vmem:[#allocation3 + $0x1c] sm:$0xf] %vm297, %v5228
      %5301 = vst.msk [vmem:[#allocation3 + $0x20] sm:$0xf] %vm297, %v5229
      %5302 = vst.msk [vmem:[#allocation3 + $0x24] sm:$0xf] %vm297, %v5230
      %5303 = vst.msk [vmem:[#allocation3 + $0x28] sm:$0xf] %vm297, %v5231
      %5304 = vst.msk [vmem:[#allocation3 + $0x2c] sm:$0xf] %vm297, %v5232
      %5305 = vst.msk [vmem:[#allocation3 + $0x30] sm:$0xf] %vm297, %v5233
      %5306 = vst.msk [vmem:[#allocation3 + $0x34] sm:$0xf] %vm297, %v5234
      %5307 = vst.msk [vmem:[#allocation3 + $0x38] sm:$0xf] %vm297, %v5235
      %5308 = vst.msk [vmem:[#allocation3 + $0x3c] sm:$0xf] %vm297, %v5236
      %5309 = vst.msk [vmem:[#allocation3 + $0x40] sm:$0xf] %vm297, %v5237
      %5310 = vst.msk [vmem:[#allocation3 + $0x44] sm:$0xf] %vm297, %v5238
      %5311 = vst.msk [vmem:[#allocation3 + $0x48] sm:$0xf] %vm297, %v5239
      %5312 = vst.msk [vmem:[#allocation3 + $0x4c] sm:$0xf] %vm297, %v5240
      %5313 = vst.msk [vmem:[#allocation3 + $0x50] sm:$0xf] %vm297, %v5241
      %5314 = vst.msk [vmem:[#allocation3 + $0x54] sm:$0xf] %vm297, %v5242
      %5315 = vst.msk [vmem:[#allocation3 + $0x58] sm:$0xf] %vm297, %v5243
      %5316 = vst.msk [vmem:[#allocation3 + $0x5c] sm:$0xf] %vm297, %v5244
      %5317 = vst.msk [vmem:[#allocation3 + $0x60] sm:$0xf] %vm297, %v5245
      %5318 = vst.msk [vmem:[#allocation3 + $0x64] sm:$0xf] %vm297, %v5246
      %5319 = vst.msk [vmem:[#allocation3 + $0x68] sm:$0xf] %vm297, %v5247
      %5320 = vst.msk [vmem:[#allocation3 + $0x6c] sm:$0xf] %vm297, %v5248
      %5321 = vst.msk [vmem:[#allocation3 + $0x70] sm:$0xf] %vm297, %v5249
      %5322 = vst.msk [vmem:[#allocation3 + $0x74] sm:$0xf] %vm297, %v5250
      %5323 = vst.msk [vmem:[#allocation3 + $0x78] sm:$0xf] %vm297, %v5251
      %5324 = vst.msk [vmem:[#allocation3 + $0x7c] sm:$0xf] %vm297, %v5252
      %5325 = vst.msk [vmem:[#allocation3 + $0x80] sm:$0xf] %vm297, %v5253
      %5326 = vst.msk [vmem:[#allocation3 + $0x84] sm:$0xf] %vm297, %v5254
      %5327 = vst.msk [vmem:[#allocation3 + $0x88] sm:$0xf] %vm297, %v5255
      %5328 = vst.msk [vmem:[#allocation3 + $0x8c] sm:$0xf] %vm297, %v5256
      %5329 = vst.msk [vmem:[#allocation3 + $0x90] sm:$0xf] %vm297, %v5257
      %5330 = vst.msk [vmem:[#allocation3 + $0x94] sm:$0xf] %vm297, %v5258
      %5331 = vst.msk [vmem:[#allocation3 + $0x98] sm:$0xf] %vm297, %v5259
      %5332 = vst.msk [vmem:[#allocation3 + $0x9c] sm:$0xf] %vm297, %v5260
      %v5333 = vld [vmem:[#allocation3 + $0x4] sm:$0xc]
      %v5334 = vld [vmem:[#allocation3 + $0x8] sm:$0xf]
      %v5335 = vld [vmem:[#allocation3 + $0xc] sm:$0xf]
      %v5336 = vld [vmem:[#allocation3 + $0x10] sm:$0xf]
      %v5337 = vld [vmem:[#allocation3 + $0x14] sm:$0xf]
      %v5338 = vld [vmem:[#allocation3 + $0x18] sm:$0xf]
      %v5339 = vld [vmem:[#allocation3 + $0x1c] sm:$0xf]
      %v5340 = vld [vmem:[#allocation3 + $0x20] sm:$0xf]
      %v5341 = vld [vmem:[#allocation3 + $0x24] sm:$0xf]
      %v5342 = vld [vmem:[#allocation3 + $0x28] sm:$0xf]
      %v5343 = vld [vmem:[#allocation3 + $0x2c] sm:$0xf]
      %v5344 = vld [vmem:[#allocation3 + $0x30] sm:$0xf]
      %v5345 = vld [vmem:[#allocation3 + $0x34] sm:$0xf]
      %v5346 = vld [vmem:[#allocation3 + $0x38] sm:$0xf]
      %v5347 = vld [vmem:[#allocation3 + $0x3c] sm:$0xf]
      %v5348 = vld [vmem:[#allocation3 + $0x40] sm:$0xf]
      %v5349 = vld [vmem:[#allocation3 + $0x44] sm:$0xf]
      %v5350 = vld [vmem:[#allocation3 + $0x48] sm:$0xf]
      %v5351 = vld [vmem:[#allocation3 + $0x4c] sm:$0xf]
      %v5352 = vld [vmem:[#allocation3 + $0x50] sm:$0xf]
      %v5353 = vld [vmem:[#allocation3 + $0x54] sm:$0xf]
      %v5354 = vld [vmem:[#allocation3 + $0x58] sm:$0xf]
      %v5355 = vld [vmem:[#allocation3 + $0x5c] sm:$0xf]
      %v5356 = vld [vmem:[#allocation3 + $0x60] sm:$0xf]
      %v5357 = vld [vmem:[#allocation3 + $0x64] sm:$0xf]
      %v5358 = vld [vmem:[#allocation3 + $0x68] sm:$0xf]
      %v5359 = vld [vmem:[#allocation3 + $0x6c] sm:$0xf]
      %v5360 = vld [vmem:[#allocation3 + $0x70] sm:$0xf]
      %v5361 = vld [vmem:[#allocation3 + $0x74] sm:$0xf]
      %v5362 = vld [vmem:[#allocation3 + $0x78] sm:$0xf]
      %v5363 = vld [vmem:[#allocation3 + $0x7c] sm:$0xf]
      %v5364 = vld [vmem:[#allocation3 + $0x80] sm:$0xf]
      %v5365 = vld [vmem:[#allocation3 + $0x84] sm:$0xf]
      %v5366 = vld [vmem:[#allocation3 + $0x88] sm:$0xf]
      %v5367 = vld [vmem:[#allocation3 + $0x8c] sm:$0xf]
      %v5368 = vld [vmem:[#allocation3 + $0x90] sm:$0xf]
      %v5369 = vld [vmem:[#allocation3 + $0x94] sm:$0x7]
      %v5370 = vld [vmem:[%s3] sm:$0xf]
      %v5371 = vld [vmem:[%s3 + $0x4] sm:$0xf]
      %v5372 = vld [vmem:[%s3 + $0x8] sm:$0xf]
      %v5373 = vld [vmem:[%s3 + $0xc] sm:$0xf]
      %v5374 = vld [vmem:[%s3 + $0x10] sm:$0xf]
      %v5375 = vld [vmem:[%s3 + $0x14] sm:$0xf]
      %v5376 = vld [vmem:[%s3 + $0x18] sm:$0xf]
      %v5377 = vld [vmem:[%s3 + $0x1c] sm:$0xf]
      %v5378 = vld [vmem:[#allocation3 + $0x4] sm:$0x8]
      %s5379 = scalar_lea.vmem %s3, 32
      %v5380 = vld [vmem:[%s5379] sm:$0xf]
      %v5381 = vld [vmem:[%s5379 + $0x4] sm:$0xf]
      %v5382 = vld [vmem:[%s5379 + $0x8] sm:$0xf]
      %v5383 = vld [vmem:[%s5379 + $0xc] sm:$0xf]
      %v5384 = vld [vmem:[%s5379 + $0x10] sm:$0xf]
      %v5385 = vld [vmem:[%s5379 + $0x14] sm:$0xf]
      %v5386 = vld [vmem:[%s5379 + $0x18] sm:$0xf]
      %v5387 = vld [vmem:[%s5379 + $0x1c] sm:$0xf]
      %v5425 = vunpack.c.l.b16 %v5378
      %v5426 = vunpack.c.l.b16 %v5334
      %v5427 = vunpack.c.l.b16 %v5335
      %v5428 = vunpack.c.l.b16 %v5336
      %v5429 = vunpack.c.l.b16 %v5337
      %v5430 = vunpack.c.l.b16 %v5338
      %v5431 = vunpack.c.l.b16 %v5339
      %v5432 = vunpack.c.l.b16 %v5340
      %v5433 = vunpack.c.l.b16 %v5341
      %v5434 = vunpack.c.l.b16 %v5342
      %v5435 = vunpack.c.l.b16 %v5343
      %v5436 = vunpack.c.l.b16 %v5344
      %v5437 = vunpack.c.l.b16 %v5345
      %v5438 = vunpack.c.l.b16 %v5346
      %v5439 = vunpack.c.l.b16 %v5347
      %v5440 = vunpack.c.l.b16 %v5348
      %v5441 = vunpack.c.l.b16 %v5349
      %v5442 = vunpack.c.l.b16 %v5350
      %v5443 = vunpack.c.l.b16 %v5351
      %v5444 = vunpack.c.l.b16 %v5352
      %v5445 = vunpack.c.l.b16 %v5353
      %v5446 = vunpack.c.l.b16 %v5354
      %v5447 = vunpack.c.l.b16 %v5355
      %v5448 = vunpack.c.l.b16 %v5356
      %v5449 = vunpack.c.l.b16 %v5357
      %v5450 = vunpack.c.l.b16 %v5358
      %v5451 = vunpack.c.l.b16 %v5359
      %v5452 = vunpack.c.l.b16 %v5360
      %v5453 = vunpack.c.l.b16 %v5361
      %v5454 = vunpack.c.l.b16 %v5362
      %v5455 = vunpack.c.l.b16 %v5363
      %v5456 = vunpack.c.l.b16 %v5364
      %v5457 = vunpack.c.l.b16 %v5365
      %v5458 = vunpack.c.l.b16 %v5366
      %v5459 = vunpack.c.l.b16 %v5367
      %v5460 = vunpack.c.l.b16 %v5368
      %v5461 = vunpack.c.l.b16 %v5369
      %v5462 = vpack.c.b16 %v5426, %v5425
      %v5463 = vpack.c.b16 %v5428, %v5427
      %v5464 = vpack.c.b16 %v5430, %v5429
      %v5465 = vpack.c.b16 %v5432, %v5431
      %v5466 = vpack.c.b16 %v5434, %v5433
      %v5467 = vpack.c.b16 %v5436, %v5435
      %v5468 = vpack.c.b16 %v5438, %v5437
      %v5469 = vpack.c.b16 %v5440, %v5439
      %v5470 = vpack.c.b16 %v5442, %v5441
      %v5471 = vpack.c.b16 %v5444, %v5443
      %v5472 = vpack.c.b16 %v5446, %v5445
      %v5473 = vpack.c.b16 %v5448, %v5447
      %v5474 = vpack.c.b16 %v5450, %v5449
      %v5475 = vpack.c.b16 %v5452, %v5451
      %v5476 = vpack.c.b16 %v5454, %v5453
      %v5477 = vpack.c.b16 %v5456, %v5455
      %v5478 = vpack.c.b16 %v5458, %v5457
      %v5479 = vpack.c.b16 %v5460, %v5459
      %v5480 = vpack.c.b16 %v5461, %v5461
      %v5481 = vrot.slane %v5462, 3
      %v5482 = vrot.slane %v5463, 3
      %v5483 = vsel %vm1324, %v5481, %v5482
      %v5484 = vrot.slane %v5464, 3
      %v5485 = vsel %vm1324, %v5482, %v5484
      %v5486 = vrot.slane %v5465, 3
      %v5487 = vsel %vm1324, %v5484, %v5486
      %v5488 = vrot.slane %v5466, 3
      %v5489 = vsel %vm1324, %v5486, %v5488
      %v5490 = vrot.slane %v5467, 3
      %v5491 = vsel %vm1324, %v5488, %v5490
      %v5492 = vrot.slane %v5468, 3
      %v5493 = vsel %vm1324, %v5490, %v5492
      %v5494 = vrot.slane %v5469, 3
      %v5495 = vsel %vm1324, %v5492, %v5494
      %v5496 = vrot.slane %v5470, 3
      %v5497 = vsel %vm1324, %v5494, %v5496
      %v5498 = vrot.slane %v5471, 3
      %v5499 = vsel %vm1324, %v5496, %v5498
      %v5500 = vrot.slane %v5472, 3
      %v5501 = vsel %vm1324, %v5498, %v5500
      %v5502 = vrot.slane %v5473, 3
      %v5503 = vsel %vm1324, %v5500, %v5502
      %v5504 = vrot.slane %v5474, 3
      %v5505 = vsel %vm1324, %v5502, %v5504
      %v5506 = vrot.slane %v5475, 3
      %v5507 = vsel %vm1324, %v5504, %v5506
      %v5508 = vrot.slane %v5476, 3
      %v5509 = vsel %vm1324, %v5506, %v5508
      %v5510 = vrot.slane %v5477, 3
      %v5511 = vsel %vm1324, %v5508, %v5510
      %v5512 = vrot.slane %v5478, 3
      %v5513 = vsel %vm1324, %v5510, %v5512
      %v5514 = vrot.slane %v5479, 3
      %v5515 = vsel %vm1324, %v5512, %v5514
      %v5516 = vrot.slane %v5480, 3
      %v5517 = vsel %vm1324, %v5514, %v5516
      %v5526 = vunpack.c.l.b16 %v5380
      %v5527 = vunpack.c.l.b16 %v5381
      %v5528 = vunpack.c.l.b16 %v5382
      %v5529 = vunpack.c.l.b16 %v5383
      %v5530 = vunpack.c.l.b16 %v5384
      %v5531 = vunpack.c.l.b16 %v5385
      %v5532 = vunpack.c.l.b16 %v5386
      %v5533 = vunpack.c.l.b16 %v5387
      %v5534 = vpack.c.b16 %v5527, %v5526
      %v5535 = vpack.c.b16 %v5529, %v5528
      %v5536 = vpack.c.b16 %v5531, %v5530
      %v5537 = vpack.c.b16 %v5533, %v5532
      %vm5542 = vcmask 523264
      %v5544 = vsel %vm5542, %v5483, 0
      %v5547 = vsel %vm5542, %v5485, 0
      %v5550 = vsel %vm5542, %v5487, 0
      %v5553 = vsel %vm5542, %v5489, 0
      %v5556 = vsel %vm5542, %v5491, 0
      %v5559 = vsel %vm5542, %v5493, 0
      %v5562 = vsel %vm5542, %v5495, 0
      %v5565 = vsel %vm5542, %v5497, 0
      %v5568 = vsel %vm5542, %v5499, 0
      %v5571 = vsel %vm5542, %v5501, 0
      %v5574 = vsel %vm5542, %v5503, 0
      %v5577 = vsel %vm5542, %v5505, 0
      %v5580 = vsel %vm5542, %v5507, 0
      %v5583 = vsel %vm5542, %v5509, 0
      %v5586 = vsel %vm5542, %v5511, 0
      %v5589 = vsel %vm5542, %v5513, 0
      %v5592 = vsel %vm5542, %v5515, 0
      %v5595 = vsel %vm5542, %v5517, 0
      %5597 = vmatprep.subr.bf16.mxu0 0
      %5598 = vmatpush1.bf16.msra.mxu0 %v5534
      %5599 = vmatprep.subr.bf16.mxu0 0
      %5600 = vmatpush1.bf16.msra.mxu0 %v5535
      %5601 = vmatprep.subr.bf16.mxu0 0
      %5602 = vmatpush1.bf16.msra.mxu0 %v5536
      %5603 = vmatprep.subr.bf16.mxu0 0
      %5604 = vmatpush1.bf16.msra.mxu0 %v5537
      %5605 = vmatprep.subr.bf16.mxu0 0
      %5606 = vmatpush1.bf16.msra.mxu0 0
      %5607 = vmatprep.subr.bf16.mxu0 0
      %5608 = vmatpush1.bf16.msra.mxu0 0
      %5609 = vmatprep.subr.bf16.mxu0 0
      %5610 = vmatpush1.bf16.msra.mxu0 0
      %5611 = vmatprep.subr.bf16.mxu0 0
      %5612 = vmatpush1.bf16.msra.mxu0 0
      %5613 = vmatprep.subr.bf16.mxu0 0
      %5614 = vmatpush1.bf16.msra.mxu0 0
      %5615 = vmatprep.subr.bf16.mxu0 0
      %5616 = vmatpush1.bf16.msra.mxu0 0
      %5617 = vmatprep.subr.bf16.mxu0 0
      %5618 = vmatpush1.bf16.msra.mxu0 0
      %5619 = vmatprep.subr.bf16.mxu0 0
      %5620 = vmatpush1.bf16.msra.mxu0 0
      %5621 = vmatprep.subr.bf16.mxu0 0
      %5622 = vmatpush1.bf16.msra.mxu0 0
      %5623 = vmatprep.subr.bf16.mxu0 0
      %5624 = vmatpush1.bf16.msra.mxu0 0
      %5625 = vmatprep.subr.bf16.mxu0 0
      %5626 = vmatpush1.bf16.msra.mxu0 0
      %5627 = vmatprep.subr.bf16.mxu0 0
      %5628 = vmatpush1.bf16.msra.mxu0 0
      %5629 = vmatprep.mubr.bf16.mxu0 0
      %5630 = vmatmul.mubr.bf16.gmra.mrb[0].mxu0 %v5544
      %v5631 = vpop.f32.mrb[0].mxu0
      %v5632 = vadd.f32 0.0, %v5631
      %v5633 = vpop.f32.mrb[0].mxu0
      %v5634 = vpop.f32.mrb[0].mxu0
      %v5635 = vadd.f32 0.0, %v5634
      %v5636 = vpop.f32.mrb[0].mxu0
      %5637 = vmatprep.mubr.bf16.mxu0 0
      %5638 = vmatmul.mubr.bf16.gmra.mrb[0].mxu0 %v5547
      %v5639 = vpop.f32.mrb[0].mxu0
      %v5640 = vadd.f32 0.0, %v5639
      %v5641 = vpop.f32.mrb[0].mxu0
      %v5642 = vpop.f32.mrb[0].mxu0
      %v5643 = vadd.f32 0.0, %v5642
      %v5644 = vpop.f32.mrb[0].mxu0
      %5645 = vmatprep.mubr.bf16.mxu0 0
      %5646 = vmatmul.mubr.bf16.gmra.mrb[0].mxu0 %v5550
      %v5647 = vpop.f32.mrb[0].mxu0
      %v5648 = vadd.f32 0.0, %v5647
      %v5649 = vpop.f32.mrb[0].mxu0
      %v5650 = vpop.f32.mrb[0].mxu0
      %v5651 = vadd.f32 0.0, %v5650
      %v5652 = vpop.f32.mrb[0].mxu0
      %5653 = vmatprep.mubr.bf16.mxu0 0
      %5654 = vmatmul.mubr.bf16.gmra.mrb[0].mxu0 %v5553
      %v5655 = vpop.f32.mrb[0].mxu0
      %v5656 = vadd.f32 0.0, %v5655
      %v5657 = vpop.f32.mrb[0].mxu0
      %v5658 = vpop.f32.mrb[0].mxu0
      %v5659 = vadd.f32 0.0, %v5658
      %v5660 = vpop.f32.mrb[0].mxu0
      %5661 = vmatprep.mubr.bf16.mxu0 0
      %5662 = vmatmul.mubr.bf16.gmra.mrb[0].mxu0 %v5556
      %v5663 = vpop.f32.mrb[0].mxu0
      %v5664 = vadd.f32 0.0, %v5663
      %v5665 = vpop.f32.mrb[0].mxu0
      %v5666 = vpop.f32.mrb[0].mxu0
      %v5667 = vadd.f32 0.0, %v5666
      %v5668 = vpop.f32.mrb[0].mxu0
      %5669 = vmatprep.mubr.bf16.mxu0 0
      %5670 = vmatmul.mubr.bf16.gmra.mrb[0].mxu0 %v5559
      %v5671 = vpop.f32.mrb[0].mxu0
      %v5672 = vadd.f32 0.0, %v5671
      %v5673 = vpop.f32.mrb[0].mxu0
      %v5674 = vpop.f32.mrb[0].mxu0
      %v5675 = vadd.f32 0.0, %v5674
      %v5676 = vpop.f32.mrb[0].mxu0
      %5677 = vmatprep.mubr.bf16.mxu0 0
      %5678 = vmatmul.mubr.bf16.gmra.mrb[0].mxu0 %v5562
      %v5679 = vpop.f32.mrb[0].mxu0
      %v5680 = vadd.f32 0.0, %v5679
      %v5681 = vpop.f32.mrb[0].mxu0
      %v5682 = vpop.f32.mrb[0].mxu0
      %v5683 = vadd.f32 0.0, %v5682
      %v5684 = vpop.f32.mrb[0].mxu0
      %5685 = vmatprep.mubr.bf16.mxu0 0
      %5686 = vmatmul.mubr.bf16.gmra.mrb[0].mxu0 %v5565
      %v5687 = vpop.f32.mrb[0].mxu0
      %v5688 = vadd.f32 0.0, %v5687
      %v5689 = vpop.f32.mrb[0].mxu0
      %v5690 = vpop.f32.mrb[0].mxu0
      %v5691 = vadd.f32 0.0, %v5690
      %v5692 = vpop.f32.mrb[0].mxu0
      %5693 = vmatprep.mubr.bf16.mxu0 0
      %5694 = vmatmul.mubr.bf16.gmra.mrb[0].mxu0 %v5568
      %v5695 = vpop.f32.mrb[0].mxu0
      %v5696 = vadd.f32 0.0, %v5695
      %v5697 = vpop.f32.mrb[0].mxu0
      %v5698 = vpop.f32.mrb[0].mxu0
      %v5699 = vadd.f32 0.0, %v5698
      %v5700 = vpop.f32.mrb[0].mxu0
      %5701 = vmatprep.mubr.bf16.mxu0 0
      %5702 = vmatmul.mubr.bf16.gmra.mrb[0].mxu0 %v5571
      %v5703 = vpop.f32.mrb[0].mxu0
      %v5704 = vadd.f32 0.0, %v5703
      %v5705 = vpop.f32.mrb[0].mxu0
      %v5706 = vpop.f32.mrb[0].mxu0
      %v5707 = vadd.f32 0.0, %v5706
      %v5708 = vpop.f32.mrb[0].mxu0
      %5709 = vmatprep.mubr.bf16.mxu0 0
      %5710 = vmatmul.mubr.bf16.gmra.mrb[0].mxu0 %v5574
      %v5711 = vpop.f32.mrb[0].mxu0
      %v5712 = vadd.f32 0.0, %v5711
      %v5713 = vpop.f32.mrb[0].mxu0
      %v5714 = vpop.f32.mrb[0].mxu0
      %v5715 = vadd.f32 0.0, %v5714
      %v5716 = vpop.f32.mrb[0].mxu0
      %5717 = vmatprep.mubr.bf16.mxu0 0
      %5718 = vmatmul.mubr.bf16.gmra.mrb[0].mxu0 %v5577
      %v5719 = vpop.f32.mrb[0].mxu0
      %v5720 = vadd.f32 0.0, %v5719
      %v5721 = vpop.f32.mrb[0].mxu0
      %v5722 = vpop.f32.mrb[0].mxu0
      %v5723 = vadd.f32 0.0, %v5722
      %v5724 = vpop.f32.mrb[0].mxu0
      %5725 = vmatprep.mubr.bf16.mxu0 0
      %5726 = vmatmul.mubr.bf16.gmra.mrb[0].mxu0 %v5580
      %v5727 = vpop.f32.mrb[0].mxu0
      %v5728 = vadd.f32 0.0, %v5727
      %v5729 = vpop.f32.mrb[0].mxu0
      %v5730 = vpop.f32.mrb[0].mxu0
      %v5731 = vadd.f32 0.0, %v5730
      %v5732 = vpop.f32.mrb[0].mxu0
      %5733 = vmatprep.mubr.bf16.mxu0 0
      %5734 = vmatmul.mubr.bf16.gmra.mrb[0].mxu0 %v5583
      %v5735 = vpop.f32.mrb[0].mxu0
      %v5736 = vadd.f32 0.0, %v5735
      %v5737 = vpop.f32.mrb[0].mxu0
      %v5738 = vpop.f32.mrb[0].mxu0
      %v5739 = vadd.f32 0.0, %v5738
      %v5740 = vpop.f32.mrb[0].mxu0
      %5741 = vmatprep.mubr.bf16.mxu0 0
      %5742 = vmatmul.mubr.bf16.gmra.mrb[0].mxu0 %v5586
      %v5743 = vpop.f32.mrb[0].mxu0
      %v5744 = vadd.f32 0.0, %v5743
      %v5745 = vpop.f32.mrb[0].mxu0
      %v5746 = vpop.f32.mrb[0].mxu0
      %v5747 = vadd.f32 0.0, %v5746
      %v5748 = vpop.f32.mrb[0].mxu0
      %5749 = vmatprep.mubr.bf16.mxu0 0
      %5750 = vmatmul.mubr.bf16.gmra.mrb[0].mxu0 %v5589
      %v5751 = vpop.f32.mrb[0].mxu0
      %v5752 = vadd.f32 0.0, %v5751
      %v5753 = vpop.f32.mrb[0].mxu0
      %v5754 = vpop.f32.mrb[0].mxu0
      %v5755 = vadd.f32 0.0, %v5754
      %v5756 = vpop.f32.mrb[0].mxu0
      %5757 = vmatprep.mubr.bf16.mxu0 0
      %5758 = vmatmul.mubr.bf16.gmra.mrb[0].mxu0 %v5592
      %v5759 = vpop.f32.mrb[0].mxu0
      %v5760 = vadd.f32 0.0, %v5759
      %v5761 = vpop.f32.mrb[0].mxu0
      %v5762 = vpop.f32.mrb[0].mxu0
      %v5763 = vadd.f32 0.0, %v5762
      %v5764 = vpop.f32.mrb[0].mxu0
      %5765 = vmatprep.mubr.bf16.mxu0 0
      %5766 = vmatmul.mubr.bf16.gmra.mrb[0].mxu0 %v5595
      %v5767 = vpop.f32.mrb[0].mxu0
      %v5768 = vadd.f32 0.0, %v5767
      %v5769 = vpop.f32.mrb[0].mxu0
      %v5770 = vpop.f32.mrb[0].mxu0
      %v5771 = vadd.f32 0.0, %v5770
      %v5772 = vpop.f32.mrb[0].mxu0
      %5773 = vdwg.mxu0
      %v5775 = vunpack.c.l.b16 %v5333
      %v5776 = vpack.c.b16 %v5426, %v5775
      %v5778 = vshrl.u32 %v5776, 16
      %v5780 = vrot.slane %v5778, 2
      %v5781 = vshll.u32 %v5776, 16
      %v5783 = vrot.slane %v5781, 3
      %v5784 = vor.u32 %v5780, %v5783
      %v5786 = vshrl.u32 %v5463, 16
      %v5788 = vrot.slane %v5786, 2
      %v5789 = vshll.u32 %v5463, 16
      %v5791 = vrot.slane %v5789, 3
      %v5792 = vor.u32 %v5788, %v5791
      %v5793 = vsel %vm1603, %v5784, %v5792
      %v5795 = vshrl.u32 %v5464, 16
      %v5797 = vrot.slane %v5795, 2
      %v5798 = vshll.u32 %v5464, 16
      %v5800 = vrot.slane %v5798, 3
      %v5801 = vor.u32 %v5797, %v5800
      %v5802 = vsel %vm1603, %v5792, %v5801
      %v5804 = vshrl.u32 %v5465, 16
      %v5806 = vrot.slane %v5804, 2
      %v5807 = vshll.u32 %v5465, 16
      %v5809 = vrot.slane %v5807, 3
      %v5810 = vor.u32 %v5806, %v5809
      %v5811 = vsel %vm1603, %v5801, %v5810
      %v5813 = vshrl.u32 %v5466, 16
      %v5815 = vrot.slane %v5813, 2
      %v5816 = vshll.u32 %v5466, 16
      %v5818 = vrot.slane %v5816, 3
      %v5819 = vor.u32 %v5815, %v5818
      %v5820 = vsel %vm1603, %v5810, %v5819
      %v5822 = vshrl.u32 %v5467, 16
      %v5824 = vrot.slane %v5822, 2
      %v5825 = vshll.u32 %v5467, 16
      %v5827 = vrot.slane %v5825, 3
      %v5828 = vor.u32 %v5824, %v5827
      %v5829 = vsel %vm1603, %v5819, %v5828
      %v5831 = vshrl.u32 %v5468, 16
      %v5833 = vrot.slane %v5831, 2
      %v5834 = vshll.u32 %v5468, 16
      %v5836 = vrot.slane %v5834, 3
      %v5837 = vor.u32 %v5833, %v5836
      %v5838 = vsel %vm1603, %v5828, %v5837
      %v5840 = vshrl.u32 %v5469, 16
      %v5842 = vrot.slane %v5840, 2
      %v5843 = vshll.u32 %v5469, 16
      %v5845 = vrot.slane %v5843, 3
      %v5846 = vor.u32 %v5842, %v5845
      %v5847 = vsel %vm1603, %v5837, %v5846
      %v5849 = vshrl.u32 %v5470, 16
      %v5851 = vrot.slane %v5849, 2
      %v5852 = vshll.u32 %v5470, 16
      %v5854 = vrot.slane %v5852, 3
      %v5855 = vor.u32 %v5851, %v5854
      %v5856 = vsel %vm1603, %v5846, %v5855
      %v5858 = vshrl.u32 %v5471, 16
      %v5860 = vrot.slane %v5858, 2
      %v5861 = vshll.u32 %v5471, 16
      %v5863 = vrot.slane %v5861, 3
      %v5864 = vor.u32 %v5860, %v5863
      %v5865 = vsel %vm1603, %v5855, %v5864
      %v5867 = vshrl.u32 %v5472, 16
      %v5869 = vrot.slane %v5867, 2
      %v5870 = vshll.u32 %v5472, 16
      %v5872 = vrot.slane %v5870, 3
      %v5873 = vor.u32 %v5869, %v5872
      %v5874 = vsel %vm1603, %v5864, %v5873
      %v5876 = vshrl.u32 %v5473, 16
      %v5878 = vrot.slane %v5876, 2
      %v5879 = vshll.u32 %v5473, 16
      %v5881 = vrot.slane %v5879, 3
      %v5882 = vor.u32 %v5878, %v5881
      %v5883 = vsel %vm1603, %v5873, %v5882
      %v5885 = vshrl.u32 %v5474, 16
      %v5887 = vrot.slane %v5885, 2
      %v5888 = vshll.u32 %v5474, 16
      %v5890 = vrot.slane %v5888, 3
      %v5891 = vor.u32 %v5887, %v5890
      %v5892 = vsel %vm1603, %v5882, %v5891
      %v5894 = vshrl.u32 %v5475, 16
      %v5896 = vrot.slane %v5894, 2
      %v5897 = vshll.u32 %v5475, 16
      %v5899 = vrot.slane %v5897, 3
      %v5900 = vor.u32 %v5896, %v5899
      %v5901 = vsel %vm1603, %v5891, %v5900
      %v5903 = vshrl.u32 %v5476, 16
      %v5905 = vrot.slane %v5903, 2
      %v5906 = vshll.u32 %v5476, 16
      %v5908 = vrot.slane %v5906, 3
      %v5909 = vor.u32 %v5905, %v5908
      %v5910 = vsel %vm1603, %v5900, %v5909
      %v5912 = vshrl.u32 %v5477, 16
      %v5914 = vrot.slane %v5912, 2
      %v5915 = vshll.u32 %v5477, 16
      %v5917 = vrot.slane %v5915, 3
      %v5918 = vor.u32 %v5914, %v5917
      %v5919 = vsel %vm1603, %v5909, %v5918
      %v5921 = vshrl.u32 %v5478, 16
      %v5923 = vrot.slane %v5921, 2
      %v5924 = vshll.u32 %v5478, 16
      %v5926 = vrot.slane %v5924, 3
      %v5927 = vor.u32 %v5923, %v5926
      %v5928 = vsel %vm1603, %v5918, %v5927
      %v5930 = vshrl.u32 %v5479, 16
      %v5932 = vrot.slane %v5930, 2
      %v5933 = vshll.u32 %v5479, 16
      %v5935 = vrot.slane %v5933, 3
      %v5936 = vor.u32 %v5932, %v5935
      %v5937 = vsel %vm1603, %v5927, %v5936
      %v5939 = vshrl.u32 %v5480, 16
      %v5941 = vrot.slane %v5939, 2
      %v5942 = vshll.u32 %v5480, 16
      %v5944 = vrot.slane %v5942, 3
      %v5945 = vor.u32 %v5941, %v5944
      %v5946 = vsel %vm1603, %v5936, %v5945
      %v5955 = vunpack.c.l.b16 %v5370
      %v5956 = vunpack.c.l.b16 %v5371
      %v5957 = vunpack.c.l.b16 %v5372
      %v5958 = vunpack.c.l.b16 %v5373
      %v5959 = vunpack.c.l.b16 %v5374
      %v5960 = vunpack.c.l.b16 %v5375
      %v5961 = vunpack.c.l.b16 %v5376
      %v5962 = vunpack.c.l.b16 %v5377
      %v5963 = vpack.c.b16 %v5956, %v5955
      %v5964 = vpack.c.b16 %v5958, %v5957
      %v5965 = vpack.c.b16 %v5960, %v5959
      %v5966 = vpack.c.b16 %v5962, %v5961
      %v5972 = vsel %vm5542, %v5793, 0
      %v5975 = vsel %vm5542, %v5802, 0
      %v5978 = vsel %vm5542, %v5811, 0
      %v5981 = vsel %vm5542, %v5820, 0
      %v5984 = vsel %vm5542, %v5829, 0
      %v5987 = vsel %vm5542, %v5838, 0
      %v5990 = vsel %vm5542, %v5847, 0
      %v5993 = vsel %vm5542, %v5856, 0
      %v5996 = vsel %vm5542, %v5865, 0
      %v5999 = vsel %vm5542, %v5874, 0
      %v6002 = vsel %vm5542, %v5883, 0
      %v6005 = vsel %vm5542, %v5892, 0
      %v6008 = vsel %vm5542, %v5901, 0
      %v6011 = vsel %vm5542, %v5910, 0
      %v6014 = vsel %vm5542, %v5919, 0
      %v6017 = vsel %vm5542, %v5928, 0
      %v6020 = vsel %vm5542, %v5937, 0
      %v6023 = vsel %vm5542, %v5946, 0
      %6025 = vmatprep.subr.bf16.mxu0 0
      %6026 = vmatpush1.bf16.msra.mxu0 %v5963
      %6027 = vmatprep.subr.bf16.mxu0 0
      %6028 = vmatpush1.bf16.msra.mxu0 %v5964
      %6029 = vmatprep.subr.bf16.mxu0 0
      %6030 = vmatpush1.bf16.msra.mxu0 %v5965
      %6031 = vmatprep.subr.bf16.mxu0 0
      %6032 = vmatpush1.bf16.msra.mxu0 %v5966
      %6033 = vmatprep.subr.bf16.mxu0 0
      %6034 = vmatpush1.bf16.msra.mxu0 0
      %6035 = vmatprep.subr.bf16.mxu0 0
      %6036 = vmatpush1.bf16.msra.mxu0 0
      %6037 = vmatprep.subr.bf16.mxu0 0
      %6038 = vmatpush1.bf16.msra.mxu0 0
      %6039 = vmatprep.subr.bf16.mxu0 0
      %6040 = vmatpush1.bf16.msra.mxu0 0
      %6041 = vmatprep.subr.bf16.mxu0 0
      %6042 = vmatpush1.bf16.msra.mxu0 0
      %6043 = vmatprep.subr.bf16.mxu0 0
      %6044 = vmatpush1.bf16.msra.mxu0 0
      %6045 = vmatprep.subr.bf16.mxu0 0
      %6046 = vmatpush1.bf16.msra.mxu0 0
      %6047 = vmatprep.subr.bf16.mxu0 0
      %6048 = vmatpush1.bf16.msra.mxu0 0
      %6049 = vmatprep.subr.bf16.mxu0 0
      %6050 = vmatpush1.bf16.msra.mxu0 0
      %6051 = vmatprep.subr.bf16.mxu0 0
      %6052 = vmatpush1.bf16.msra.mxu0 0
      %6053 = vmatprep.subr.bf16.mxu0 0
      %6054 = vmatpush1.bf16.msra.mxu0 0
      %6055 = vmatprep.subr.bf16.mxu0 0
      %6056 = vmatpush1.bf16.msra.mxu0 0
      %6057 = vmatprep.mubr.bf16.mxu0 0
      %6058 = vmatmul.mubr.bf16.gmra.mrb[0].mxu0 %v5972
      %v6059 = vpop.f32.mrb[0].mxu0
      %v6060 = vadd.f32 %v5632, %v6059
      %v6061 = vpop.f32.mrb[0].mxu0
      %v6062 = vpop.f32.mrb[0].mxu0
      %v6063 = vadd.f32 %v5635, %v6062
      %v6064 = vpop.f32.mrb[0].mxu0
      %6065 = vmatprep.mubr.bf16.mxu0 0
      %6066 = vmatmul.mubr.bf16.gmra.mrb[0].mxu0 %v5975
      %v6067 = vpop.f32.mrb[0].mxu0
      %v6068 = vadd.f32 %v5640, %v6067
      %v6069 = vpop.f32.mrb[0].mxu0
      %v6070 = vpop.f32.mrb[0].mxu0
      %v6071 = vadd.f32 %v5643, %v6070
      %v6072 = vpop.f32.mrb[0].mxu0
      %6073 = vmatprep.mubr.bf16.mxu0 0
      %6074 = vmatmul.mubr.bf16.gmra.mrb[0].mxu0 %v5978
      %v6075 = vpop.f32.mrb[0].mxu0
      %v6076 = vadd.f32 %v5648, %v6075
      %v6077 = vpop.f32.mrb[0].mxu0
      %v6078 = vpop.f32.mrb[0].mxu0
      %v6079 = vadd.f32 %v5651, %v6078
      %v6080 = vpop.f32.mrb[0].mxu0
      %6081 = vmatprep.mubr.bf16.mxu0 0
      %6082 = vmatmul.mubr.bf16.gmra.mrb[0].mxu0 %v5981
      %v6083 = vpop.f32.mrb[0].mxu0
      %v6084 = vadd.f32 %v5656, %v6083
      %v6085 = vpop.f32.mrb[0].mxu0
      %v6086 = vpop.f32.mrb[0].mxu0
      %v6087 = vadd.f32 %v5659, %v6086
      %v6088 = vpop.f32.mrb[0].mxu0
      %6089 = vmatprep.mubr.bf16.mxu0 0
      %6090 = vmatmul.mubr.bf16.gmra.mrb[0].mxu0 %v5984
      %v6091 = vpop.f32.mrb[0].mxu0
      %v6092 = vadd.f32 %v5664, %v6091
      %v6093 = vpop.f32.mrb[0].mxu0
      %v6094 = vpop.f32.mrb[0].mxu0
      %v6095 = vadd.f32 %v5667, %v6094
      %v6096 = vpop.f32.mrb[0].mxu0
      %6097 = vmatprep.mubr.bf16.mxu0 0
      %6098 = vmatmul.mubr.bf16.gmra.mrb[0].mxu0 %v5987
      %v6099 = vpop.f32.mrb[0].mxu0
      %v6100 = vadd.f32 %v5672, %v6099
      %v6101 = vpop.f32.mrb[0].mxu0
      %v6102 = vpop.f32.mrb[0].mxu0
      %v6103 = vadd.f32 %v5675, %v6102
      %v6104 = vpop.f32.mrb[0].mxu0
      %6105 = vmatprep.mubr.bf16.mxu0 0
      %6106 = vmatmul.mubr.bf16.gmra.mrb[0].mxu0 %v5990
      %v6107 = vpop.f32.mrb[0].mxu0
      %v6108 = vadd.f32 %v5680, %v6107
      %v6109 = vpop.f32.mrb[0].mxu0
      %v6110 = vpop.f32.mrb[0].mxu0
      %v6111 = vadd.f32 %v5683, %v6110
      %v6112 = vpop.f32.mrb[0].mxu0
      %6113 = vmatprep.mubr.bf16.mxu0 0
      %6114 = vmatmul.mubr.bf16.gmra.mrb[0].mxu0 %v5993
      %v6115 = vpop.f32.mrb[0].mxu0
      %v6116 = vadd.f32 %v5688, %v6115
      %v6117 = vpop.f32.mrb[0].mxu0
      %v6118 = vpop.f32.mrb[0].mxu0
      %v6119 = vadd.f32 %v5691, %v6118
      %v6120 = vpop.f32.mrb[0].mxu0
      %6121 = vmatprep.mubr.bf16.mxu0 0
      %6122 = vmatmul.mubr.bf16.gmra.mrb[0].mxu0 %v5996
      %v6123 = vpop.f32.mrb[0].mxu0
      %v6124 = vadd.f32 %v5696, %v6123
      %v6125 = vpop.f32.mrb[0].mxu0
      %v6126 = vpop.f32.mrb[0].mxu0
      %v6127 = vadd.f32 %v5699, %v6126
      %v6128 = vpop.f32.mrb[0].mxu0
      %6129 = vmatprep.mubr.bf16.mxu0 0
      %6130 = vmatmul.mubr.bf16.gmra.mrb[0].mxu0 %v5999
      %v6131 = vpop.f32.mrb[0].mxu0
      %v6132 = vadd.f32 %v5704, %v6131
      %v6133 = vpop.f32.mrb[0].mxu0
      %v6134 = vpop.f32.mrb[0].mxu0
      %v6135 = vadd.f32 %v5707, %v6134
      %v6136 = vpop.f32.mrb[0].mxu0
      %6137 = vmatprep.mubr.bf16.mxu0 0
      %6138 = vmatmul.mubr.bf16.gmra.mrb[0].mxu0 %v6002
      %v6139 = vpop.f32.mrb[0].mxu0
      %v6140 = vadd.f32 %v5712, %v6139
      %v6141 = vpop.f32.mrb[0].mxu0
      %v6142 = vpop.f32.mrb[0].mxu0
      %v6143 = vadd.f32 %v5715, %v6142
      %v6144 = vpop.f32.mrb[0].mxu0
      %6145 = vmatprep.mubr.bf16.mxu0 0
      %6146 = vmatmul.mubr.bf16.gmra.mrb[0].mxu0 %v6005
      %v6147 = vpop.f32.mrb[0].mxu0
      %v6148 = vadd.f32 %v5720, %v6147
      %v6149 = vpop.f32.mrb[0].mxu0
      %v6150 = vpop.f32.mrb[0].mxu0
      %v6151 = vadd.f32 %v5723, %v6150
      %v6152 = vpop.f32.mrb[0].mxu0
      %6153 = vmatprep.mubr.bf16.mxu0 0
      %6154 = vmatmul.mubr.bf16.gmra.mrb[0].mxu0 %v6008
      %v6155 = vpop.f32.mrb[0].mxu0
      %v6156 = vadd.f32 %v5728, %v6155
      %v6157 = vpop.f32.mrb[0].mxu0
      %v6158 = vpop.f32.mrb[0].mxu0
      %v6159 = vadd.f32 %v5731, %v6158
      %v6160 = vpop.f32.mrb[0].mxu0
      %6161 = vmatprep.mubr.bf16.mxu0 0
      %6162 = vmatmul.mubr.bf16.gmra.mrb[0].mxu0 %v6011
      %v6163 = vpop.f32.mrb[0].mxu0
      %v6164 = vadd.f32 %v5736, %v6163
      %v6165 = vpop.f32.mrb[0].mxu0
      %v6166 = vpop.f32.mrb[0].mxu0
      %v6167 = vadd.f32 %v5739, %v6166
      %v6168 = vpop.f32.mrb[0].mxu0
      %6169 = vmatprep.mubr.bf16.mxu0 0
      %6170 = vmatmul.mubr.bf16.gmra.mrb[0].mxu0 %v6014
      %v6171 = vpop.f32.mrb[0].mxu0
      %v6172 = vadd.f32 %v5744, %v6171
      %v6173 = vpop.f32.mrb[0].mxu0
      %v6174 = vpop.f32.mrb[0].mxu0
      %v6175 = vadd.f32 %v5747, %v6174
      %v6176 = vpop.f32.mrb[0].mxu0
      %6177 = vmatprep.mubr.bf16.mxu0 0
      %6178 = vmatmul.mubr.bf16.gmra.mrb[0].mxu0 %v6017
      %v6179 = vpop.f32.mrb[0].mxu0
      %v6180 = vadd.f32 %v5752, %v6179
      %v6181 = vpop.f32.mrb[0].mxu0
      %v6182 = vpop.f32.mrb[0].mxu0
      %v6183 = vadd.f32 %v5755, %v6182
      %v6184 = vpop.f32.mrb[0].mxu0
      %6185 = vmatprep.mubr.bf16.mxu0 0
      %6186 = vmatmul.mubr.bf16.gmra.mrb[0].mxu0 %v6020
      %v6187 = vpop.f32.mrb[0].mxu0
      %v6188 = vadd.f32 %v5760, %v6187
      %v6189 = vpop.f32.mrb[0].mxu0
      %v6190 = vpop.f32.mrb[0].mxu0
      %v6191 = vadd.f32 %v5763, %v6190
      %v6192 = vpop.f32.mrb[0].mxu0
      %6193 = vmatprep.mubr.bf16.mxu0 0
      %6194 = vmatmul.mubr.bf16.gmra.mrb[0].mxu0 %v6023
      %v6195 = vpop.f32.mrb[0].mxu0
      %v6196 = vadd.f32 %v5768, %v6195
      %v6197 = vpop.f32.mrb[0].mxu0
      %v6198 = vpop.f32.mrb[0].mxu0
      %v6199 = vadd.f32 %v5771, %v6198
      %v6200 = vpop.f32.mrb[0].mxu0
      %6201 = vdwg.mxu0
      %v6202 = vld [vmem:[#allocation3 + $0x94] sm:$0xf]
      %s6203 = scalar_lea.vmem %s3, 64
      %v6204 = vld [vmem:[%s6203] sm:$0xf]
      %v6205 = vld [vmem:[%s6203 + $0x4] sm:$0xf]
      %v6206 = vld [vmem:[%s6203 + $0x8] sm:$0xf]
      %v6207 = vld [vmem:[%s6203 + $0xc] sm:$0xf]
      %v6208 = vld [vmem:[%s6203 + $0x10] sm:$0xf]
      %v6209 = vld [vmem:[%s6203 + $0x14] sm:$0xf]
      %v6210 = vld [vmem:[%s6203 + $0x18] sm:$0xf]
      %v6211 = vld [vmem:[%s6203 + $0x1c] sm:$0xf]
      %v6213 = vunpack.c.l.b16 %v6202
      %v6214 = vpack.c.b16 %v6213, %v6213
      %v6216 = vshrl.u32 %v5462, 16
      %v6218 = vrot.slane %v6216, 3
      %v6219 = vshll.u32 %v5462, 16
      %v6221 = vrot.slane %v6219, 4
      %v6222 = vor.u32 %v6218, %v6221
      %v6223 = vrot.slane %v5786, 3
      %v6224 = vrot.slane %v5789, 4
      %v6225 = vor.u32 %v6223, %v6224
      %v6226 = vsel %vm2018, %v6222, %v6225
      %v6227 = vrot.slane %v5795, 3
      %v6228 = vrot.slane %v5798, 4
      %v6229 = vor.u32 %v6227, %v6228
      %v6230 = vsel %vm2018, %v6225, %v6229
      %v6231 = vrot.slane %v5804, 3
      %v6232 = vrot.slane %v5807, 4
      %v6233 = vor.u32 %v6231, %v6232
      %v6234 = vsel %vm2018, %v6229, %v6233
      %v6235 = vrot.slane %v5813, 3
      %v6236 = vrot.slane %v5816, 4
      %v6237 = vor.u32 %v6235, %v6236
      %v6238 = vsel %vm2018, %v6233, %v6237
      %v6239 = vrot.slane %v5822, 3
      %v6240 = vrot.slane %v5825, 4
      %v6241 = vor.u32 %v6239, %v6240
      %v6242 = vsel %vm2018, %v6237, %v6241
      %v6243 = vrot.slane %v5831, 3
      %v6244 = vrot.slane %v5834, 4
      %v6245 = vor.u32 %v6243, %v6244
      %v6246 = vsel %vm2018, %v6241, %v6245
      %v6247 = vrot.slane %v5840, 3
      %v6248 = vrot.slane %v5843, 4
      %v6249 = vor.u32 %v6247, %v6248
      %v6250 = vsel %vm2018, %v6245, %v6249
      %v6251 = vrot.slane %v5849, 3
      %v6252 = vrot.slane %v5852, 4
      %v6253 = vor.u32 %v6251, %v6252
      %v6254 = vsel %vm2018, %v6249, %v6253
      %v6255 = vrot.slane %v5858, 3
      %v6256 = vrot.slane %v5861, 4
      %v6257 = vor.u32 %v6255, %v6256
      %v6258 = vsel %vm2018, %v6253, %v6257
      %v6259 = vrot.slane %v5867, 3
      %v6260 = vrot.slane %v5870, 4
      %v6261 = vor.u32 %v6259, %v6260
      %v6262 = vsel %vm2018, %v6257, %v6261
      %v6263 = vrot.slane %v5876, 3
      %v6264 = vrot.slane %v5879, 4
      %v6265 = vor.u32 %v6263, %v6264
      %v6266 = vsel %vm2018, %v6261, %v6265
      %v6267 = vrot.slane %v5885, 3
      %v6268 = vrot.slane %v5888, 4
      %v6269 = vor.u32 %v6267, %v6268
      %v6270 = vsel %vm2018, %v6265, %v6269
      %v6271 = vrot.slane %v5894, 3
      %v6272 = vrot.slane %v5897, 4
      %v6273 = vor.u32 %v6271, %v6272
      %v6274 = vsel %vm2018, %v6269, %v6273
      %v6275 = vrot.slane %v5903, 3
      %v6276 = vrot.slane %v5906, 4
      %v6277 = vor.u32 %v6275, %v6276
      %v6278 = vsel %vm2018, %v6273, %v6277
      %v6279 = vrot.slane %v5912, 3
      %v6280 = vrot.slane %v5915, 4
      %v6281 = vor.u32 %v6279, %v6280
      %v6282 = vsel %vm2018, %v6277, %v6281
      %v6283 = vrot.slane %v5921, 3
      %v6284 = vrot.slane %v5924, 4
      %v6285 = vor.u32 %v6283, %v6284
      %v6286 = vsel %vm2018, %v6281, %v6285
      %v6287 = vrot.slane %v5930, 3
      %v6288 = vrot.slane %v5933, 4
      %v6289 = vor.u32 %v6287, %v6288
      %v6290 = vsel %vm2018, %v6285, %v6289
      %v6292 = vshrl.u32 %v6214, 16
      %v6294 = vrot.slane %v6292, 3
      %v6295 = vshll.u32 %v6214, 16
      %v6297 = vrot.slane %v6295, 4
      %v6298 = vor.u32 %v6294, %v6297
      %v6299 = vsel %vm2018, %v6289, %v6298
      %v6308 = vunpack.c.l.b16 %v6204
      %v6309 = vunpack.c.l.b16 %v6205
      %v6310 = vunpack.c.l.b16 %v6206
      %v6311 = vunpack.c.l.b16 %v6207
      %v6312 = vunpack.c.l.b16 %v6208
      %v6313 = vunpack.c.l.b16 %v6209
      %v6314 = vunpack.c.l.b16 %v6210
      %v6315 = vunpack.c.l.b16 %v6211
      %v6316 = vpack.c.b16 %v6309, %v6308
      %v6317 = vpack.c.b16 %v6311, %v6310
      %v6318 = vpack.c.b16 %v6313, %v6312
      %v6319 = vpack.c.b16 %v6315, %v6314
      %v6325 = vsel %vm5542, %v6226, 0
      %v6328 = vsel %vm5542, %v6230, 0
      %v6331 = vsel %vm5542, %v6234, 0
      %v6334 = vsel %vm5542, %v6238, 0
      %v6337 = vsel %vm5542, %v6242, 0
      %v6340 = vsel %vm5542, %v6246, 0
      %v6343 = vsel %vm5542, %v6250, 0
      %v6346 = vsel %vm5542, %v6254, 0
      %v6349 = vsel %vm5542, %v6258, 0
      %v6352 = vsel %vm5542, %v6262, 0
      %v6355 = vsel %vm5542, %v6266, 0
      %v6358 = vsel %vm5542, %v6270, 0
      %v6361 = vsel %vm5542, %v6274, 0
      %v6364 = vsel %vm5542, %v6278, 0
      %v6367 = vsel %vm5542, %v6282, 0
      %v6370 = vsel %vm5542, %v6286, 0
      %v6373 = vsel %vm5542, %v6290, 0
      %v6376 = vsel %vm5542, %v6299, 0
      %6378 = vmatprep.subr.bf16.mxu0 0
      %6379 = vmatpush1.bf16.msra.mxu0 %v6316
      %6380 = vmatprep.subr.bf16.mxu0 0
      %6381 = vmatpush1.bf16.msra.mxu0 %v6317
      %6382 = vmatprep.subr.bf16.mxu0 0
      %6383 = vmatpush1.bf16.msra.mxu0 %v6318
      %6384 = vmatprep.subr.bf16.mxu0 0
      %6385 = vmatpush1.bf16.msra.mxu0 %v6319
      %6386 = vmatprep.subr.bf16.mxu0 0
      %6387 = vmatpush1.bf16.msra.mxu0 0
      %6388 = vmatprep.subr.bf16.mxu0 0
      %6389 = vmatpush1.bf16.msra.mxu0 0
      %6390 = vmatprep.subr.bf16.mxu0 0
      %6391 = vmatpush1.bf16.msra.mxu0 0
      %6392 = vmatprep.subr.bf16.mxu0 0
      %6393 = vmatpush1.bf16.msra.mxu0 0
      %6394 = vmatprep.subr.bf16.mxu0 0
      %6395 = vmatpush1.bf16.msra.mxu0 0
      %6396 = vmatprep.subr.bf16.mxu0 0
      %6397 = vmatpush1.bf16.msra.mxu0 0
      %6398 = vmatprep.subr.bf16.mxu0 0
      %6399 = vmatpush1.bf16.msra.mxu0 0
      %6400 = vmatprep.subr.bf16.mxu0 0
      %6401 = vmatpush1.bf16.msra.mxu0 0
      %6402 = vmatprep.subr.bf16.mxu0 0
      %6403 = vmatpush1.bf16.msra.mxu0 0
      %6404 = vmatprep.subr.bf16.mxu0 0
      %6405 = vmatpush1.bf16.msra.mxu0 0
      %6406 = vmatprep.subr.bf16.mxu0 0
      %6407 = vmatpush1.bf16.msra.mxu0 0
      %6408 = vmatprep.subr.bf16.mxu0 0
      %6409 = vmatpush1.bf16.msra.mxu0 0
      %6410 = vmatprep.mubr.bf16.mxu0 0
      %6411 = vmatmul.mubr.bf16.gmra.mrb[0].mxu0 %v6325
      %v6412 = vpop.f32.mrb[0].mxu0
      %v6413 = vadd.f32 0.0, %v6412
      %v6414 = vpop.f32.mrb[0].mxu0
      %v6415 = vpop.f32.mrb[0].mxu0
      %v6416 = vadd.f32 0.0, %v6415
      %v6417 = vpop.f32.mrb[0].mxu0
      %6418 = vmatprep.mubr.bf16.mxu0 0
      %6419 = vmatmul.mubr.bf16.gmra.mrb[0].mxu0 %v6328
      %v6420 = vpop.f32.mrb[0].mxu0
      %v6421 = vadd.f32 0.0, %v6420
      %v6422 = vpop.f32.mrb[0].mxu0
      %v6423 = vpop.f32.mrb[0].mxu0
      %v6424 = vadd.f32 0.0, %v6423
      %v6425 = vpop.f32.mrb[0].mxu0
      %6426 = vmatprep.mubr.bf16.mxu0 0
      %6427 = vmatmul.mubr.bf16.gmra.mrb[0].mxu0 %v6331
      %v6428 = vpop.f32.mrb[0].mxu0
      %v6429 = vadd.f32 0.0, %v6428
      %v6430 = vpop.f32.mrb[0].mxu0
      %v6431 = vpop.f32.mrb[0].mxu0
      %v6432 = vadd.f32 0.0, %v6431
      %v6433 = vpop.f32.mrb[0].mxu0
      %6434 = vmatprep.mubr.bf16.mxu0 0
      %6435 = vmatmul.mubr.bf16.gmra.mrb[0].mxu0 %v6334
      %v6436 = vpop.f32.mrb[0].mxu0
      %v6437 = vadd.f32 0.0, %v6436
      %v6438 = vpop.f32.mrb[0].mxu0
      %v6439 = vpop.f32.mrb[0].mxu0
      %v6440 = vadd.f32 0.0, %v6439
      %v6441 = vpop.f32.mrb[0].mxu0
      %6442 = vmatprep.mubr.bf16.mxu0 0
      %6443 = vmatmul.mubr.bf16.gmra.mrb[0].mxu0 %v6337
      %v6444 = vpop.f32.mrb[0].mxu0
      %v6445 = vadd.f32 0.0, %v6444
      %v6446 = vpop.f32.mrb[0].mxu0
      %v6447 = vpop.f32.mrb[0].mxu0
      %v6448 = vadd.f32 0.0, %v6447
      %v6449 = vpop.f32.mrb[0].mxu0
      %6450 = vmatprep.mubr.bf16.mxu0 0
      %6451 = vmatmul.mubr.bf16.gmra.mrb[0].mxu0 %v6340
      %v6452 = vpop.f32.mrb[0].mxu0
      %v6453 = vadd.f32 0.0, %v6452
      %v6454 = vpop.f32.mrb[0].mxu0
      %v6455 = vpop.f32.mrb[0].mxu0
      %v6456 = vadd.f32 0.0, %v6455
      %v6457 = vpop.f32.mrb[0].mxu0
      %6458 = vmatprep.mubr.bf16.mxu0 0
      %6459 = vmatmul.mubr.bf16.gmra.mrb[0].mxu0 %v6343
      %v6460 = vpop.f32.mrb[0].mxu0
      %v6461 = vadd.f32 0.0, %v6460
      %v6462 = vpop.f32.mrb[0].mxu0
      %v6463 = vpop.f32.mrb[0].mxu0
      %v6464 = vadd.f32 0.0, %v6463
      %v6465 = vpop.f32.mrb[0].mxu0
      %6466 = vmatprep.mubr.bf16.mxu0 0
      %6467 = vmatmul.mubr.bf16.gmra.mrb[0].mxu0 %v6346
      %v6468 = vpop.f32.mrb[0].mxu0
      %v6469 = vadd.f32 0.0, %v6468
      %v6470 = vpop.f32.mrb[0].mxu0
      %v6471 = vpop.f32.mrb[0].mxu0
      %v6472 = vadd.f32 0.0, %v6471
      %v6473 = vpop.f32.mrb[0].mxu0
      %6474 = vmatprep.mubr.bf16.mxu0 0
      %6475 = vmatmul.mubr.bf16.gmra.mrb[0].mxu0 %v6349
      %v6476 = vpop.f32.mrb[0].mxu0
      %v6477 = vadd.f32 0.0, %v6476
      %v6478 = vpop.f32.mrb[0].mxu0
      %v6479 = vpop.f32.mrb[0].mxu0
      %v6480 = vadd.f32 0.0, %v6479
      %v6481 = vpop.f32.mrb[0].mxu0
      %6482 = vmatprep.mubr.bf16.mxu0 0
      %6483 = vmatmul.mubr.bf16.gmra.mrb[0].mxu0 %v6352
      %v6484 = vpop.f32.mrb[0].mxu0
      %v6485 = vadd.f32 0.0, %v6484
      %v6486 = vpop.f32.mrb[0].mxu0
      %v6487 = vpop.f32.mrb[0].mxu0
      %v6488 = vadd.f32 0.0, %v6487
      %v6489 = vpop.f32.mrb[0].mxu0
      %6490 = vmatprep.mubr.bf16.mxu0 0
      %6491 = vmatmul.mubr.bf16.gmra.mrb[0].mxu0 %v6355
      %v6492 = vpop.f32.mrb[0].mxu0
      %v6493 = vadd.f32 0.0, %v6492
      %v6494 = vpop.f32.mrb[0].mxu0
      %v6495 = vpop.f32.mrb[0].mxu0
      %v6496 = vadd.f32 0.0, %v6495
      %v6497 = vpop.f32.mrb[0].mxu0
      %6498 = vmatprep.mubr.bf16.mxu0 0
      %6499 = vmatmul.mubr.bf16.gmra.mrb[0].mxu0 %v6358
      %v6500 = vpop.f32.mrb[0].mxu0
      %v6501 = vadd.f32 0.0, %v6500
      %v6502 = vpop.f32.mrb[0].mxu0
      %v6503 = vpop.f32.mrb[0].mxu0
      %v6504 = vadd.f32 0.0, %v6503
      %v6505 = vpop.f32.mrb[0].mxu0
      %6506 = vmatprep.mubr.bf16.mxu0 0
      %6507 = vmatmul.mubr.bf16.gmra.mrb[0].mxu0 %v6361
      %v6508 = vpop.f32.mrb[0].mxu0
      %v6509 = vadd.f32 0.0, %v6508
      %v6510 = vpop.f32.mrb[0].mxu0
      %v6511 = vpop.f32.mrb[0].mxu0
      %v6512 = vadd.f32 0.0, %v6511
      %v6513 = vpop.f32.mrb[0].mxu0
      %6514 = vmatprep.mubr.bf16.mxu0 0
      %6515 = vmatmul.mubr.bf16.gmra.mrb[0].mxu0 %v6364
      %v6516 = vpop.f32.mrb[0].mxu0
      %v6517 = vadd.f32 0.0, %v6516
      %v6518 = vpop.f32.mrb[0].mxu0
      %v6519 = vpop.f32.mrb[0].mxu0
      %v6520 = vadd.f32 0.0, %v6519
      %v6521 = vpop.f32.mrb[0].mxu0
      %6522 = vmatprep.mubr.bf16.mxu0 0
      %6523 = vmatmul.mubr.bf16.gmra.mrb[0].mxu0 %v6367
      %v6524 = vpop.f32.mrb[0].mxu0
      %v6525 = vadd.f32 0.0, %v6524
      %v6526 = vpop.f32.mrb[0].mxu0
      %v6527 = vpop.f32.mrb[0].mxu0
      %v6528 = vadd.f32 0.0, %v6527
      %v6529 = vpop.f32.mrb[0].mxu0
      %6530 = vmatprep.mubr.bf16.mxu0 0
      %6531 = vmatmul.mubr.bf16.gmra.mrb[0].mxu0 %v6370
      %v6532 = vpop.f32.mrb[0].mxu0
      %v6533 = vadd.f32 0.0, %v6532
      %v6534 = vpop.f32.mrb[0].mxu0
      %v6535 = vpop.f32.mrb[0].mxu0
      %v6536 = vadd.f32 0.0, %v6535
      %v6537 = vpop.f32.mrb[0].mxu0
      %6538 = vmatprep.mubr.bf16.mxu0 0
      %6539 = vmatmul.mubr.bf16.gmra.mrb[0].mxu0 %v6373
      %v6540 = vpop.f32.mrb[0].mxu0
      %v6541 = vadd.f32 0.0, %v6540
      %v6542 = vpop.f32.mrb[0].mxu0
      %v6543 = vpop.f32.mrb[0].mxu0
      %v6544 = vadd.f32 0.0, %v6543
      %v6545 = vpop.f32.mrb[0].mxu0
      %6546 = vmatprep.mubr.bf16.mxu0 0
      %6547 = vmatmul.mubr.bf16.gmra.mrb[0].mxu0 %v6376
      %v6548 = vpop.f32.mrb[0].mxu0
      %v6549 = vadd.f32 0.0, %v6548
      %v6550 = vpop.f32.mrb[0].mxu0
      %v6551 = vpop.f32.mrb[0].mxu0
      %v6552 = vadd.f32 0.0, %v6551
      %v6553 = vpop.f32.mrb[0].mxu0
      %6554 = vdwg.mxu0
      %v6555 = vadd.f32 %v6060, %v6413
      %v6556 = vadd.f32 %v6063, %v6416
      %v6557 = vadd.f32 %v6068, %v6421
      %v6558 = vadd.f32 %v6071, %v6424
      %v6559 = vadd.f32 %v6076, %v6429
      %v6560 = vadd.f32 %v6079, %v6432
      %v6561 = vadd.f32 %v6084, %v6437
      %v6562 = vadd.f32 %v6087, %v6440
      %v6563 = vadd.f32 %v6092, %v6445
      %v6564 = vadd.f32 %v6095, %v6448
      %v6565 = vadd.f32 %v6100, %v6453
      %v6566 = vadd.f32 %v6103, %v6456
      %v6567 = vadd.f32 %v6108, %v6461
      %v6568 = vadd.f32 %v6111, %v6464
      %v6569 = vadd.f32 %v6116, %v6469
      %v6570 = vadd.f32 %v6119, %v6472
      %v6571 = vadd.f32 %v6124, %v6477
      %v6572 = vadd.f32 %v6127, %v6480
      %v6573 = vadd.f32 %v6132, %v6485
      %v6574 = vadd.f32 %v6135, %v6488
      %v6575 = vadd.f32 %v6140, %v6493
      %v6576 = vadd.f32 %v6143, %v6496
      %v6577 = vadd.f32 %v6148, %v6501
      %v6578 = vadd.f32 %v6151, %v6504
      %v6579 = vadd.f32 %v6156, %v6509
      %v6580 = vadd.f32 %v6159, %v6512
      %v6581 = vadd.f32 %v6164, %v6517
      %v6582 = vadd.f32 %v6167, %v6520
      %v6583 = vadd.f32 %v6172, %v6525
      %v6584 = vadd.f32 %v6175, %v6528
      %v6585 = vadd.f32 %v6180, %v6533
      %v6586 = vadd.f32 %v6183, %v6536
      %v6587 = vadd.f32 %v6188, %v6541
      %v6588 = vadd.f32 %v6191, %v6544
      %v6589 = vadd.f32 %v6196, %v6549
      %v6590 = vadd.f32 %v6199, %v6552
      %v6591 = vld [vmem:[#allocation3 + $0xc] sm:$0x8]
      %v6592 = vld [vmem:[#allocation3 + $0x10] sm:$0xf]
      %v6593 = vld [vmem:[#allocation3 + $0x14] sm:$0xf]
      %v6594 = vld [vmem:[#allocation3 + $0x18] sm:$0xf]
      %v6595 = vld [vmem:[#allocation3 + $0x1c] sm:$0xf]
      %v6596 = vld [vmem:[#allocation3 + $0x20] sm:$0xf]
      %v6597 = vld [vmem:[#allocation3 + $0x24] sm:$0xf]
      %v6598 = vld [vmem:[#allocation3 + $0x28] sm:$0xf]
      %v6599 = vld [vmem:[#allocation3 + $0x2c] sm:$0xf]
      %v6600 = vld [vmem:[#allocation3 + $0x30] sm:$0xf]
      %v6601 = vld [vmem:[#allocation3 + $0x34] sm:$0xf]
      %v6602 = vld [vmem:[#allocation3 + $0x38] sm:$0xf]
      %v6603 = vld [vmem:[#allocation3 + $0x3c] sm:$0xf]
      %v6604 = vld [vmem:[#allocation3 + $0x40] sm:$0xf]
      %v6605 = vld [vmem:[#allocation3 + $0x44] sm:$0xf]
      %v6606 = vld [vmem:[#allocation3 + $0x48] sm:$0xf]
      %v6607 = vld [vmem:[#allocation3 + $0x4c] sm:$0xf]
      %v6608 = vld [vmem:[#allocation3 + $0x50] sm:$0xf]
      %v6609 = vld [vmem:[#allocation3 + $0x54] sm:$0xf]
      %v6610 = vld [vmem:[#allocation3 + $0x58] sm:$0xf]
      %v6611 = vld [vmem:[#allocation3 + $0x5c] sm:$0xf]
      %v6612 = vld [vmem:[#allocation3 + $0x60] sm:$0xf]
      %v6613 = vld [vmem:[#allocation3 + $0x64] sm:$0xf]
      %v6614 = vld [vmem:[#allocation3 + $0x68] sm:$0xf]
      %v6615 = vld [vmem:[#allocation3 + $0x6c] sm:$0xf]
      %v6616 = vld [vmem:[#allocation3 + $0x70] sm:$0xf]
      %v6617 = vld [vmem:[#allocation3 + $0x74] sm:$0xf]
      %v6618 = vld [vmem:[#allocation3 + $0x78] sm:$0xf]
      %v6619 = vld [vmem:[#allocation3 + $0x7c] sm:$0xf]
      %v6620 = vld [vmem:[#allocation3 + $0x80] sm:$0xf]
      %v6621 = vld [vmem:[#allocation3 + $0x84] sm:$0xf]
      %v6622 = vld [vmem:[#allocation3 + $0x88] sm:$0xf]
      %v6623 = vld [vmem:[#allocation3 + $0x8c] sm:$0xf]
      %v6624 = vld [vmem:[#allocation3 + $0x90] sm:$0xf]
      %v6625 = vld [vmem:[#allocation3 + $0x94] sm:$0xf]
      %v6626 = vld [vmem:[#allocation3 + $0x98] sm:$0xf]
      %v6627 = vld [vmem:[#allocation3 + $0x9c] sm:$0xf]
      %s6628 = scalar_lea.vmem %s3, 96
      %v6629 = vld [vmem:[%s6628] sm:$0xf]
      %v6630 = vld [vmem:[%s6628 + $0x4] sm:$0xf]
      %v6631 = vld [vmem:[%s6628 + $0x8] sm:$0xf]
      %v6632 = vld [vmem:[%s6628 + $0xc] sm:$0xf]
      %v6633 = vld [vmem:[%s6628 + $0x10] sm:$0xf]
      %v6634 = vld [vmem:[%s6628 + $0x14] sm:$0xf]
      %v6635 = vld [vmem:[%s6628 + $0x18] sm:$0xf]
      %v6636 = vld [vmem:[%s6628 + $0x1c] sm:$0xf]
      %v6674 = vunpack.c.l.b16 %v6591
      %v6675 = vunpack.c.l.b16 %v6592
      %v6676 = vunpack.c.l.b16 %v6593
      %v6677 = vunpack.c.l.b16 %v6594
      %v6678 = vunpack.c.l.b16 %v6595
      %v6679 = vunpack.c.l.b16 %v6596
      %v6680 = vunpack.c.l.b16 %v6597
      %v6681 = vunpack.c.l.b16 %v6598
      %v6682 = vunpack.c.l.b16 %v6599
      %v6683 = vunpack.c.l.b16 %v6600
      %v6684 = vunpack.c.l.b16 %v6601
      %v6685 = vunpack.c.l.b16 %v6602
      %v6686 = vunpack.c.l.b16 %v6603
      %v6687 = vunpack.c.l.b16 %v6604
      %v6688 = vunpack.c.l.b16 %v6605
      %v6689 = vunpack.c.l.b16 %v6606
      %v6690 = vunpack.c.l.b16 %v6607
      %v6691 = vunpack.c.l.b16 %v6608
      %v6692 = vunpack.c.l.b16 %v6609
      %v6693 = vunpack.c.l.b16 %v6610
      %v6694 = vunpack.c.l.b16 %v6611
      %v6695 = vunpack.c.l.b16 %v6612
      %v6696 = vunpack.c.l.b16 %v6613
      %v6697 = vunpack.c.l.b16 %v6614
      %v6698 = vunpack.c.l.b16 %v6615
      %v6699 = vunpack.c.l.b16 %v6616
      %v6700 = vunpack.c.l.b16 %v6617
      %v6701 = vunpack.c.l.b16 %v6618
      %v6702 = vunpack.c.l.b16 %v6619
      %v6703 = vunpack.c.l.b16 %v6620
      %v6704 = vunpack.c.l.b16 %v6621
      %v6705 = vunpack.c.l.b16 %v6622
      %v6706 = vunpack.c.l.b16 %v6623
      %v6707 = vunpack.c.l.b16 %v6624
      %v6708 = vunpack.c.l.b16 %v6625
      %v6709 = vunpack.c.l.b16 %v6626
      %v6710 = vunpack.c.l.b16 %v6627
      %v6711 = vpack.c.b16 %v6675, %v6674
      %v6712 = vpack.c.b16 %v6677, %v6676
      %v6713 = vpack.c.b16 %v6679, %v6678
      %v6714 = vpack.c.b16 %v6681, %v6680
      %v6715 = vpack.c.b16 %v6683, %v6682
      %v6716 = vpack.c.b16 %v6685, %v6684
      %v6717 = vpack.c.b16 %v6687, %v6686
      %v6718 = vpack.c.b16 %v6689, %v6688
      %v6719 = vpack.c.b16 %v6691, %v6690
      %v6720 = vpack.c.b16 %v6693, %v6692
      %v6721 = vpack.c.b16 %v6695, %v6694
      %v6722 = vpack.c.b16 %v6697, %v6696
      %v6723 = vpack.c.b16 %v6699, %v6698
      %v6724 = vpack.c.b16 %v6701, %v6700
      %v6725 = vpack.c.b16 %v6703, %v6702
      %v6726 = vpack.c.b16 %v6705, %v6704
      %v6727 = vpack.c.b16 %v6707, %v6706
      %v6728 = vpack.c.b16 %v6709, %v6708
      %v6729 = vpack.c.b16 %v6710, %v6710
      %v6731 = vshrl.u32 %v6711, 16
      %v6733 = vrot.slane %v6731, 3
      %v6734 = vshll.u32 %v6711, 16
      %v6736 = vrot.slane %v6734, 4
      %v6737 = vor.u32 %v6733, %v6736
      %v6739 = vshrl.u32 %v6712, 16
      %v6741 = vrot.slane %v6739, 3
      %v6742 = vshll.u32 %v6712, 16
      %v6744 = vrot.slane %v6742, 4
      %v6745 = vor.u32 %v6741, %v6744
      %v6746 = vsel %vm2018, %v6737, %v6745
      %v6748 = vshrl.u32 %v6713, 16
      %v6750 = vrot.slane %v6748, 3
      %v6751 = vshll.u32 %v6713, 16
      %v6753 = vrot.slane %v6751, 4
      %v6754 = vor.u32 %v6750, %v6753
      %v6755 = vsel %vm2018, %v6745, %v6754
      %v6757 = vshrl.u32 %v6714, 16
      %v6759 = vrot.slane %v6757, 3
      %v6760 = vshll.u32 %v6714, 16
      %v6762 = vrot.slane %v6760, 4
      %v6763 = vor.u32 %v6759, %v6762
      %v6764 = vsel %vm2018, %v6754, %v6763
      %v6766 = vshrl.u32 %v6715, 16
      %v6768 = vrot.slane %v6766, 3
      %v6769 = vshll.u32 %v6715, 16
      %v6771 = vrot.slane %v6769, 4
      %v6772 = vor.u32 %v6768, %v6771
      %v6773 = vsel %vm2018, %v6763, %v6772
      %v6775 = vshrl.u32 %v6716, 16
      %v6777 = vrot.slane %v6775, 3
      %v6778 = vshll.u32 %v6716, 16
      %v6780 = vrot.slane %v6778, 4
      %v6781 = vor.u32 %v6777, %v6780
      %v6782 = vsel %vm2018, %v6772, %v6781
      %v6784 = vshrl.u32 %v6717, 16
      %v6786 = vrot.slane %v6784, 3
      %v6787 = vshll.u32 %v6717, 16
      %v6789 = vrot.slane %v6787, 4
      %v6790 = vor.u32 %v6786, %v6789
      %v6791 = vsel %vm2018, %v6781, %v6790
      %v6793 = vshrl.u32 %v6718, 16
      %v6795 = vrot.slane %v6793, 3
      %v6796 = vshll.u32 %v6718, 16
      %v6798 = vrot.slane %v6796, 4
      %v6799 = vor.u32 %v6795, %v6798
      %v6800 = vsel %vm2018, %v6790, %v6799
      %v6802 = vshrl.u32 %v6719, 16
      %v6804 = vrot.slane %v6802, 3
      %v6805 = vshll.u32 %v6719, 16
      %v6807 = vrot.slane %v6805, 4
      %v6808 = vor.u32 %v6804, %v6807
      %v6809 = vsel %vm2018, %v6799, %v6808
      %v6811 = vshrl.u32 %v6720, 16
      %v6813 = vrot.slane %v6811, 3
      %v6814 = vshll.u32 %v6720, 16
      %v6816 = vrot.slane %v6814, 4
      %v6817 = vor.u32 %v6813, %v6816
      %v6818 = vsel %vm2018, %v6808, %v6817
      %v6820 = vshrl.u32 %v6721, 16
      %v6822 = vrot.slane %v6820, 3
      %v6823 = vshll.u32 %v6721, 16
      %v6825 = vrot.slane %v6823, 4
      %v6826 = vor.u32 %v6822, %v6825
      %v6827 = vsel %vm2018, %v6817, %v6826
      %v6829 = vshrl.u32 %v6722, 16
      %v6831 = vrot.slane %v6829, 3
      %v6832 = vshll.u32 %v6722, 16
      %v6834 = vrot.slane %v6832, 4
      %v6835 = vor.u32 %v6831, %v6834
      %v6836 = vsel %vm2018, %v6826, %v6835
      %v6838 = vshrl.u32 %v6723, 16
      %v6840 = vrot.slane %v6838, 3
      %v6841 = vshll.u32 %v6723, 16
      %v6843 = vrot.slane %v6841, 4
      %v6844 = vor.u32 %v6840, %v6843
      %v6845 = vsel %vm2018, %v6835, %v6844
      %v6847 = vshrl.u32 %v6724, 16
      %v6849 = vrot.slane %v6847, 3
      %v6850 = vshll.u32 %v6724, 16
      %v6852 = vrot.slane %v6850, 4
      %v6853 = vor.u32 %v6849, %v6852
      %v6854 = vsel %vm2018, %v6844, %v6853
      %v6856 = vshrl.u32 %v6725, 16
      %v6858 = vrot.slane %v6856, 3
      %v6859 = vshll.u32 %v6725, 16
      %v6861 = vrot.slane %v6859, 4
      %v6862 = vor.u32 %v6858, %v6861
      %v6863 = vsel %vm2018, %v6853, %v6862
      %v6865 = vshrl.u32 %v6726, 16
      %v6867 = vrot.slane %v6865, 3
      %v6868 = vshll.u32 %v6726, 16
      %v6870 = vrot.slane %v6868, 4
      %v6871 = vor.u32 %v6867, %v6870
      %v6872 = vsel %vm2018, %v6862, %v6871
      %v6874 = vshrl.u32 %v6727, 16
      %v6876 = vrot.slane %v6874, 3
      %v6877 = vshll.u32 %v6727, 16
      %v6879 = vrot.slane %v6877, 4
      %v6880 = vor.u32 %v6876, %v6879
      %v6881 = vsel %vm2018, %v6871, %v6880
      %v6883 = vshrl.u32 %v6728, 16
      %v6885 = vrot.slane %v6883, 3
      %v6886 = vshll.u32 %v6728, 16
      %v6888 = vrot.slane %v6886, 4
      %v6889 = vor.u32 %v6885, %v6888
      %v6890 = vsel %vm2018, %v6880, %v6889
      %v6892 = vshrl.u32 %v6729, 16
      %v6894 = vrot.slane %v6892, 3
      %v6895 = vshll.u32 %v6729, 16
      %v6897 = vrot.slane %v6895, 4
      %v6898 = vor.u32 %v6894, %v6897
      %v6899 = vsel %vm2018, %v6889, %v6898
      %v6908 = vunpack.c.l.b16 %v6629
      %v6909 = vunpack.c.l.b16 %v6630
      %v6910 = vunpack.c.l.b16 %v6631
      %v6911 = vunpack.c.l.b16 %v6632
      %v6912 = vunpack.c.l.b16 %v6633
      %v6913 = vunpack.c.l.b16 %v6634
      %v6914 = vunpack.c.l.b16 %v6635
      %v6915 = vunpack.c.l.b16 %v6636
      %v6916 = vpack.c.b16 %v6909, %v6908
      %v6917 = vpack.c.b16 %v6911, %v6910
      %v6918 = vpack.c.b16 %v6913, %v6912
      %v6919 = vpack.c.b16 %v6915, %v6914
      %v6925 = vsel %vm5542, %v6746, 0
      %v6928 = vsel %vm5542, %v6755, 0
      %v6931 = vsel %vm5542, %v6764, 0
      %v6934 = vsel %vm5542, %v6773, 0
      %v6937 = vsel %vm5542, %v6782, 0
      %v6940 = vsel %vm5542, %v6791, 0
      %v6943 = vsel %vm5542, %v6800, 0
      %v6946 = vsel %vm5542, %v6809, 0
      %v6949 = vsel %vm5542, %v6818, 0
      %v6952 = vsel %vm5542, %v6827, 0
      %v6955 = vsel %vm5542, %v6836, 0
      %v6958 = vsel %vm5542, %v6845, 0
      %v6961 = vsel %vm5542, %v6854, 0
      %v6964 = vsel %vm5542, %v6863, 0
      %v6967 = vsel %vm5542, %v6872, 0
      %v6970 = vsel %vm5542, %v6881, 0
      %v6973 = vsel %vm5542, %v6890, 0
      %v6976 = vsel %vm5542, %v6899, 0
      %6978 = vmatprep.subr.bf16.mxu0 0
      %6979 = vmatpush1.bf16.msra.mxu0 %v6916
      %6980 = vmatprep.subr.bf16.mxu0 0
      %6981 = vmatpush1.bf16.msra.mxu0 %v6917
      %6982 = vmatprep.subr.bf16.mxu0 0
      %6983 = vmatpush1.bf16.msra.mxu0 %v6918
      %6984 = vmatprep.subr.bf16.mxu0 0
      %6985 = vmatpush1.bf16.msra.mxu0 %v6919
      %6986 = vmatprep.subr.bf16.mxu0 0
      %6987 = vmatpush1.bf16.msra.mxu0 0
      %6988 = vmatprep.subr.bf16.mxu0 0
      %6989 = vmatpush1.bf16.msra.mxu0 0
      %6990 = vmatprep.subr.bf16.mxu0 0
      %6991 = vmatpush1.bf16.msra.mxu0 0
      %6992 = vmatprep.subr.bf16.mxu0 0
      %6993 = vmatpush1.bf16.msra.mxu0 0
      %6994 = vmatprep.subr.bf16.mxu0 0
      %6995 = vmatpush1.bf16.msra.mxu0 0
      %6996 = vmatprep.subr.bf16.mxu0 0
      %6997 = vmatpush1.bf16.msra.mxu0 0
      %6998 = vmatprep.subr.bf16.mxu0 0
      %6999 = vmatpush1.bf16.msra.mxu0 0
      %7000 = vmatprep.subr.bf16.mxu0 0
      %7001 = vmatpush1.bf16.msra.mxu0 0
      %7002 = vmatprep.subr.bf16.mxu0 0
      %7003 = vmatpush1.bf16.msra.mxu0 0
      %7004 = vmatprep.subr.bf16.mxu0 0
      %7005 = vmatpush1.bf16.msra.mxu0 0
      %7006 = vmatprep.subr.bf16.mxu0 0
      %7007 = vmatpush1.bf16.msra.mxu0 0
      %7008 = vmatprep.subr.bf16.mxu0 0
      %7009 = vmatpush1.bf16.msra.mxu0 0
      %7010 = vmatprep.mubr.bf16.mxu0 0
      %7011 = vmatmul.mubr.bf16.gmra.mrb[0].mxu0 %v6925
      %v7012 = vpop.f32.mrb[0].mxu0
      %v7013 = vadd.f32 0.0, %v7012
      %v7014 = vpop.f32.mrb[0].mxu0
      %v7015 = vpop.f32.mrb[0].mxu0
      %v7016 = vadd.f32 0.0, %v7015
      %v7017 = vpop.f32.mrb[0].mxu0
      %7018 = vmatprep.mubr.bf16.mxu0 0
      %7019 = vmatmul.mubr.bf16.gmra.mrb[0].mxu0 %v6928
      %v7020 = vpop.f32.mrb[0].mxu0
      %v7021 = vadd.f32 0.0, %v7020
      %v7022 = vpop.f32.mrb[0].mxu0
      %v7023 = vpop.f32.mrb[0].mxu0
      %v7024 = vadd.f32 0.0, %v7023
      %v7025 = vpop.f32.mrb[0].mxu0
      %7026 = vmatprep.mubr.bf16.mxu0 0
      %7027 = vmatmul.mubr.bf16.gmra.mrb[0].mxu0 %v6931
      %v7028 = vpop.f32.mrb[0].mxu0
      %v7029 = vadd.f32 0.0, %v7028
      %v7030 = vpop.f32.mrb[0].mxu0
      %v7031 = vpop.f32.mrb[0].mxu0
      %v7032 = vadd.f32 0.0, %v7031
      %v7033 = vpop.f32.mrb[0].mxu0
      %7034 = vmatprep.mubr.bf16.mxu0 0
      %7035 = vmatmul.mubr.bf16.gmra.mrb[0].mxu0 %v6934
      %v7036 = vpop.f32.mrb[0].mxu0
      %v7037 = vadd.f32 0.0, %v7036
      %v7038 = vpop.f32.mrb[0].mxu0
      %v7039 = vpop.f32.mrb[0].mxu0
      %v7040 = vadd.f32 0.0, %v7039
      %v7041 = vpop.f32.mrb[0].mxu0
      %7042 = vmatprep.mubr.bf16.mxu0 0
      %7043 = vmatmul.mubr.bf16.gmra.mrb[0].mxu0 %v6937
      %v7044 = vpop.f32.mrb[0].mxu0
      %v7045 = vadd.f32 0.0, %v7044
      %v7046 = vpop.f32.mrb[0].mxu0
      %v7047 = vpop.f32.mrb[0].mxu0
      %v7048 = vadd.f32 0.0, %v7047
      %v7049 = vpop.f32.mrb[0].mxu0
      %7050 = vmatprep.mubr.bf16.mxu0 0
      %7051 = vmatmul.mubr.bf16.gmra.mrb[0].mxu0 %v6940
      %v7052 = vpop.f32.mrb[0].mxu0
      %v7053 = vadd.f32 0.0, %v7052
      %v7054 = vpop.f32.mrb[0].mxu0
      %v7055 = vpop.f32.mrb[0].mxu0
      %v7056 = vadd.f32 0.0, %v7055
      %v7057 = vpop.f32.mrb[0].mxu0
      %7058 = vmatprep.mubr.bf16.mxu0 0
      %7059 = vmatmul.mubr.bf16.gmra.mrb[0].mxu0 %v6943
      %v7060 = vpop.f32.mrb[0].mxu0
      %v7061 = vadd.f32 0.0, %v7060
      %v7062 = vpop.f32.mrb[0].mxu0
      %v7063 = vpop.f32.mrb[0].mxu0
      %v7064 = vadd.f32 0.0, %v7063
      %v7065 = vpop.f32.mrb[0].mxu0
      %7066 = vmatprep.mubr.bf16.mxu0 0
      %7067 = vmatmul.mubr.bf16.gmra.mrb[0].mxu0 %v6946
      %v7068 = vpop.f32.mrb[0].mxu0
      %v7069 = vadd.f32 0.0, %v7068
      %v7070 = vpop.f32.mrb[0].mxu0
      %v7071 = vpop.f32.mrb[0].mxu0
      %v7072 = vadd.f32 0.0, %v7071
      %v7073 = vpop.f32.mrb[0].mxu0
      %7074 = vmatprep.mubr.bf16.mxu0 0
      %7075 = vmatmul.mubr.bf16.gmra.mrb[0].mxu0 %v6949
      %v7076 = vpop.f32.mrb[0].mxu0
      %v7077 = vadd.f32 0.0, %v7076
      %v7078 = vpop.f32.mrb[0].mxu0
      %v7079 = vpop.f32.mrb[0].mxu0
      %v7080 = vadd.f32 0.0, %v7079
      %v7081 = vpop.f32.mrb[0].mxu0
      %7082 = vmatprep.mubr.bf16.mxu0 0
      %7083 = vmatmul.mubr.bf16.gmra.mrb[0].mxu0 %v6952
      %v7084 = vpop.f32.mrb[0].mxu0
      %v7085 = vadd.f32 0.0, %v7084
      %v7086 = vpop.f32.mrb[0].mxu0
      %v7087 = vpop.f32.mrb[0].mxu0
      %v7088 = vadd.f32 0.0, %v7087
      %v7089 = vpop.f32.mrb[0].mxu0
      %7090 = vmatprep.mubr.bf16.mxu0 0
      %7091 = vmatmul.mubr.bf16.gmra.mrb[0].mxu0 %v6955
      %v7092 = vpop.f32.mrb[0].mxu0
      %v7093 = vadd.f32 0.0, %v7092
      %v7094 = vpop.f32.mrb[0].mxu0
      %v7095 = vpop.f32.mrb[0].mxu0
      %v7096 = vadd.f32 0.0, %v7095
      %v7097 = vpop.f32.mrb[0].mxu0
      %7098 = vmatprep.mubr.bf16.mxu0 0
      %7099 = vmatmul.mubr.bf16.gmra.mrb[0].mxu0 %v6958
      %v7100 = vpop.f32.mrb[0].mxu0
      %v7101 = vadd.f32 0.0, %v7100
      %v7102 = vpop.f32.mrb[0].mxu0
      %v7103 = vpop.f32.mrb[0].mxu0
      %v7104 = vadd.f32 0.0, %v7103
      %v7105 = vpop.f32.mrb[0].mxu0
      %7106 = vmatprep.mubr.bf16.mxu0 0
      %7107 = vmatmul.mubr.bf16.gmra.mrb[0].mxu0 %v6961
      %v7108 = vpop.f32.mrb[0].mxu0
      %v7109 = vadd.f32 0.0, %v7108
      %v7110 = vpop.f32.mrb[0].mxu0
      %v7111 = vpop.f32.mrb[0].mxu0
      %v7112 = vadd.f32 0.0, %v7111
      %v7113 = vpop.f32.mrb[0].mxu0
      %7114 = vmatprep.mubr.bf16.mxu0 0
      %7115 = vmatmul.mubr.bf16.gmra.mrb[0].mxu0 %v6964
      %v7116 = vpop.f32.mrb[0].mxu0
      %v7117 = vadd.f32 0.0, %v7116
      %v7118 = vpop.f32.mrb[0].mxu0
      %v7119 = vpop.f32.mrb[0].mxu0
      %v7120 = vadd.f32 0.0, %v7119
      %v7121 = vpop.f32.mrb[0].mxu0
      %7122 = vmatprep.mubr.bf16.mxu0 0
      %7123 = vmatmul.mubr.bf16.gmra.mrb[0].mxu0 %v6967
      %v7124 = vpop.f32.mrb[0].mxu0
      %v7125 = vadd.f32 0.0, %v7124
      %v7126 = vpop.f32.mrb[0].mxu0
      %v7127 = vpop.f32.mrb[0].mxu0
      %v7128 = vadd.f32 0.0, %v7127
      %v7129 = vpop.f32.mrb[0].mxu0
      %7130 = vmatprep.mubr.bf16.mxu0 0
      %7131 = vmatmul.mubr.bf16.gmra.mrb[0].mxu0 %v6970
      %v7132 = vpop.f32.mrb[0].mxu0
      %v7133 = vadd.f32 0.0, %v7132
      %v7134 = vpop.f32.mrb[0].mxu0
      %v7135 = vpop.f32.mrb[0].mxu0
      %v7136 = vadd.f32 0.0, %v7135
      %v7137 = vpop.f32.mrb[0].mxu0
      %7138 = vmatprep.mubr.bf16.mxu0 0
      %7139 = vmatmul.mubr.bf16.gmra.mrb[0].mxu0 %v6973
      %v7140 = vpop.f32.mrb[0].mxu0
      %v7141 = vadd.f32 0.0, %v7140
      %v7142 = vpop.f32.mrb[0].mxu0
      %v7143 = vpop.f32.mrb[0].mxu0
      %v7144 = vadd.f32 0.0, %v7143
      %v7145 = vpop.f32.mrb[0].mxu0
      %7146 = vmatprep.mubr.bf16.mxu0 0
      %7147 = vmatmul.mubr.bf16.gmra.mrb[0].mxu0 %v6976
      %v7148 = vpop.f32.mrb[0].mxu0
      %v7149 = vadd.f32 0.0, %v7148
      %v7150 = vpop.f32.mrb[0].mxu0
      %v7151 = vpop.f32.mrb[0].mxu0
      %v7152 = vadd.f32 0.0, %v7151
      %v7153 = vpop.f32.mrb[0].mxu0
      %7154 = vdwg.mxu0
      %v7155 = vadd.f32 %v6555, %v7013
      %v7156 = vadd.f32 %v6556, %v7016
      %v7157 = vadd.f32 %v6557, %v7021
      %v7158 = vadd.f32 %v6558, %v7024
      %v7159 = vadd.f32 %v6559, %v7029
      %v7160 = vadd.f32 %v6560, %v7032
      %v7161 = vadd.f32 %v6561, %v7037
      %v7162 = vadd.f32 %v6562, %v7040
      %v7163 = vadd.f32 %v6563, %v7045
      %v7164 = vadd.f32 %v6564, %v7048
      %v7165 = vadd.f32 %v6565, %v7053
      %v7166 = vadd.f32 %v6566, %v7056
      %v7167 = vadd.f32 %v6567, %v7061
      %v7168 = vadd.f32 %v6568, %v7064
      %v7169 = vadd.f32 %v6569, %v7069
      %v7170 = vadd.f32 %v6570, %v7072
      %v7171 = vadd.f32 %v6571, %v7077
      %v7172 = vadd.f32 %v6572, %v7080
      %v7173 = vadd.f32 %v6573, %v7085
      %v7174 = vadd.f32 %v6574, %v7088
      %v7175 = vadd.f32 %v6575, %v7093
      %v7176 = vadd.f32 %v6576, %v7096
      %v7177 = vadd.f32 %v6577, %v7101
      %v7178 = vadd.f32 %v6578, %v7104
      %v7179 = vadd.f32 %v6579, %v7109
      %v7180 = vadd.f32 %v6580, %v7112
      %v7181 = vadd.f32 %v6581, %v7117
      %v7182 = vadd.f32 %v6582, %v7120
      %v7183 = vadd.f32 %v6583, %v7125
      %v7184 = vadd.f32 %v6584, %v7128
      %v7185 = vadd.f32 %v6585, %v7133
      %v7186 = vadd.f32 %v6586, %v7136
      %v7187 = vadd.f32 %v6587, %v7141
      %v7188 = vadd.f32 %v6588, %v7144
      %v7189 = vadd.f32 %v6589, %v7149
      %v7190 = vadd.f32 %v6590, %v7152
      %s7191 = scalar_lea.vmem %s3, 128
      %v7192 = vld [vmem:[%s7191] sm:$0xf]
      %v7193 = vld [vmem:[%s7191 + $0x4] sm:$0xf]
      %v7194 = vld [vmem:[%s7191 + $0x8] sm:$0xf]
      %v7195 = vld [vmem:[%s7191 + $0xc] sm:$0xf]
      %v7196 = vld [vmem:[%s7191 + $0x10] sm:$0xf]
      %v7197 = vld [vmem:[%s7191 + $0x14] sm:$0xf]
      %v7198 = vld [vmem:[%s7191 + $0x18] sm:$0xf]
      %v7199 = vld [vmem:[%s7191 + $0x1c] sm:$0xf]
      %v7200 = vpack.c.b16 %v6676, %v6675
      %v7201 = vpack.c.b16 %v6678, %v6677
      %v7202 = vpack.c.b16 %v6680, %v6679
      %v7203 = vpack.c.b16 %v6682, %v6681
      %v7204 = vpack.c.b16 %v6684, %v6683
      %v7205 = vpack.c.b16 %v6686, %v6685
      %v7206 = vpack.c.b16 %v6688, %v6687
      %v7207 = vpack.c.b16 %v6690, %v6689
      %v7208 = vpack.c.b16 %v6692, %v6691
      %v7209 = vpack.c.b16 %v6694, %v6693
      %v7210 = vpack.c.b16 %v6696, %v6695
      %v7211 = vpack.c.b16 %v6698, %v6697
      %v7212 = vpack.c.b16 %v6700, %v6699
      %v7213 = vpack.c.b16 %v6702, %v6701
      %v7214 = vpack.c.b16 %v6704, %v6703
      %v7215 = vpack.c.b16 %v6706, %v6705
      %v7216 = vpack.c.b16 %v6708, %v6707
      %v7217 = vpack.c.b16 %v6710, %v6709
      %v7226 = vunpack.c.l.b16 %v7192
      %v7227 = vunpack.c.l.b16 %v7193
      %v7228 = vunpack.c.l.b16 %v7194
      %v7229 = vunpack.c.l.b16 %v7195
      %v7230 = vunpack.c.l.b16 %v7196
      %v7231 = vunpack.c.l.b16 %v7197
      %v7232 = vunpack.c.l.b16 %v7198
      %v7233 = vunpack.c.l.b16 %v7199
      %v7234 = vpack.c.b16 %v7227, %v7226
      %v7235 = vpack.c.b16 %v7229, %v7228
      %v7236 = vpack.c.b16 %v7231, %v7230
      %v7237 = vpack.c.b16 %v7233, %v7232
      %v7243 = vsel %vm5542, %v7200, 0
      %v7246 = vsel %vm5542, %v7201, 0
      %v7249 = vsel %vm5542, %v7202, 0
      %v7252 = vsel %vm5542, %v7203, 0
      %v7255 = vsel %vm5542, %v7204, 0
      %v7258 = vsel %vm5542, %v7205, 0
      %v7261 = vsel %vm5542, %v7206, 0
      %v7264 = vsel %vm5542, %v7207, 0
      %v7267 = vsel %vm5542, %v7208, 0
      %v7270 = vsel %vm5542, %v7209, 0
      %v7273 = vsel %vm5542, %v7210, 0
      %v7276 = vsel %vm5542, %v7211, 0
      %v7279 = vsel %vm5542, %v7212, 0
      %v7282 = vsel %vm5542, %v7213, 0
      %v7285 = vsel %vm5542, %v7214, 0
      %v7288 = vsel %vm5542, %v7215, 0
      %v7291 = vsel %vm5542, %v7216, 0
      %v7294 = vsel %vm5542, %v7217, 0
      %7296 = vmatprep.subr.bf16.mxu0 0
      %7297 = vmatpush1.bf16.msra.mxu0 %v7234
      %7298 = vmatprep.subr.bf16.mxu0 0
      %7299 = vmatpush1.bf16.msra.mxu0 %v7235
      %7300 = vmatprep.subr.bf16.mxu0 0
      %7301 = vmatpush1.bf16.msra.mxu0 %v7236
      %7302 = vmatprep.subr.bf16.mxu0 0
      %7303 = vmatpush1.bf16.msra.mxu0 %v7237
      %7304 = vmatprep.subr.bf16.mxu0 0
      %7305 = vmatpush1.bf16.msra.mxu0 0
      %7306 = vmatprep.subr.bf16.mxu0 0
      %7307 = vmatpush1.bf16.msra.mxu0 0
      %7308 = vmatprep.subr.bf16.mxu0 0
      %7309 = vmatpush1.bf16.msra.mxu0 0
      %7310 = vmatprep.subr.bf16.mxu0 0
      %7311 = vmatpush1.bf16.msra.mxu0 0
      %7312 = vmatprep.subr.bf16.mxu0 0
      %7313 = vmatpush1.bf16.msra.mxu0 0
      %7314 = vmatprep.subr.bf16.mxu0 0
      %7315 = vmatpush1.bf16.msra.mxu0 0
      %7316 = vmatprep.subr.bf16.mxu0 0
      %7317 = vmatpush1.bf16.msra.mxu0 0
      %7318 = vmatprep.subr.bf16.mxu0 0
      %7319 = vmatpush1.bf16.msra.mxu0 0
      %7320 = vmatprep.subr.bf16.mxu0 0
      %7321 = vmatpush1.bf16.msra.mxu0 0
      %7322 = vmatprep.subr.bf16.mxu0 0
      %7323 = vmatpush1.bf16.msra.mxu0 0
      %7324 = vmatprep.subr.bf16.mxu0 0
      %7325 = vmatpush1.bf16.msra.mxu0 0
      %7326 = vmatprep.subr.bf16.mxu0 0
      %7327 = vmatpush1.bf16.msra.mxu0 0
      %7328 = vmatprep.mubr.bf16.mxu0 0
      %7329 = vmatmul.mubr.bf16.gmra.mrb[0].mxu0 %v7243
      %v7330 = vpop.f32.mrb[0].mxu0
      %v7331 = vadd.f32 0.0, %v7330
      %v7332 = vpop.f32.mrb[0].mxu0
      %v7333 = vpop.f32.mrb[0].mxu0
      %v7334 = vadd.f32 0.0, %v7333
      %v7335 = vpop.f32.mrb[0].mxu0
      %7336 = vmatprep.mubr.bf16.mxu0 0
      %7337 = vmatmul.mubr.bf16.gmra.mrb[0].mxu0 %v7246
      %v7338 = vpop.f32.mrb[0].mxu0
      %v7339 = vadd.f32 0.0, %v7338
      %v7340 = vpop.f32.mrb[0].mxu0
      %v7341 = vpop.f32.mrb[0].mxu0
      %v7342 = vadd.f32 0.0, %v7341
      %v7343 = vpop.f32.mrb[0].mxu0
      %7344 = vmatprep.mubr.bf16.mxu0 0
      %7345 = vmatmul.mubr.bf16.gmra.mrb[0].mxu0 %v7249
      %v7346 = vpop.f32.mrb[0].mxu0
      %v7347 = vadd.f32 0.0, %v7346
      %v7348 = vpop.f32.mrb[0].mxu0
      %v7349 = vpop.f32.mrb[0].mxu0
      %v7350 = vadd.f32 0.0, %v7349
      %v7351 = vpop.f32.mrb[0].mxu0
      %7352 = vmatprep.mubr.bf16.mxu0 0
      %7353 = vmatmul.mubr.bf16.gmra.mrb[0].mxu0 %v7252
      %v7354 = vpop.f32.mrb[0].mxu0
      %v7355 = vadd.f32 0.0, %v7354
      %v7356 = vpop.f32.mrb[0].mxu0
      %v7357 = vpop.f32.mrb[0].mxu0
      %v7358 = vadd.f32 0.0, %v7357
      %v7359 = vpop.f32.mrb[0].mxu0
      %7360 = vmatprep.mubr.bf16.mxu0 0
      %7361 = vmatmul.mubr.bf16.gmra.mrb[0].mxu0 %v7255
      %v7362 = vpop.f32.mrb[0].mxu0
      %v7363 = vadd.f32 0.0, %v7362
      %v7364 = vpop.f32.mrb[0].mxu0
      %v7365 = vpop.f32.mrb[0].mxu0
      %v7366 = vadd.f32 0.0, %v7365
      %v7367 = vpop.f32.mrb[0].mxu0
      %7368 = vmatprep.mubr.bf16.mxu0 0
      %7369 = vmatmul.mubr.bf16.gmra.mrb[0].mxu0 %v7258
      %v7370 = vpop.f32.mrb[0].mxu0
      %v7371 = vadd.f32 0.0, %v7370
      %v7372 = vpop.f32.mrb[0].mxu0
      %v7373 = vpop.f32.mrb[0].mxu0
      %v7374 = vadd.f32 0.0, %v7373
      %v7375 = vpop.f32.mrb[0].mxu0
      %7376 = vmatprep.mubr.bf16.mxu0 0
      %7377 = vmatmul.mubr.bf16.gmra.mrb[0].mxu0 %v7261
      %v7378 = vpop.f32.mrb[0].mxu0
      %v7379 = vadd.f32 0.0, %v7378
      %v7380 = vpop.f32.mrb[0].mxu0
      %v7381 = vpop.f32.mrb[0].mxu0
      %v7382 = vadd.f32 0.0, %v7381
      %v7383 = vpop.f32.mrb[0].mxu0
      %7384 = vmatprep.mubr.bf16.mxu0 0
      %7385 = vmatmul.mubr.bf16.gmra.mrb[0].mxu0 %v7264
      %v7386 = vpop.f32.mrb[0].mxu0
      %v7387 = vadd.f32 0.0, %v7386
      %v7388 = vpop.f32.mrb[0].mxu0
      %v7389 = vpop.f32.mrb[0].mxu0
      %v7390 = vadd.f32 0.0, %v7389
      %v7391 = vpop.f32.mrb[0].mxu0
      %7392 = vmatprep.mubr.bf16.mxu0 0
      %7393 = vmatmul.mubr.bf16.gmra.mrb[0].mxu0 %v7267
      %v7394 = vpop.f32.mrb[0].mxu0
      %v7395 = vadd.f32 0.0, %v7394
      %v7396 = vpop.f32.mrb[0].mxu0
      %v7397 = vpop.f32.mrb[0].mxu0
      %v7398 = vadd.f32 0.0, %v7397
      %v7399 = vpop.f32.mrb[0].mxu0
      %7400 = vmatprep.mubr.bf16.mxu0 0
      %7401 = vmatmul.mubr.bf16.gmra.mrb[0].mxu0 %v7270
      %v7402 = vpop.f32.mrb[0].mxu0
      %v7403 = vadd.f32 0.0, %v7402
      %v7404 = vpop.f32.mrb[0].mxu0
      %v7405 = vpop.f32.mrb[0].mxu0
      %v7406 = vadd.f32 0.0, %v7405
      %v7407 = vpop.f32.mrb[0].mxu0
      %7408 = vmatprep.mubr.bf16.mxu0 0
      %7409 = vmatmul.mubr.bf16.gmra.mrb[0].mxu0 %v7273
      %v7410 = vpop.f32.mrb[0].mxu0
      %v7411 = vadd.f32 0.0, %v7410
      %v7412 = vpop.f32.mrb[0].mxu0
      %v7413 = vpop.f32.mrb[0].mxu0
      %v7414 = vadd.f32 0.0, %v7413
      %v7415 = vpop.f32.mrb[0].mxu0
      %7416 = vmatprep.mubr.bf16.mxu0 0
      %7417 = vmatmul.mubr.bf16.gmra.mrb[0].mxu0 %v7276
      %v7418 = vpop.f32.mrb[0].mxu0
      %v7419 = vadd.f32 0.0, %v7418
      %v7420 = vpop.f32.mrb[0].mxu0
      %v7421 = vpop.f32.mrb[0].mxu0
      %v7422 = vadd.f32 0.0, %v7421
      %v7423 = vpop.f32.mrb[0].mxu0
      %7424 = vmatprep.mubr.bf16.mxu0 0
      %7425 = vmatmul.mubr.bf16.gmra.mrb[0].mxu0 %v7279
      %v7426 = vpop.f32.mrb[0].mxu0
      %v7427 = vadd.f32 0.0, %v7426
      %v7428 = vpop.f32.mrb[0].mxu0
      %v7429 = vpop.f32.mrb[0].mxu0
      %v7430 = vadd.f32 0.0, %v7429
      %v7431 = vpop.f32.mrb[0].mxu0
      %7432 = vmatprep.mubr.bf16.mxu0 0
      %7433 = vmatmul.mubr.bf16.gmra.mrb[0].mxu0 %v7282
      %v7434 = vpop.f32.mrb[0].mxu0
      %v7435 = vadd.f32 0.0, %v7434
      %v7436 = vpop.f32.mrb[0].mxu0
      %v7437 = vpop.f32.mrb[0].mxu0
      %v7438 = vadd.f32 0.0, %v7437
      %v7439 = vpop.f32.mrb[0].mxu0
      %7440 = vmatprep.mubr.bf16.mxu0 0
      %7441 = vmatmul.mubr.bf16.gmra.mrb[0].mxu0 %v7285
      %v7442 = vpop.f32.mrb[0].mxu0
      %v7443 = vadd.f32 0.0, %v7442
      %v7444 = vpop.f32.mrb[0].mxu0
      %v7445 = vpop.f32.mrb[0].mxu0
      %v7446 = vadd.f32 0.0, %v7445
      %v7447 = vpop.f32.mrb[0].mxu0
      %7448 = vmatprep.mubr.bf16.mxu0 0
      %7449 = vmatmul.mubr.bf16.gmra.mrb[0].mxu0 %v7288
      %v7450 = vpop.f32.mrb[0].mxu0
      %v7451 = vadd.f32 0.0, %v7450
      %v7452 = vpop.f32.mrb[0].mxu0
      %v7453 = vpop.f32.mrb[0].mxu0
      %v7454 = vadd.f32 0.0, %v7453
      %v7455 = vpop.f32.mrb[0].mxu0
      %7456 = vmatprep.mubr.bf16.mxu0 0
      %7457 = vmatmul.mubr.bf16.gmra.mrb[0].mxu0 %v7291
      %v7458 = vpop.f32.mrb[0].mxu0
      %v7459 = vadd.f32 0.0, %v7458
      %v7460 = vpop.f32.mrb[0].mxu0
      %v7461 = vpop.f32.mrb[0].mxu0
      %v7462 = vadd.f32 0.0, %v7461
      %v7463 = vpop.f32.mrb[0].mxu0
      %7464 = vmatprep.mubr.bf16.mxu0 0
      %7465 = vmatmul.mubr.bf16.gmra.mrb[0].mxu0 %v7294
      %v7466 = vpop.f32.mrb[0].mxu0
      %v7467 = vadd.f32 0.0, %v7466
      %v7468 = vpop.f32.mrb[0].mxu0
      %v7469 = vpop.f32.mrb[0].mxu0
      %v7470 = vadd.f32 0.0, %v7469
      %v7471 = vpop.f32.mrb[0].mxu0
      %7472 = vdwg.mxu0
      %v7473 = vadd.f32 %v7155, %v7331
      %v7474 = vadd.f32 %v7156, %v7334
      %v7475 = vadd.f32 %v7157, %v7339
      %v7476 = vadd.f32 %v7158, %v7342
      %v7477 = vadd.f32 %v7159, %v7347
      %v7478 = vadd.f32 %v7160, %v7350
      %v7479 = vadd.f32 %v7161, %v7355
      %v7480 = vadd.f32 %v7162, %v7358
      %v7481 = vadd.f32 %v7163, %v7363
      %v7482 = vadd.f32 %v7164, %v7366
      %v7483 = vadd.f32 %v7165, %v7371
      %v7484 = vadd.f32 %v7166, %v7374
      %v7485 = vadd.f32 %v7167, %v7379
      %v7486 = vadd.f32 %v7168, %v7382
      %v7487 = vadd.f32 %v7169, %v7387
      %v7488 = vadd.f32 %v7170, %v7390
      %v7489 = vadd.f32 %v7171, %v7395
      %v7490 = vadd.f32 %v7172, %v7398
      %v7491 = vadd.f32 %v7173, %v7403
      %v7492 = vadd.f32 %v7174, %v7406
      %v7493 = vadd.f32 %v7175, %v7411
      %v7494 = vadd.f32 %v7176, %v7414
      %v7495 = vadd.f32 %v7177, %v7419
      %v7496 = vadd.f32 %v7178, %v7422
      %v7497 = vadd.f32 %v7179, %v7427
      %v7498 = vadd.f32 %v7180, %v7430
      %v7499 = vadd.f32 %v7181, %v7435
      %v7500 = vadd.f32 %v7182, %v7438
      %v7501 = vadd.f32 %v7183, %v7443
      %v7502 = vadd.f32 %v7184, %v7446
      %v7503 = vadd.f32 %v7185, %v7451
      %v7504 = vadd.f32 %v7186, %v7454
      %v7505 = vadd.f32 %v7187, %v7459
      %v7506 = vadd.f32 %v7188, %v7462
      %v7507 = vadd.f32 %v7189, %v7467
      %v7508 = vadd.f32 %v7190, %v7470
      %v7509 = vld [vmem:[#allocation3 + $0x10] sm:$0xf]
      %v7510 = vld [vmem:[#allocation3 + $0x14] sm:$0xf]
      %v7511 = vld [vmem:[#allocation3 + $0x18] sm:$0xf]
      %v7512 = vld [vmem:[#allocation3 + $0x1c] sm:$0xf]
      %v7513 = vld [vmem:[#allocation3 + $0x20] sm:$0xf]
      %v7514 = vld [vmem:[#allocation3 + $0x24] sm:$0xf]
      %v7515 = vld [vmem:[#allocation3 + $0x28] sm:$0xf]
      %v7516 = vld [vmem:[#allocation3 + $0x2c] sm:$0xf]
      %v7517 = vld [vmem:[#allocation3 + $0x30] sm:$0xf]
      %v7518 = vld [vmem:[#allocation3 + $0x34] sm:$0xf]
      %v7519 = vld [vmem:[#allocation3 + $0x38] sm:$0xf]
      %v7520 = vld [vmem:[#allocation3 + $0x3c] sm:$0xf]
      %v7521 = vld [vmem:[#allocation3 + $0x40] sm:$0xf]
      %v7522 = vld [vmem:[#allocation3 + $0x44] sm:$0xf]
      %v7523 = vld [vmem:[#allocation3 + $0x48] sm:$0xf]
      %v7524 = vld [vmem:[#allocation3 + $0x4c] sm:$0xf]
      %v7525 = vld [vmem:[#allocation3 + $0x50] sm:$0xf]
      %v7526 = vld [vmem:[#allocation3 + $0x54] sm:$0xf]
      %v7527 = vld [vmem:[#allocation3 + $0x58] sm:$0xf]
      %v7528 = vld [vmem:[#allocation3 + $0x5c] sm:$0xf]
      %v7529 = vld [vmem:[#allocation3 + $0x60] sm:$0xf]
      %v7530 = vld [vmem:[#allocation3 + $0x64] sm:$0xf]
      %v7531 = vld [vmem:[#allocation3 + $0x68] sm:$0xf]
      %v7532 = vld [vmem:[#allocation3 + $0x6c] sm:$0xf]
      %v7533 = vld [vmem:[#allocation3 + $0x70] sm:$0xf]
      %v7534 = vld [vmem:[#allocation3 + $0x74] sm:$0xf]
      %v7535 = vld [vmem:[#allocation3 + $0x78] sm:$0xf]
      %v7536 = vld [vmem:[#allocation3 + $0x7c] sm:$0xf]
      %v7537 = vld [vmem:[#allocation3 + $0x80] sm:$0xf]
      %v7538 = vld [vmem:[#allocation3 + $0x84] sm:$0xf]
      %v7539 = vld [vmem:[#allocation3 + $0x88] sm:$0xf]
      %v7540 = vld [vmem:[#allocation3 + $0x8c] sm:$0xf]
      %v7541 = vld [vmem:[#allocation3 + $0x90] sm:$0xf]
      %v7542 = vld [vmem:[#allocation3 + $0x94] sm:$0xf]
      %v7543 = vld [vmem:[#allocation3 + $0x98] sm:$0xf]
      %v7544 = vld [vmem:[#allocation3 + $0x9c] sm:$0xf]
      %v7545 = vld [vmem:[#allocation3 + $0xa0] sm:$0x1]
      %s7546 = scalar_lea.vmem %s3, 160
      %v7547 = vld [vmem:[%s7546] sm:$0xf]
      %v7548 = vld [vmem:[%s7546 + $0x4] sm:$0xf]
      %v7549 = vld [vmem:[%s7546 + $0x8] sm:$0xf]
      %v7550 = vld [vmem:[%s7546 + $0xc] sm:$0xf]
      %v7551 = vld [vmem:[%s7546 + $0x10] sm:$0xf]
      %v7552 = vld [vmem:[%s7546 + $0x14] sm:$0xf]
      %v7553 = vld [vmem:[%s7546 + $0x18] sm:$0xf]
      %v7554 = vld [vmem:[%s7546 + $0x1c] sm:$0xf]
      %v7592 = vunpack.c.l.b16 %v7509
      %v7593 = vunpack.c.l.b16 %v7510
      %v7594 = vunpack.c.l.b16 %v7511
      %v7595 = vunpack.c.l.b16 %v7512
      %v7596 = vunpack.c.l.b16 %v7513
      %v7597 = vunpack.c.l.b16 %v7514
      %v7598 = vunpack.c.l.b16 %v7515
      %v7599 = vunpack.c.l.b16 %v7516
      %v7600 = vunpack.c.l.b16 %v7517
      %v7601 = vunpack.c.l.b16 %v7518
      %v7602 = vunpack.c.l.b16 %v7519
      %v7603 = vunpack.c.l.b16 %v7520
      %v7604 = vunpack.c.l.b16 %v7521
      %v7605 = vunpack.c.l.b16 %v7522
      %v7606 = vunpack.c.l.b16 %v7523
      %v7607 = vunpack.c.l.b16 %v7524
      %v7608 = vunpack.c.l.b16 %v7525
      %v7609 = vunpack.c.l.b16 %v7526
      %v7610 = vunpack.c.l.b16 %v7527
      %v7611 = vunpack.c.l.b16 %v7528
      %v7612 = vunpack.c.l.b16 %v7529
      %v7613 = vunpack.c.l.b16 %v7530
      %v7614 = vunpack.c.l.b16 %v7531
      %v7615 = vunpack.c.l.b16 %v7532
      %v7616 = vunpack.c.l.b16 %v7533
      %v7617 = vunpack.c.l.b16 %v7534
      %v7618 = vunpack.c.l.b16 %v7535
      %v7619 = vunpack.c.l.b16 %v7536
      %v7620 = vunpack.c.l.b16 %v7537
      %v7621 = vunpack.c.l.b16 %v7538
      %v7622 = vunpack.c.l.b16 %v7539
      %v7623 = vunpack.c.l.b16 %v7540
      %v7624 = vunpack.c.l.b16 %v7541
      %v7625 = vunpack.c.l.b16 %v7542
      %v7626 = vunpack.c.l.b16 %v7543
      %v7627 = vunpack.c.l.b16 %v7544
      %v7628 = vunpack.c.l.b16 %v7545
      %v7629 = vpack.c.b16 %v7593, %v7592
      %v7630 = vpack.c.b16 %v7595, %v7594
      %v7631 = vpack.c.b16 %v7597, %v7596
      %v7632 = vpack.c.b16 %v7599, %v7598
      %v7633 = vpack.c.b16 %v7601, %v7600
      %v7634 = vpack.c.b16 %v7603, %v7602
      %v7635 = vpack.c.b16 %v7605, %v7604
      %v7636 = vpack.c.b16 %v7607, %v7606
      %v7637 = vpack.c.b16 %v7609, %v7608
      %v7638 = vpack.c.b16 %v7611, %v7610
      %v7639 = vpack.c.b16 %v7613, %v7612
      %v7640 = vpack.c.b16 %v7615, %v7614
      %v7641 = vpack.c.b16 %v7617, %v7616
      %v7642 = vpack.c.b16 %v7619, %v7618
      %v7643 = vpack.c.b16 %v7621, %v7620
      %v7644 = vpack.c.b16 %v7623, %v7622
      %v7645 = vpack.c.b16 %v7625, %v7624
      %v7646 = vpack.c.b16 %v7627, %v7626
      %v7647 = vpack.c.b16 %v7628, %v7628
      %v7649 = vshrl.u32 %v7629, 16
      %v7651 = vshll.u32 %v7629, 16
      %v7653 = vrot.slane %v7651, 1
      %v7654 = vor.u32 %v7649, %v7653
      %v7656 = vshll.u32 %v7630, 16
      %v7658 = vrot.slane %v7656, 1
      %v7659 = vsel %vm3380, %v7654, %v7658
      %v7660 = vshrl.u32 %v7630, 16
      %v7662 = vor.u32 %v7660, %v7658
      %v7664 = vshll.u32 %v7631, 16
      %v7666 = vrot.slane %v7664, 1
      %v7667 = vsel %vm3380, %v7662, %v7666
      %v7668 = vshrl.u32 %v7631, 16
      %v7670 = vor.u32 %v7668, %v7666
      %v7672 = vshll.u32 %v7632, 16
      %v7674 = vrot.slane %v7672, 1
      %v7675 = vsel %vm3380, %v7670, %v7674
      %v7676 = vshrl.u32 %v7632, 16
      %v7678 = vor.u32 %v7676, %v7674
      %v7680 = vshll.u32 %v7633, 16
      %v7682 = vrot.slane %v7680, 1
      %v7683 = vsel %vm3380, %v7678, %v7682
      %v7684 = vshrl.u32 %v7633, 16
      %v7686 = vor.u32 %v7684, %v7682
      %v7688 = vshll.u32 %v7634, 16
      %v7690 = vrot.slane %v7688, 1
      %v7691 = vsel %vm3380, %v7686, %v7690
      %v7692 = vshrl.u32 %v7634, 16
      %v7694 = vor.u32 %v7692, %v7690
      %v7696 = vshll.u32 %v7635, 16
      %v7698 = vrot.slane %v7696, 1
      %v7699 = vsel %vm3380, %v7694, %v7698
      %v7700 = vshrl.u32 %v7635, 16
      %v7702 = vor.u32 %v7700, %v7698
      %v7704 = vshll.u32 %v7636, 16
      %v7706 = vrot.slane %v7704, 1
      %v7707 = vsel %vm3380, %v7702, %v7706
      %v7708 = vshrl.u32 %v7636, 16
      %v7710 = vor.u32 %v7708, %v7706
      %v7712 = vshll.u32 %v7637, 16
      %v7714 = vrot.slane %v7712, 1
      %v7715 = vsel %vm3380, %v7710, %v7714
      %v7716 = vshrl.u32 %v7637, 16
      %v7718 = vor.u32 %v7716, %v7714
      %v7720 = vshll.u32 %v7638, 16
      %v7722 = vrot.slane %v7720, 1
      %v7723 = vsel %vm3380, %v7718, %v7722
      %v7724 = vshrl.u32 %v7638, 16
      %v7726 = vor.u32 %v7724, %v7722
      %v7728 = vshll.u32 %v7639, 16
      %v7730 = vrot.slane %v7728, 1
      %v7731 = vsel %vm3380, %v7726, %v7730
      %v7732 = vshrl.u32 %v7639, 16
      %v7734 = vor.u32 %v7732, %v7730
      %v7736 = vshll.u32 %v7640, 16
      %v7738 = vrot.slane %v7736, 1
      %v7739 = vsel %vm3380, %v7734, %v7738
      %v7740 = vshrl.u32 %v7640, 16
      %v7742 = vor.u32 %v7740, %v7738
      %v7744 = vshll.u32 %v7641, 16
      %v7746 = vrot.slane %v7744, 1
      %v7747 = vsel %vm3380, %v7742, %v7746
      %v7748 = vshrl.u32 %v7641, 16
      %v7750 = vor.u32 %v7748, %v7746
      %v7752 = vshll.u32 %v7642, 16
      %v7754 = vrot.slane %v7752, 1
      %v7755 = vsel %vm3380, %v7750, %v7754
      %v7756 = vshrl.u32 %v7642, 16
      %v7758 = vor.u32 %v7756, %v7754
      %v7760 = vshll.u32 %v7643, 16
      %v7762 = vrot.slane %v7760, 1
      %v7763 = vsel %vm3380, %v7758, %v7762
      %v7764 = vshrl.u32 %v7643, 16
      %v7766 = vor.u32 %v7764, %v7762
      %v7768 = vshll.u32 %v7644, 16
      %v7770 = vrot.slane %v7768, 1
      %v7771 = vsel %vm3380, %v7766, %v7770
      %v7772 = vshrl.u32 %v7644, 16
      %v7774 = vor.u32 %v7772, %v7770
      %v7776 = vshll.u32 %v7645, 16
      %v7778 = vrot.slane %v7776, 1
      %v7779 = vsel %vm3380, %v7774, %v7778
      %v7780 = vshrl.u32 %v7645, 16
      %v7782 = vor.u32 %v7780, %v7778
      %v7784 = vshll.u32 %v7646, 16
      %v7786 = vrot.slane %v7784, 1
      %v7787 = vsel %vm3380, %v7782, %v7786
      %v7788 = vshrl.u32 %v7646, 16
      %v7790 = vor.u32 %v7788, %v7786
      %v7792 = vshll.u32 %v7647, 16
      %v7794 = vrot.slane %v7792, 1
      %v7795 = vsel %vm3380, %v7790, %v7794
      %v7804 = vunpack.c.l.b16 %v7547
      %v7805 = vunpack.c.l.b16 %v7548
      %v7806 = vunpack.c.l.b16 %v7549
      %v7807 = vunpack.c.l.b16 %v7550
      %v7808 = vunpack.c.l.b16 %v7551
      %v7809 = vunpack.c.l.b16 %v7552
      %v7810 = vunpack.c.l.b16 %v7553
      %v7811 = vunpack.c.l.b16 %v7554
      %v7812 = vpack.c.b16 %v7805, %v7804
      %v7813 = vpack.c.b16 %v7807, %v7806
      %v7814 = vpack.c.b16 %v7809, %v7808
      %v7815 = vpack.c.b16 %v7811, %v7810
      %v7821 = vsel %vm5542, %v7659, 0
      %v7824 = vsel %vm5542, %v7667, 0
      %v7827 = vsel %vm5542, %v7675, 0
      %v7830 = vsel %vm5542, %v7683, 0
      %v7833 = vsel %vm5542, %v7691, 0
      %v7836 = vsel %vm5542, %v7699, 0
      %v7839 = vsel %vm5542, %v7707, 0
      %v7842 = vsel %vm5542, %v7715, 0
      %v7845 = vsel %vm5542, %v7723, 0
      %v7848 = vsel %vm5542, %v7731, 0
      %v7851 = vsel %vm5542, %v7739, 0
      %v7854 = vsel %vm5542, %v7747, 0
      %v7857 = vsel %vm5542, %v7755, 0
      %v7860 = vsel %vm5542, %v7763, 0
      %v7863 = vsel %vm5542, %v7771, 0
      %v7866 = vsel %vm5542, %v7779, 0
      %v7869 = vsel %vm5542, %v7787, 0
      %v7872 = vsel %vm5542, %v7795, 0
      %7874 = vmatprep.subr.bf16.mxu0 0
      %7875 = vmatpush1.bf16.msra.mxu0 %v7812
      %7876 = vmatprep.subr.bf16.mxu0 0
      %7877 = vmatpush1.bf16.msra.mxu0 %v7813
      %7878 = vmatprep.subr.bf16.mxu0 0
      %7879 = vmatpush1.bf16.msra.mxu0 %v7814
      %7880 = vmatprep.subr.bf16.mxu0 0
      %7881 = vmatpush1.bf16.msra.mxu0 %v7815
      %7882 = vmatprep.subr.bf16.mxu0 0
      %7883 = vmatpush1.bf16.msra.mxu0 0
      %7884 = vmatprep.subr.bf16.mxu0 0
      %7885 = vmatpush1.bf16.msra.mxu0 0
      %7886 = vmatprep.subr.bf16.mxu0 0
      %7887 = vmatpush1.bf16.msra.mxu0 0
      %7888 = vmatprep.subr.bf16.mxu0 0
      %7889 = vmatpush1.bf16.msra.mxu0 0
      %7890 = vmatprep.subr.bf16.mxu0 0
      %7891 = vmatpush1.bf16.msra.mxu0 0
      %7892 = vmatprep.subr.bf16.mxu0 0
      %7893 = vmatpush1.bf16.msra.mxu0 0
      %7894 = vmatprep.subr.bf16.mxu0 0
      %7895 = vmatpush1.bf16.msra.mxu0 0
      %7896 = vmatprep.subr.bf16.mxu0 0
      %7897 = vmatpush1.bf16.msra.mxu0 0
      %7898 = vmatprep.subr.bf16.mxu0 0
      %7899 = vmatpush1.bf16.msra.mxu0 0
      %7900 = vmatprep.subr.bf16.mxu0 0
      %7901 = vmatpush1.bf16.msra.mxu0 0
      %7902 = vmatprep.subr.bf16.mxu0 0
      %7903 = vmatpush1.bf16.msra.mxu0 0
      %7904 = vmatprep.subr.bf16.mxu0 0
      %7905 = vmatpush1.bf16.msra.mxu0 0
      %7906 = vmatprep.mubr.bf16.mxu0 0
      %7907 = vmatmul.mubr.bf16.gmra.mrb[0].mxu0 %v7821
      %v7908 = vpop.f32.mrb[0].mxu0
      %v7909 = vadd.f32 0.0, %v7908
      %v7910 = vpop.f32.mrb[0].mxu0
      %v7911 = vpop.f32.mrb[0].mxu0
      %v7912 = vadd.f32 0.0, %v7911
      %v7913 = vpop.f32.mrb[0].mxu0
      %7914 = vmatprep.mubr.bf16.mxu0 0
      %7915 = vmatmul.mubr.bf16.gmra.mrb[0].mxu0 %v7824
      %v7916 = vpop.f32.mrb[0].mxu0
      %v7917 = vadd.f32 0.0, %v7916
      %v7918 = vpop.f32.mrb[0].mxu0
      %v7919 = vpop.f32.mrb[0].mxu0
      %v7920 = vadd.f32 0.0, %v7919
      %v7921 = vpop.f32.mrb[0].mxu0
      %7922 = vmatprep.mubr.bf16.mxu0 0
      %7923 = vmatmul.mubr.bf16.gmra.mrb[0].mxu0 %v7827
      %v7924 = vpop.f32.mrb[0].mxu0
      %v7925 = vadd.f32 0.0, %v7924
      %v7926 = vpop.f32.mrb[0].mxu0
      %v7927 = vpop.f32.mrb[0].mxu0
      %v7928 = vadd.f32 0.0, %v7927
      %v7929 = vpop.f32.mrb[0].mxu0
      %7930 = vmatprep.mubr.bf16.mxu0 0
      %7931 = vmatmul.mubr.bf16.gmra.mrb[0].mxu0 %v7830
      %v7932 = vpop.f32.mrb[0].mxu0
      %v7933 = vadd.f32 0.0, %v7932
      %v7934 = vpop.f32.mrb[0].mxu0
      %v7935 = vpop.f32.mrb[0].mxu0
      %v7936 = vadd.f32 0.0, %v7935
      %v7937 = vpop.f32.mrb[0].mxu0
      %7938 = vmatprep.mubr.bf16.mxu0 0
      %7939 = vmatmul.mubr.bf16.gmra.mrb[0].mxu0 %v7833
      %v7940 = vpop.f32.mrb[0].mxu0
      %v7941 = vadd.f32 0.0, %v7940
      %v7942 = vpop.f32.mrb[0].mxu0
      %v7943 = vpop.f32.mrb[0].mxu0
      %v7944 = vadd.f32 0.0, %v7943
      %v7945 = vpop.f32.mrb[0].mxu0
      %7946 = vmatprep.mubr.bf16.mxu0 0
      %7947 = vmatmul.mubr.bf16.gmra.mrb[0].mxu0 %v7836
      %v7948 = vpop.f32.mrb[0].mxu0
      %v7949 = vadd.f32 0.0, %v7948
      %v7950 = vpop.f32.mrb[0].mxu0
      %v7951 = vpop.f32.mrb[0].mxu0
      %v7952 = vadd.f32 0.0, %v7951
      %v7953 = vpop.f32.mrb[0].mxu0
      %7954 = vmatprep.mubr.bf16.mxu0 0
      %7955 = vmatmul.mubr.bf16.gmra.mrb[0].mxu0 %v7839
      %v7956 = vpop.f32.mrb[0].mxu0
      %v7957 = vadd.f32 0.0, %v7956
      %v7958 = vpop.f32.mrb[0].mxu0
      %v7959 = vpop.f32.mrb[0].mxu0
      %v7960 = vadd.f32 0.0, %v7959
      %v7961 = vpop.f32.mrb[0].mxu0
      %7962 = vmatprep.mubr.bf16.mxu0 0
      %7963 = vmatmul.mubr.bf16.gmra.mrb[0].mxu0 %v7842
      %v7964 = vpop.f32.mrb[0].mxu0
      %v7965 = vadd.f32 0.0, %v7964
      %v7966 = vpop.f32.mrb[0].mxu0
      %v7967 = vpop.f32.mrb[0].mxu0
      %v7968 = vadd.f32 0.0, %v7967
      %v7969 = vpop.f32.mrb[0].mxu0
      %7970 = vmatprep.mubr.bf16.mxu0 0
      %7971 = vmatmul.mubr.bf16.gmra.mrb[0].mxu0 %v7845
      %v7972 = vpop.f32.mrb[0].mxu0
      %v7973 = vadd.f32 0.0, %v7972
      %v7974 = vpop.f32.mrb[0].mxu0
      %v7975 = vpop.f32.mrb[0].mxu0
      %v7976 = vadd.f32 0.0, %v7975
      %v7977 = vpop.f32.mrb[0].mxu0
      %7978 = vmatprep.mubr.bf16.mxu0 0
      %7979 = vmatmul.mubr.bf16.gmra.mrb[0].mxu0 %v7848
      %v7980 = vpop.f32.mrb[0].mxu0
      %v7981 = vadd.f32 0.0, %v7980
      %v7982 = vpop.f32.mrb[0].mxu0
      %v7983 = vpop.f32.mrb[0].mxu0
      %v7984 = vadd.f32 0.0, %v7983
      %v7985 = vpop.f32.mrb[0].mxu0
      %7986 = vmatprep.mubr.bf16.mxu0 0
      %7987 = vmatmul.mubr.bf16.gmra.mrb[0].mxu0 %v7851
      %v7988 = vpop.f32.mrb[0].mxu0
      %v7989 = vadd.f32 0.0, %v7988
      %v7990 = vpop.f32.mrb[0].mxu0
      %v7991 = vpop.f32.mrb[0].mxu0
      %v7992 = vadd.f32 0.0, %v7991
      %v7993 = vpop.f32.mrb[0].mxu0
      %7994 = vmatprep.mubr.bf16.mxu0 0
      %7995 = vmatmul.mubr.bf16.gmra.mrb[0].mxu0 %v7854
      %v7996 = vpop.f32.mrb[0].mxu0
      %v7997 = vadd.f32 0.0, %v7996
      %v7998 = vpop.f32.mrb[0].mxu0
      %v7999 = vpop.f32.mrb[0].mxu0
      %v8000 = vadd.f32 0.0, %v7999
      %v8001 = vpop.f32.mrb[0].mxu0
      %8002 = vmatprep.mubr.bf16.mxu0 0
      %8003 = vmatmul.mubr.bf16.gmra.mrb[0].mxu0 %v7857
      %v8004 = vpop.f32.mrb[0].mxu0
      %v8005 = vadd.f32 0.0, %v8004
      %v8006 = vpop.f32.mrb[0].mxu0
      %v8007 = vpop.f32.mrb[0].mxu0
      %v8008 = vadd.f32 0.0, %v8007
      %v8009 = vpop.f32.mrb[0].mxu0
      %8010 = vmatprep.mubr.bf16.mxu0 0
      %8011 = vmatmul.mubr.bf16.gmra.mrb[0].mxu0 %v7860
      %v8012 = vpop.f32.mrb[0].mxu0
      %v8013 = vadd.f32 0.0, %v8012
      %v8014 = vpop.f32.mrb[0].mxu0
      %v8015 = vpop.f32.mrb[0].mxu0
      %v8016 = vadd.f32 0.0, %v8015
      %v8017 = vpop.f32.mrb[0].mxu0
      %8018 = vmatprep.mubr.bf16.mxu0 0
      %8019 = vmatmul.mubr.bf16.gmra.mrb[0].mxu0 %v7863
      %v8020 = vpop.f32.mrb[0].mxu0
      %v8021 = vadd.f32 0.0, %v8020
      %v8022 = vpop.f32.mrb[0].mxu0
      %v8023 = vpop.f32.mrb[0].mxu0
      %v8024 = vadd.f32 0.0, %v8023
      %v8025 = vpop.f32.mrb[0].mxu0
      %8026 = vmatprep.mubr.bf16.mxu0 0
      %8027 = vmatmul.mubr.bf16.gmra.mrb[0].mxu0 %v7866
      %v8028 = vpop.f32.mrb[0].mxu0
      %v8029 = vadd.f32 0.0, %v8028
      %v8030 = vpop.f32.mrb[0].mxu0
      %v8031 = vpop.f32.mrb[0].mxu0
      %v8032 = vadd.f32 0.0, %v8031
      %v8033 = vpop.f32.mrb[0].mxu0
      %8034 = vmatprep.mubr.bf16.mxu0 0
      %8035 = vmatmul.mubr.bf16.gmra.mrb[0].mxu0 %v7869
      %v8036 = vpop.f32.mrb[0].mxu0
      %v8037 = vadd.f32 0.0, %v8036
      %v8038 = vpop.f32.mrb[0].mxu0
      %v8039 = vpop.f32.mrb[0].mxu0
      %v8040 = vadd.f32 0.0, %v8039
      %v8041 = vpop.f32.mrb[0].mxu0
      %8042 = vmatprep.mubr.bf16.mxu0 0
      %8043 = vmatmul.mubr.bf16.gmra.mrb[0].mxu0 %v7872
      %v8044 = vpop.f32.mrb[0].mxu0
      %v8045 = vadd.f32 0.0, %v8044
      %v8046 = vpop.f32.mrb[0].mxu0
      %v8047 = vpop.f32.mrb[0].mxu0
      %v8048 = vadd.f32 0.0, %v8047
      %v8049 = vpop.f32.mrb[0].mxu0
      %8050 = vdwg.mxu0
      %v8051 = vadd.f32 %v7473, %v7909
      %v8052 = vadd.f32 %v7474, %v7912
      %v8053 = vadd.f32 %v7475, %v7917
      %v8054 = vadd.f32 %v7476, %v7920
      %v8055 = vadd.f32 %v7477, %v7925
      %v8056 = vadd.f32 %v7478, %v7928
      %v8057 = vadd.f32 %v7479, %v7933
      %v8058 = vadd.f32 %v7480, %v7936
      %v8059 = vadd.f32 %v7481, %v7941
      %v8060 = vadd.f32 %v7482, %v7944
      %v8061 = vadd.f32 %v7483, %v7949
      %v8062 = vadd.f32 %v7484, %v7952
      %v8063 = vadd.f32 %v7485, %v7957
      %v8064 = vadd.f32 %v7486, %v7960
      %v8065 = vadd.f32 %v7487, %v7965
      %v8066 = vadd.f32 %v7488, %v7968
      %v8067 = vadd.f32 %v7489, %v7973
      %v8068 = vadd.f32 %v7490, %v7976
      %v8069 = vadd.f32 %v7491, %v7981
      %v8070 = vadd.f32 %v7492, %v7984
      %v8071 = vadd.f32 %v7493, %v7989
      %v8072 = vadd.f32 %v7494, %v7992
      %v8073 = vadd.f32 %v7495, %v7997
      %v8074 = vadd.f32 %v7496, %v8000
      %v8075 = vadd.f32 %v7497, %v8005
      %v8076 = vadd.f32 %v7498, %v8008
      %v8077 = vadd.f32 %v7499, %v8013
      %v8078 = vadd.f32 %v7500, %v8016
      %v8079 = vadd.f32 %v7501, %v8021
      %v8080 = vadd.f32 %v7502, %v8024
      %v8081 = vadd.f32 %v7503, %v8029
      %v8082 = vadd.f32 %v7504, %v8032
      %v8083 = vadd.f32 %v7505, %v8037
      %v8084 = vadd.f32 %v7506, %v8040
      %v8085 = vadd.f32 %v7507, %v8045
      %v8086 = vadd.f32 %v7508, %v8048
      %v8087 = vld [vmem:[#allocation3 + $0x18] sm:$0xf]
      %v8088 = vld [vmem:[#allocation3 + $0x1c] sm:$0xf]
      %v8089 = vld [vmem:[#allocation3 + $0x20] sm:$0xf]
      %v8090 = vld [vmem:[#allocation3 + $0x24] sm:$0xf]
      %v8091 = vld [vmem:[#allocation3 + $0x28] sm:$0xf]
      %v8092 = vld [vmem:[#allocation3 + $0x2c] sm:$0xf]
      %v8093 = vld [vmem:[#allocation3 + $0x30] sm:$0xf]
      %v8094 = vld [vmem:[#allocation3 + $0x34] sm:$0xf]
      %v8095 = vld [vmem:[#allocation3 + $0x38] sm:$0xf]
      %v8096 = vld [vmem:[#allocation3 + $0x3c] sm:$0xf]
      %v8097 = vld [vmem:[#allocation3 + $0x40] sm:$0xf]
      %v8098 = vld [vmem:[#allocation3 + $0x44] sm:$0xf]
      %v8099 = vld [vmem:[#allocation3 + $0x48] sm:$0xf]
      %v8100 = vld [vmem:[#allocation3 + $0x4c] sm:$0xf]
      %v8101 = vld [vmem:[#allocation3 + $0x50] sm:$0xf]
      %v8102 = vld [vmem:[#allocation3 + $0x54] sm:$0xf]
      %v8103 = vld [vmem:[#allocation3 + $0x58] sm:$0xf]
      %v8104 = vld [vmem:[#allocation3 + $0x5c] sm:$0xf]
      %v8105 = vld [vmem:[#allocation3 + $0x60] sm:$0xf]
      %v8106 = vld [vmem:[#allocation3 + $0x64] sm:$0xf]
      %v8107 = vld [vmem:[#allocation3 + $0x68] sm:$0xf]
      %v8108 = vld [vmem:[#allocation3 + $0x6c] sm:$0xf]
      %v8109 = vld [vmem:[#allocation3 + $0x70] sm:$0xf]
      %v8110 = vld [vmem:[#allocation3 + $0x74] sm:$0xf]
      %v8111 = vld [vmem:[#allocation3 + $0x78] sm:$0xf]
      %v8112 = vld [vmem:[#allocation3 + $0x7c] sm:$0xf]
      %v8113 = vld [vmem:[#allocation3 + $0x80] sm:$0xf]
      %v8114 = vld [vmem:[#allocation3 + $0x84] sm:$0xf]
      %v8115 = vld [vmem:[#allocation3 + $0x88] sm:$0xf]
      %v8116 = vld [vmem:[#allocation3 + $0x8c] sm:$0xf]
      %v8117 = vld [vmem:[#allocation3 + $0x90] sm:$0xf]
      %v8118 = vld [vmem:[#allocation3 + $0x94] sm:$0xf]
      %v8119 = vld [vmem:[#allocation3 + $0x98] sm:$0xf]
      %v8120 = vld [vmem:[#allocation3 + $0x9c] sm:$0xf]
      %v8121 = vld [vmem:[#allocation3 + $0xa0] sm:$0xf]
      %v8122 = vld [vmem:[#allocation3 + $0xa4] sm:$0xf]
      %v8123 = vld [vmem:[#allocation3 + $0xa8] sm:$0x1]
      %s8124 = scalar_lea.vmem %s3, 192
      %v8125 = vld [vmem:[%s8124] sm:$0xf]
      %v8126 = vld [vmem:[%s8124 + $0x4] sm:$0xf]
      %v8127 = vld [vmem:[%s8124 + $0x8] sm:$0xf]
      %v8128 = vld [vmem:[%s8124 + $0xc] sm:$0xf]
      %v8129 = vld [vmem:[%s8124 + $0x10] sm:$0xf]
      %v8130 = vld [vmem:[%s8124 + $0x14] sm:$0xf]
      %v8131 = vld [vmem:[%s8124 + $0x18] sm:$0xf]
      %v8132 = vld [vmem:[%s8124 + $0x1c] sm:$0xf]
      %v8170 = vunpack.c.l.b16 %v8087
      %v8171 = vunpack.c.l.b16 %v8088
      %v8172 = vunpack.c.l.b16 %v8089
      %v8173 = vunpack.c.l.b16 %v8090
      %v8174 = vunpack.c.l.b16 %v8091
      %v8175 = vunpack.c.l.b16 %v8092
      %v8176 = vunpack.c.l.b16 %v8093
      %v8177 = vunpack.c.l.b16 %v8094
      %v8178 = vunpack.c.l.b16 %v8095
      %v8179 = vunpack.c.l.b16 %v8096
      %v8180 = vunpack.c.l.b16 %v8097
      %v8181 = vunpack.c.l.b16 %v8098
      %v8182 = vunpack.c.l.b16 %v8099
      %v8183 = vunpack.c.l.b16 %v8100
      %v8184 = vunpack.c.l.b16 %v8101
      %v8185 = vunpack.c.l.b16 %v8102
      %v8186 = vunpack.c.l.b16 %v8103
      %v8187 = vunpack.c.l.b16 %v8104
      %v8188 = vunpack.c.l.b16 %v8105
      %v8189 = vunpack.c.l.b16 %v8106
      %v8190 = vunpack.c.l.b16 %v8107
      %v8191 = vunpack.c.l.b16 %v8108
      %v8192 = vunpack.c.l.b16 %v8109
      %v8193 = vunpack.c.l.b16 %v8110
      %v8194 = vunpack.c.l.b16 %v8111
      %v8195 = vunpack.c.l.b16 %v8112
      %v8196 = vunpack.c.l.b16 %v8113
      %v8197 = vunpack.c.l.b16 %v8114
      %v8198 = vunpack.c.l.b16 %v8115
      %v8199 = vunpack.c.l.b16 %v8116
      %v8200 = vunpack.c.l.b16 %v8117
      %v8201 = vunpack.c.l.b16 %v8118
      %v8202 = vunpack.c.l.b16 %v8119
      %v8203 = vunpack.c.l.b16 %v8120
      %v8204 = vunpack.c.l.b16 %v8121
      %v8205 = vunpack.c.l.b16 %v8122
      %v8206 = vunpack.c.l.b16 %v8123
      %v8207 = vpack.c.b16 %v8171, %v8170
      %v8208 = vpack.c.b16 %v8173, %v8172
      %v8209 = vpack.c.b16 %v8175, %v8174
      %v8210 = vpack.c.b16 %v8177, %v8176
      %v8211 = vpack.c.b16 %v8179, %v8178
      %v8212 = vpack.c.b16 %v8181, %v8180
      %v8213 = vpack.c.b16 %v8183, %v8182
      %v8214 = vpack.c.b16 %v8185, %v8184
      %v8215 = vpack.c.b16 %v8187, %v8186
      %v8216 = vpack.c.b16 %v8189, %v8188
      %v8217 = vpack.c.b16 %v8191, %v8190
      %v8218 = vpack.c.b16 %v8193, %v8192
      %v8219 = vpack.c.b16 %v8195, %v8194
      %v8220 = vpack.c.b16 %v8197, %v8196
      %v8221 = vpack.c.b16 %v8199, %v8198
      %v8222 = vpack.c.b16 %v8201, %v8200
      %v8223 = vpack.c.b16 %v8203, %v8202
      %v8224 = vpack.c.b16 %v8205, %v8204
      %v8225 = vpack.c.b16 %v8206, %v8206
      %v8227 = vshrl.u32 %v8207, 16
      %v8229 = vshll.u32 %v8207, 16
      %v8231 = vrot.slane %v8229, 1
      %v8232 = vor.u32 %v8227, %v8231
      %v8234 = vshll.u32 %v8208, 16
      %v8236 = vrot.slane %v8234, 1
      %v8237 = vsel %vm3380, %v8232, %v8236
      %v8238 = vshrl.u32 %v8208, 16
      %v8240 = vor.u32 %v8238, %v8236
      %v8242 = vshll.u32 %v8209, 16
      %v8244 = vrot.slane %v8242, 1
      %v8245 = vsel %vm3380, %v8240, %v8244
      %v8246 = vshrl.u32 %v8209, 16
      %v8248 = vor.u32 %v8246, %v8244
      %v8250 = vshll.u32 %v8210, 16
      %v8252 = vrot.slane %v8250, 1
      %v8253 = vsel %vm3380, %v8248, %v8252
      %v8254 = vshrl.u32 %v8210, 16
      %v8256 = vor.u32 %v8254, %v8252
      %v8258 = vshll.u32 %v8211, 16
      %v8260 = vrot.slane %v8258, 1
      %v8261 = vsel %vm3380, %v8256, %v8260
      %v8262 = vshrl.u32 %v8211, 16
      %v8264 = vor.u32 %v8262, %v8260
      %v8266 = vshll.u32 %v8212, 16
      %v8268 = vrot.slane %v8266, 1
      %v8269 = vsel %vm3380, %v8264, %v8268
      %v8270 = vshrl.u32 %v8212, 16
      %v8272 = vor.u32 %v8270, %v8268
      %v8274 = vshll.u32 %v8213, 16
      %v8276 = vrot.slane %v8274, 1
      %v8277 = vsel %vm3380, %v8272, %v8276
      %v8278 = vshrl.u32 %v8213, 16
      %v8280 = vor.u32 %v8278, %v8276
      %v8282 = vshll.u32 %v8214, 16
      %v8284 = vrot.slane %v8282, 1
      %v8285 = vsel %vm3380, %v8280, %v8284
      %v8286 = vshrl.u32 %v8214, 16
      %v8288 = vor.u32 %v8286, %v8284
      %v8290 = vshll.u32 %v8215, 16
      %v8292 = vrot.slane %v8290, 1
      %v8293 = vsel %vm3380, %v8288, %v8292
      %v8294 = vshrl.u32 %v8215, 16
      %v8296 = vor.u32 %v8294, %v8292
      %v8298 = vshll.u32 %v8216, 16
      %v8300 = vrot.slane %v8298, 1
      %v8301 = vsel %vm3380, %v8296, %v8300
      %v8302 = vshrl.u32 %v8216, 16
      %v8304 = vor.u32 %v8302, %v8300
      %v8306 = vshll.u32 %v8217, 16
      %v8308 = vrot.slane %v8306, 1
      %v8309 = vsel %vm3380, %v8304, %v8308
      %v8310 = vshrl.u32 %v8217, 16
      %v8312 = vor.u32 %v8310, %v8308
      %v8314 = vshll.u32 %v8218, 16
      %v8316 = vrot.slane %v8314, 1
      %v8317 = vsel %vm3380, %v8312, %v8316
      %v8318 = vshrl.u32 %v8218, 16
      %v8320 = vor.u32 %v8318, %v8316
      %v8322 = vshll.u32 %v8219, 16
      %v8324 = vrot.slane %v8322, 1
      %v8325 = vsel %vm3380, %v8320, %v8324
      %v8326 = vshrl.u32 %v8219, 16
      %v8328 = vor.u32 %v8326, %v8324
      %v8330 = vshll.u32 %v8220, 16
      %v8332 = vrot.slane %v8330, 1
      %v8333 = vsel %vm3380, %v8328, %v8332
      %v8334 = vshrl.u32 %v8220, 16
      %v8336 = vor.u32 %v8334, %v8332
      %v8338 = vshll.u32 %v8221, 16
      %v8340 = vrot.slane %v8338, 1
      %v8341 = vsel %vm3380, %v8336, %v8340
      %v8342 = vshrl.u32 %v8221, 16
      %v8344 = vor.u32 %v8342, %v8340
      %v8346 = vshll.u32 %v8222, 16
      %v8348 = vrot.slane %v8346, 1
      %v8349 = vsel %vm3380, %v8344, %v8348
      %v8350 = vshrl.u32 %v8222, 16
      %v8352 = vor.u32 %v8350, %v8348
      %v8354 = vshll.u32 %v8223, 16
      %v8356 = vrot.slane %v8354, 1
      %v8357 = vsel %vm3380, %v8352, %v8356
      %v8358 = vshrl.u32 %v8223, 16
      %v8360 = vor.u32 %v8358, %v8356
      %v8362 = vshll.u32 %v8224, 16
      %v8364 = vrot.slane %v8362, 1
      %v8365 = vsel %vm3380, %v8360, %v8364
      %v8366 = vshrl.u32 %v8224, 16
      %v8368 = vor.u32 %v8366, %v8364
      %v8370 = vshll.u32 %v8225, 16
      %v8372 = vrot.slane %v8370, 1
      %v8373 = vsel %vm3380, %v8368, %v8372
      %v8382 = vunpack.c.l.b16 %v8125
      %v8383 = vunpack.c.l.b16 %v8126
      %v8384 = vunpack.c.l.b16 %v8127
      %v8385 = vunpack.c.l.b16 %v8128
      %v8386 = vunpack.c.l.b16 %v8129
      %v8387 = vunpack.c.l.b16 %v8130
      %v8388 = vunpack.c.l.b16 %v8131
      %v8389 = vunpack.c.l.b16 %v8132
      %v8390 = vpack.c.b16 %v8383, %v8382
      %v8391 = vpack.c.b16 %v8385, %v8384
      %v8392 = vpack.c.b16 %v8387, %v8386
      %v8393 = vpack.c.b16 %v8389, %v8388
      %v8399 = vsel %vm5542, %v8237, 0
      %v8402 = vsel %vm5542, %v8245, 0
      %v8405 = vsel %vm5542, %v8253, 0
      %v8408 = vsel %vm5542, %v8261, 0
      %v8411 = vsel %vm5542, %v8269, 0
      %v8414 = vsel %vm5542, %v8277, 0
      %v8417 = vsel %vm5542, %v8285, 0
      %v8420 = vsel %vm5542, %v8293, 0
      %v8423 = vsel %vm5542, %v8301, 0
      %v8426 = vsel %vm5542, %v8309, 0
      %v8429 = vsel %vm5542, %v8317, 0
      %v8432 = vsel %vm5542, %v8325, 0
      %v8435 = vsel %vm5542, %v8333, 0
      %v8438 = vsel %vm5542, %v8341, 0
      %v8441 = vsel %vm5542, %v8349, 0
      %v8444 = vsel %vm5542, %v8357, 0
      %v8447 = vsel %vm5542, %v8365, 0
      %v8450 = vsel %vm5542, %v8373, 0
      %8452 = vmatprep.subr.bf16.mxu0 0
      %8453 = vmatpush1.bf16.msra.mxu0 %v8390
      %8454 = vmatprep.subr.bf16.mxu0 0
      %8455 = vmatpush1.bf16.msra.mxu0 %v8391
      %8456 = vmatprep.subr.bf16.mxu0 0
      %8457 = vmatpush1.bf16.msra.mxu0 %v8392
      %8458 = vmatprep.subr.bf16.mxu0 0
      %8459 = vmatpush1.bf16.msra.mxu0 %v8393
      %8460 = vmatprep.subr.bf16.mxu0 0
      %8461 = vmatpush1.bf16.msra.mxu0 0
      %8462 = vmatprep.subr.bf16.mxu0 0
      %8463 = vmatpush1.bf16.msra.mxu0 0
      %8464 = vmatprep.subr.bf16.mxu0 0
      %8465 = vmatpush1.bf16.msra.mxu0 0
      %8466 = vmatprep.subr.bf16.mxu0 0
      %8467 = vmatpush1.bf16.msra.mxu0 0
      %8468 = vmatprep.subr.bf16.mxu0 0
      %8469 = vmatpush1.bf16.msra.mxu0 0
      %8470 = vmatprep.subr.bf16.mxu0 0
      %8471 = vmatpush1.bf16.msra.mxu0 0
      %8472 = vmatprep.subr.bf16.mxu0 0
      %8473 = vmatpush1.bf16.msra.mxu0 0
      %8474 = vmatprep.subr.bf16.mxu0 0
      %8475 = vmatpush1.bf16.msra.mxu0 0
      %8476 = vmatprep.subr.bf16.mxu0 0
      %8477 = vmatpush1.bf16.msra.mxu0 0
      %8478 = vmatprep.subr.bf16.mxu0 0
      %8479 = vmatpush1.bf16.msra.mxu0 0
      %8480 = vmatprep.subr.bf16.mxu0 0
      %8481 = vmatpush1.bf16.msra.mxu0 0
      %8482 = vmatprep.subr.bf16.mxu0 0
      %8483 = vmatpush1.bf16.msra.mxu0 0
      %8484 = vmatprep.mubr.bf16.mxu0 0
      %8485 = vmatmul.mubr.bf16.gmra.mrb[0].mxu0 %v8399
      %v8486 = vpop.f32.mrb[0].mxu0
      %v8487 = vadd.f32 0.0, %v8486
      %v8488 = vpop.f32.mrb[0].mxu0
      %v8489 = vpop.f32.mrb[0].mxu0
      %v8490 = vadd.f32 0.0, %v8489
      %v8491 = vpop.f32.mrb[0].mxu0
      %8492 = vmatprep.mubr.bf16.mxu0 0
      %8493 = vmatmul.mubr.bf16.gmra.mrb[0].mxu0 %v8402
      %v8494 = vpop.f32.mrb[0].mxu0
      %v8495 = vadd.f32 0.0, %v8494
      %v8496 = vpop.f32.mrb[0].mxu0
      %v8497 = vpop.f32.mrb[0].mxu0
      %v8498 = vadd.f32 0.0, %v8497
      %v8499 = vpop.f32.mrb[0].mxu0
      %8500 = vmatprep.mubr.bf16.mxu0 0
      %8501 = vmatmul.mubr.bf16.gmra.mrb[0].mxu0 %v8405
      %v8502 = vpop.f32.mrb[0].mxu0
      %v8503 = vadd.f32 0.0, %v8502
      %v8504 = vpop.f32.mrb[0].mxu0
      %v8505 = vpop.f32.mrb[0].mxu0
      %v8506 = vadd.f32 0.0, %v8505
      %v8507 = vpop.f32.mrb[0].mxu0
      %8508 = vmatprep.mubr.bf16.mxu0 0
      %8509 = vmatmul.mubr.bf16.gmra.mrb[0].mxu0 %v8408
      %v8510 = vpop.f32.mrb[0].mxu0
      %v8511 = vadd.f32 0.0, %v8510
      %v8512 = vpop.f32.mrb[0].mxu0
      %v8513 = vpop.f32.mrb[0].mxu0
      %v8514 = vadd.f32 0.0, %v8513
      %v8515 = vpop.f32.mrb[0].mxu0
      %8516 = vmatprep.mubr.bf16.mxu0 0
      %8517 = vmatmul.mubr.bf16.gmra.mrb[0].mxu0 %v8411
      %v8518 = vpop.f32.mrb[0].mxu0
      %v8519 = vadd.f32 0.0, %v8518
      %v8520 = vpop.f32.mrb[0].mxu0
      %v8521 = vpop.f32.mrb[0].mxu0
      %v8522 = vadd.f32 0.0, %v8521
      %v8523 = vpop.f32.mrb[0].mxu0
      %8524 = vmatprep.mubr.bf16.mxu0 0
      %8525 = vmatmul.mubr.bf16.gmra.mrb[0].mxu0 %v8414
      %v8526 = vpop.f32.mrb[0].mxu0
      %v8527 = vadd.f32 0.0, %v8526
      %v8528 = vpop.f32.mrb[0].mxu0
      %v8529 = vpop.f32.mrb[0].mxu0
      %v8530 = vadd.f32 0.0, %v8529
      %v8531 = vpop.f32.mrb[0].mxu0
      %8532 = vmatprep.mubr.bf16.mxu0 0
      %8533 = vmatmul.mubr.bf16.gmra.mrb[0].mxu0 %v8417
      %v8534 = vpop.f32.mrb[0].mxu0
      %v8535 = vadd.f32 0.0, %v8534
      %v8536 = vpop.f32.mrb[0].mxu0
      %v8537 = vpop.f32.mrb[0].mxu0
      %v8538 = vadd.f32 0.0, %v8537
      %v8539 = vpop.f32.mrb[0].mxu0
      %8540 = vmatprep.mubr.bf16.mxu0 0
      %8541 = vmatmul.mubr.bf16.gmra.mrb[0].mxu0 %v8420
      %v8542 = vpop.f32.mrb[0].mxu0
      %v8543 = vadd.f32 0.0, %v8542
      %v8544 = vpop.f32.mrb[0].mxu0
      %v8545 = vpop.f32.mrb[0].mxu0
      %v8546 = vadd.f32 0.0, %v8545
      %v8547 = vpop.f32.mrb[0].mxu0
      %8548 = vmatprep.mubr.bf16.mxu0 0
      %8549 = vmatmul.mubr.bf16.gmra.mrb[0].mxu0 %v8423
      %v8550 = vpop.f32.mrb[0].mxu0
      %v8551 = vadd.f32 0.0, %v8550
      %v8552 = vpop.f32.mrb[0].mxu0
      %v8553 = vpop.f32.mrb[0].mxu0
      %v8554 = vadd.f32 0.0, %v8553
      %v8555 = vpop.f32.mrb[0].mxu0
      %8556 = vmatprep.mubr.bf16.mxu0 0
      %8557 = vmatmul.mubr.bf16.gmra.mrb[0].mxu0 %v8426
      %v8558 = vpop.f32.mrb[0].mxu0
      %v8559 = vadd.f32 0.0, %v8558
      %v8560 = vpop.f32.mrb[0].mxu0
      %v8561 = vpop.f32.mrb[0].mxu0
      %v8562 = vadd.f32 0.0, %v8561
      %v8563 = vpop.f32.mrb[0].mxu0
      %8564 = vmatprep.mubr.bf16.mxu0 0
      %8565 = vmatmul.mubr.bf16.gmra.mrb[0].mxu0 %v8429
      %v8566 = vpop.f32.mrb[0].mxu0
      %v8567 = vadd.f32 0.0, %v8566
      %v8568 = vpop.f32.mrb[0].mxu0
      %v8569 = vpop.f32.mrb[0].mxu0
      %v8570 = vadd.f32 0.0, %v8569
      %v8571 = vpop.f32.mrb[0].mxu0
      %8572 = vmatprep.mubr.bf16.mxu0 0
      %8573 = vmatmul.mubr.bf16.gmra.mrb[0].mxu0 %v8432
      %v8574 = vpop.f32.mrb[0].mxu0
      %v8575 = vadd.f32 0.0, %v8574
      %v8576 = vpop.f32.mrb[0].mxu0
      %v8577 = vpop.f32.mrb[0].mxu0
      %v8578 = vadd.f32 0.0, %v8577
      %v8579 = vpop.f32.mrb[0].mxu0
      %8580 = vmatprep.mubr.bf16.mxu0 0
      %8581 = vmatmul.mubr.bf16.gmra.mrb[0].mxu0 %v8435
      %v8582 = vpop.f32.mrb[0].mxu0
      %v8583 = vadd.f32 0.0, %v8582
      %v8584 = vpop.f32.mrb[0].mxu0
      %v8585 = vpop.f32.mrb[0].mxu0
      %v8586 = vadd.f32 0.0, %v8585
      %v8587 = vpop.f32.mrb[0].mxu0
      %8588 = vmatprep.mubr.bf16.mxu0 0
      %8589 = vmatmul.mubr.bf16.gmra.mrb[0].mxu0 %v8438
      %v8590 = vpop.f32.mrb[0].mxu0
      %v8591 = vadd.f32 0.0, %v8590
      %v8592 = vpop.f32.mrb[0].mxu0
      %v8593 = vpop.f32.mrb[0].mxu0
      %v8594 = vadd.f32 0.0, %v8593
      %v8595 = vpop.f32.mrb[0].mxu0
      %8596 = vmatprep.mubr.bf16.mxu0 0
      %8597 = vmatmul.mubr.bf16.gmra.mrb[0].mxu0 %v8441
      %v8598 = vpop.f32.mrb[0].mxu0
      %v8599 = vadd.f32 0.0, %v8598
      %v8600 = vpop.f32.mrb[0].mxu0
      %v8601 = vpop.f32.mrb[0].mxu0
      %v8602 = vadd.f32 0.0, %v8601
      %v8603 = vpop.f32.mrb[0].mxu0
      %8604 = vmatprep.mubr.bf16.mxu0 0
      %8605 = vmatmul.mubr.bf16.gmra.mrb[0].mxu0 %v8444
      %v8606 = vpop.f32.mrb[0].mxu0
      %v8607 = vadd.f32 0.0, %v8606
      %v8608 = vpop.f32.mrb[0].mxu0
      %v8609 = vpop.f32.mrb[0].mxu0
      %v8610 = vadd.f32 0.0, %v8609
      %v8611 = vpop.f32.mrb[0].mxu0
      %8612 = vmatprep.mubr.bf16.mxu0 0
      %8613 = vmatmul.mubr.bf16.gmra.mrb[0].mxu0 %v8447
      %v8614 = vpop.f32.mrb[0].mxu0
      %v8615 = vadd.f32 0.0, %v8614
      %v8616 = vpop.f32.mrb[0].mxu0
      %v8617 = vpop.f32.mrb[0].mxu0
      %v8618 = vadd.f32 0.0, %v8617
      %v8619 = vpop.f32.mrb[0].mxu0
      %8620 = vmatprep.mubr.bf16.mxu0 0
      %8621 = vmatmul.mubr.bf16.gmra.mrb[0].mxu0 %v8450
      %v8622 = vpop.f32.mrb[0].mxu0
      %v8623 = vadd.f32 0.0, %v8622
      %v8624 = vpop.f32.mrb[0].mxu0
      %v8625 = vpop.f32.mrb[0].mxu0
      %v8626 = vadd.f32 0.0, %v8625
      %v8627 = vpop.f32.mrb[0].mxu0
      %8628 = vdwg.mxu0
      %v8629 = vadd.f32 %v8051, %v8487
      %v8630 = vadd.f32 %v8052, %v8490
      %v8631 = vadd.f32 %v8053, %v8495
      %v8632 = vadd.f32 %v8054, %v8498
      %v8633 = vadd.f32 %v8055, %v8503
      %v8634 = vadd.f32 %v8056, %v8506
      %v8635 = vadd.f32 %v8057, %v8511
      %v8636 = vadd.f32 %v8058, %v8514
      %v8637 = vadd.f32 %v8059, %v8519
      %v8638 = vadd.f32 %v8060, %v8522
      %v8639 = vadd.f32 %v8061, %v8527
      %v8640 = vadd.f32 %v8062, %v8530
      %v8641 = vadd.f32 %v8063, %v8535
      %v8642 = vadd.f32 %v8064, %v8538
      %v8643 = vadd.f32 %v8065, %v8543
      %v8644 = vadd.f32 %v8066, %v8546
      %v8645 = vadd.f32 %v8067, %v8551
      %v8646 = vadd.f32 %v8068, %v8554
      %v8647 = vadd.f32 %v8069, %v8559
      %v8648 = vadd.f32 %v8070, %v8562
      %v8649 = vadd.f32 %v8071, %v8567
      %v8650 = vadd.f32 %v8072, %v8570
      %v8651 = vadd.f32 %v8073, %v8575
      %v8652 = vadd.f32 %v8074, %v8578
      %v8653 = vadd.f32 %v8075, %v8583
      %v8654 = vadd.f32 %v8076, %v8586
      %v8655 = vadd.f32 %v8077, %v8591
      %v8656 = vadd.f32 %v8078, %v8594
      %v8657 = vadd.f32 %v8079, %v8599
      %v8658 = vadd.f32 %v8080, %v8602
      %v8659 = vadd.f32 %v8081, %v8607
      %v8660 = vadd.f32 %v8082, %v8610
      %v8661 = vadd.f32 %v8083, %v8615
      %v8662 = vadd.f32 %v8084, %v8618
      %v8663 = vadd.f32 %v8085, %v8623
      %v8664 = vadd.f32 %v8086, %v8626
      %v8665 = vld [vmem:[#allocation3 + $0x18] sm:$0xe]
      %s8666 = scalar_lea.vmem %s3, 224
      %v8667 = vld [vmem:[%s8666] sm:$0xf]
      %v8668 = vld [vmem:[%s8666 + $0x4] sm:$0xf]
      %v8669 = vld [vmem:[%s8666 + $0x8] sm:$0xf]
      %v8670 = vld [vmem:[%s8666 + $0xc] sm:$0xf]
      %v8671 = vld [vmem:[%s8666 + $0x10] sm:$0xf]
      %v8672 = vld [vmem:[%s8666 + $0x14] sm:$0xf]
      %v8673 = vld [vmem:[%s8666 + $0x18] sm:$0xf]
      %v8674 = vld [vmem:[%s8666 + $0x1c] sm:$0xf]
      %v8676 = vunpack.c.l.b16 %v8665
      %v8677 = vpack.c.b16 %v8171, %v8676
      %v8678 = vrot.slane %v8677, 1
      %v8679 = vrot.slane %v8208, 1
      %v8680 = vsel %vm4363, %v8678, %v8679
      %v8681 = vrot.slane %v8209, 1
      %v8682 = vsel %vm4363, %v8679, %v8681
      %v8683 = vrot.slane %v8210, 1
      %v8684 = vsel %vm4363, %v8681, %v8683
      %v8685 = vrot.slane %v8211, 1
      %v8686 = vsel %vm4363, %v8683, %v8685
      %v8687 = vrot.slane %v8212, 1
      %v8688 = vsel %vm4363, %v8685, %v8687
      %v8689 = vrot.slane %v8213, 1
      %v8690 = vsel %vm4363, %v8687, %v8689
      %v8691 = vrot.slane %v8214, 1
      %v8692 = vsel %vm4363, %v8689, %v8691
      %v8693 = vrot.slane %v8215, 1
      %v8694 = vsel %vm4363, %v8691, %v8693
      %v8695 = vrot.slane %v8216, 1
      %v8696 = vsel %vm4363, %v8693, %v8695
      %v8697 = vrot.slane %v8217, 1
      %v8698 = vsel %vm4363, %v8695, %v8697
      %v8699 = vrot.slane %v8218, 1
      %v8700 = vsel %vm4363, %v8697, %v8699
      %v8701 = vrot.slane %v8219, 1
      %v8702 = vsel %vm4363, %v8699, %v8701
      %v8703 = vrot.slane %v8220, 1
      %v8704 = vsel %vm4363, %v8701, %v8703
      %v8705 = vrot.slane %v8221, 1
      %v8706 = vsel %vm4363, %v8703, %v8705
      %v8707 = vrot.slane %v8222, 1
      %v8708 = vsel %vm4363, %v8705, %v8707
      %v8709 = vrot.slane %v8223, 1
      %v8710 = vsel %vm4363, %v8707, %v8709
      %v8711 = vrot.slane %v8224, 1
      %v8712 = vsel %vm4363, %v8709, %v8711
      %v8713 = vrot.slane %v8225, 1
      %v8714 = vsel %vm4363, %v8711, %v8713
      %v8723 = vunpack.c.l.b16 %v8667
      %v8724 = vunpack.c.l.b16 %v8668
      %v8725 = vunpack.c.l.b16 %v8669
      %v8726 = vunpack.c.l.b16 %v8670
      %v8727 = vunpack.c.l.b16 %v8671
      %v8728 = vunpack.c.l.b16 %v8672
      %v8729 = vunpack.c.l.b16 %v8673
      %v8730 = vunpack.c.l.b16 %v8674
      %v8731 = vpack.c.b16 %v8724, %v8723
      %v8732 = vpack.c.b16 %v8726, %v8725
      %v8733 = vpack.c.b16 %v8728, %v8727
      %v8734 = vpack.c.b16 %v8730, %v8729
      %v8740 = vsel %vm5542, %v8680, 0
      %v8743 = vsel %vm5542, %v8682, 0
      %v8746 = vsel %vm5542, %v8684, 0
      %v8749 = vsel %vm5542, %v8686, 0
      %v8752 = vsel %vm5542, %v8688, 0
      %v8755 = vsel %vm5542, %v8690, 0
      %v8758 = vsel %vm5542, %v8692, 0
      %v8761 = vsel %vm5542, %v8694, 0
      %v8764 = vsel %vm5542, %v8696, 0
      %v8767 = vsel %vm5542, %v8698, 0
      %v8770 = vsel %vm5542, %v8700, 0
      %v8773 = vsel %vm5542, %v8702, 0
      %v8776 = vsel %vm5542, %v8704, 0
      %v8779 = vsel %vm5542, %v8706, 0
      %v8782 = vsel %vm5542, %v8708, 0
      %v8785 = vsel %vm5542, %v8710, 0
      %v8788 = vsel %vm5542, %v8712, 0
      %v8791 = vsel %vm5542, %v8714, 0
      %8793 = vmatprep.subr.bf16.mxu0 0
      %8794 = vmatpush1.bf16.msra.mxu0 %v8731
      %8795 = vmatprep.subr.bf16.mxu0 0
      %8796 = vmatpush1.bf16.msra.mxu0 %v8732
      %8797 = vmatprep.subr.bf16.mxu0 0
      %8798 = vmatpush1.bf16.msra.mxu0 %v8733
      %8799 = vmatprep.subr.bf16.mxu0 0
      %8800 = vmatpush1.bf16.msra.mxu0 %v8734
      %8801 = vmatprep.subr.bf16.mxu0 0
      %8802 = vmatpush1.bf16.msra.mxu0 0
      %8803 = vmatprep.subr.bf16.mxu0 0
      %8804 = vmatpush1.bf16.msra.mxu0 0
      %8805 = vmatprep.subr.bf16.mxu0 0
      %8806 = vmatpush1.bf16.msra.mxu0 0
      %8807 = vmatprep.subr.bf16.mxu0 0
      %8808 = vmatpush1.bf16.msra.mxu0 0
      %8809 = vmatprep.subr.bf16.mxu0 0
      %8810 = vmatpush1.bf16.msra.mxu0 0
      %8811 = vmatprep.subr.bf16.mxu0 0
      %8812 = vmatpush1.bf16.msra.mxu0 0
      %8813 = vmatprep.subr.bf16.mxu0 0
      %8814 = vmatpush1.bf16.msra.mxu0 0
      %8815 = vmatprep.subr.bf16.mxu0 0
      %8816 = vmatpush1.bf16.msra.mxu0 0
      %8817 = vmatprep.subr.bf16.mxu0 0
      %8818 = vmatpush1.bf16.msra.mxu0 0
      %8819 = vmatprep.subr.bf16.mxu0 0
      %8820 = vmatpush1.bf16.msra.mxu0 0
      %8821 = vmatprep.subr.bf16.mxu0 0
      %8822 = vmatpush1.bf16.msra.mxu0 0
      %8823 = vmatprep.subr.bf16.mxu0 0
      %8824 = vmatpush1.bf16.msra.mxu0 0
      %8825 = vmatprep.mubr.bf16.mxu0 0
      %8826 = vmatmul.mubr.bf16.gmra.mrb[0].mxu0 %v8740
      %v8827 = vpop.f32.mrb[0].mxu0
      %v8828 = vadd.f32 0.0, %v8827
      %v8829 = vpop.f32.mrb[0].mxu0
      %v8830 = vpop.f32.mrb[0].mxu0
      %v8831 = vadd.f32 0.0, %v8830
      %v8832 = vpop.f32.mrb[0].mxu0
      %8833 = vmatprep.mubr.bf16.mxu0 0
      %8834 = vmatmul.mubr.bf16.gmra.mrb[0].mxu0 %v8743
      %v8835 = vpop.f32.mrb[0].mxu0
      %v8836 = vadd.f32 0.0, %v8835
      %v8837 = vpop.f32.mrb[0].mxu0
      %v8838 = vpop.f32.mrb[0].mxu0
      %v8839 = vadd.f32 0.0, %v8838
      %v8840 = vpop.f32.mrb[0].mxu0
      %8841 = vmatprep.mubr.bf16.mxu0 0
      %8842 = vmatmul.mubr.bf16.gmra.mrb[0].mxu0 %v8746
      %v8843 = vpop.f32.mrb[0].mxu0
      %v8844 = vadd.f32 0.0, %v8843
      %v8845 = vpop.f32.mrb[0].mxu0
      %v8846 = vpop.f32.mrb[0].mxu0
      %v8847 = vadd.f32 0.0, %v8846
      %v8848 = vpop.f32.mrb[0].mxu0
      %8849 = vmatprep.mubr.bf16.mxu0 0
      %8850 = vmatmul.mubr.bf16.gmra.mrb[0].mxu0 %v8749
      %v8851 = vpop.f32.mrb[0].mxu0
      %v8852 = vadd.f32 0.0, %v8851
      %v8853 = vpop.f32.mrb[0].mxu0
      %v8854 = vpop.f32.mrb[0].mxu0
      %v8855 = vadd.f32 0.0, %v8854
      %v8856 = vpop.f32.mrb[0].mxu0
      %8857 = vmatprep.mubr.bf16.mxu0 0
      %8858 = vmatmul.mubr.bf16.gmra.mrb[0].mxu0 %v8752
      %v8859 = vpop.f32.mrb[0].mxu0
      %v8860 = vadd.f32 0.0, %v8859
      %v8861 = vpop.f32.mrb[0].mxu0
      %v8862 = vpop.f32.mrb[0].mxu0
      %v8863 = vadd.f32 0.0, %v8862
      %v8864 = vpop.f32.mrb[0].mxu0
      %8865 = vmatprep.mubr.bf16.mxu0 0
      %8866 = vmatmul.mubr.bf16.gmra.mrb[0].mxu0 %v8755
      %v8867 = vpop.f32.mrb[0].mxu0
      %v8868 = vadd.f32 0.0, %v8867
      %v8869 = vpop.f32.mrb[0].mxu0
      %v8870 = vpop.f32.mrb[0].mxu0
      %v8871 = vadd.f32 0.0, %v8870
      %v8872 = vpop.f32.mrb[0].mxu0
      %8873 = vmatprep.mubr.bf16.mxu0 0
      %8874 = vmatmul.mubr.bf16.gmra.mrb[0].mxu0 %v8758
      %v8875 = vpop.f32.mrb[0].mxu0
      %v8876 = vadd.f32 0.0, %v8875
      %v8877 = vpop.f32.mrb[0].mxu0
      %v8878 = vpop.f32.mrb[0].mxu0
      %v8879 = vadd.f32 0.0, %v8878
      %v8880 = vpop.f32.mrb[0].mxu0
      %8881 = vmatprep.mubr.bf16.mxu0 0
      %8882 = vmatmul.mubr.bf16.gmra.mrb[0].mxu0 %v8761
      %v8883 = vpop.f32.mrb[0].mxu0
      %v8884 = vadd.f32 0.0, %v8883
      %v8885 = vpop.f32.mrb[0].mxu0
      %v8886 = vpop.f32.mrb[0].mxu0
      %v8887 = vadd.f32 0.0, %v8886
      %v8888 = vpop.f32.mrb[0].mxu0
      %8889 = vmatprep.mubr.bf16.mxu0 0
      %8890 = vmatmul.mubr.bf16.gmra.mrb[0].mxu0 %v8764
      %v8891 = vpop.f32.mrb[0].mxu0
      %v8892 = vadd.f32 0.0, %v8891
      %v8893 = vpop.f32.mrb[0].mxu0
      %v8894 = vpop.f32.mrb[0].mxu0
      %v8895 = vadd.f32 0.0, %v8894
      %v8896 = vpop.f32.mrb[0].mxu0
      %8897 = vmatprep.mubr.bf16.mxu0 0
      %8898 = vmatmul.mubr.bf16.gmra.mrb[0].mxu0 %v8767
      %v8899 = vpop.f32.mrb[0].mxu0
      %v8900 = vadd.f32 0.0, %v8899
      %v8901 = vpop.f32.mrb[0].mxu0
      %v8902 = vpop.f32.mrb[0].mxu0
      %v8903 = vadd.f32 0.0, %v8902
      %v8904 = vpop.f32.mrb[0].mxu0
      %8905 = vmatprep.mubr.bf16.mxu0 0
      %8906 = vmatmul.mubr.bf16.gmra.mrb[0].mxu0 %v8770
      %v8907 = vpop.f32.mrb[0].mxu0
      %v8908 = vadd.f32 0.0, %v8907
      %v8909 = vpop.f32.mrb[0].mxu0
      %v8910 = vpop.f32.mrb[0].mxu0
      %v8911 = vadd.f32 0.0, %v8910
      %v8912 = vpop.f32.mrb[0].mxu0
      %8913 = vmatprep.mubr.bf16.mxu0 0
      %8914 = vmatmul.mubr.bf16.gmra.mrb[0].mxu0 %v8773
      %v8915 = vpop.f32.mrb[0].mxu0
      %v8916 = vadd.f32 0.0, %v8915
      %v8917 = vpop.f32.mrb[0].mxu0
      %v8918 = vpop.f32.mrb[0].mxu0
      %v8919 = vadd.f32 0.0, %v8918
      %v8920 = vpop.f32.mrb[0].mxu0
      %8921 = vmatprep.mubr.bf16.mxu0 0
      %8922 = vmatmul.mubr.bf16.gmra.mrb[0].mxu0 %v8776
      %v8923 = vpop.f32.mrb[0].mxu0
      %v8924 = vadd.f32 0.0, %v8923
      %v8925 = vpop.f32.mrb[0].mxu0
      %v8926 = vpop.f32.mrb[0].mxu0
      %v8927 = vadd.f32 0.0, %v8926
      %v8928 = vpop.f32.mrb[0].mxu0
      %8929 = vmatprep.mubr.bf16.mxu0 0
      %8930 = vmatmul.mubr.bf16.gmra.mrb[0].mxu0 %v8779
      %v8931 = vpop.f32.mrb[0].mxu0
      %v8932 = vadd.f32 0.0, %v8931
      %v8933 = vpop.f32.mrb[0].mxu0
      %v8934 = vpop.f32.mrb[0].mxu0
      %v8935 = vadd.f32 0.0, %v8934
      %v8936 = vpop.f32.mrb[0].mxu0
      %8937 = vmatprep.mubr.bf16.mxu0 0
      %8938 = vmatmul.mubr.bf16.gmra.mrb[0].mxu0 %v8782
      %v8939 = vpop.f32.mrb[0].mxu0
      %v8940 = vadd.f32 0.0, %v8939
      %v8941 = vpop.f32.mrb[0].mxu0
      %v8942 = vpop.f32.mrb[0].mxu0
      %v8943 = vadd.f32 0.0, %v8942
      %v8944 = vpop.f32.mrb[0].mxu0
      %8945 = vmatprep.mubr.bf16.mxu0 0
      %8946 = vmatmul.mubr.bf16.gmra.mrb[0].mxu0 %v8785
      %v8947 = vpop.f32.mrb[0].mxu0
      %v8948 = vadd.f32 0.0, %v8947
      %v8949 = vpop.f32.mrb[0].mxu0
      %v8950 = vpop.f32.mrb[0].mxu0
      %v8951 = vadd.f32 0.0, %v8950
      %v8952 = vpop.f32.mrb[0].mxu0
      %8953 = vmatprep.mubr.bf16.mxu0 0
      %8954 = vmatmul.mubr.bf16.gmra.mrb[0].mxu0 %v8788
      %v8955 = vpop.f32.mrb[0].mxu0
      %v8956 = vadd.f32 0.0, %v8955
      %v8957 = vpop.f32.mrb[0].mxu0
      %v8958 = vpop.f32.mrb[0].mxu0
      %v8959 = vadd.f32 0.0, %v8958
      %v8960 = vpop.f32.mrb[0].mxu0
      %8961 = vmatprep.mubr.bf16.mxu0 0
      %8962 = vmatmul.mubr.bf16.gmra.mrb[0].mxu0 %v8791
      %v8963 = vpop.f32.mrb[0].mxu0
      %v8964 = vadd.f32 0.0, %v8963
      %v8965 = vpop.f32.mrb[0].mxu0
      %v8966 = vpop.f32.mrb[0].mxu0
      %v8967 = vadd.f32 0.0, %v8966
      %v8968 = vpop.f32.mrb[0].mxu0
      %8969 = vdwg.mxu0
      %v8970 = vadd.f32 %v8629, %v8828
      %v8971 = vadd.f32 %v8630, %v8831
      %v8972 = vadd.f32 %v8631, %v8836
      %v8973 = vadd.f32 %v8632, %v8839
      %v8974 = vadd.f32 %v8633, %v8844
      %v8975 = vadd.f32 %v8634, %v8847
      %v8976 = vadd.f32 %v8635, %v8852
      %v8977 = vadd.f32 %v8636, %v8855
      %v8978 = vadd.f32 %v8637, %v8860
      %v8979 = vadd.f32 %v8638, %v8863
      %v8980 = vadd.f32 %v8639, %v8868
      %v8981 = vadd.f32 %v8640, %v8871
      %v8982 = vadd.f32 %v8641, %v8876
      %v8983 = vadd.f32 %v8642, %v8879
      %v8984 = vadd.f32 %v8643, %v8884
      %v8985 = vadd.f32 %v8644, %v8887
      %v8986 = vadd.f32 %v8645, %v8892
      %v8987 = vadd.f32 %v8646, %v8895
      %v8988 = vadd.f32 %v8647, %v8900
      %v8989 = vadd.f32 %v8648, %v8903
      %v8990 = vadd.f32 %v8649, %v8908
      %v8991 = vadd.f32 %v8650, %v8911
      %v8992 = vadd.f32 %v8651, %v8916
      %v8993 = vadd.f32 %v8652, %v8919
      %v8994 = vadd.f32 %v8653, %v8924
      %v8995 = vadd.f32 %v8654, %v8927
      %v8996 = vadd.f32 %v8655, %v8932
      %v8997 = vadd.f32 %v8656, %v8935
      %v8998 = vadd.f32 %v8657, %v8940
      %v8999 = vadd.f32 %v8658, %v8943
      %v9000 = vadd.f32 %v8659, %v8948
      %v9001 = vadd.f32 %v8660, %v8951
      %v9002 = vadd.f32 %v8661, %v8956
      %v9003 = vadd.f32 %v8662, %v8959
      %v9004 = vadd.f32 %v8663, %v8964
      %v9005 = vadd.f32 %v8664, %v8967
      %v9006 = vld [vmem:[#allocation3 + $0xa8] sm:$0x3]
      %s9007 = scalar_lea.vmem %s3, 256
      %v9008 = vld [vmem:[%s9007] sm:$0xf]
      %v9009 = vld [vmem:[%s9007 + $0x4] sm:$0xf]
      %v9010 = vld [vmem:[%s9007 + $0x8] sm:$0xf]
      %v9011 = vld [vmem:[%s9007 + $0xc] sm:$0xf]
      %v9012 = vld [vmem:[%s9007 + $0x10] sm:$0xf]
      %v9013 = vld [vmem:[%s9007 + $0x14] sm:$0xf]
      %v9014 = vld [vmem:[%s9007 + $0x18] sm:$0xf]
      %v9015 = vld [vmem:[%s9007 + $0x1c] sm:$0xf]
      %v9017 = vunpack.c.l.b16 %v9006
      %v9018 = vpack.c.b16 %v9017, %v9017
      %v9020 = vshrl.u32 %v8677, 16
      %v9022 = vrot.slane %v9020, 1
      %v9023 = vshll.u32 %v8677, 16
      %v9025 = vrot.slane %v9023, 2
      %v9026 = vor.u32 %v9022, %v9025
      %v9027 = vrot.slane %v8238, 1
      %v9028 = vrot.slane %v8234, 2
      %v9029 = vor.u32 %v9027, %v9028
      %v9030 = vsel %vm4681, %v9026, %v9029
      %v9031 = vrot.slane %v8246, 1
      %v9032 = vrot.slane %v8242, 2
      %v9033 = vor.u32 %v9031, %v9032
      %v9034 = vsel %vm4681, %v9029, %v9033
      %v9035 = vrot.slane %v8254, 1
      %v9036 = vrot.slane %v8250, 2
      %v9037 = vor.u32 %v9035, %v9036
      %v9038 = vsel %vm4681, %v9033, %v9037
      %v9039 = vrot.slane %v8262, 1
      %v9040 = vrot.slane %v8258, 2
      %v9041 = vor.u32 %v9039, %v9040
      %v9042 = vsel %vm4681, %v9037, %v9041
      %v9043 = vrot.slane %v8270, 1
      %v9044 = vrot.slane %v8266, 2
      %v9045 = vor.u32 %v9043, %v9044
      %v9046 = vsel %vm4681, %v9041, %v9045
      %v9047 = vrot.slane %v8278, 1
      %v9048 = vrot.slane %v8274, 2
      %v9049 = vor.u32 %v9047, %v9048
      %v9050 = vsel %vm4681, %v9045, %v9049
      %v9051 = vrot.slane %v8286, 1
      %v9052 = vrot.slane %v8282, 2
      %v9053 = vor.u32 %v9051, %v9052
      %v9054 = vsel %vm4681, %v9049, %v9053
      %v9055 = vrot.slane %v8294, 1
      %v9056 = vrot.slane %v8290, 2
      %v9057 = vor.u32 %v9055, %v9056
      %v9058 = vsel %vm4681, %v9053, %v9057
      %v9059 = vrot.slane %v8302, 1
      %v9060 = vrot.slane %v8298, 2
      %v9061 = vor.u32 %v9059, %v9060
      %v9062 = vsel %vm4681, %v9057, %v9061
      %v9063 = vrot.slane %v8310, 1
      %v9064 = vrot.slane %v8306, 2
      %v9065 = vor.u32 %v9063, %v9064
      %v9066 = vsel %vm4681, %v9061, %v9065
      %v9067 = vrot.slane %v8318, 1
      %v9068 = vrot.slane %v8314, 2
      %v9069 = vor.u32 %v9067, %v9068
      %v9070 = vsel %vm4681, %v9065, %v9069
      %v9071 = vrot.slane %v8326, 1
      %v9072 = vrot.slane %v8322, 2
      %v9073 = vor.u32 %v9071, %v9072
      %v9074 = vsel %vm4681, %v9069, %v9073
      %v9075 = vrot.slane %v8334, 1
      %v9076 = vrot.slane %v8330, 2
      %v9077 = vor.u32 %v9075, %v9076
      %v9078 = vsel %vm4681, %v9073, %v9077
      %v9079 = vrot.slane %v8342, 1
      %v9080 = vrot.slane %v8338, 2
      %v9081 = vor.u32 %v9079, %v9080
      %v9082 = vsel %vm4681, %v9077, %v9081
      %v9083 = vrot.slane %v8350, 1
      %v9084 = vrot.slane %v8346, 2
      %v9085 = vor.u32 %v9083, %v9084
      %v9086 = vsel %vm4681, %v9081, %v9085
      %v9087 = vrot.slane %v8358, 1
      %v9088 = vrot.slane %v8354, 2
      %v9089 = vor.u32 %v9087, %v9088
      %v9090 = vsel %vm4681, %v9085, %v9089
      %v9091 = vrot.slane %v8366, 1
      %v9092 = vrot.slane %v8362, 2
      %v9093 = vor.u32 %v9091, %v9092
      %v9094 = vsel %vm4681, %v9089, %v9093
      %v9096 = vshrl.u32 %v9018, 16
      %v9098 = vrot.slane %v9096, 1
      %v9099 = vshll.u32 %v9018, 16
      %v9101 = vrot.slane %v9099, 2
      %v9102 = vor.u32 %v9098, %v9101
      %v9103 = vsel %vm4681, %v9093, %v9102
      %v9112 = vunpack.c.l.b16 %v9008
      %v9113 = vunpack.c.l.b16 %v9009
      %v9114 = vunpack.c.l.b16 %v9010
      %v9115 = vunpack.c.l.b16 %v9011
      %v9116 = vunpack.c.l.b16 %v9012
      %v9117 = vunpack.c.l.b16 %v9013
      %v9118 = vunpack.c.l.b16 %v9014
      %v9119 = vunpack.c.l.b16 %v9015
      %v9120 = vpack.c.b16 %v9113, %v9112
      %v9121 = vpack.c.b16 %v9115, %v9114
      %v9122 = vpack.c.b16 %v9117, %v9116
      %v9123 = vpack.c.b16 %v9119, %v9118
      %v9129 = vsel %vm5542, %v9030, 0
      %v9132 = vsel %vm5542, %v9034, 0
      %v9135 = vsel %vm5542, %v9038, 0
      %v9138 = vsel %vm5542, %v9042, 0
      %v9141 = vsel %vm5542, %v9046, 0
      %v9144 = vsel %vm5542, %v9050, 0
      %v9147 = vsel %vm5542, %v9054, 0
      %v9150 = vsel %vm5542, %v9058, 0
      %v9153 = vsel %vm5542, %v9062, 0
      %v9156 = vsel %vm5542, %v9066, 0
      %v9159 = vsel %vm5542, %v9070, 0
      %v9162 = vsel %vm5542, %v9074, 0
      %v9165 = vsel %vm5542, %v9078, 0
      %v9168 = vsel %vm5542, %v9082, 0
      %v9171 = vsel %vm5542, %v9086, 0
      %v9174 = vsel %vm5542, %v9090, 0
      %v9177 = vsel %vm5542, %v9094, 0
      %v9180 = vsel %vm5542, %v9103, 0
      %9182 = vmatprep.subr.bf16.mxu0 0
      %9183 = vmatpush1.bf16.msra.mxu0 %v9120
      %9184 = vmatprep.subr.bf16.mxu0 0
      %9185 = vmatpush1.bf16.msra.mxu0 %v9121
      %9186 = vmatprep.subr.bf16.mxu0 0
      %9187 = vmatpush1.bf16.msra.mxu0 %v9122
      %9188 = vmatprep.subr.bf16.mxu0 0
      %9189 = vmatpush1.bf16.msra.mxu0 %v9123
      %9190 = vmatprep.subr.bf16.mxu0 0
      %9191 = vmatpush1.bf16.msra.mxu0 0
      %9192 = vmatprep.subr.bf16.mxu0 0
      %9193 = vmatpush1.bf16.msra.mxu0 0
      %9194 = vmatprep.subr.bf16.mxu0 0
      %9195 = vmatpush1.bf16.msra.mxu0 0
      %9196 = vmatprep.subr.bf16.mxu0 0
      %9197 = vmatpush1.bf16.msra.mxu0 0
      %9198 = vmatprep.subr.bf16.mxu0 0
      %9199 = vmatpush1.bf16.msra.mxu0 0
      %9200 = vmatprep.subr.bf16.mxu0 0
      %9201 = vmatpush1.bf16.msra.mxu0 0
      %9202 = vmatprep.subr.bf16.mxu0 0
      %9203 = vmatpush1.bf16.msra.mxu0 0
      %9204 = vmatprep.subr.bf16.mxu0 0
      %9205 = vmatpush1.bf16.msra.mxu0 0
      %9206 = vmatprep.subr.bf16.mxu0 0
      %9207 = vmatpush1.bf16.msra.mxu0 0
      %9208 = vmatprep.subr.bf16.mxu0 0
      %9209 = vmatpush1.bf16.msra.mxu0 0
      %9210 = vmatprep.subr.bf16.mxu0 0
      %9211 = vmatpush1.bf16.msra.mxu0 0
      %9212 = vmatprep.subr.bf16.mxu0 0
      %9213 = vmatpush1.bf16.msra.mxu0 0
      %9214 = vmatprep.mubr.bf16.mxu0 0
      %9215 = vmatmul.mubr.bf16.gmra.mrb[0].mxu0 %v9129
      %v9216 = vpop.f32.mrb[0].mxu0
      %v9217 = vadd.f32 0.0, %v9216
      %v9218 = vpop.f32.mrb[0].mxu0
      %v9219 = vpop.f32.mrb[0].mxu0
      %v9220 = vadd.f32 0.0, %v9219
      %v9221 = vpop.f32.mrb[0].mxu0
      %9222 = vmatprep.mubr.bf16.mxu0 0
      %9223 = vmatmul.mubr.bf16.gmra.mrb[0].mxu0 %v9132
      %v9224 = vpop.f32.mrb[0].mxu0
      %v9225 = vadd.f32 0.0, %v9224
      %v9226 = vpop.f32.mrb[0].mxu0
      %v9227 = vpop.f32.mrb[0].mxu0
      %v9228 = vadd.f32 0.0, %v9227
      %v9229 = vpop.f32.mrb[0].mxu0
      %9230 = vmatprep.mubr.bf16.mxu0 0
      %9231 = vmatmul.mubr.bf16.gmra.mrb[0].mxu0 %v9135
      %v9232 = vpop.f32.mrb[0].mxu0
      %v9233 = vadd.f32 0.0, %v9232
      %v9234 = vpop.f32.mrb[0].mxu0
      %v9235 = vpop.f32.mrb[0].mxu0
      %v9236 = vadd.f32 0.0, %v9235
      %v9237 = vpop.f32.mrb[0].mxu0
      %9238 = vmatprep.mubr.bf16.mxu0 0
      %9239 = vmatmul.mubr.bf16.gmra.mrb[0].mxu0 %v9138
      %v9240 = vpop.f32.mrb[0].mxu0
      %v9241 = vadd.f32 0.0, %v9240
      %v9242 = vpop.f32.mrb[0].mxu0
      %v9243 = vpop.f32.mrb[0].mxu0
      %v9244 = vadd.f32 0.0, %v9243
      %v9245 = vpop.f32.mrb[0].mxu0
      %9246 = vmatprep.mubr.bf16.mxu0 0
      %9247 = vmatmul.mubr.bf16.gmra.mrb[0].mxu0 %v9141
      %v9248 = vpop.f32.mrb[0].mxu0
      %v9249 = vadd.f32 0.0, %v9248
      %v9250 = vpop.f32.mrb[0].mxu0
      %v9251 = vpop.f32.mrb[0].mxu0
      %v9252 = vadd.f32 0.0, %v9251
      %v9253 = vpop.f32.mrb[0].mxu0
      %9254 = vmatprep.mubr.bf16.mxu0 0
      %9255 = vmatmul.mubr.bf16.gmra.mrb[0].mxu0 %v9144
      %v9256 = vpop.f32.mrb[0].mxu0
      %v9257 = vadd.f32 0.0, %v9256
      %v9258 = vpop.f32.mrb[0].mxu0
      %v9259 = vpop.f32.mrb[0].mxu0
      %v9260 = vadd.f32 0.0, %v9259
      %v9261 = vpop.f32.mrb[0].mxu0
      %9262 = vmatprep.mubr.bf16.mxu0 0
      %9263 = vmatmul.mubr.bf16.gmra.mrb[0].mxu0 %v9147
      %v9264 = vpop.f32.mrb[0].mxu0
      %v9265 = vadd.f32 0.0, %v9264
      %v9266 = vpop.f32.mrb[0].mxu0
      %v9267 = vpop.f32.mrb[0].mxu0
      %v9268 = vadd.f32 0.0, %v9267
      %v9269 = vpop.f32.mrb[0].mxu0
      %9270 = vmatprep.mubr.bf16.mxu0 0
      %9271 = vmatmul.mubr.bf16.gmra.mrb[0].mxu0 %v9150
      %v9272 = vpop.f32.mrb[0].mxu0
      %v9273 = vadd.f32 0.0, %v9272
      %v9274 = vpop.f32.mrb[0].mxu0
      %v9275 = vpop.f32.mrb[0].mxu0
      %v9276 = vadd.f32 0.0, %v9275
      %v9277 = vpop.f32.mrb[0].mxu0
      %9278 = vmatprep.mubr.bf16.mxu0 0
      %9279 = vmatmul.mubr.bf16.gmra.mrb[0].mxu0 %v9153
      %v9280 = vpop.f32.mrb[0].mxu0
      %v9281 = vadd.f32 0.0, %v9280
      %v9282 = vpop.f32.mrb[0].mxu0
      %v9283 = vpop.f32.mrb[0].mxu0
      %v9284 = vadd.f32 0.0, %v9283
      %v9285 = vpop.f32.mrb[0].mxu0
      %9286 = vmatprep.mubr.bf16.mxu0 0
      %9287 = vmatmul.mubr.bf16.gmra.mrb[0].mxu0 %v9156
      %v9288 = vpop.f32.mrb[0].mxu0
      %v9289 = vadd.f32 0.0, %v9288
      %v9290 = vpop.f32.mrb[0].mxu0
      %v9291 = vpop.f32.mrb[0].mxu0
      %v9292 = vadd.f32 0.0, %v9291
      %v9293 = vpop.f32.mrb[0].mxu0
      %9294 = vmatprep.mubr.bf16.mxu0 0
      %9295 = vmatmul.mubr.bf16.gmra.mrb[0].mxu0 %v9159
      %v9296 = vpop.f32.mrb[0].mxu0
      %v9297 = vadd.f32 0.0, %v9296
      %v9298 = vpop.f32.mrb[0].mxu0
      %v9299 = vpop.f32.mrb[0].mxu0
      %v9300 = vadd.f32 0.0, %v9299
      %v9301 = vpop.f32.mrb[0].mxu0
      %9302 = vmatprep.mubr.bf16.mxu0 0
      %9303 = vmatmul.mubr.bf16.gmra.mrb[0].mxu0 %v9162
      %v9304 = vpop.f32.mrb[0].mxu0
      %v9305 = vadd.f32 0.0, %v9304
      %v9306 = vpop.f32.mrb[0].mxu0
      %v9307 = vpop.f32.mrb[0].mxu0
      %v9308 = vadd.f32 0.0, %v9307
      %v9309 = vpop.f32.mrb[0].mxu0
      %9310 = vmatprep.mubr.bf16.mxu0 0
      %9311 = vmatmul.mubr.bf16.gmra.mrb[0].mxu0 %v9165
      %v9312 = vpop.f32.mrb[0].mxu0
      %v9313 = vadd.f32 0.0, %v9312
      %v9314 = vpop.f32.mrb[0].mxu0
      %v9315 = vpop.f32.mrb[0].mxu0
      %v9316 = vadd.f32 0.0, %v9315
      %v9317 = vpop.f32.mrb[0].mxu0
      %9318 = vmatprep.mubr.bf16.mxu0 0
      %9319 = vmatmul.mubr.bf16.gmra.mrb[0].mxu0 %v9168
      %v9320 = vpop.f32.mrb[0].mxu0
      %v9321 = vadd.f32 0.0, %v9320
      %v9322 = vpop.f32.mrb[0].mxu0
      %v9323 = vpop.f32.mrb[0].mxu0
      %v9324 = vadd.f32 0.0, %v9323
      %v9325 = vpop.f32.mrb[0].mxu0
      %9326 = vmatprep.mubr.bf16.mxu0 0
      %9327 = vmatmul.mubr.bf16.gmra.mrb[0].mxu0 %v9171
      %v9328 = vpop.f32.mrb[0].mxu0
      %v9329 = vadd.f32 0.0, %v9328
      %v9330 = vpop.f32.mrb[0].mxu0
      %v9331 = vpop.f32.mrb[0].mxu0
      %v9332 = vadd.f32 0.0, %v9331
      %v9333 = vpop.f32.mrb[0].mxu0
      %9334 = vmatprep.mubr.bf16.mxu0 0
      %9335 = vmatmul.mubr.bf16.gmra.mrb[0].mxu0 %v9174
      %v9336 = vpop.f32.mrb[0].mxu0
      %v9337 = vadd.f32 0.0, %v9336
      %v9338 = vpop.f32.mrb[0].mxu0
      %v9339 = vpop.f32.mrb[0].mxu0
      %v9340 = vadd.f32 0.0, %v9339
      %v9341 = vpop.f32.mrb[0].mxu0
      %9342 = vmatprep.mubr.bf16.mxu0 0
      %9343 = vmatmul.mubr.bf16.gmra.mrb[0].mxu0 %v9177
      %v9344 = vpop.f32.mrb[0].mxu0
      %v9345 = vadd.f32 0.0, %v9344
      %v9346 = vpop.f32.mrb[0].mxu0
      %v9347 = vpop.f32.mrb[0].mxu0
      %v9348 = vadd.f32 0.0, %v9347
      %v9349 = vpop.f32.mrb[0].mxu0
      %9350 = vmatprep.mubr.bf16.mxu0 0
      %9351 = vmatmul.mubr.bf16.gmra.mrb[0].mxu0 %v9180
      %v9352 = vpop.f32.mrb[0].mxu0
      %v9353 = vadd.f32 0.0, %v9352
      %v9354 = vpop.f32.mrb[0].mxu0
      %v9355 = vpop.f32.mrb[0].mxu0
      %v9356 = vadd.f32 0.0, %v9355
      %v9357 = vpop.f32.mrb[0].mxu0
      %9358 = vdwg.mxu0
      %v9359 = vadd.f32 %v8970, %v9217
      %v9360 = vadd.f32 %v8971, %v9220
      %v9361 = vadd.f32 %v8972, %v9225
      %v9362 = vadd.f32 %v8973, %v9228
      %v9363 = vadd.f32 %v8974, %v9233
      %v9364 = vadd.f32 %v8975, %v9236
      %v9365 = vadd.f32 %v8976, %v9241
      %v9366 = vadd.f32 %v8977, %v9244
      %v9367 = vadd.f32 %v8978, %v9249
      %v9368 = vadd.f32 %v8979, %v9252
      %v9369 = vadd.f32 %v8980, %v9257
      %v9370 = vadd.f32 %v8981, %v9260
      %v9371 = vadd.f32 %v8982, %v9265
      %v9372 = vadd.f32 %v8983, %v9268
      %v9373 = vadd.f32 %v8984, %v9273
      %v9374 = vadd.f32 %v8985, %v9276
      %v9375 = vadd.f32 %v8986, %v9281
      %v9376 = vadd.f32 %v8987, %v9284
      %v9377 = vadd.f32 %v8988, %v9289
      %v9378 = vadd.f32 %v8989, %v9292
      %v9379 = vadd.f32 %v8990, %v9297
      %v9380 = vadd.f32 %v8991, %v9300
      %v9381 = vadd.f32 %v8992, %v9305
      %v9382 = vadd.f32 %v8993, %v9308
      %v9383 = vadd.f32 %v8994, %v9313
      %v9384 = vadd.f32 %v8995, %v9316
      %v9385 = vadd.f32 %v8996, %v9321
      %v9386 = vadd.f32 %v8997, %v9324
      %v9387 = vadd.f32 %v8998, %v9329
      %v9388 = vadd.f32 %v8999, %v9332
      %v9389 = vadd.f32 %v9000, %v9337
      %v9390 = vadd.f32 %v9001, %v9340
      %v9391 = vadd.f32 %v9002, %v9345
      %v9392 = vadd.f32 %v9003, %v9348
      %v9393 = vadd.f32 %v9004, %v9353
      %v9394 = vadd.f32 %v9005, %v9356
      %v9395 = vld [vmem:[%s4 + $0x2] sm:$0x1]
      %v9396 = vlaneseq
      %v9397 = vshrl.u32 %v9396, 7
      %v9398 = vsub.s32 0, %v9397
      %v9399 = vrot.slane %v9395, %v9398
      %v9400 = vadd.f32 %v9359, %v9399
      %v9401 = vadd.f32 %v9360, %v9399
      %v9402 = vadd.f32 %v9361, %v9399
      %v9403 = vadd.f32 %v9362, %v9399
      %v9404 = vadd.f32 %v9363, %v9399
      %v9405 = vadd.f32 %v9364, %v9399
      %v9406 = vadd.f32 %v9365, %v9399
      %v9407 = vadd.f32 %v9366, %v9399
      %v9408 = vadd.f32 %v9367, %v9399
      %v9409 = vadd.f32 %v9368, %v9399
      %v9410 = vadd.f32 %v9369, %v9399
      %v9411 = vadd.f32 %v9370, %v9399
      %v9412 = vadd.f32 %v9371, %v9399
      %v9413 = vadd.f32 %v9372, %v9399
      %v9414 = vadd.f32 %v9373, %v9399
      %v9415 = vadd.f32 %v9374, %v9399
      %v9416 = vadd.f32 %v9375, %v9399
      %v9417 = vadd.f32 %v9376, %v9399
      %v9418 = vadd.f32 %v9377, %v9399
      %v9419 = vadd.f32 %v9378, %v9399
      %v9420 = vadd.f32 %v9379, %v9399
      %v9421 = vadd.f32 %v9380, %v9399
      %v9422 = vadd.f32 %v9381, %v9399
      %v9423 = vadd.f32 %v9382, %v9399
      %v9424 = vadd.f32 %v9383, %v9399
      %v9425 = vadd.f32 %v9384, %v9399
      %v9426 = vadd.f32 %v9385, %v9399
      %v9427 = vadd.f32 %v9386, %v9399
      %v9428 = vadd.f32 %v9387, %v9399
      %v9429 = vadd.f32 %v9388, %v9399
      %v9430 = vadd.f32 %v9389, %v9399
      %v9431 = vadd.f32 %v9390, %v9399
      %v9432 = vadd.f32 %v9391, %v9399
      %v9433 = vadd.f32 %v9392, %v9399
      %v9434 = vadd.f32 %v9393, %v9399
      %v9435 = vadd.f32 %v9394, %v9399
      %v9436 = vmax.f32 %v9400, 0.0
      %v9437 = vmax.f32 %v9401, 0.0
      %v9438 = vmax.f32 %v9402, 0.0
      %v9439 = vmax.f32 %v9403, 0.0
      %v9440 = vmax.f32 %v9404, 0.0
      %v9441 = vmax.f32 %v9405, 0.0
      %v9442 = vmax.f32 %v9406, 0.0
      %v9443 = vmax.f32 %v9407, 0.0
      %v9444 = vmax.f32 %v9408, 0.0
      %v9445 = vmax.f32 %v9409, 0.0
      %v9446 = vmax.f32 %v9410, 0.0
      %v9447 = vmax.f32 %v9411, 0.0
      %v9448 = vmax.f32 %v9412, 0.0
      %v9449 = vmax.f32 %v9413, 0.0
      %v9450 = vmax.f32 %v9414, 0.0
      %v9451 = vmax.f32 %v9415, 0.0
      %v9452 = vmax.f32 %v9416, 0.0
      %v9453 = vmax.f32 %v9417, 0.0
      %v9454 = vmax.f32 %v9418, 0.0
      %v9455 = vmax.f32 %v9419, 0.0
      %v9456 = vmax.f32 %v9420, 0.0
      %v9457 = vmax.f32 %v9421, 0.0
      %v9458 = vmax.f32 %v9422, 0.0
      %v9459 = vmax.f32 %v9423, 0.0
      %v9460 = vmax.f32 %v9424, 0.0
      %v9461 = vmax.f32 %v9425, 0.0
      %v9462 = vmax.f32 %v9426, 0.0
      %v9463 = vmax.f32 %v9427, 0.0
      %v9464 = vmax.f32 %v9428, 0.0
      %v9465 = vmax.f32 %v9429, 0.0
      %v9466 = vmax.f32 %v9430, 0.0
      %v9467 = vmax.f32 %v9431, 0.0
      %v9468 = vmax.f32 %v9432, 0.0
      %v9469 = vmax.f32 %v9433, 0.0
      %v9470 = vmax.f32 %v9434, 0.0
      %v9471 = vmax.f32 %v9435, 0.0
      %9472 = vst [vmem:[%s251] sm:$0xff] %v9436
      %9473 = vst [vmem:[%s251 + $0x8] sm:$0xff] %v9437
      %9474 = vst [vmem:[%s251 + $0x10] sm:$0xff] %v9438
      %9475 = vst [vmem:[%s251 + $0x18] sm:$0xff] %v9439
      %9476 = vst [vmem:[%s251 + $0x20] sm:$0xff] %v9440
      %9477 = vst [vmem:[%s251 + $0x28] sm:$0xff] %v9441
      %9478 = vst [vmem:[%s251 + $0x30] sm:$0xff] %v9442
      %9479 = vst [vmem:[%s251 + $0x38] sm:$0xff] %v9443
      %9480 = vst [vmem:[%s251 + $0x40] sm:$0xff] %v9444
      %9481 = vst [vmem:[%s251 + $0x48] sm:$0xff] %v9445
      %9482 = vst [vmem:[%s251 + $0x50] sm:$0xff] %v9446
      %9483 = vst [vmem:[%s251 + $0x58] sm:$0xff] %v9447
      %9484 = vst [vmem:[%s251 + $0x60] sm:$0xff] %v9448
      %9485 = vst [vmem:[%s251 + $0x68] sm:$0xff] %v9449
      %9486 = vst [vmem:[%s251 + $0x70] sm:$0xff] %v9450
      %9487 = vst [vmem:[%s251 + $0x78] sm:$0xff] %v9451
      %9488 = vst [vmem:[%s251 + $0x80] sm:$0xff] %v9452
      %9489 = vst [vmem:[%s251 + $0x88] sm:$0xff] %v9453
      %9490 = vst [vmem:[%s251 + $0x90] sm:$0xff] %v9454
      %9491 = vst [vmem:[%s251 + $0x98] sm:$0xff] %v9455
      %9492 = vst [vmem:[%s251 + $0xa0] sm:$0xff] %v9456
      %9493 = vst [vmem:[%s251 + $0xa8] sm:$0xff] %v9457
      %9494 = vst [vmem:[%s251 + $0xb0] sm:$0xff] %v9458
      %9495 = vst [vmem:[%s251 + $0xb8] sm:$0xff] %v9459
      %9496 = vst [vmem:[%s251 + $0xc0] sm:$0xff] %v9460
      %9497 = vst [vmem:[%s251 + $0xc8] sm:$0xff] %v9461
      %9498 = vst [vmem:[%s251 + $0xd0] sm:$0xff] %v9462
      %9499 = vst [vmem:[%s251 + $0xd8] sm:$0xff] %v9463
      %9500 = vst [vmem:[%s251 + $0xe0] sm:$0xff] %v9464
      %9501 = vst [vmem:[%s251 + $0xe8] sm:$0xff] %v9465
      %9502 = vst [vmem:[%s251 + $0xf0] sm:$0xff] %v9466
      %9503 = vst [vmem:[%s251 + $0xf8] sm:$0xff] %v9467
      %9504 = vst [vmem:[%s251 + $0x100] sm:$0xff] %v9468
      %9505 = vst [vmem:[%s251 + $0x108] sm:$0xff] %v9469
      %9506 = vst [vmem:[%s251 + $0x110] sm:$0xff] %v9470
      %9507 = vst [vmem:[%s251 + $0x118] sm:$0xff] %v9471
      %p9508 = scmp.lt.s32.totalorder %s17, 1
      %s9509 = scalar_select %p9508, %s17, 1
      %s9510 = smul.addr %s9509, 36
      %s9511 = smul.addr %s9510, 8
      %s9512 = scalar_lea.vmem %s6, %s9511
      // Predicated region
      $region45: #{model_viz_forward.1} parent=43 // pred_check
        %p9513 = pneg %p166
      $region46: #{model_viz_forward.1} parent=43 // pred_check_branch
        %9515 = sbr.rel (%p9513) target = $region48
      $region47: #{model_viz_forward.1} parent=43 // pred_region
        _
      $region48: #{model_viz_forward.1} parent=43 // pred_fallthru
        _
    $region44: #{model_viz_forward.1} parent=5 // pred_fallthru
      _
    %p9516 = scmp.le.s32.totalorder 2, %s12
    // Predicated region
    $region49: #{model_viz_forward.1} parent=5 // pred_check
      %p9517 = pneg %p9516
    $region50: #{model_viz_forward.1} parent=5 // pred_check_branch
      %9519 = sbr.rel (%p9517) target = $region52
    $region51: #{model_viz_forward.1} parent=5 // pred_region
      %s9520 = ssub.s32 %s12, 2
      // Predicated region
      $region53: #{model_viz_forward.1} parent=51 // pred_check
        %p9521 = pneg %p172
      $region54: #{model_viz_forward.1} parent=51 // pred_check_branch
        %9523 = sbr.rel (%p9521) target = $region56
      $region55: #{model_viz_forward.1} parent=51 // pred_region
        %p9524 = scmp.lt.s32.totalorder %s18, 1
        %s9525 = scalar_select %p9524, %s18, 1
        %s9526 = smul.addr %s9525, 36
        %s9527 = smul.addr %s9526, 8
        %s9528 = scalar_lea.vmem %s6, %s9527
      $region56: #{model_viz_forward.1} parent=51 // pred_fallthru
        _
    $region52: #{model_viz_forward.1} parent=5 // pred_fallthru
      _
  $region6: #{model_viz_forward.1} parent=0 // loop_footer
    %s16 = sadd.s32 1, %s12
  $region7: #{model_viz_forward.1} parent=0 // loop_footer_branch
    %11 = sbr.rel target = $region3
  $region8: #{model_viz_forward.1} parent=0 // loop_exit
    _

</llo_original>
